<compile_context>
chip_gen: v7x
topology: tpu7x:2x2x1
jax: 0.10.0
libtpu: 0.0.40
codegen_flags: <defaults>
</compile_context>

<pallas_src>
import functools

import jax
import jax.numpy as jnp
from jax import lax
from jax.experimental import pallas as pl
from jax.experimental.pallas import tpu as pltpu

_VMEM_LIMIT = 48 * 1024 * 1024  # <= 48 MiB so v7x (64 MiB/TC) keeps headroom


# ----------------------------------------------------------------------------
# Helpers
# ----------------------------------------------------------------------------
def _pick_row_tile(H, target, *, even=False, mult=1):
    """Largest divisor of H that is <= target, preferring multiples of `mult`
    (and even when pooling).  Falls back gracefully."""
    target = max(1, min(H, target))
    best = None
    for th in range(target, 0, -1):
        if H % th:
            continue
        if even and th % 2:
            continue
        if th % mult == 0:
            return th
        if best is None:
            best = th
    return best if best is not None else H


# ----------------------------------------------------------------------------
# Pallas kernel: 3x3 'same' conv + bias + ReLU (+ optional fused 2x2 maxpool)
# ----------------------------------------------------------------------------
def _conv3x3_kernel(x_ref, w_ref, b_ref, o_ref, *, th, pool, flat):
    """One row tile of output.

    x_ref: (1, H, W, Cin)    whole (unpadded) image, VMEM-resident per batch
    w_ref: (9*Cin, Cout)     HWIO weights reshaped to (dy, dx, cin) x cout
    b_ref: (1, Cout)         f32 bias
    o_ref: (1, tho, Wo, Cout)        if not flat
           (1, tho, Wo*Cout)         if flat (lane-dense store for Cout < 128)
    """
    H, W, Cin = x_ref.shape[1], x_ref.shape[2], x_ref.shape[3]
    Cout = w_ref.shape[1]

    r = pl.program_id(1)
    r0 = pl.multiple_of(r * th, th)

    # Body rows of this tile (always in range).
    body = x_ref[0, pl.ds(r0, th), :, :]                          # (th, W, Cin)
    # Halo rows: clamp slice starts so they are always valid, then zero the
    # out-of-image case with a scalar mask (no HBM pre-padding anywhere).
    top = x_ref[0, pl.ds(jnp.maximum(r0 - 1, 0), 1), :, :]        # (1, W, Cin)
    top = top * (r0 > 0).astype(top.dtype)
    bot = x_ref[0, pl.ds(jnp.minimum(r0 + th, H - 1), 1), :, :]   # (1, W, Cin)
    bot = bot * (r0 + th < H).astype(bot.dtype)

    slab = jnp.concatenate([top, body, bot], axis=0)              # (th+2, W, Cin)
    zcol = jnp.zeros((th + 2, 1, Cin), slab.dtype)
    slab = jnp.concatenate([zcol, slab, zcol], axis=1)            # (th+2, W+2, Cin)

    # Three dy-accumulated MXU matmuls, K = 3*Cin each (tap order (dx, cin)
    # inside each dy matches w_hwio.reshape(9*Cin, Cout) row order (dy,dx,cin)).
    acc = None
    for dy in range(3):
        taps = jnp.concatenate(
            [slab[dy:dy + th, dx:dx + W, :] for dx in range(3)], axis=-1)
        taps = taps.reshape(th * W, 3 * Cin)
        w_dy = w_ref[dy * 3 * Cin:(dy + 1) * 3 * Cin, :]
        part = jnp.dot(taps, w_dy, preferred_element_type=jnp.float32)
        acc = part if acc is None else acc + part

    out = jnp.maximum(acc + b_ref[...], 0.0).reshape(th, W, Cout)   # f32
    if pool:
        out = out.reshape(th // 2, 2, W, Cout).max(axis=1)
        out = out.reshape(th // 2, W // 2, 2, Cout).max(axis=2)
    out = out.astype(o_ref.dtype)
    if flat:  # lane-dense store: last block dim = Wo*Cout (multiple of 128)
        out = out.reshape(out.shape[0], out.shape[1] * out.shape[2])
    o_ref[0] = out


# ----------------------------------------------------------------------------
# pallas_call wrapper
# ----------------------------------------------------------------------------
def conv3x3_relu(x, w_hwio, b, *, pool=False, row_tile=56):
    """x: (N,H,W,Cin) NHWC activations (compute dtype). Conv+ReLU(+2x2 pool)."""
    N, H, W, Cin = x.shape
    Cout = w_hwio.shape[3]

    # Lane-dense output only pays off when Cout < 128 (masked vst otherwise avoided).
    flat = Cout < 128
    mult = 16 if (pool and flat) else 8
    th = _pick_row_tile(H, row_tile, even=pool, mult=mult)
    R = H // th
    Ho, Wo = (H // 2, W // 2) if pool else (H, W)
    tho = th // 2 if pool else th
    if flat and (tho % 8) and tho != Ho:
        flat = False  # keep the block layout legal if the tile ended up odd-sized

    w2 = w_hwio.reshape(9 * Cin, Cout).astype(x.dtype)
    b2 = b.reshape(1, Cout).astype(jnp.float32)
    kernel = functools.partial(_conv3x3_kernel, th=th, pool=pool, flat=flat)

    if flat:
        out_shape = jax.ShapeDtypeStruct((N, Ho, Wo * Cout), x.dtype)
        out_spec = pl.BlockSpec((1, tho, Wo * Cout), lambda n, r: (n, r, 0))
    else:
        out_shape = jax.ShapeDtypeStruct((N, Ho, Wo, Cout), x.dtype)
        out_spec = pl.BlockSpec((1, tho, Wo, Cout), lambda n, r: (n, r, 0, 0))

    y = pl.pallas_call(
        kernel,
        out_shape=out_shape,
        grid=(N, R),
        in_specs=[
            # Whole image per batch element; index_map ignores r so it stays
            # resident across all row tiles of that image.
            pl.BlockSpec((1, H, W, Cin), lambda n, r: (n, 0, 0, 0)),
            pl.BlockSpec((9 * Cin, Cout), lambda n, r: (0, 0)),
            pl.BlockSpec((1, Cout), lambda n, r: (0, 0)),
        ],
        out_specs=out_spec,
        compiler_params=pltpu.CompilerParams(
            dimension_semantics=("parallel", "parallel"),
            vmem_limit_bytes=_VMEM_LIMIT),
    )(x, w2, b2)

    if flat:
        y = y.reshape(N, Ho, Wo, Cout)  # free metadata reshape (trailing dims)
    return y


def conv3x3_relu_cin3_xla(x, w_hwio, b):
    """conv1_1 (Cin=3).

    TODO(synk): a 3-wide channel axis on the lane dimension has no efficient
    Pallas formulation (every vreg would be 125/128 empty) and the previous
    wrapper-side HBM im2col was a ~25% whole-network HBM tax, so per the perf
    review this <1%-of-FLOPs layer is dispatched to XLA's conv.
    """
    y = lax.conv_general_dilated(
        x, w_hwio.astype(x.dtype), (1, 1), "SAME",
        dimension_numbers=("NHWC", "HWIO", "NHWC"),
        preferred_element_type=jnp.float32)
    return jnp.maximum(y + b, 0.0).astype(x.dtype)


# ----------------------------------------------------------------------------
# Model: parameters + forward
# ----------------------------------------------------------------------------
_CONV_CHANNELS = [  # (Cin, Cout) for vgg16.features[0:12] convs
    ("conv1_1", 3, 64),
    ("conv1_2", 64, 64),
    ("conv2_1", 64, 128),
    ("conv2_2", 128, 128),
    ("conv3_1", 128, 256),
]


def init_params(key):
    params = {}
    for name, cin, cout in _CONV_CHANNELS:
        key, kw, kb = jax.random.split(key, 3)
        # PyTorch conv weight is (Cout, Cin, 3, 3); store as HWIO (3,3,Cin,Cout).
        w_oihw = jax.random.normal(kw, (cout, cin, 3, 3), jnp.float32)
        w_oihw = w_oihw * (2.0 / (cin * 9)) ** 0.5
        w_hwio = jnp.transpose(w_oihw, (2, 3, 1, 0))
        b = 0.01 * jax.random.normal(kb, (cout,), jnp.float32)
        params[name] = (w_hwio, b)
    return params


def vgg16_relu3_1(x_nchw, params, compute_dtype=jnp.bfloat16):
    # NCHW in/out (PyTorch convention); NHWC + bf16 inside.
    x = jnp.transpose(x_nchw, (0, 2, 3, 1)).astype(compute_dtype)
    x = conv3x3_relu_cin3_xla(x, *params["conv1_1"])
    x = conv3x3_relu(x, *params["conv1_2"], pool=True)   # pool fused, lane-dense out
    x = conv3x3_relu(x, *params["conv2_1"])
    x = conv3x3_relu(x, *params["conv2_2"], pool=True)   # pool fused
    x = conv3x3_relu(x, *params["conv3_1"])
    return jnp.transpose(x, (0, 3, 1, 2)).astype(x_nchw.dtype)


# ----------------------------------------------------------------------------
# Pure-JAX reference (matches the kernel's bf16 quantization; check only)
# ----------------------------------------------------------------------------
def _conv_ref(x, w, b, compute_dtype):
    y = lax.conv_general_dilated(
        x, w.astype(compute_dtype), (1, 1), "SAME",
        dimension_numbers=("NHWC", "HWIO", "NHWC"),
        preferred_element_type=jnp.float32)
    return jnp.maximum(y + b, 0.0).astype(compute_dtype)


def _pool_ref(x):
    N, H, W, C = x.shape
    x = x.reshape(N, H // 2, 2, W, C).max(axis=2)
    x = x.reshape(N, H // 2, W // 2, 2, C).max(axis=3)
    return x


def vgg16_relu3_1_ref(x_nchw, params, compute_dtype=jnp.bfloat16):
    x = jnp.transpose(x_nchw, (0, 2, 3, 1)).astype(compute_dtype)
    x = _conv_ref(x, *params["conv1_1"], compute_dtype=compute_dtype)
    x = _pool_ref(_conv_ref(x, *params["conv1_2"], compute_dtype=compute_dtype))
    x = _conv_ref(x, *params["conv2_1"], compute_dtype=compute_dtype)
    x = _pool_ref(_conv_ref(x, *params["conv2_2"], compute_dtype=compute_dtype))
    x = _conv_ref(x, *params["conv3_1"], compute_dtype=compute_dtype)
    return jnp.transpose(x, (0, 3, 1, 2)).astype(x_nchw.dtype)


# ----------------------------------------------------------------------------
if __name__ == "__main__":
    x = jax.random.normal(jax.random.PRNGKey(0), (2, 3, 16, 16), jnp.float32)
    params = init_params(jax.random.PRNGKey(1))

    fwd = jax.jit(lambda inp: vgg16_relu3_1(inp, params))
    out = fwd(x)
    jax.block_until_ready(out)
    assert out.shape == (2, 256, 4, 4), out.shape

    ref = jax.jit(lambda inp: vgg16_relu3_1_ref(inp, params))(x)
    jax.block_until_ready(ref)

    err = float(jnp.max(jnp.abs(out - ref)))
    assert jnp.allclose(out, ref, atol=5e-2, rtol=5e-2), err

    print("KERNEL_OK")
</pallas_src>

<mosaic_0001>
module attributes {stable_mosaic.version = 11 : i64} {
  func.func @_conv3x3_kernel(%arg0: i32, %arg1: i32, %arg2: memref<1x16x16x64xbf16, #tpu.memory_space<vmem>>, %arg3: memref<576x64xbf16, #tpu.memory_space<vmem>>, %arg4: memref<1x64xf32, #tpu.memory_space<vmem>>, %arg5: memref<1x8x512xbf16, #tpu.memory_space<vmem>>) attributes {dimension_semantics = [#tpu.dimension_semantics<parallel>, #tpu.dimension_semantics<parallel>], iteration_bounds = array<i64: 2, 1>, scalar_prefetch = 0 : i64, scratch_operands = 0 : i64, tpu.core_type = #tpu.core_type<tc>, window_params = [{transform_indices = @transform_0, window_bounds = array<i64: 1, 16, 16, 64>}, {pipeline_mode = #tpu.pipeline_mode<synchronous>, transform_indices = @transform_1, window_bounds = array<i64: 576, 64>}, {pipeline_mode = #tpu.pipeline_mode<synchronous>, transform_indices = @transform_2, window_bounds = array<i64: 1, 64>}, {transform_indices = @transform_3, window_bounds = array<i64: 1, 8, 512>}]} {
    %c16_i32 = arith.constant 16 : i32
    %0 = arith.muli %arg1, %c16_i32 : i32
    %1 = tpu.assume_multiple %0, 16 : i32
    %c0 = arith.constant 0 : index
    %2 = arith.index_cast %1 : i32 to index
    %c0_0 = arith.constant 0 : index
    %c0_1 = arith.constant 0 : index
    %3 = vector.load %arg2[%c0, %2, %c0_0, %c0_1] : memref<1x16x16x64xbf16, #tpu.memory_space<vmem>>, vector<1x16x16x64xbf16>
    %4 = vector.shape_cast %3 : vector<1x16x16x64xbf16> to vector<16x16x64xbf16>
    %c1_i32 = arith.constant 1 : i32
    %5 = arith.subi %1, %c1_i32 : i32
    %c0_i32 = arith.constant 0 : i32
    %6 = arith.maxsi %5, %c0_i32 : i32
    %c0_2 = arith.constant 0 : index
    %7 = arith.index_cast %6 : i32 to index
    %c0_3 = arith.constant 0 : index
    %c0_4 = arith.constant 0 : index
    %8 = vector.load %arg2[%c0_2, %7, %c0_3, %c0_4] : memref<1x16x16x64xbf16, #tpu.memory_space<vmem>>, vector<1x1x16x64xbf16>
    %9 = vector.shape_cast %8 : vector<1x1x16x64xbf16> to vector<1x16x64xbf16>
    %c0_i32_5 = arith.constant 0 : i32
    %10 = arith.cmpi sgt, %1, %c0_i32_5 : i32
    %11 = arith.extui %10 : i1 to i32
    %12 = arith.sitofp %11 : i32 to f32
    %13 = arith.truncf %12 : f32 to bf16
    %14 = vector.broadcast %13 : bf16 to vector<1x16x64xbf16>
    %15 = arith.mulf %9, %14 : vector<1x16x64xbf16>
    %c16_i32_6 = arith.constant 16 : i32
    %16 = arith.addi %1, %c16_i32_6 : i32
    %c15_i32 = arith.constant 15 : i32
    %17 = arith.minsi %16, %c15_i32 : i32
    %c0_7 = arith.constant 0 : index
    %18 = arith.index_cast %17 : i32 to index
    %c0_8 = arith.constant 0 : index
    %c0_9 = arith.constant 0 : index
    %19 = vector.load %arg2[%c0_7, %18, %c0_8, %c0_9] : memref<1x16x16x64xbf16, #tpu.memory_space<vmem>>, vector<1x1x16x64xbf16>
    %20 = vector.shape_cast %19 : vector<1x1x16x64xbf16> to vector<1x16x64xbf16>
    %c16_i32_10 = arith.constant 16 : i32
    %21 = arith.addi %1, %c16_i32_10 : i32
    %c16_i32_11 = arith.constant 16 : i32
    %22 = arith.cmpi slt, %21, %c16_i32_11 : i32
    %23 = arith.extui %22 : i1 to i32
    %24 = arith.sitofp %23 : i32 to f32
    %25 = arith.truncf %24 : f32 to bf16
    %26 = vector.broadcast %25 : bf16 to vector<1x16x64xbf16>
    %27 = arith.mulf %20, %26 : vector<1x16x64xbf16>
    %28 = tpu.concatenate %15, %4, %27 in 0 : vector<1x16x64xbf16>, vector<16x16x64xbf16>, vector<1x16x64xbf16> -> vector<18x16x64xbf16>
    %cst = arith.constant 0.000000e+00 : bf16
    %29 = vector.broadcast %cst : bf16 to vector<18x1x64xbf16>
    %30 = tpu.concatenate %29, %28, %29 in 1 : vector<18x1x64xbf16>, vector<18x16x64xbf16>, vector<18x1x64xbf16> -> vector<18x18x64xbf16>
    %31 = vector.extract_strided_slice %30 {offsets = [0, 0, 0], sizes = [16, 16, 64], strides = [1, 1, 1]} : vector<18x18x64xbf16> to vector<16x16x64xbf16>
    %32 = vector.extract_strided_slice %30 {offsets = [0, 1, 0], sizes = [16, 16, 64], strides = [1, 1, 1]} : vector<18x18x64xbf16> to vector<16x16x64xbf16>
    %33 = vector.extract_strided_slice %30 {offsets = [0, 2, 0], sizes = [16, 16, 64], strides = [1, 1, 1]} : vector<18x18x64xbf16> to vector<16x16x64xbf16>
    %34 = tpu.concatenate %31, %32, %33 in 2 : vector<16x16x64xbf16>, vector<16x16x64xbf16>, vector<16x16x64xbf16> -> vector<16x16x192xbf16>
    %35 = vector.shape_cast %34 : vector<16x16x192xbf16> to vector<256x192xbf16>
    %c0_12 = arith.constant 0 : index
    %c0_13 = arith.constant 0 : index
    %36 = vector.load %arg3[%c0_12, %c0_13] : memref<576x64xbf16, #tpu.memory_space<vmem>>, vector<192x64xbf16>
    %cst_14 = arith.constant dense<0.000000e+00> : vector<256x64xf32>
    %37 = tpu.matmul %35, %36, %cst_14 {dimension_numbers = #tpu.dot_dimension_numbers<[1], [0], [0], [1], [0, 0, 1, 1], [], []>} : vector<256x192xbf16>, vector<192x64xbf16>, vector<256x64xf32> -> vector<256x64xf32>
    %38 = vector.extract_strided_slice %30 {offsets = [1, 0, 0], sizes = [16, 16, 64], strides = [1, 1, 1]} : vector<18x18x64xbf16> to vector<16x16x64xbf16>
    %39 = vector.extract_strided_slice %30 {offsets = [1, 1, 0], sizes = [16, 16, 64], strides = [1, 1, 1]} : vector<18x18x64xbf16> to vector<16x16x64xbf16>
    %40 = vector.extract_strided_slice %30 {offsets = [1, 2, 0], sizes = [16, 16, 64], strides = [1, 1, 1]} : vector<18x18x64xbf16> to vector<16x16x64xbf16>
    %41 = tpu.concatenate %38, %39, %40 in 2 : vector<16x16x64xbf16>, vector<16x16x64xbf16>, vector<16x16x64xbf16> -> vector<16x16x192xbf16>
    %42 = vector.shape_cast %41 : vector<16x16x192xbf16> to vector<256x192xbf16>
    %c192 = arith.constant 192 : index
    %c0_15 = arith.constant 0 : index
    %43 = vector.load %arg3[%c192, %c0_15] : memref<576x64xbf16, #tpu.memory_space<vmem>>, vector<192x64xbf16>
    %cst_16 = arith.constant dense<0.000000e+00> : vector<256x64xf32>
    %44 = tpu.matmul %42, %43, %cst_16 {dimension_numbers = #tpu.dot_dimension_numbers<[1], [0], [0], [1], [0, 0, 1, 1], [], []>} : vector<256x192xbf16>, vector<192x64xbf16>, vector<256x64xf32> -> vector<256x64xf32>
    %45 = arith.addf %37, %44 : vector<256x64xf32>
    %46 = vector.extract_strided_slice %30 {offsets = [2, 0, 0], sizes = [16, 16, 64], strides = [1, 1, 1]} : vector<18x18x64xbf16> to vector<16x16x64xbf16>
    %47 = vector.extract_strided_slice %30 {offsets = [2, 1, 0], sizes = [16, 16, 64], strides = [1, 1, 1]} : vector<18x18x64xbf16> to vector<16x16x64xbf16>
    %48 = vector.extract_strided_slice %30 {offsets = [2, 2, 0], sizes = [16, 16, 64], strides = [1, 1, 1]} : vector<18x18x64xbf16> to vector<16x16x64xbf16>
    %49 = tpu.concatenate %46, %47, %48 in 2 : vector<16x16x64xbf16>, vector<16x16x64xbf16>, vector<16x16x64xbf16> -> vector<16x16x192xbf16>
    %50 = vector.shape_cast %49 : vector<16x16x192xbf16> to vector<256x192xbf16>
    %c384 = arith.constant 384 : index
    %c0_17 = arith.constant 0 : index
    %51 = vector.load %arg3[%c384, %c0_17] : memref<576x64xbf16, #tpu.memory_space<vmem>>, vector<192x64xbf16>
    %cst_18 = arith.constant dense<0.000000e+00> : vector<256x64xf32>
    %52 = tpu.matmul %50, %51, %cst_18 {dimension_numbers = #tpu.dot_dimension_numbers<[1], [0], [0], [1], [0, 0, 1, 1], [], []>} : vector<256x192xbf16>, vector<192x64xbf16>, vector<256x64xf32> -> vector<256x64xf32>
    %53 = arith.addf %45, %52 : vector<256x64xf32>
    %c0_19 = arith.constant 0 : index
    %c0_20 = arith.constant 0 : index
    %54 = vector.load %arg4[%c0_19, %c0_20] : memref<1x64xf32, #tpu.memory_space<vmem>>, vector<1x64xf32>
    %55 = vector.broadcast %54 : vector<1x64xf32> to vector<256x64xf32>
    %56 = arith.addf %53, %55 : vector<256x64xf32>
    %cst_21 = arith.constant 0.000000e+00 : f32
    %57 = vector.broadcast %cst_21 : f32 to vector<256x64xf32>
    %58 = arith.maximumf %56, %57 : vector<256x64xf32>
    %59 = vector.shape_cast %58 : vector<256x64xf32> to vector<16x16x64xf32>
    %60 = vector.shape_cast %59 : vector<16x16x64xf32> to vector<8x2x16x64xf32>
    %cst_22 = arith.constant dense<0xFF800000> : vector<8x16x64xf32>
    %61 = vector.multi_reduction <maximumf>, %60, %cst_22 [1] : vector<8x2x16x64xf32> to vector<8x16x64xf32>
    %62 = vector.shape_cast %61 : vector<8x16x64xf32> to vector<8x8x2x64xf32>
    %cst_23 = arith.constant dense<0xFF800000> : vector<8x8x64xf32>
    %63 = vector.multi_reduction <maximumf>, %62, %cst_23 [2] : vector<8x8x2x64xf32> to vector<8x8x64xf32>
    %64 = arith.truncf %63 : vector<8x8x64xf32> to vector<8x8x64xbf16>
    %65 = vector.shape_cast %64 : vector<8x8x64xbf16> to vector<8x512xbf16>
    %c0_24 = arith.constant 0 : index
    %c0_25 = arith.constant 0 : index
    %c0_26 = arith.constant 0 : index
    %66 = vector.load %arg5[%c0_24, %c0_25, %c0_26] : memref<1x8x512xbf16, #tpu.memory_space<vmem>>, vector<1x8x512xbf16>
    %67 = vector.shape_cast %66 : vector<1x8x512xbf16> to vector<8x512xbf16>
    %68 = vector.shape_cast %65 : vector<8x512xbf16> to vector<1x8x512xbf16>
    tpu.vector_store %arg5[%c0_24, %c0_25, %c0_26], %68 {strides = array<i32>} : memref<1x8x512xbf16, #tpu.memory_space<vmem>>, vector<1x8x512xbf16>,
    return
  }
  func.func @transform_0(%arg0: i32, %arg1: i32) -> (i32, i32, i32, i32) {
    %c0_i32 = arith.constant 0 : i32
    %c0_i32_0 = arith.constant 0 : i32
    %c0_i32_1 = arith.constant 0 : i32
    %c0_i32_2 = arith.constant 0 : i32
    return %arg0, %c0_i32, %c0_i32_0, %c0_i32_1 : i32, i32, i32, i32
  }
  func.func @transform_1(%arg0: i32, %arg1: i32) -> (i32, i32) {
    %c0_i32 = arith.constant 0 : i32
    %c0_i32_0 = arith.constant 0 : i32
    %c0_i32_1 = arith.constant 0 : i32
    return %c0_i32, %c0_i32_0 : i32, i32
  }
  func.func @transform_2(%arg0: i32, %arg1: i32) -> (i32, i32) {
    %c0_i32 = arith.constant 0 : i32
    %c0_i32_0 = arith.constant 0 : i32
    %c0_i32_1 = arith.constant 0 : i32
    return %c0_i32, %c0_i32_0 : i32, i32
  }
  func.func @transform_3(%arg0: i32, %arg1: i32) -> (i32, i32, i32) {
    %c0_i32 = arith.constant 0 : i32
    %c0_i32_0 = arith.constant 0 : i32
    return %arg0, %arg1, %c0_i32 : i32, i32, i32
  }
}

module attributes {stable_mosaic.version = 11 : i64} {
  func.func @_conv3x3_kernel(%arg0: i32, %arg1: i32, %arg2: memref<1x8x8x64xbf16, #tpu.memory_space<vmem>>, %arg3: memref<576x128xbf16, #tpu.memory_space<vmem>>, %arg4: memref<1x128xf32, #tpu.memory_space<vmem>>, %arg5: memref<1x8x8x128xbf16, #tpu.memory_space<vmem>>) attributes {dimension_semantics = [#tpu.dimension_semantics<parallel>, #tpu.dimension_semantics<parallel>], iteration_bounds = array<i64: 2, 1>, scalar_prefetch = 0 : i64, scratch_operands = 0 : i64, tpu.core_type = #tpu.core_type<tc>, window_params = [{transform_indices = @transform_0, window_bounds = array<i64: 1, 8, 8, 64>}, {pipeline_mode = #tpu.pipeline_mode<synchronous>, transform_indices = @transform_1, window_bounds = array<i64: 576, 128>}, {pipeline_mode = #tpu.pipeline_mode<synchronous>, transform_indices = @transform_2, window_bounds = array<i64: 1, 128>}, {transform_indices = @transform_3, window_bounds = array<i64: 1, 8, 8, 128>}]} {
    %c8_i32 = arith.constant 8 : i32
    %0 = arith.muli %arg1, %c8_i32 : i32
    %1 = tpu.assume_multiple %0, 8 : i32
    %c0 = arith.constant 0 : index
    %2 = arith.index_cast %1 : i32 to index
    %c0_0 = arith.constant 0 : index
    %c0_1 = arith.constant 0 : index
    %3 = vector.load %arg2[%c0, %2, %c0_0, %c0_1] : memref<1x8x8x64xbf16, #tpu.memory_space<vmem>>, vector<1x8x8x64xbf16>
    %4 = vector.shape_cast %3 : vector<1x8x8x64xbf16> to vector<8x8x64xbf16>
    %c1_i32 = arith.constant 1 : i32
    %5 = arith.subi %1, %c1_i32 : i32
    %c0_i32 = arith.constant 0 : i32
    %6 = arith.maxsi %5, %c0_i32 : i32
    %c0_2 = arith.constant 0 : index
    %7 = arith.index_cast %6 : i32 to index
    %c0_3 = arith.constant 0 : index
    %c0_4 = arith.constant 0 : index
    %8 = vector.load %arg2[%c0_2, %7, %c0_3, %c0_4] : memref<1x8x8x64xbf16, #tpu.memory_space<vmem>>, vector<1x1x8x64xbf16>
    %9 = vector.shape_cast %8 : vector<1x1x8x64xbf16> to vector<1x8x64xbf16>
    %c0_i32_5 = arith.constant 0 : i32
    %10 = arith.cmpi sgt, %1, %c0_i32_5 : i32
    %11 = arith.extui %10 : i1 to i32
    %12 = arith.sitofp %11 : i32 to f32
    %13 = arith.truncf %12 : f32 to bf16
    %14 = vector.broadcast %13 : bf16 to vector<1x8x64xbf16>
    %15 = arith.mulf %9, %14 : vector<1x8x64xbf16>
    %c8_i32_6 = arith.constant 8 : i32
    %16 = arith.addi %1, %c8_i32_6 : i32
    %c7_i32 = arith.constant 7 : i32
    %17 = arith.minsi %16, %c7_i32 : i32
    %c0_7 = arith.constant 0 : index
    %18 = arith.index_cast %17 : i32 to index
    %c0_8 = arith.constant 0 : index
    %c0_9 = arith.constant 0 : index
    %19 = vector.load %arg2[%c0_7, %18, %c0_8, %c0_9] : memref<1x8x8x64xbf16, #tpu.memory_space<vmem>>, vector<1x1x8x64xbf16>
    %20 = vector.shape_cast %19 : vector<1x1x8x64xbf16> to vector<1x8x64xbf16>
    %c8_i32_10 = arith.constant 8 : i32
    %21 = arith.addi %1, %c8_i32_10 : i32
    %c8_i32_11 = arith.constant 8 : i32
    %22 = arith.cmpi slt, %21, %c8_i32_11 : i32
    %23 = arith.extui %22 : i1 to i32
    %24 = arith.sitofp %23 : i32 to f32
    %25 = arith.truncf %24 : f32 to bf16
    %26 = vector.broadcast %25 : bf16 to vector<1x8x64xbf16>
    %27 = arith.mulf %20, %26 : vector<1x8x64xbf16>
    %28 = tpu.concatenate %15, %4, %27 in 0 : vector<1x8x64xbf16>, vector<8x8x64xbf16>, vector<1x8x64xbf16> -> vector<10x8x64xbf16>
    %cst = arith.constant 0.000000e+00 : bf16
    %29 = vector.broadcast %cst : bf16 to vector<10x1x64xbf16>
    %30 = tpu.concatenate %29, %28, %29 in 1 : vector<10x1x64xbf16>, vector<10x8x64xbf16>, vector<10x1x64xbf16> -> vector<10x10x64xbf16>
    %31 = vector.extract_strided_slice %30 {offsets = [0, 0, 0], sizes = [8, 8, 64], strides = [1, 1, 1]} : vector<10x10x64xbf16> to vector<8x8x64xbf16>
    %32 = vector.extract_strided_slice %30 {offsets = [0, 1, 0], sizes = [8, 8, 64], strides = [1, 1, 1]} : vector<10x10x64xbf16> to vector<8x8x64xbf16>
    %33 = vector.extract_strided_slice %30 {offsets = [0, 2, 0], sizes = [8, 8, 64], strides = [1, 1, 1]} : vector<10x10x64xbf16> to vector<8x8x64xbf16>
    %34 = tpu.concatenate %31, %32, %33 in 2 : vector<8x8x64xbf16>, vector<8x8x64xbf16>, vector<8x8x64xbf16> -> vector<8x8x192xbf16>
    %35 = vector.shape_cast %34 : vector<8x8x192xbf16> to vector<64x192xbf16>
    %c0_12 = arith.constant 0 : index
    %c0_13 = arith.constant 0 : index
    %36 = vector.load %arg3[%c0_12, %c0_13] : memref<576x128xbf16, #tpu.memory_space<vmem>>, vector<192x128xbf16>
    %cst_14 = arith.constant dense<0.000000e+00> : vector<64x128xf32>
    %37 = tpu.matmul %35, %36, %cst_14 {dimension_numbers = #tpu.dot_dimension_numbers<[1], [0], [0], [1], [0, 0, 1, 1], [], []>} : vector<64x192xbf16>, vector<192x128xbf16>, vector<64x128xf32> -> vector<64x128xf32>
    %38 = vector.extract_strided_slice %30 {offsets = [1, 0, 0], sizes = [8, 8, 64], strides = [1, 1, 1]} : vector<10x10x64xbf16> to vector<8x8x64xbf16>
    %39 = vector.extract_strided_slice %30 {offsets = [1, 1, 0], sizes = [8, 8, 64], strides = [1, 1, 1]} : vector<10x10x64xbf16> to vector<8x8x64xbf16>
    %40 = vector.extract_strided_slice %30 {offsets = [1, 2, 0], sizes = [8, 8, 64], strides = [1, 1, 1]} : vector<10x10x64xbf16> to vector<8x8x64xbf16>
    %41 = tpu.concatenate %38, %39, %40 in 2 : vector<8x8x64xbf16>, vector<8x8x64xbf16>, vector<8x8x64xbf16> -> vector<8x8x192xbf16>
    %42 = vector.shape_cast %41 : vector<8x8x192xbf16> to vector<64x192xbf16>
    %c192 = arith.constant 192 : index
    %c0_15 = arith.constant 0 : index
    %43 = vector.load %arg3[%c192, %c0_15] : memref<576x128xbf16, #tpu.memory_space<vmem>>, vector<192x128xbf16>
    %cst_16 = arith.constant dense<0.000000e+00> : vector<64x128xf32>
    %44 = tpu.matmul %42, %43, %cst_16 {dimension_numbers = #tpu.dot_dimension_numbers<[1], [0], [0], [1], [0, 0, 1, 1], [], []>} : vector<64x192xbf16>, vector<192x128xbf16>, vector<64x128xf32> -> vector<64x128xf32>
    %45 = arith.addf %37, %44 : vector<64x128xf32>
    %46 = vector.extract_strided_slice %30 {offsets = [2, 0, 0], sizes = [8, 8, 64], strides = [1, 1, 1]} : vector<10x10x64xbf16> to vector<8x8x64xbf16>
    %47 = vector.extract_strided_slice %30 {offsets = [2, 1, 0], sizes = [8, 8, 64], strides = [1, 1, 1]} : vector<10x10x64xbf16> to vector<8x8x64xbf16>
    %48 = vector.extract_strided_slice %30 {offsets = [2, 2, 0], sizes = [8, 8, 64], strides = [1, 1, 1]} : vector<10x10x64xbf16> to vector<8x8x64xbf16>
    %49 = tpu.concatenate %46, %47, %48 in 2 : vector<8x8x64xbf16>, vector<8x8x64xbf16>, vector<8x8x64xbf16> -> vector<8x8x192xbf16>
    %50 = vector.shape_cast %49 : vector<8x8x192xbf16> to vector<64x192xbf16>
    %c384 = arith.constant 384 : index
    %c0_17 = arith.constant 0 : index
    %51 = vector.load %arg3[%c384, %c0_17] : memref<576x128xbf16, #tpu.memory_space<vmem>>, vector<192x128xbf16>
    %cst_18 = arith.constant dense<0.000000e+00> : vector<64x128xf32>
    %52 = tpu.matmul %50, %51, %cst_18 {dimension_numbers = #tpu.dot_dimension_numbers<[1], [0], [0], [1], [0, 0, 1, 1], [], []>} : vector<64x192xbf16>, vector<192x128xbf16>, vector<64x128xf32> -> vector<64x128xf32>
    %53 = arith.addf %45, %52 : vector<64x128xf32>
    %c0_19 = arith.constant 0 : index
    %c0_20 = arith.constant 0 : index
    %54 = vector.load %arg4[%c0_19, %c0_20] : memref<1x128xf32, #tpu.memory_space<vmem>>, vector<1x128xf32>
    %55 = vector.broadcast %54 : vector<1x128xf32> to vector<64x128xf32>
    %56 = arith.addf %53, %55 : vector<64x128xf32>
    %cst_21 = arith.constant 0.000000e+00 : f32
    %57 = vector.broadcast %cst_21 : f32 to vector<64x128xf32>
    %58 = arith.maximumf %56, %57 : vector<64x128xf32>
    %59 = vector.shape_cast %58 : vector<64x128xf32> to vector<8x8x128xf32>
    %60 = arith.truncf %59 : vector<8x8x128xf32> to vector<8x8x128xbf16>
    %c0_22 = arith.constant 0 : index
    %c0_23 = arith.constant 0 : index
    %c0_24 = arith.constant 0 : index
    %c0_25 = arith.constant 0 : index
    %61 = vector.load %arg5[%c0_22, %c0_23, %c0_24, %c0_25] : memref<1x8x8x128xbf16, #tpu.memory_space<vmem>>, vector<1x8x8x128xbf16>
    %62 = vector.shape_cast %61 : vector<1x8x8x128xbf16> to vector<8x8x128xbf16>
    %63 = vector.shape_cast %60 : vector<8x8x128xbf16> to vector<1x8x8x128xbf16>
    tpu.vector_store %arg5[%c0_22, %c0_23, %c0_24, %c0_25], %63 {strides = array<i32>} : memref<1x8x8x128xbf16, #tpu.memory_space<vmem>>, vector<1x8x8x128xbf16>,
    return
  }
  func.func @transform_0(%arg0: i32, %arg1: i32) -> (i32, i32, i32, i32) {
    %c0_i32 = arith.constant 0 : i32
    %c0_i32_0 = arith.constant 0 : i32
    %c0_i32_1 = arith.constant 0 : i32
    %c0_i32_2 = arith.constant 0 : i32
    return %arg0, %c0_i32, %c0_i32_0, %c0_i32_1 : i32, i32, i32, i32
  }
  func.func @transform_1(%arg0: i32, %arg1: i32) -> (i32, i32) {
    %c0_i32 = arith.constant 0 : i32
    %c0_i32_0 = arith.constant 0 : i32
    %c0_i32_1 = arith.constant 0 : i32
    return %c0_i32, %c0_i32_0 : i32, i32
  }
  func.func @transform_2(%arg0: i32, %arg1: i32) -> (i32, i32) {
    %c0_i32 = arith.constant 0 : i32
    %c0_i32_0 = arith.constant 0 : i32
    %c0_i32_1 = arith.constant 0 : i32
    return %c0_i32, %c0_i32_0 : i32, i32
  }
  func.func @transform_3(%arg0: i32, %arg1: i32) -> (i32, i32, i32, i32) {
    %c0_i32 = arith.constant 0 : i32
    %c0_i32_0 = arith.constant 0 : i32
    %c0_i32_1 = arith.constant 0 : i32
    return %arg0, %arg1, %c0_i32, %c0_i32_0 : i32, i32, i32, i32
  }
}

module attributes {stable_mosaic.version = 11 : i64} {
  func.func @_conv3x3_kernel(%arg0: i32, %arg1: i32, %arg2: memref<1x8x8x128xbf16, #tpu.memory_space<vmem>>, %arg3: memref<1152x128xbf16, #tpu.memory_space<vmem>>, %arg4: memref<1x128xf32, #tpu.memory_space<vmem>>, %arg5: memref<1x4x4x128xbf16, #tpu.memory_space<vmem>>) attributes {dimension_semantics = [#tpu.dimension_semantics<parallel>, #tpu.dimension_semantics<parallel>], iteration_bounds = array<i64: 2, 1>, scalar_prefetch = 0 : i64, scratch_operands = 0 : i64, tpu.core_type = #tpu.core_type<tc>, window_params = [{transform_indices = @transform_0, window_bounds = array<i64: 1, 8, 8, 128>}, {pipeline_mode = #tpu.pipeline_mode<synchronous>, transform_indices = @transform_1, window_bounds = array<i64: 1152, 128>}, {pipeline_mode = #tpu.pipeline_mode<synchronous>, transform_indices = @transform_2, window_bounds = array<i64: 1, 128>}, {transform_indices = @transform_3, window_bounds = array<i64: 1, 4, 4, 128>}]} {
    %c8_i32 = arith.constant 8 : i32
    %0 = arith.muli %arg1, %c8_i32 : i32
    %1 = tpu.assume_multiple %0, 8 : i32
    %c0 = arith.constant 0 : index
    %2 = arith.index_cast %1 : i32 to index
    %c0_0 = arith.constant 0 : index
    %c0_1 = arith.constant 0 : index
    %3 = vector.load %arg2[%c0, %2, %c0_0, %c0_1] : memref<1x8x8x128xbf16, #tpu.memory_space<vmem>>, vector<1x8x8x128xbf16>
    %4 = vector.shape_cast %3 : vector<1x8x8x128xbf16> to vector<8x8x128xbf16>
    %c1_i32 = arith.constant 1 : i32
    %5 = arith.subi %1, %c1_i32 : i32
    %c0_i32 = arith.constant 0 : i32
    %6 = arith.maxsi %5, %c0_i32 : i32
    %c0_2 = arith.constant 0 : index
    %7 = arith.index_cast %6 : i32 to index
    %c0_3 = arith.constant 0 : index
    %c0_4 = arith.constant 0 : index
    %8 = vector.load %arg2[%c0_2, %7, %c0_3, %c0_4] : memref<1x8x8x128xbf16, #tpu.memory_space<vmem>>, vector<1x1x8x128xbf16>
    %9 = vector.shape_cast %8 : vector<1x1x8x128xbf16> to vector<1x8x128xbf16>
    %c0_i32_5 = arith.constant 0 : i32
    %10 = arith.cmpi sgt, %1, %c0_i32_5 : i32
    %11 = arith.extui %10 : i1 to i32
    %12 = arith.sitofp %11 : i32 to f32
    %13 = arith.truncf %12 : f32 to bf16
    %14 = vector.broadcast %13 : bf16 to vector<1x8x128xbf16>
    %15 = arith.mulf %9, %14 : vector<1x8x128xbf16>
    %c8_i32_6 = arith.constant 8 : i32
    %16 = arith.addi %1, %c8_i32_6 : i32
    %c7_i32 = arith.constant 7 : i32
    %17 = arith.minsi %16, %c7_i32 : i32
    %c0_7 = arith.constant 0 : index
    %18 = arith.index_cast %17 : i32 to index
    %c0_8 = arith.constant 0 : index
    %c0_9 = arith.constant 0 : index
    %19 = vector.load %arg2[%c0_7, %18, %c0_8, %c0_9] : memref<1x8x8x128xbf16, #tpu.memory_space<vmem>>, vector<1x1x8x128xbf16>
    %20 = vector.shape_cast %19 : vector<1x1x8x128xbf16> to vector<1x8x128xbf16>
    %c8_i32_10 = arith.constant 8 : i32
    %21 = arith.addi %1, %c8_i32_10 : i32
    %c8_i32_11 = arith.constant 8 : i32
    %22 = arith.cmpi slt, %21, %c8_i32_11 : i32
    %23 = arith.extui %22 : i1 to i32
    %24 = arith.sitofp %23 : i32 to f32
    %25 = arith.truncf %24 : f32 to bf16
    %26 = vector.broadcast %25 : bf16 to vector<1x8x128xbf16>
    %27 = arith.mulf %20, %26 : vector<1x8x128xbf16>
    %28 = tpu.concatenate %15, %4, %27 in 0 : vector<1x8x128xbf16>, vector<8x8x128xbf16>, vector<1x8x128xbf16> -> vector<10x8x128xbf16>
    %cst = arith.constant 0.000000e+00 : bf16
    %29 = vector.broadcast %cst : bf16 to vector<10x1x128xbf16>
    %30 = tpu.concatenate %29, %28, %29 in 1 : vector<10x1x128xbf16>, vector<10x8x128xbf16>, vector<10x1x128xbf16> -> vector<10x10x128xbf16>
    %31 = vector.extract_strided_slice %30 {offsets = [0, 0, 0], sizes = [8, 8, 128], strides = [1, 1, 1]} : vector<10x10x128xbf16> to vector<8x8x128xbf16>
    %32 = vector.extract_strided_slice %30 {offsets = [0, 1, 0], sizes = [8, 8, 128], strides = [1, 1, 1]} : vector<10x10x128xbf16> to vector<8x8x128xbf16>
    %33 = vector.extract_strided_slice %30 {offsets = [0, 2, 0], sizes = [8, 8, 128], strides = [1, 1, 1]} : vector<10x10x128xbf16> to vector<8x8x128xbf16>
    %34 = tpu.concatenate %31, %32, %33 in 2 : vector<8x8x128xbf16>, vector<8x8x128xbf16>, vector<8x8x128xbf16> -> vector<8x8x384xbf16>
    %35 = vector.shape_cast %34 : vector<8x8x384xbf16> to vector<64x384xbf16>
    %c0_12 = arith.constant 0 : index
    %c0_13 = arith.constant 0 : index
    %36 = vector.load %arg3[%c0_12, %c0_13] : memref<1152x128xbf16, #tpu.memory_space<vmem>>, vector<384x128xbf16>
    %cst_14 = arith.constant dense<0.000000e+00> : vector<64x128xf32>
    %37 = tpu.matmul %35, %36, %cst_14 {dimension_numbers = #tpu.dot_dimension_numbers<[1], [0], [0], [1], [0, 0, 1, 1], [], []>} : vector<64x384xbf16>, vector<384x128xbf16>, vector<64x128xf32> -> vector<64x128xf32>
    %38 = vector.extract_strided_slice %30 {offsets = [1, 0, 0], sizes = [8, 8, 128], strides = [1, 1, 1]} : vector<10x10x128xbf16> to vector<8x8x128xbf16>
    %39 = vector.extract_strided_slice %30 {offsets = [1, 1, 0], sizes = [8, 8, 128], strides = [1, 1, 1]} : vector<10x10x128xbf16> to vector<8x8x128xbf16>
    %40 = vector.extract_strided_slice %30 {offsets = [1, 2, 0], sizes = [8, 8, 128], strides = [1, 1, 1]} : vector<10x10x128xbf16> to vector<8x8x128xbf16>
    %41 = tpu.concatenate %38, %39, %40 in 2 : vector<8x8x128xbf16>, vector<8x8x128xbf16>, vector<8x8x128xbf16> -> vector<8x8x384xbf16>
    %42 = vector.shape_cast %41 : vector<8x8x384xbf16> to vector<64x384xbf16>
    %c384 = arith.constant 384 : index
    %c0_15 = arith.constant 0 : index
    %43 = vector.load %arg3[%c384, %c0_15] : memref<1152x128xbf16, #tpu.memory_space<vmem>>, vector<384x128xbf16>
    %cst_16 = arith.constant dense<0.000000e+00> : vector<64x128xf32>
    %44 = tpu.matmul %42, %43, %cst_16 {dimension_numbers = #tpu.dot_dimension_numbers<[1], [0], [0], [1], [0, 0, 1, 1], [], []>} : vector<64x384xbf16>, vector<384x128xbf16>, vector<64x128xf32> -> vector<64x128xf32>
    %45 = arith.addf %37, %44 : vector<64x128xf32>
    %46 = vector.extract_strided_slice %30 {offsets = [2, 0, 0], sizes = [8, 8, 128], strides = [1, 1, 1]} : vector<10x10x128xbf16> to vector<8x8x128xbf16>
    %47 = vector.extract_strided_slice %30 {offsets = [2, 1, 0], sizes = [8, 8, 128], strides = [1, 1, 1]} : vector<10x10x128xbf16> to vector<8x8x128xbf16>
    %48 = vector.extract_strided_slice %30 {offsets = [2, 2, 0], sizes = [8, 8, 128], strides = [1, 1, 1]} : vector<10x10x128xbf16> to vector<8x8x128xbf16>
    %49 = tpu.concatenate %46, %47, %48 in 2 : vector<8x8x128xbf16>, vector<8x8x128xbf16>, vector<8x8x128xbf16> -> vector<8x8x384xbf16>
    %50 = vector.shape_cast %49 : vector<8x8x384xbf16> to vector<64x384xbf16>
    %c768 = arith.constant 768 : index
    %c0_17 = arith.constant 0 : index
    %51 = vector.load %arg3[%c768, %c0_17] : memref<1152x128xbf16, #tpu.memory_space<vmem>>, vector<384x128xbf16>
    %cst_18 = arith.constant dense<0.000000e+00> : vector<64x128xf32>
    %52 = tpu.matmul %50, %51, %cst_18 {dimension_numbers = #tpu.dot_dimension_numbers<[1], [0], [0], [1], [0, 0, 1, 1], [], []>} : vector<64x384xbf16>, vector<384x128xbf16>, vector<64x128xf32> -> vector<64x128xf32>
    %53 = arith.addf %45, %52 : vector<64x128xf32>
    %c0_19 = arith.constant 0 : index
    %c0_20 = arith.constant 0 : index
    %54 = vector.load %arg4[%c0_19, %c0_20] : memref<1x128xf32, #tpu.memory_space<vmem>>, vector<1x128xf32>
    %55 = vector.broadcast %54 : vector<1x128xf32> to vector<64x128xf32>
    %56 = arith.addf %53, %55 : vector<64x128xf32>
    %cst_21 = arith.constant 0.000000e+00 : f32
    %57 = vector.broadcast %cst_21 : f32 to vector<64x128xf32>
    %58 = arith.maximumf %56, %57 : vector<64x128xf32>
    %59 = vector.shape_cast %58 : vector<64x128xf32> to vector<8x8x128xf32>
    %60 = vector.shape_cast %59 : vector<8x8x128xf32> to vector<4x2x8x128xf32>
    %cst_22 = arith.constant dense<0xFF800000> : vector<4x8x128xf32>
    %61 = vector.multi_reduction <maximumf>, %60, %cst_22 [1] : vector<4x2x8x128xf32> to vector<4x8x128xf32>
    %62 = vector.shape_cast %61 : vector<4x8x128xf32> to vector<4x4x2x128xf32>
    %cst_23 = arith.constant dense<0xFF800000> : vector<4x4x128xf32>
    %63 = vector.multi_reduction <maximumf>, %62, %cst_23 [2] : vector<4x4x2x128xf32> to vector<4x4x128xf32>
    %64 = arith.truncf %63 : vector<4x4x128xf32> to vector<4x4x128xbf16>
    %c0_24 = arith.constant 0 : index
    %c0_25 = arith.constant 0 : index
    %c0_26 = arith.constant 0 : index
    %c0_27 = arith.constant 0 : index
    %65 = vector.load %arg5[%c0_24, %c0_25, %c0_26, %c0_27] : memref<1x4x4x128xbf16, #tpu.memory_space<vmem>>, vector<1x4x4x128xbf16>
    %66 = vector.shape_cast %65 : vector<1x4x4x128xbf16> to vector<4x4x128xbf16>
    %67 = vector.shape_cast %64 : vector<4x4x128xbf16> to vector<1x4x4x128xbf16>
    tpu.vector_store %arg5[%c0_24, %c0_25, %c0_26, %c0_27], %67 {strides = array<i32>} : memref<1x4x4x128xbf16, #tpu.memory_space<vmem>>, vector<1x4x4x128xbf16>,
    return
  }
  func.func @transform_0(%arg0: i32, %arg1: i32) -> (i32, i32, i32, i32) {
    %c0_i32 = arith.constant 0 : i32
    %c0_i32_0 = arith.constant 0 : i32
    %c0_i32_1 = arith.constant 0 : i32
    %c0_i32_2 = arith.constant 0 : i32
    return %arg0, %c0_i32, %c0_i32_0, %c0_i32_1 : i32, i32, i32, i32
  }
  func.func @transform_1(%arg0: i32, %arg1: i32) -> (i32, i32) {
    %c0_i32 = arith.constant 0 : i32
    %c0_i32_0 = arith.constant 0 : i32
    %c0_i32_1 = arith.constant 0 : i32
    return %c0_i32, %c0_i32_0 : i32, i32
  }
  func.func @transform_2(%arg0: i32, %arg1: i32) -> (i32, i32) {
    %c0_i32 = arith.constant 0 : i32
    %c0_i32_0 = arith.constant 0 : i32
    %c0_i32_1 = arith.constant 0 : i32
    return %c0_i32, %c0_i32_0 : i32, i32
  }
  func.func @transform_3(%arg0: i32, %arg1: i32) -> (i32, i32, i32, i32) {
    %c0_i32 = arith.constant 0 : i32
    %c0_i32_0 = arith.constant 0 : i32
    %c0_i32_1 = arith.constant 0 : i32
    return %arg0, %arg1, %c0_i32, %c0_i32_0 : i32, i32, i32, i32
  }
}

module attributes {stable_mosaic.version = 11 : i64} {
  func.func @_conv3x3_kernel(%arg0: i32, %arg1: i32, %arg2: memref<1x4x4x128xbf16, #tpu.memory_space<vmem>>, %arg3: memref<1152x256xbf16, #tpu.memory_space<vmem>>, %arg4: memref<1x256xf32, #tpu.memory_space<vmem>>, %arg5: memref<1x4x4x256xbf16, #tpu.memory_space<vmem>>) attributes {dimension_semantics = [#tpu.dimension_semantics<parallel>, #tpu.dimension_semantics<parallel>], iteration_bounds = array<i64: 2, 1>, scalar_prefetch = 0 : i64, scratch_operands = 0 : i64, tpu.core_type = #tpu.core_type<tc>, window_params = [{transform_indices = @transform_0, window_bounds = array<i64: 1, 4, 4, 128>}, {pipeline_mode = #tpu.pipeline_mode<synchronous>, transform_indices = @transform_1, window_bounds = array<i64: 1152, 256>}, {pipeline_mode = #tpu.pipeline_mode<synchronous>, transform_indices = @transform_2, window_bounds = array<i64: 1, 256>}, {transform_indices = @transform_3, window_bounds = array<i64: 1, 4, 4, 256>}]} {
    %c4_i32 = arith.constant 4 : i32
    %0 = arith.muli %arg1, %c4_i32 : i32
    %1 = tpu.assume_multiple %0, 4 : i32
    %c0 = arith.constant 0 : index
    %2 = arith.index_cast %1 : i32 to index
    %c0_0 = arith.constant 0 : index
    %c0_1 = arith.constant 0 : index
    %3 = vector.load %arg2[%c0, %2, %c0_0, %c0_1] : memref<1x4x4x128xbf16, #tpu.memory_space<vmem>>, vector<1x4x4x128xbf16>
    %4 = vector.shape_cast %3 : vector<1x4x4x128xbf16> to vector<4x4x128xbf16>
    %c1_i32 = arith.constant 1 : i32
    %5 = arith.subi %1, %c1_i32 : i32
    %c0_i32 = arith.constant 0 : i32
    %6 = arith.maxsi %5, %c0_i32 : i32
    %c0_2 = arith.constant 0 : index
    %7 = arith.index_cast %6 : i32 to index
    %c0_3 = arith.constant 0 : index
    %c0_4 = arith.constant 0 : index
    %8 = vector.load %arg2[%c0_2, %7, %c0_3, %c0_4] : memref<1x4x4x128xbf16, #tpu.memory_space<vmem>>, vector<1x1x4x128xbf16>
    %9 = vector.shape_cast %8 : vector<1x1x4x128xbf16> to vector<1x4x128xbf16>
    %c0_i32_5 = arith.constant 0 : i32
    %10 = arith.cmpi sgt, %1, %c0_i32_5 : i32
    %11 = arith.extui %10 : i1 to i32
    %12 = arith.sitofp %11 : i32 to f32
    %13 = arith.truncf %12 : f32 to bf16
    %14 = vector.broadcast %13 : bf16 to vector<1x4x128xbf16>
    %15 = arith.mulf %9, %14 : vector<1x4x128xbf16>
    %c4_i32_6 = arith.constant 4 : i32
    %16 = arith.addi %1, %c4_i32_6 : i32
    %c3_i32 = arith.constant 3 : i32
    %17 = arith.minsi %16, %c3_i32 : i32
    %c0_7 = arith.constant 0 : index
    %18 = arith.index_cast %17 : i32 to index
    %c0_8 = arith.constant 0 : index
    %c0_9 = arith.constant 0 : index
    %19 = vector.load %arg2[%c0_7, %18, %c0_8, %c0_9] : memref<1x4x4x128xbf16, #tpu.memory_space<vmem>>, vector<1x1x4x128xbf16>
    %20 = vector.shape_cast %19 : vector<1x1x4x128xbf16> to vector<1x4x128xbf16>
    %c4_i32_10 = arith.constant 4 : i32
    %21 = arith.addi %1, %c4_i32_10 : i32
    %c4_i32_11 = arith.constant 4 : i32
    %22 = arith.cmpi slt, %21, %c4_i32_11 : i32
    %23 = arith.extui %22 : i1 to i32
    %24 = arith.sitofp %23 : i32 to f32
    %25 = arith.truncf %24 : f32 to bf16
    %26 = vector.broadcast %25 : bf16 to vector<1x4x128xbf16>
    %27 = arith.mulf %20, %26 : vector<1x4x128xbf16>
    %28 = tpu.concatenate %15, %4, %27 in 0 : vector<1x4x128xbf16>, vector<4x4x128xbf16>, vector<1x4x128xbf16> -> vector<6x4x128xbf16>
    %cst = arith.constant 0.000000e+00 : bf16
    %29 = vector.broadcast %cst : bf16 to vector<6x1x128xbf16>
    %30 = tpu.concatenate %29, %28, %29 in 1 : vector<6x1x128xbf16>, vector<6x4x128xbf16>, vector<6x1x128xbf16> -> vector<6x6x128xbf16>
    %31 = vector.extract_strided_slice %30 {offsets = [0, 0, 0], sizes = [4, 4, 128], strides = [1, 1, 1]} : vector<6x6x128xbf16> to vector<4x4x128xbf16>
    %32 = vector.extract_strided_slice %30 {offsets = [0, 1, 0], sizes = [4, 4, 128], strides = [1, 1, 1]} : vector<6x6x128xbf16> to vector<4x4x128xbf16>
    %33 = vector.extract_strided_slice %30 {offsets = [0, 2, 0], sizes = [4, 4, 128], strides = [1, 1, 1]} : vector<6x6x128xbf16> to vector<4x4x128xbf16>
    %34 = tpu.concatenate %31, %32, %33 in 2 : vector<4x4x128xbf16>, vector<4x4x128xbf16>, vector<4x4x128xbf16> -> vector<4x4x384xbf16>
    %35 = vector.shape_cast %34 : vector<4x4x384xbf16> to vector<16x384xbf16>
    %c0_12 = arith.constant 0 : index
    %c0_13 = arith.constant 0 : index
    %36 = vector.load %arg3[%c0_12, %c0_13] : memref<1152x256xbf16, #tpu.memory_space<vmem>>, vector<384x256xbf16>
    %cst_14 = arith.constant dense<0.000000e+00> : vector<16x256xf32>
    %37 = tpu.matmul %35, %36, %cst_14 {dimension_numbers = #tpu.dot_dimension_numbers<[1], [0], [0], [1], [0, 0, 1, 1], [], []>} : vector<16x384xbf16>, vector<384x256xbf16>, vector<16x256xf32> -> vector<16x256xf32>
    %38 = vector.extract_strided_slice %30 {offsets = [1, 0, 0], sizes = [4, 4, 128], strides = [1, 1, 1]} : vector<6x6x128xbf16> to vector<4x4x128xbf16>
    %39 = vector.extract_strided_slice %30 {offsets = [1, 1, 0], sizes = [4, 4, 128], strides = [1, 1, 1]} : vector<6x6x128xbf16> to vector<4x4x128xbf16>
    %40 = vector.extract_strided_slice %30 {offsets = [1, 2, 0], sizes = [4, 4, 128], strides = [1, 1, 1]} : vector<6x6x128xbf16> to vector<4x4x128xbf16>
    %41 = tpu.concatenate %38, %39, %40 in 2 : vector<4x4x128xbf16>, vector<4x4x128xbf16>, vector<4x4x128xbf16> -> vector<4x4x384xbf16>
    %42 = vector.shape_cast %41 : vector<4x4x384xbf16> to vector<16x384xbf16>
    %c384 = arith.constant 384 : index
    %c0_15 = arith.constant 0 : index
    %43 = vector.load %arg3[%c384, %c0_15] : memref<1152x256xbf16, #tpu.memory_space<vmem>>, vector<384x256xbf16>
    %cst_16 = arith.constant dense<0.000000e+00> : vector<16x256xf32>
    %44 = tpu.matmul %42, %43, %cst_16 {dimension_numbers = #tpu.dot_dimension_numbers<[1], [0], [0], [1], [0, 0, 1, 1], [], []>} : vector<16x384xbf16>, vector<384x256xbf16>, vector<16x256xf32> -> vector<16x256xf32>
    %45 = arith.addf %37, %44 : vector<16x256xf32>
    %46 = vector.extract_strided_slice %30 {offsets = [2, 0, 0], sizes = [4, 4, 128], strides = [1, 1, 1]} : vector<6x6x128xbf16> to vector<4x4x128xbf16>
    %47 = vector.extract_strided_slice %30 {offsets = [2, 1, 0], sizes = [4, 4, 128], strides = [1, 1, 1]} : vector<6x6x128xbf16> to vector<4x4x128xbf16>
    %48 = vector.extract_strided_slice %30 {offsets = [2, 2, 0], sizes = [4, 4, 128], strides = [1, 1, 1]} : vector<6x6x128xbf16> to vector<4x4x128xbf16>
    %49 = tpu.concatenate %46, %47, %48 in 2 : vector<4x4x128xbf16>, vector<4x4x128xbf16>, vector<4x4x128xbf16> -> vector<4x4x384xbf16>
    %50 = vector.shape_cast %49 : vector<4x4x384xbf16> to vector<16x384xbf16>
    %c768 = arith.constant 768 : index
    %c0_17 = arith.constant 0 : index
    %51 = vector.load %arg3[%c768, %c0_17] : memref<1152x256xbf16, #tpu.memory_space<vmem>>, vector<384x256xbf16>
    %cst_18 = arith.constant dense<0.000000e+00> : vector<16x256xf32>
    %52 = tpu.matmul %50, %51, %cst_18 {dimension_numbers = #tpu.dot_dimension_numbers<[1], [0], [0], [1], [0, 0, 1, 1], [], []>} : vector<16x384xbf16>, vector<384x256xbf16>, vector<16x256xf32> -> vector<16x256xf32>
    %53 = arith.addf %45, %52 : vector<16x256xf32>
    %c0_19 = arith.constant 0 : index
    %c0_20 = arith.constant 0 : index
    %54 = vector.load %arg4[%c0_19, %c0_20] : memref<1x256xf32, #tpu.memory_space<vmem>>, vector<1x256xf32>
    %55 = vector.broadcast %54 : vector<1x256xf32> to vector<16x256xf32>
    %56 = arith.addf %53, %55 : vector<16x256xf32>
    %cst_21 = arith.constant 0.000000e+00 : f32
    %57 = vector.broadcast %cst_21 : f32 to vector<16x256xf32>
    %58 = arith.maximumf %56, %57 : vector<16x256xf32>
    %59 = vector.shape_cast %58 : vector<16x256xf32> to vector<4x4x256xf32>
    %60 = arith.truncf %59 : vector<4x4x256xf32> to vector<4x4x256xbf16>
    %c0_22 = arith.constant 0 : index
    %c0_23 = arith.constant 0 : index
    %c0_24 = arith.constant 0 : index
    %c0_25 = arith.constant 0 : index
    %61 = vector.load %arg5[%c0_22, %c0_23, %c0_24, %c0_25] : memref<1x4x4x256xbf16, #tpu.memory_space<vmem>>, vector<1x4x4x256xbf16>
    %62 = vector.shape_cast %61 : vector<1x4x4x256xbf16> to vector<4x4x256xbf16>
    %63 = vector.shape_cast %60 : vector<4x4x256xbf16> to vector<1x4x4x256xbf16>
    tpu.vector_store %arg5[%c0_22, %c0_23, %c0_24, %c0_25], %63 {strides = array<i32>} : memref<1x4x4x256xbf16, #tpu.memory_space<vmem>>, vector<1x4x4x256xbf16>,
    return
  }
  func.func @transform_0(%arg0: i32, %arg1: i32) -> (i32, i32, i32, i32) {
    %c0_i32 = arith.constant 0 : i32
    %c0_i32_0 = arith.constant 0 : i32
    %c0_i32_1 = arith.constant 0 : i32
    %c0_i32_2 = arith.constant 0 : i32
    return %arg0, %c0_i32, %c0_i32_0, %c0_i32_1 : i32, i32, i32, i32
  }
  func.func @transform_1(%arg0: i32, %arg1: i32) -> (i32, i32) {
    %c0_i32 = arith.constant 0 : i32
    %c0_i32_0 = arith.constant 0 : i32
    %c0_i32_1 = arith.constant 0 : i32
    return %c0_i32, %c0_i32_0 : i32, i32
  }
  func.func @transform_2(%arg0: i32, %arg1: i32) -> (i32, i32) {
    %c0_i32 = arith.constant 0 : i32
    %c0_i32_0 = arith.constant 0 : i32
    %c0_i32_1 = arith.constant 0 : i32
    return %c0_i32, %c0_i32_0 : i32, i32
  }
  func.func @transform_3(%arg0: i32, %arg1: i32) -> (i32, i32, i32, i32) {
    %c0_i32 = arith.constant 0 : i32
    %c0_i32_0 = arith.constant 0 : i32
    %c0_i32_1 = arith.constant 0 : i32
    return %arg0, %arg1, %c0_i32, %c0_i32_0 : i32, i32, i32, i32
  }
}

</mosaic_0001>

<llo_original>
// kernel: _lambda_.5
$region0: #{_lambda_.5}
  #allocation0 [shape = 'u32[]', space=smem, size = 0x4, offset = 0x4, fixed_abs, tag = 'smem constant byte address 0x4 - core index']
  #allocation1 [shape = 'u32[144,128]{1,0:T(1,128)}', space=vmem, size = 0x12000, scoped, tag = 'internal scratch']
  %s0 = inlined_call_operand.vmem [shape: bf16[2,8,8,64], index: 0, kind: input, shape index: {}]
  %s1 = inlined_call_operand.vmem [shape: bf16[576,128], index: 1, kind: input, shape index: {}]
  %s2 = inlined_call_operand.vmem [shape: f32[1,128], index: 2, kind: input, shape index: {}]
  %s3 = inlined_call_operand.vmem [shape: bf16[2,8,8,128], index: 3, kind: output, shape index: {}]
  %s4 = sld [smem:[#allocation0]]
  $region45: #{_lambda_.5} parent=0
    _
  %s6 = ssub.s32 1, %s4
  %s7 = scalar_select 0, %s6, %s4
  loop: start=0, step=1, limit=4
  $region2: #{_lambda_.5} parent=0 // loop_pre_header
    _
  $region3: #{_lambda_.5} parent=0 // loop_header
    %s9 = sphi 0, %s13
    %p10 = scmp.ge.s32.totalorder %s9, 4
    %s16 = sphi 0, %s28
    %s17 = sphi 0, %s24
    %s18 = sphi 0, %s16
    %s19 = sphi 0, %s17
    %s20 = sphi 0, %s18
    %s21 = sphi 0, %s19
    %s31 = sphi 0, %s33
    %s34 = sphi 0, %s31
    %s35 = sphi 0, %s34
    %s51 = sphi 0, %s35
    %s55 = sphi 0, %s55
    %s57 = sphi 0, %s55
    %s58 = sphi 0, %s57
    %s72 = sphi 0, %s58
    %s76 = sphi 0, %s76
    %s78 = sphi 0, %s76
    %s79 = sphi 0, %s78
    %s93 = sphi 0, %s79
    %s101 = sphi 0, %s103
    %s104 = sphi 0, %s101
    %s105 = sphi 0, %s104
    %s121 = sphi 0, %s105
  $region4: #{_lambda_.5} parent=0 // loop_header_branch
    %12 = sbr.rel (%p10) target = $region8
  $region5: #{_lambda_.5} parent=0 // loop_body
    %s14 = ssub.s32 %s9, 1
    %s15 = ssub.s32 %s9, 2
    %s22 = sadd.s32 1, %s17
    %p23 = scmp.ge.s32.totalorder %s22, 1
    %s24 = scalar_select %p23, 0, %s22
    %s25 = sadd.s32 1, %s16
    %s26 = scalar_select %p23, %s25, %s16
    %p27 = scmp.ge.s32.totalorder %s26, 2
    %s28 = scalar_select %p27, 0, %s26
    %s29 = ssub.s32 %s16, %s28
    %p30 = scmp.eq.s32.totalorder %s29, 0
    %s32 = sadd.s32 %s31, 1
    %s33 = scalar_select %p30, %s31, %s32
    %p36 = pneg %p30
    %p37 = scmp.eq.s32.totalorder %s9, 1
    %p38 = por %p36, %p37
    %p39 = scmp.ne.s32.totalorder %s31, %s34
    %p40 = scmp.eq.s32.totalorder %s9, 0
    %p41 = por %p39, %p40
    %p42 = scmp.ne.s32.totalorder %s31, %s34
    %p43 = scmp.eq.s32.totalorder %s14, 1
    %p44 = por %p42, %p43
    %p45 = scmp.ne.s32.totalorder %s34, %s35
    %p46 = scmp.eq.s32.totalorder %s14, 0
    %p47 = por %p45, %p46
    %p48 = scmp.ne.s32.totalorder %s34, %s35
    %p49 = scmp.eq.s32.totalorder %s15, 1
    %p50 = por %p48, %p49
    %p52 = scmp.ne.s32.totalorder %s35, %s51
    %p53 = scmp.eq.s32.totalorder %s15, 0
    %p54 = por %p52, %p53
    %s56 = sadd.s32 %s55, 1
    %p59 = scmp.eq.s32.totalorder %s9, 1
    %p60 = scmp.ne.s32.totalorder %s55, %s57
    %p61 = scmp.eq.s32.totalorder %s9, 0
    %p62 = por %p60, %p61
    %p63 = scmp.ne.s32.totalorder %s55, %s57
    %p64 = scmp.eq.s32.totalorder %s14, 1
    %p65 = por %p63, %p64
    %p66 = scmp.ne.s32.totalorder %s57, %s58
    %p67 = scmp.eq.s32.totalorder %s14, 0
    %p68 = por %p66, %p67
    %p69 = scmp.ne.s32.totalorder %s57, %s58
    %p70 = scmp.eq.s32.totalorder %s15, 1
    %p71 = por %p69, %p70
    %p73 = scmp.ne.s32.totalorder %s58, %s72
    %p74 = scmp.eq.s32.totalorder %s15, 0
    %p75 = por %p73, %p74
    %s77 = sadd.s32 %s76, 1
    %p80 = scmp.eq.s32.totalorder %s9, 1
    %p81 = scmp.ne.s32.totalorder %s76, %s78
    %p82 = scmp.eq.s32.totalorder %s9, 0
    %p83 = por %p81, %p82
    %p84 = scmp.ne.s32.totalorder %s76, %s78
    %p85 = scmp.eq.s32.totalorder %s14, 1
    %p86 = por %p84, %p85
    %p87 = scmp.ne.s32.totalorder %s78, %s79
    %p88 = scmp.eq.s32.totalorder %s14, 0
    %p89 = por %p87, %p88
    %p90 = scmp.ne.s32.totalorder %s78, %s79
    %p91 = scmp.eq.s32.totalorder %s15, 1
    %p92 = por %p90, %p91
    %p94 = scmp.ne.s32.totalorder %s79, %s93
    %p95 = scmp.eq.s32.totalorder %s15, 0
    %p96 = por %p94, %p95
    %s97 = ssub.s32 %s16, %s28
    %s98 = ssub.s32 %s17, %s24
    %s99 = sor.u32 %s97, %s98
    %p100 = scmp.eq.s32.totalorder %s99, 0
    %s102 = sadd.s32 %s101, 1
    %s103 = scalar_select %p100, %s101, %s102
    %p106 = pneg %p100
    %p107 = scmp.eq.s32.totalorder %s9, 1
    %p108 = por %p106, %p107
    %p109 = scmp.ne.s32.totalorder %s101, %s104
    %p110 = scmp.eq.s32.totalorder %s9, 0
    %p111 = por %p109, %p110
    %p112 = scmp.ne.s32.totalorder %s101, %s104
    %p113 = scmp.eq.s32.totalorder %s14, 1
    %p114 = por %p112, %p113
    %p115 = scmp.ne.s32.totalorder %s104, %s105
    %p116 = scmp.eq.s32.totalorder %s14, 0
    %p117 = por %p115, %p116
    %p118 = scmp.ne.s32.totalorder %s104, %s105
    %p119 = scmp.eq.s32.totalorder %s15, 1
    %p120 = por %p118, %p119
    %p122 = scmp.ne.s32.totalorder %s105, %s121
    %p123 = scmp.eq.s32.totalorder %s15, 0
    %p124 = por %p122, %p123
    %p125 = scmp.le.s32.totalorder 1, %s9
    %p126 = scmp.lt.s32.totalorder %s9, 3
    %p127 = pnand %p125, %p126
    %p128 = pneg %p127
    // Predicated region
    $region9: #{_lambda_.5} parent=5 // pred_check
      _
    $region10: #{_lambda_.5} parent=5 // pred_check_branch
      %130 = sbr.rel (%p127) target = $region12
    $region11: #{_lambda_.5} parent=5 // pred_region
      %s131 = ssub.s32 %s9, 1
      // Predicated region
      $region13: #{_lambda_.5} parent=11 // pred_check
        %p132 = pneg %p68
      $region14: #{_lambda_.5} parent=11 // pred_check_branch
        %134 = sbr.rel (%p132) target = $region16
      $region15: #{_lambda_.5} parent=11 // pred_region
        _
      $region16: #{_lambda_.5} parent=11 // pred_fallthru
        _
      // Predicated region
      $region17: #{_lambda_.5} parent=11 // pred_check
        %p135 = pneg %p89
      $region18: #{_lambda_.5} parent=11 // pred_check_branch
        %137 = sbr.rel (%p135) target = $region20
      $region19: #{_lambda_.5} parent=11 // pred_region
        _
      $region20: #{_lambda_.5} parent=11 // pred_fallthru
        _
    $region12: #{_lambda_.5} parent=5 // pred_fallthru
      _
    %p138 = scmp.lt.s32.totalorder %s9, 2
    // Predicated region
    $region21: #{_lambda_.5} parent=5 // pred_check
      %p139 = pneg %p138
    $region22: #{_lambda_.5} parent=5 // pred_check_branch
      %141 = sbr.rel (%p139) target = $region24
    $region23: #{_lambda_.5} parent=5 // pred_region
      // Predicated region
      $region25: #{_lambda_.5} parent=23 // pred_check
        %p142 = pneg %p41
      $region26: #{_lambda_.5} parent=23 // pred_check_branch
        %144 = sbr.rel (%p142) target = $region28
      $region27: #{_lambda_.5} parent=23 // pred_region
        %p145 = scmp.lt.s32.totalorder %s16, 1
        %s146 = scalar_select %p145, %s16, 1
        %s147 = smul.addr %s146, 8
        %s148 = smul.addr %s147, 4
        %s149 = scalar_lea.vmem %s0, %s148
      $region28: #{_lambda_.5} parent=23 // pred_fallthru
        _
    $region24: #{_lambda_.5} parent=5 // pred_fallthru
      _
    %p150 = scmp.le.s32.totalorder 1, %s9
    %p151 = scmp.lt.s32.totalorder %s9, 3
    %p152 = pnand %p150, %p151
    %p153 = pneg %p152
    // Predicated region
    $region29: #{_lambda_.5} parent=5 // pred_check
      _
    $region30: #{_lambda_.5} parent=5 // pred_check_branch
      %155 = sbr.rel (%p152) target = $region32
    $region31: #{_lambda_.5} parent=5 // pred_region
      %s156 = ssub.s32 %s9, 1
      %p157 = scmp.lt.s32.totalorder %s18, 1
      %s158 = scalar_select %p157, %s18, 1
      %s159 = smul.addr %s158, 8
      %s160 = smul.addr %s159, 4
      %s161 = scalar_lea.vmem %s0, %s160
      %p162 = pneg %p47
      %p163 = pneg %p44
      %p164 = pneg %p68
      %p165 = pneg %p65
      %p166 = pneg %p89
      %p167 = pneg %p86
      %p168 = pneg %p117
      %p169 = pneg %p114
      %s170 = smul.u32 8, %s19
      %p171 = scmp.lt.s32.totalorder %s18, 1
      %s172 = scalar_select %p171, %s18, 1
      %p173 = scmp.lt.s32.totalorder %s170, 7
      %s174 = scalar_select %p173, %s170, 7
      %s175 = smul.addr %s172, 8
      %s176 = sadd.s32 %s174, %s175
      %s177 = smul.addr %s176, 4
      %s178 = scalar_lea.vmem %s3, %s177
      %p179 = scmp.lt.s32.totalorder %s18, 1
      %s180 = scalar_select %p179, %s18, 1
      %s181 = smul.addr %s180, 8
      %s182 = smul.addr %s181, 4
      %s183 = scalar_lea.vmem %s0, %s182
      %s184 = smul.u32 8, %s19
      %p185 = scmp.lt.s32.totalorder %s18, 1
      %s186 = scalar_select %p185, %s18, 1
      %p187 = scmp.lt.s32.totalorder %s184, 7
      %s188 = scalar_select %p187, %s184, 7
      %s189 = smul.addr %s186, 8
      %s190 = sadd.s32 %s188, %s189
      %s191 = smul.addr %s190, 4
      %s192 = scalar_lea.vmem %s3, %s191
      %s193 = smul.u32 8, %s19
      %s195 = smul.u32 %s19, 8
      %s196 = smul.addr %s195, 4
      %s197 = scalar_lea.vmem %s183, %s196
      %v198 = vld [vmem:[%s197] sm:$0xf]
      %v199 = vld [vmem:[%s197 + $0x4] sm:$0xf]
      %v200 = vld [vmem:[%s197 + $0x8] sm:$0xf]
      %v201 = vld [vmem:[%s197 + $0xc] sm:$0xf]
      %v202 = vld [vmem:[%s197 + $0x10] sm:$0xf]
      %v203 = vld [vmem:[%s197 + $0x14] sm:$0xf]
      %v204 = vld [vmem:[%s197 + $0x18] sm:$0xf]
      %v205 = vld [vmem:[%s197 + $0x1c] sm:$0xf]
      %s206 = ssub.s32 %s195, 1
      %p207 = scmp.gt.s32.totalorder %s206, 0
      %s208 = scalar_select %p207, %s206, 0
      %s209 = smul.addr %s208, 4
      %s210 = scalar_lea.vmem %s183, %s209
      %v211 = vld [vmem:[%s210] sm:$0xf]
      %p212 = scmp.gt.s32.totalorder %s195, 0
      %s213 = scalar_select %p212, 1, 0
      %s214 = scvt.s32.f32 %s213
      %p216 = scmp.ne.f32.partialorder %s214, %s214
      %s217 = sshrl.u32 %s214, 16
      %s218 = sand.u32 %s217, 1
      %s219 = sadd.s32 32767, %s218
      %s220 = sadd.s32 %s214, %s219
      %s221 = sand.u32 %s220, 4294901760
      %s222 = scalar_select %p216, 2143289344, %s221
      %s224 = sshrl.u32 %s222, 16
      %s225 = sshll.u32 %s224, 16
      %s226 = sor.u32 %s224, %s225
      %v227 = vstv %s226
      %v229 = vmul.bf16 %v211, %v227
      %s230 = sadd.s32 %s195, 8
      %p231 = scmp.lt.s32.totalorder %s230, 7
      %s232 = scalar_select %p231, %s230, 7
      %s233 = smul.addr %s232, 4
      %s234 = scalar_lea.vmem %s183, %s233
      %v235 = vld [vmem:[%s234] sm:$0xf]
      %p236 = scmp.lt.s32.totalorder %s230, 8
      %s237 = scalar_select %p236, 1, 0
      %s238 = scvt.s32.f32 %s237
      %p240 = scmp.ne.f32.partialorder %s238, %s238
      %s241 = sshrl.u32 %s238, 16
      %s242 = sand.u32 %s241, 1
      %s243 = sadd.s32 32767, %s242
      %s244 = sadd.s32 %s238, %s243
      %s245 = sand.u32 %s244, 4294901760
      %s246 = scalar_select %p240, 2143289344, %s245
      %s248 = sshrl.u32 %s246, 16
      %s249 = sshll.u32 %s248, 16
      %s250 = sor.u32 %s248, %s249
      %v251 = vstv %s250
      %v253 = vmul.bf16 %v235, %v251
      %v264 = vunpack.c.l.b16 %v229
      %v265 = vunpack.c.l.b16 %v198
      %v266 = vunpack.c.l.b16 %v199
      %v267 = vunpack.c.l.b16 %v200
      %v268 = vunpack.c.l.b16 %v201
      %v269 = vunpack.c.l.b16 %v202
      %v270 = vunpack.c.l.b16 %v203
      %v271 = vunpack.c.l.b16 %v204
      %v272 = vunpack.c.l.b16 %v205
      %v273 = vunpack.c.l.b16 %v253
      %v274 = vpack.c.b16 %v264, %v264
      %v275 = vpack.c.b16 %v265, %v265
      %v276 = vpack.c.b16 %v266, %v266
      %v277 = vpack.c.b16 %v267, %v267
      %v278 = vpack.c.b16 %v268, %v268
      %v279 = vpack.c.b16 %v269, %v269
      %v280 = vpack.c.b16 %v270, %v270
      %v281 = vpack.c.b16 %v271, %v271
      %v282 = vpack.c.b16 %v272, %v272
      %v283 = vpack.c.b16 %v273, %v273
      %v285 = vshrl.u32 %v274, 16
      %v287 = vrot.slane %v285, 7
      %v288 = vshll.u32 %v274, 16
      %v290 = vor.u32 %v287, %v288
      %v292 = vshrl.u32 %v275, 16
      %v294 = vrot.slane %v292, 7
      %v295 = vshll.u32 %v275, 16
      %v297 = vor.u32 %v294, %v295
      %v299 = vshrl.u32 %v276, 16
      %v301 = vrot.slane %v299, 7
      %v302 = vshll.u32 %v276, 16
      %v304 = vor.u32 %v301, %v302
      %v306 = vshrl.u32 %v277, 16
      %v308 = vrot.slane %v306, 7
      %v309 = vshll.u32 %v277, 16
      %v311 = vor.u32 %v308, %v309
      %v313 = vshrl.u32 %v278, 16
      %v315 = vrot.slane %v313, 7
      %v316 = vshll.u32 %v278, 16
      %v318 = vor.u32 %v315, %v316
      %v320 = vshrl.u32 %v279, 16
      %v322 = vrot.slane %v320, 7
      %v323 = vshll.u32 %v279, 16
      %v325 = vor.u32 %v322, %v323
      %v327 = vshrl.u32 %v280, 16
      %v329 = vrot.slane %v327, 7
      %v330 = vshll.u32 %v280, 16
      %v332 = vor.u32 %v329, %v330
      %v334 = vshrl.u32 %v281, 16
      %v336 = vrot.slane %v334, 7
      %v337 = vshll.u32 %v281, 16
      %v339 = vor.u32 %v336, %v337
      %v341 = vshrl.u32 %v282, 16
      %v343 = vrot.slane %v341, 7
      %v344 = vshll.u32 %v282, 16
      %v346 = vor.u32 %v343, %v344
      %v348 = vshrl.u32 %v283, 16
      %v350 = vrot.slane %v348, 7
      %v351 = vshll.u32 %v283, 16
      %v353 = vor.u32 %v350, %v351
      %vm364 = vcmask 1040384
      %vm365 = vsmask.f32 256
      %vm366 = vmand %vm364, %vm365
      %v367 = vsel %vm366, 0, %v290
      %v368 = vsel %vm366, 0, %v297
      %v369 = vsel %vm366, 0, %v304
      %v370 = vsel %vm366, 0, %v311
      %v371 = vsel %vm366, 0, %v318
      %v372 = vsel %vm366, 0, %v325
      %v373 = vsel %vm366, 0, %v332
      %v374 = vsel %vm366, 0, %v339
      %v375 = vsel %vm366, 0, %v346
      %v376 = vsel %vm366, 0, %v353
      %vm377 = vcmask 1044480
      %vm378 = vsmask.f32 4352
      %vm379 = vmand %vm377, %vm378
      %v380 = vsel %vm379, %v367, 0
      %v381 = vsel %vm379, %v368, 0
      %v382 = vsel %vm379, %v369, 0
      %v383 = vsel %vm379, %v370, 0
      %v384 = vsel %vm379, %v371, 0
      %v385 = vsel %vm379, %v372, 0
      %v386 = vsel %vm379, %v373, 0
      %v387 = vsel %vm379, %v374, 0
      %v388 = vsel %vm379, %v375, 0
      %v389 = vsel %vm379, %v376, 0
      %v391 = vshrl.u32 %v380, 16
      %v393 = vshll.u32 %v380, 16
      %v395 = vrot.slane %v393, 1
      %v396 = vor.u32 %v391, %v395
      %v398 = vshrl.u32 %v381, 16
      %v400 = vshll.u32 %v381, 16
      %v402 = vrot.slane %v400, 1
      %v403 = vor.u32 %v398, %v402
      %v405 = vshrl.u32 %v382, 16
      %v407 = vshll.u32 %v382, 16
      %v409 = vrot.slane %v407, 1
      %v410 = vor.u32 %v405, %v409
      %v412 = vshrl.u32 %v383, 16
      %v414 = vshll.u32 %v383, 16
      %v416 = vrot.slane %v414, 1
      %v417 = vor.u32 %v412, %v416
      %v419 = vshrl.u32 %v384, 16
      %v421 = vshll.u32 %v384, 16
      %v423 = vrot.slane %v421, 1
      %v424 = vor.u32 %v419, %v423
      %v426 = vshrl.u32 %v385, 16
      %v428 = vshll.u32 %v385, 16
      %v430 = vrot.slane %v428, 1
      %v431 = vor.u32 %v426, %v430
      %v433 = vshrl.u32 %v386, 16
      %v435 = vshll.u32 %v386, 16
      %v437 = vrot.slane %v435, 1
      %v438 = vor.u32 %v433, %v437
      %v440 = vshrl.u32 %v387, 16
      %v442 = vshll.u32 %v387, 16
      %v444 = vrot.slane %v442, 1
      %v445 = vor.u32 %v440, %v444
      %446 = vrot.lane.b32.xlu0 %v396, 64
      %v447 = vpop.permute.xlu0 %446
      %448 = vrot.lane.b32.xlu0 %v403, 64
      %v449 = vpop.permute.xlu0 %448
      %450 = vrot.lane.b32.xlu0 %v410, 64
      %v451 = vpop.permute.xlu0 %450
      %452 = vrot.lane.b32.xlu0 %v417, 64
      %v453 = vpop.permute.xlu0 %452
      %454 = vrot.lane.b32.xlu0 %v424, 64
      %v455 = vpop.permute.xlu0 %454
      %456 = vrot.lane.b32.xlu0 %v431, 64
      %v457 = vpop.permute.xlu0 %456
      %458 = vrot.lane.b32.xlu0 %v438, 64
      %v459 = vpop.permute.xlu0 %458
      %460 = vrot.lane.b32.xlu0 %v445, 64
      %v461 = vpop.permute.xlu0 %460
      %v470 = vrot.slane %v380, 1
      %v471 = vrot.slane %v381, 1
      %v472 = vrot.slane %v382, 1
      %v473 = vrot.slane %v383, 1
      %v474 = vrot.slane %v384, 1
      %v475 = vrot.slane %v385, 1
      %v476 = vrot.slane %v386, 1
      %v477 = vrot.slane %v387, 1
      %vm478 = vcmask 523264
      %v480 = vsel %vm478, %v380, %v447
      %v482 = vsel %vm478, %v381, %v449
      %v484 = vsel %vm478, %v382, %v451
      %v486 = vsel %vm478, %v383, %v453
      %v488 = vsel %vm478, %v384, %v455
      %v490 = vsel %vm478, %v385, %v457
      %v492 = vsel %vm478, %v386, %v459
      %v494 = vsel %vm478, %v387, %v461
      %v503 = vunpack.c.l.b16 %v480
      %v504 = vunpack.c.l.b16 %v470
      %v505 = vunpack.c.l.b16 %v482
      %v506 = vunpack.c.l.b16 %v471
      %v507 = vunpack.c.l.b16 %v484
      %v508 = vunpack.c.l.b16 %v472
      %v509 = vunpack.c.l.b16 %v486
      %v510 = vunpack.c.l.b16 %v473
      %v511 = vunpack.c.l.b16 %v488
      %v512 = vunpack.c.l.b16 %v474
      %v513 = vunpack.c.l.b16 %v490
      %v514 = vunpack.c.l.b16 %v475
      %v515 = vunpack.c.l.b16 %v492
      %v516 = vunpack.c.l.b16 %v476
      %v517 = vunpack.c.l.b16 %v494
      %v518 = vunpack.c.l.b16 %v477
      %v519 = vld [vmem:[%s1] sm:$0xf]
      %v520 = vld [vmem:[%s1 + $0x4] sm:$0xf]
      %v521 = vld [vmem:[%s1 + $0x8] sm:$0xf]
      %v522 = vld [vmem:[%s1 + $0xc] sm:$0xf]
      %v523 = vld [vmem:[%s1 + $0x10] sm:$0xf]
      %v524 = vld [vmem:[%s1 + $0x14] sm:$0xf]
      %v525 = vld [vmem:[%s1 + $0x18] sm:$0xf]
      %v526 = vld [vmem:[%s1 + $0x1c] sm:$0xf]
      %v527 = vld [vmem:[%s1 + $0x20] sm:$0xf]
      %v528 = vld [vmem:[%s1 + $0x24] sm:$0xf]
      %v529 = vld [vmem:[%s1 + $0x28] sm:$0xf]
      %v530 = vld [vmem:[%s1 + $0x2c] sm:$0xf]
      %v531 = vld [vmem:[%s1 + $0x30] sm:$0xf]
      %v532 = vld [vmem:[%s1 + $0x34] sm:$0xf]
      %v533 = vld [vmem:[%s1 + $0x38] sm:$0xf]
      %v534 = vld [vmem:[%s1 + $0x3c] sm:$0xf]
      %v535 = vld [vmem:[%s1 + $0x40] sm:$0xf]
      %v536 = vld [vmem:[%s1 + $0x44] sm:$0xf]
      %v537 = vld [vmem:[%s1 + $0x48] sm:$0xf]
      %v538 = vld [vmem:[%s1 + $0x4c] sm:$0xf]
      %v539 = vld [vmem:[%s1 + $0x50] sm:$0xf]
      %v540 = vld [vmem:[%s1 + $0x54] sm:$0xf]
      %v541 = vld [vmem:[%s1 + $0x58] sm:$0xf]
      %v542 = vld [vmem:[%s1 + $0x5c] sm:$0xf]
      %v544 = vshrl.u32 %v388, 16
      %v546 = vshll.u32 %v388, 16
      %v548 = vrot.slane %v546, 1
      %v549 = vor.u32 %v544, %v548
      %550 = vrot.lane.b32.xlu0 %v549, 64
      %v551 = vpop.permute.xlu0 %550
      %v553 = vrot.slane %v388, 1
      %v555 = vsel %vm478, %v388, %v551
      %v557 = vunpack.c.l.b16 %v555
      %v558 = vunpack.c.l.b16 %v553
      %v559 = vld [vmem:[%s1 + $0x60] sm:$0xf]
      %v560 = vld [vmem:[%s1 + $0x64] sm:$0xf]
      %v561 = vld [vmem:[%s1 + $0x68] sm:$0xf]
      %v562 = vld [vmem:[%s1 + $0x6c] sm:$0xf]
      %v563 = vld [vmem:[%s1 + $0x70] sm:$0xf]
      %v564 = vld [vmem:[%s1 + $0x74] sm:$0xf]
      %v565 = vld [vmem:[%s1 + $0x78] sm:$0xf]
      %v566 = vld [vmem:[%s1 + $0x7c] sm:$0xf]
      %v567 = vld [vmem:[%s1 + $0x80] sm:$0xf]
      %v568 = vld [vmem:[%s1 + $0x84] sm:$0xf]
      %v569 = vld [vmem:[%s1 + $0x88] sm:$0xf]
      %v570 = vld [vmem:[%s1 + $0x8c] sm:$0xf]
      %v571 = vld [vmem:[%s1 + $0x90] sm:$0xf]
      %v572 = vld [vmem:[%s1 + $0x94] sm:$0xf]
      %v573 = vld [vmem:[%s1 + $0x98] sm:$0xf]
      %v574 = vld [vmem:[%s1 + $0x9c] sm:$0xf]
      %v575 = vld [vmem:[%s1 + $0xa0] sm:$0xf]
      %v576 = vld [vmem:[%s1 + $0xa4] sm:$0xf]
      %v577 = vld [vmem:[%s1 + $0xa8] sm:$0xf]
      %v578 = vld [vmem:[%s1 + $0xac] sm:$0xf]
      %v579 = vld [vmem:[%s1 + $0xb0] sm:$0xf]
      %v580 = vld [vmem:[%s1 + $0xb4] sm:$0xf]
      %v581 = vld [vmem:[%s1 + $0xb8] sm:$0xf]
      %v582 = vld [vmem:[%s1 + $0xbc] sm:$0xf]
      %v583 = vpack.c.b16 %v507, %v505
      %v584 = vpack.c.b16 %v508, %v506
      %v585 = vpack.c.b16 %v511, %v509
      %v586 = vpack.c.b16 %v512, %v510
      %v587 = vpack.c.b16 %v515, %v513
      %v588 = vpack.c.b16 %v516, %v514
      %v589 = vpack.c.b16 %v557, %v517
      %v590 = vpack.c.b16 %v558, %v518
      %v619 = vunpack.c.l.b16 %v559
      %v620 = vunpack.c.l.b16 %v560
      %v621 = vunpack.c.l.b16 %v561
      %v622 = vunpack.c.l.b16 %v562
      %v623 = vunpack.c.l.b16 %v563
      %v624 = vunpack.c.l.b16 %v564
      %v625 = vunpack.c.l.b16 %v565
      %v626 = vunpack.c.l.b16 %v566
      %v627 = vunpack.c.l.b16 %v567
      %v628 = vunpack.c.l.b16 %v568
      %v629 = vunpack.c.l.b16 %v569
      %v630 = vunpack.c.l.b16 %v570
      %v631 = vunpack.c.l.b16 %v571
      %v632 = vunpack.c.l.b16 %v572
      %v633 = vunpack.c.l.b16 %v573
      %v634 = vunpack.c.l.b16 %v574
      %v635 = vunpack.c.l.b16 %v575
      %v636 = vunpack.c.l.b16 %v576
      %v637 = vunpack.c.l.b16 %v577
      %v638 = vunpack.c.l.b16 %v578
      %v639 = vunpack.c.l.b16 %v579
      %v640 = vunpack.c.l.b16 %v580
      %v641 = vunpack.c.l.b16 %v581
      %v642 = vunpack.c.l.b16 %v582
      %v643 = vpack.c.b16 %v620, %v619
      %v644 = vpack.c.b16 %v622, %v621
      %v645 = vpack.c.b16 %v624, %v623
      %v646 = vpack.c.b16 %v626, %v625
      %v647 = vpack.c.b16 %v628, %v627
      %v648 = vpack.c.b16 %v630, %v629
      %v649 = vpack.c.b16 %v632, %v631
      %v650 = vpack.c.b16 %v634, %v633
      %v651 = vpack.c.b16 %v636, %v635
      %v652 = vpack.c.b16 %v638, %v637
      %v653 = vpack.c.b16 %v640, %v639
      %v654 = vpack.c.b16 %v642, %v641
      %v668 = vsel %vm478, %v584, 0
      %v671 = vsel %vm478, %v586, 0
      %v674 = vsel %vm478, %v588, 0
      %v677 = vsel %vm478, %v590, 0
      %679 = vmatprep.subr.bf16.mxu0 0
      %680 = vmatpush1.bf16.msra.mxu0 %v643
      %681 = vmatprep.subr.bf16.mxu0 0
      %682 = vmatpush1.bf16.msra.mxu0 %v644
      %683 = vmatprep.subr.bf16.mxu0 0
      %684 = vmatpush1.bf16.msra.mxu0 %v645
      %685 = vmatprep.subr.bf16.mxu0 0
      %686 = vmatpush1.bf16.msra.mxu0 %v646
      %687 = vmatprep.subr.bf16.mxu0 0
      %688 = vmatpush1.bf16.msra.mxu0 %v647
      %689 = vmatprep.subr.bf16.mxu0 0
      %690 = vmatpush1.bf16.msra.mxu0 %v648
      %691 = vmatprep.subr.bf16.mxu0 0
      %692 = vmatpush1.bf16.msra.mxu0 %v649
      %693 = vmatprep.subr.bf16.mxu0 0
      %694 = vmatpush1.bf16.msra.mxu0 %v650
      %695 = vmatprep.subr.bf16.mxu0 0
      %696 = vmatpush1.bf16.msra.mxu0 %v651
      %697 = vmatprep.subr.bf16.mxu0 0
      %698 = vmatpush1.bf16.msra.mxu0 %v652
      %699 = vmatprep.subr.bf16.mxu0 0
      %700 = vmatpush1.bf16.msra.mxu0 %v653
      %701 = vmatprep.subr.bf16.mxu0 0
      %702 = vmatpush1.bf16.msra.mxu0 %v654
      %703 = vmatprep.subr.bf16.mxu0 0
      %704 = vmatpush1.bf16.msra.mxu0 0
      %705 = vmatprep.subr.bf16.mxu0 0
      %706 = vmatpush1.bf16.msra.mxu0 0
      %707 = vmatprep.subr.bf16.mxu0 0
      %708 = vmatpush1.bf16.msra.mxu0 0
      %709 = vmatprep.subr.bf16.mxu0 0
      %710 = vmatpush1.bf16.msra.mxu0 0
      %711 = vmatprep.mubr.bf16.mxu0 %v668
      %712 = vmatmul.mubr.bf16.gmra.mrb[0].mxu0 %v583
      %v713 = vpop.f32.mrb[0].mxu0
      %v714 = vadd.f32 0.0, %v713
      %v715 = vpop.f32.mrb[0].mxu0
      %v716 = vpop.f32.mrb[0].mxu0
      %v717 = vadd.f32 0.0, %v716
      %v718 = vpop.f32.mrb[0].mxu0
      %719 = vmatprep.mubr.bf16.mxu0 %v671
      %720 = vmatmul.mubr.bf16.gmra.mrb[0].mxu0 %v585
      %v721 = vpop.f32.mrb[0].mxu0
      %v722 = vadd.f32 0.0, %v721
      %v723 = vpop.f32.mrb[0].mxu0
      %v724 = vpop.f32.mrb[0].mxu0
      %v725 = vadd.f32 0.0, %v724
      %v726 = vpop.f32.mrb[0].mxu0
      %727 = vmatprep.mubr.bf16.mxu0 %v674
      %728 = vmatmul.mubr.bf16.gmra.mrb[0].mxu0 %v587
      %v729 = vpop.f32.mrb[0].mxu0
      %v730 = vadd.f32 0.0, %v729
      %v731 = vpop.f32.mrb[0].mxu0
      %v732 = vpop.f32.mrb[0].mxu0
      %v733 = vadd.f32 0.0, %v732
      %v734 = vpop.f32.mrb[0].mxu0
      %735 = vmatprep.mubr.bf16.mxu0 %v677
      %736 = vmatmul.mubr.bf16.gmra.mrb[0].mxu0 %v589
      %v737 = vpop.f32.mrb[0].mxu0
      %v738 = vadd.f32 0.0, %v737
      %v739 = vpop.f32.mrb[0].mxu0
      %v740 = vpop.f32.mrb[0].mxu0
      %v741 = vadd.f32 0.0, %v740
      %v742 = vpop.f32.mrb[0].mxu0
      %743 = vdwg.mxu0
      %v744 = vpack.c.b16 %v505, %v503
      %v745 = vpack.c.b16 %v506, %v504
      %v746 = vpack.c.b16 %v509, %v507
      %v747 = vpack.c.b16 %v510, %v508
      %v748 = vpack.c.b16 %v513, %v511
      %v749 = vpack.c.b16 %v514, %v512
      %v750 = vpack.c.b16 %v517, %v515
      %v751 = vpack.c.b16 %v518, %v516
      %v780 = vunpack.c.l.b16 %v519
      %v781 = vunpack.c.l.b16 %v520
      %v782 = vunpack.c.l.b16 %v521
      %v783 = vunpack.c.l.b16 %v522
      %v784 = vunpack.c.l.b16 %v523
      %v785 = vunpack.c.l.b16 %v524
      %v786 = vunpack.c.l.b16 %v525
      %v787 = vunpack.c.l.b16 %v526
      %v788 = vunpack.c.l.b16 %v527
      %v789 = vunpack.c.l.b16 %v528
      %v790 = vunpack.c.l.b16 %v529
      %v791 = vunpack.c.l.b16 %v530
      %v792 = vunpack.c.l.b16 %v531
      %v793 = vunpack.c.l.b16 %v532
      %v794 = vunpack.c.l.b16 %v533
      %v795 = vunpack.c.l.b16 %v534
      %v796 = vunpack.c.l.b16 %v535
      %v797 = vunpack.c.l.b16 %v536
      %v798 = vunpack.c.l.b16 %v537
      %v799 = vunpack.c.l.b16 %v538
      %v800 = vunpack.c.l.b16 %v539
      %v801 = vunpack.c.l.b16 %v540
      %v802 = vunpack.c.l.b16 %v541
      %v803 = vunpack.c.l.b16 %v542
      %v804 = vpack.c.b16 %v781, %v780
      %v805 = vpack.c.b16 %v783, %v782
      %v806 = vpack.c.b16 %v785, %v784
      %v807 = vpack.c.b16 %v787, %v786
      %v808 = vpack.c.b16 %v789, %v788
      %v809 = vpack.c.b16 %v791, %v790
      %v810 = vpack.c.b16 %v793, %v792
      %v811 = vpack.c.b16 %v795, %v794
      %v812 = vpack.c.b16 %v797, %v796
      %v813 = vpack.c.b16 %v799, %v798
      %v814 = vpack.c.b16 %v801, %v800
      %v815 = vpack.c.b16 %v803, %v802
      %v829 = vsel %vm478, %v745, 0
      %v832 = vsel %vm478, %v747, 0
      %v835 = vsel %vm478, %v749, 0
      %v838 = vsel %vm478, %v751, 0
      %840 = vmatprep.subr.bf16.mxu0 0
      %841 = vmatpush1.bf16.msra.mxu0 %v804
      %842 = vmatprep.subr.bf16.mxu0 0
      %843 = vmatpush1.bf16.msra.mxu0 %v805
      %844 = vmatprep.subr.bf16.mxu0 0
      %845 = vmatpush1.bf16.msra.mxu0 %v806
      %846 = vmatprep.subr.bf16.mxu0 0
      %847 = vmatpush1.bf16.msra.mxu0 %v807
      %848 = vmatprep.subr.bf16.mxu0 0
      %849 = vmatpush1.bf16.msra.mxu0 %v808
      %850 = vmatprep.subr.bf16.mxu0 0
      %851 = vmatpush1.bf16.msra.mxu0 %v809
      %852 = vmatprep.subr.bf16.mxu0 0
      %853 = vmatpush1.bf16.msra.mxu0 %v810
      %854 = vmatprep.subr.bf16.mxu0 0
      %855 = vmatpush1.bf16.msra.mxu0 %v811
      %856 = vmatprep.subr.bf16.mxu0 0
      %857 = vmatpush1.bf16.msra.mxu0 %v812
      %858 = vmatprep.subr.bf16.mxu0 0
      %859 = vmatpush1.bf16.msra.mxu0 %v813
      %860 = vmatprep.subr.bf16.mxu0 0
      %861 = vmatpush1.bf16.msra.mxu0 %v814
      %862 = vmatprep.subr.bf16.mxu0 0
      %863 = vmatpush1.bf16.msra.mxu0 %v815
      %864 = vmatprep.subr.bf16.mxu0 0
      %865 = vmatpush1.bf16.msra.mxu0 0
      %866 = vmatprep.subr.bf16.mxu0 0
      %867 = vmatpush1.bf16.msra.mxu0 0
      %868 = vmatprep.subr.bf16.mxu0 0
      %869 = vmatpush1.bf16.msra.mxu0 0
      %870 = vmatprep.subr.bf16.mxu0 0
      %871 = vmatpush1.bf16.msra.mxu0 0
      %872 = vmatprep.mubr.bf16.mxu0 %v829
      %873 = vmatmul.mubr.bf16.gmra.mrb[0].mxu0 %v744
      %v874 = vpop.f32.mrb[0].mxu0
      %v875 = vadd.f32 %v714, %v874
      %v876 = vpop.f32.mrb[0].mxu0
      %v877 = vpop.f32.mrb[0].mxu0
      %v878 = vadd.f32 %v717, %v877
      %v879 = vpop.f32.mrb[0].mxu0
      %880 = vmatprep.mubr.bf16.mxu0 %v832
      %881 = vmatmul.mubr.bf16.gmra.mrb[0].mxu0 %v746
      %v882 = vpop.f32.mrb[0].mxu0
      %v883 = vadd.f32 %v722, %v882
      %v884 = vpop.f32.mrb[0].mxu0
      %v885 = vpop.f32.mrb[0].mxu0
      %v886 = vadd.f32 %v725, %v885
      %v887 = vpop.f32.mrb[0].mxu0
      %888 = vmatprep.mubr.bf16.mxu0 %v835
      %889 = vmatmul.mubr.bf16.gmra.mrb[0].mxu0 %v748
      %v890 = vpop.f32.mrb[0].mxu0
      %v891 = vadd.f32 %v730, %v890
      %v892 = vpop.f32.mrb[0].mxu0
      %v893 = vpop.f32.mrb[0].mxu0
      %v894 = vadd.f32 %v733, %v893
      %v895 = vpop.f32.mrb[0].mxu0
      %896 = vmatprep.mubr.bf16.mxu0 %v838
      %897 = vmatmul.mubr.bf16.gmra.mrb[0].mxu0 %v750
      %v898 = vpop.f32.mrb[0].mxu0
      %v899 = vadd.f32 %v738, %v898
      %v900 = vpop.f32.mrb[0].mxu0
      %v901 = vpop.f32.mrb[0].mxu0
      %v902 = vadd.f32 %v741, %v901
      %v903 = vpop.f32.mrb[0].mxu0
      %904 = vdwg.mxu0
      %v906 = vshrl.u32 %v389, 16
      %v908 = vshll.u32 %v389, 16
      %v910 = vrot.slane %v908, 1
      %v911 = vor.u32 %v906, %v910
      %912 = vrot.lane.b32.xlu0 %v911, 64
      %v913 = vpop.permute.xlu0 %912
      %v915 = vrot.slane %v389, 1
      %v917 = vsel %vm478, %v389, %v913
      %v919 = vunpack.c.l.b16 %v917
      %v920 = vunpack.c.l.b16 %v915
      %v921 = vld [vmem:[%s1 + $0xc0] sm:$0xf]
      %v922 = vld [vmem:[%s1 + $0xc4] sm:$0xf]
      %v923 = vld [vmem:[%s1 + $0xc8] sm:$0xf]
      %v924 = vld [vmem:[%s1 + $0xcc] sm:$0xf]
      %v925 = vld [vmem:[%s1 + $0xd0] sm:$0xf]
      %v926 = vld [vmem:[%s1 + $0xd4] sm:$0xf]
      %v927 = vld [vmem:[%s1 + $0xd8] sm:$0xf]
      %v928 = vld [vmem:[%s1 + $0xdc] sm:$0xf]
      %v929 = vld [vmem:[%s1 + $0xe0] sm:$0xf]
      %v930 = vld [vmem:[%s1 + $0xe4] sm:$0xf]
      %v931 = vld [vmem:[%s1 + $0xe8] sm:$0xf]
      %v932 = vld [vmem:[%s1 + $0xec] sm:$0xf]
      %v933 = vld [vmem:[%s1 + $0xf0] sm:$0xf]
      %v934 = vld [vmem:[%s1 + $0xf4] sm:$0xf]
      %v935 = vld [vmem:[%s1 + $0xf8] sm:$0xf]
      %v936 = vld [vmem:[%s1 + $0xfc] sm:$0xf]
      %v937 = vld [vmem:[%s1 + $0x100] sm:$0xf]
      %v938 = vld [vmem:[%s1 + $0x104] sm:$0xf]
      %v939 = vld [vmem:[%s1 + $0x108] sm:$0xf]
      %v940 = vld [vmem:[%s1 + $0x10c] sm:$0xf]
      %v941 = vld [vmem:[%s1 + $0x110] sm:$0xf]
      %v942 = vld [vmem:[%s1 + $0x114] sm:$0xf]
      %v943 = vld [vmem:[%s1 + $0x118] sm:$0xf]
      %v944 = vld [vmem:[%s1 + $0x11c] sm:$0xf]
      %v945 = vpack.c.b16 %v919, %v557
      %v946 = vpack.c.b16 %v920, %v558
      %v972 = vunpack.c.l.b16 %v921
      %v973 = vunpack.c.l.b16 %v922
      %v974 = vunpack.c.l.b16 %v923
      %v975 = vunpack.c.l.b16 %v924
      %v976 = vunpack.c.l.b16 %v925
      %v977 = vunpack.c.l.b16 %v926
      %v978 = vunpack.c.l.b16 %v927
      %v979 = vunpack.c.l.b16 %v928
      %v980 = vunpack.c.l.b16 %v929
      %v981 = vunpack.c.l.b16 %v930
      %v982 = vunpack.c.l.b16 %v931
      %v983 = vunpack.c.l.b16 %v932
      %v984 = vunpack.c.l.b16 %v933
      %v985 = vunpack.c.l.b16 %v934
      %v986 = vunpack.c.l.b16 %v935
      %v987 = vunpack.c.l.b16 %v936
      %v988 = vunpack.c.l.b16 %v937
      %v989 = vunpack.c.l.b16 %v938
      %v990 = vunpack.c.l.b16 %v939
      %v991 = vunpack.c.l.b16 %v940
      %v992 = vunpack.c.l.b16 %v941
      %v993 = vunpack.c.l.b16 %v942
      %v994 = vunpack.c.l.b16 %v943
      %v995 = vunpack.c.l.b16 %v944
      %v996 = vpack.c.b16 %v973, %v972
      %v997 = vpack.c.b16 %v975, %v974
      %v998 = vpack.c.b16 %v977, %v976
      %v999 = vpack.c.b16 %v979, %v978
      %v1000 = vpack.c.b16 %v981, %v980
      %v1001 = vpack.c.b16 %v983, %v982
      %v1002 = vpack.c.b16 %v985, %v984
      %v1003 = vpack.c.b16 %v987, %v986
      %v1004 = vpack.c.b16 %v989, %v988
      %v1005 = vpack.c.b16 %v991, %v990
      %v1006 = vpack.c.b16 %v993, %v992
      %v1007 = vpack.c.b16 %v995, %v994
      %v1021 = vsel %vm478, %v946, 0
      %1023 = vmatprep.subr.bf16.mxu0 0
      %1024 = vmatpush1.bf16.msra.mxu0 %v996
      %1025 = vmatprep.subr.bf16.mxu0 0
      %1026 = vmatpush1.bf16.msra.mxu0 %v997
      %1027 = vmatprep.subr.bf16.mxu0 0
      %1028 = vmatpush1.bf16.msra.mxu0 %v998
      %1029 = vmatprep.subr.bf16.mxu0 0
      %1030 = vmatpush1.bf16.msra.mxu0 %v999
      %1031 = vmatprep.subr.bf16.mxu0 0
      %1032 = vmatpush1.bf16.msra.mxu0 %v1000
      %1033 = vmatprep.subr.bf16.mxu0 0
      %1034 = vmatpush1.bf16.msra.mxu0 %v1001
      %1035 = vmatprep.subr.bf16.mxu0 0
      %1036 = vmatpush1.bf16.msra.mxu0 %v1002
      %1037 = vmatprep.subr.bf16.mxu0 0
      %1038 = vmatpush1.bf16.msra.mxu0 %v1003
      %1039 = vmatprep.subr.bf16.mxu0 0
      %1040 = vmatpush1.bf16.msra.mxu0 %v1004
      %1041 = vmatprep.subr.bf16.mxu0 0
      %1042 = vmatpush1.bf16.msra.mxu0 %v1005
      %1043 = vmatprep.subr.bf16.mxu0 0
      %1044 = vmatpush1.bf16.msra.mxu0 %v1006
      %1045 = vmatprep.subr.bf16.mxu0 0
      %1046 = vmatpush1.bf16.msra.mxu0 %v1007
      %1047 = vmatprep.subr.bf16.mxu0 0
      %1048 = vmatpush1.bf16.msra.mxu0 0
      %1049 = vmatprep.subr.bf16.mxu0 0
      %1050 = vmatpush1.bf16.msra.mxu0 0
      %1051 = vmatprep.subr.bf16.mxu0 0
      %1052 = vmatpush1.bf16.msra.mxu0 0
      %1053 = vmatprep.subr.bf16.mxu0 0
      %1054 = vmatpush1.bf16.msra.mxu0 0
      %1055 = vmatprep.mubr.bf16.mxu0 %v832
      %1056 = vmatmul.mubr.bf16.gmra.mrb[0].mxu0 %v746
      %v1057 = vpop.f32.mrb[0].mxu0
      %v1058 = vadd.f32 0.0, %v1057
      %v1059 = vpop.f32.mrb[0].mxu0
      %v1060 = vpop.f32.mrb[0].mxu0
      %v1061 = vadd.f32 0.0, %v1060
      %v1062 = vpop.f32.mrb[0].mxu0
      %1063 = vmatprep.mubr.bf16.mxu0 %v835
      %1064 = vmatmul.mubr.bf16.gmra.mrb[0].mxu0 %v748
      %v1065 = vpop.f32.mrb[0].mxu0
      %v1066 = vadd.f32 0.0, %v1065
      %v1067 = vpop.f32.mrb[0].mxu0
      %v1068 = vpop.f32.mrb[0].mxu0
      %v1069 = vadd.f32 0.0, %v1068
      %v1070 = vpop.f32.mrb[0].mxu0
      %1071 = vmatprep.mubr.bf16.mxu0 %v838
      %1072 = vmatmul.mubr.bf16.gmra.mrb[0].mxu0 %v750
      %v1073 = vpop.f32.mrb[0].mxu0
      %v1074 = vadd.f32 0.0, %v1073
      %v1075 = vpop.f32.mrb[0].mxu0
      %v1076 = vpop.f32.mrb[0].mxu0
      %v1077 = vadd.f32 0.0, %v1076
      %v1078 = vpop.f32.mrb[0].mxu0
      %1079 = vmatprep.mubr.bf16.mxu0 %v1021
      %1080 = vmatmul.mubr.bf16.gmra.mrb[0].mxu0 %v945
      %v1081 = vpop.f32.mrb[0].mxu0
      %v1082 = vadd.f32 0.0, %v1081
      %v1083 = vpop.f32.mrb[0].mxu0
      %v1084 = vpop.f32.mrb[0].mxu0
      %v1085 = vadd.f32 0.0, %v1084
      %v1086 = vpop.f32.mrb[0].mxu0
      %1087 = vdwg.mxu0
      %v1088 = vadd.f32 %v875, %v1058
      %v1089 = vadd.f32 %v878, %v1061
      %v1090 = vadd.f32 %v883, %v1066
      %v1091 = vadd.f32 %v886, %v1069
      %v1092 = vadd.f32 %v891, %v1074
      %v1093 = vadd.f32 %v894, %v1077
      %v1094 = vadd.f32 %v899, %v1082
      %v1095 = vadd.f32 %v902, %v1085
      %v1096 = vld [vmem:[%s2] sm:$0x1]
      %v1098 = vlaneseq
      %v1099 = vshrl.u32 %v1098, 7
      %v1100 = vsub.s32 0, %v1099
      %v1101 = vrot.slane %v1096, %v1100
      %v1103 = vadd.f32 %v1088, %v1101
      %v1104 = vadd.f32 %v1089, %v1101
      %v1105 = vadd.f32 %v1090, %v1101
      %v1106 = vadd.f32 %v1091, %v1101
      %v1107 = vadd.f32 %v1092, %v1101
      %v1108 = vadd.f32 %v1093, %v1101
      %v1109 = vadd.f32 %v1094, %v1101
      %v1110 = vadd.f32 %v1095, %v1101
      %v1111 = vmax.f32 %v1103, 0.0
      %v1112 = vmax.f32 %v1104, 0.0
      %v1113 = vmax.f32 %v1105, 0.0
      %v1114 = vmax.f32 %v1106, 0.0
      %v1115 = vmax.f32 %v1107, 0.0
      %v1116 = vmax.f32 %v1108, 0.0
      %v1117 = vmax.f32 %v1109, 0.0
      %v1118 = vmax.f32 %v1110, 0.0
      %v1119 = vpack.c.bf16 %v1111, %v1111
      %v1120 = vpack.c.bf16 %v1112, %v1112
      %v1121 = vpack.c.bf16 %v1113, %v1113
      %v1122 = vpack.c.bf16 %v1114, %v1114
      %v1123 = vpack.c.bf16 %v1115, %v1115
      %v1124 = vpack.c.bf16 %v1116, %v1116
      %v1125 = vpack.c.bf16 %v1117, %v1117
      %v1126 = vpack.c.bf16 %v1118, %v1118
      %1127 = vst [vmem:[%s192] sm:$0xf] %v1119
      %1128 = vst [vmem:[%s192 + $0x4] sm:$0xf] %v1120
      %1129 = vst [vmem:[%s192 + $0x8] sm:$0xf] %v1121
      %1130 = vst [vmem:[%s192 + $0xc] sm:$0xf] %v1122
      %1131 = vst [vmem:[%s192 + $0x10] sm:$0xf] %v1123
      %1132 = vst [vmem:[%s192 + $0x14] sm:$0xf] %v1124
      %1133 = vst [vmem:[%s192 + $0x18] sm:$0xf] %v1125
      %1134 = vst [vmem:[%s192 + $0x1c] sm:$0xf] %v1126
      %s1135 = smul.u32 8, %s19
      %p1136 = scmp.lt.s32.totalorder %s18, 1
      %s1137 = scalar_select %p1136, %s18, 1
      %p1138 = scmp.lt.s32.totalorder %s1135, 7
      %s1139 = scalar_select %p1138, %s1135, 7
      %s1140 = smul.addr %s1137, 8
      %s1141 = sadd.s32 %s1139, %s1140
      %s1142 = smul.addr %s1141, 4
      %s1143 = scalar_lea.vmem %s3, %s1142
      // Predicated region
      $region33: #{_lambda_.5} parent=31 // pred_check
        %p1144 = pneg %p114
      $region34: #{_lambda_.5} parent=31 // pred_check_branch
        %1146 = sbr.rel (%p1144) target = $region36
      $region35: #{_lambda_.5} parent=31 // pred_region
        %s1147 = smul.u32 8, %s19
      $region36: #{_lambda_.5} parent=31 // pred_fallthru
        _
    $region32: #{_lambda_.5} parent=5 // pred_fallthru
      _
    %p1148 = scmp.le.s32.totalorder 2, %s9
    // Predicated region
    $region37: #{_lambda_.5} parent=5 // pred_check
      %p1149 = pneg %p1148
    $region38: #{_lambda_.5} parent=5 // pred_check_branch
      %1151 = sbr.rel (%p1149) target = $region40
    $region39: #{_lambda_.5} parent=5 // pred_region
      %s1152 = ssub.s32 %s9, 2
      // Predicated region
      $region41: #{_lambda_.5} parent=39 // pred_check
        %p1153 = pneg %p120
      $region42: #{_lambda_.5} parent=39 // pred_check_branch
        %1155 = sbr.rel (%p1153) target = $region44
      $region43: #{_lambda_.5} parent=39 // pred_region
        %s1156 = smul.u32 8, %s21
        %p1157 = scmp.lt.s32.totalorder %s20, 1
        %s1158 = scalar_select %p1157, %s20, 1
        %p1159 = scmp.lt.s32.totalorder %s1156, 7
        %s1160 = scalar_select %p1159, %s1156, 7
        %s1161 = smul.addr %s1158, 8
        %s1162 = sadd.s32 %s1160, %s1161
        %s1163 = smul.addr %s1162, 4
        %s1164 = scalar_lea.vmem %s3, %s1163
      $region44: #{_lambda_.5} parent=39 // pred_fallthru
        _
    $region40: #{_lambda_.5} parent=5 // pred_fallthru
      _
  $region6: #{_lambda_.5} parent=0 // loop_footer
    %s13 = sadd.s32 1, %s9
  $region7: #{_lambda_.5} parent=0 // loop_footer_branch
    %8 = sbr.rel target = $region3
  $region8: #{_lambda_.5} parent=0 // loop_exit
    _

// kernel: _lambda_.6
$region0: #{_lambda_.6}
  #allocation0 [shape = 'u32[]', space=smem, size = 0x4, offset = 0x4, fixed_abs, tag = 'smem constant byte address 0x4 - core index']
  #allocation1 [shape = 'u32[144,128]{1,0:T(1,128)}', space=vmem, size = 0x12000, scoped, tag = 'internal scratch']
  %s0 = inlined_call_operand.vmem [shape: bf16[2,8,8,128], index: 0, kind: input, shape index: {}]
  %s1 = inlined_call_operand.vmem [shape: bf16[1152,128], index: 1, kind: input, shape index: {}]
  %s2 = inlined_call_operand.vmem [shape: f32[1,128], index: 2, kind: input, shape index: {}]
  %s3 = inlined_call_operand.vmem [shape: bf16[2,4,4,128], index: 3, kind: output, shape index: {}]
  %s4 = sld [smem:[#allocation0]]
  $region45: #{_lambda_.6} parent=0
    _
  %s6 = ssub.s32 1, %s4
  %s7 = scalar_select 0, %s6, %s4
  loop: start=0, step=1, limit=4
  $region2: #{_lambda_.6} parent=0 // loop_pre_header
    _
  $region3: #{_lambda_.6} parent=0 // loop_header
    %s9 = sphi 0, %s13
    %p10 = scmp.ge.s32.totalorder %s9, 4
    %s16 = sphi 0, %s28
    %s17 = sphi 0, %s24
    %s18 = sphi 0, %s16
    %s19 = sphi 0, %s17
    %s20 = sphi 0, %s18
    %s21 = sphi 0, %s19
    %s31 = sphi 0, %s33
    %s34 = sphi 0, %s31
    %s35 = sphi 0, %s34
    %s51 = sphi 0, %s35
    %s55 = sphi 0, %s55
    %s57 = sphi 0, %s55
    %s58 = sphi 0, %s57
    %s72 = sphi 0, %s58
    %s76 = sphi 0, %s76
    %s78 = sphi 0, %s76
    %s79 = sphi 0, %s78
    %s93 = sphi 0, %s79
    %s101 = sphi 0, %s103
    %s104 = sphi 0, %s101
    %s105 = sphi 0, %s104
    %s121 = sphi 0, %s105
  $region4: #{_lambda_.6} parent=0 // loop_header_branch
    %12 = sbr.rel (%p10) target = $region8
  $region5: #{_lambda_.6} parent=0 // loop_body
    %s14 = ssub.s32 %s9, 1
    %s15 = ssub.s32 %s9, 2
    %s22 = sadd.s32 1, %s17
    %p23 = scmp.ge.s32.totalorder %s22, 1
    %s24 = scalar_select %p23, 0, %s22
    %s25 = sadd.s32 1, %s16
    %s26 = scalar_select %p23, %s25, %s16
    %p27 = scmp.ge.s32.totalorder %s26, 2
    %s28 = scalar_select %p27, 0, %s26
    %s29 = ssub.s32 %s16, %s28
    %p30 = scmp.eq.s32.totalorder %s29, 0
    %s32 = sadd.s32 %s31, 1
    %s33 = scalar_select %p30, %s31, %s32
    %p36 = pneg %p30
    %p37 = scmp.eq.s32.totalorder %s9, 1
    %p38 = por %p36, %p37
    %p39 = scmp.ne.s32.totalorder %s31, %s34
    %p40 = scmp.eq.s32.totalorder %s9, 0
    %p41 = por %p39, %p40
    %p42 = scmp.ne.s32.totalorder %s31, %s34
    %p43 = scmp.eq.s32.totalorder %s14, 1
    %p44 = por %p42, %p43
    %p45 = scmp.ne.s32.totalorder %s34, %s35
    %p46 = scmp.eq.s32.totalorder %s14, 0
    %p47 = por %p45, %p46
    %p48 = scmp.ne.s32.totalorder %s34, %s35
    %p49 = scmp.eq.s32.totalorder %s15, 1
    %p50 = por %p48, %p49
    %p52 = scmp.ne.s32.totalorder %s35, %s51
    %p53 = scmp.eq.s32.totalorder %s15, 0
    %p54 = por %p52, %p53
    %s56 = sadd.s32 %s55, 1
    %p59 = scmp.eq.s32.totalorder %s9, 1
    %p60 = scmp.ne.s32.totalorder %s55, %s57
    %p61 = scmp.eq.s32.totalorder %s9, 0
    %p62 = por %p60, %p61
    %p63 = scmp.ne.s32.totalorder %s55, %s57
    %p64 = scmp.eq.s32.totalorder %s14, 1
    %p65 = por %p63, %p64
    %p66 = scmp.ne.s32.totalorder %s57, %s58
    %p67 = scmp.eq.s32.totalorder %s14, 0
    %p68 = por %p66, %p67
    %p69 = scmp.ne.s32.totalorder %s57, %s58
    %p70 = scmp.eq.s32.totalorder %s15, 1
    %p71 = por %p69, %p70
    %p73 = scmp.ne.s32.totalorder %s58, %s72
    %p74 = scmp.eq.s32.totalorder %s15, 0
    %p75 = por %p73, %p74
    %s77 = sadd.s32 %s76, 1
    %p80 = scmp.eq.s32.totalorder %s9, 1
    %p81 = scmp.ne.s32.totalorder %s76, %s78
    %p82 = scmp.eq.s32.totalorder %s9, 0
    %p83 = por %p81, %p82
    %p84 = scmp.ne.s32.totalorder %s76, %s78
    %p85 = scmp.eq.s32.totalorder %s14, 1
    %p86 = por %p84, %p85
    %p87 = scmp.ne.s32.totalorder %s78, %s79
    %p88 = scmp.eq.s32.totalorder %s14, 0
    %p89 = por %p87, %p88
    %p90 = scmp.ne.s32.totalorder %s78, %s79
    %p91 = scmp.eq.s32.totalorder %s15, 1
    %p92 = por %p90, %p91
    %p94 = scmp.ne.s32.totalorder %s79, %s93
    %p95 = scmp.eq.s32.totalorder %s15, 0
    %p96 = por %p94, %p95
    %s97 = ssub.s32 %s16, %s28
    %s98 = ssub.s32 %s17, %s24
    %s99 = sor.u32 %s97, %s98
    %p100 = scmp.eq.s32.totalorder %s99, 0
    %s102 = sadd.s32 %s101, 1
    %s103 = scalar_select %p100, %s101, %s102
    %p106 = pneg %p100
    %p107 = scmp.eq.s32.totalorder %s9, 1
    %p108 = por %p106, %p107
    %p109 = scmp.ne.s32.totalorder %s101, %s104
    %p110 = scmp.eq.s32.totalorder %s9, 0
    %p111 = por %p109, %p110
    %p112 = scmp.ne.s32.totalorder %s101, %s104
    %p113 = scmp.eq.s32.totalorder %s14, 1
    %p114 = por %p112, %p113
    %p115 = scmp.ne.s32.totalorder %s104, %s105
    %p116 = scmp.eq.s32.totalorder %s14, 0
    %p117 = por %p115, %p116
    %p118 = scmp.ne.s32.totalorder %s104, %s105
    %p119 = scmp.eq.s32.totalorder %s15, 1
    %p120 = por %p118, %p119
    %p122 = scmp.ne.s32.totalorder %s105, %s121
    %p123 = scmp.eq.s32.totalorder %s15, 0
    %p124 = por %p122, %p123
    %p125 = scmp.le.s32.totalorder 1, %s9
    %p126 = scmp.lt.s32.totalorder %s9, 3
    %p127 = pnand %p125, %p126
    %p128 = pneg %p127
    // Predicated region
    $region9: #{_lambda_.6} parent=5 // pred_check
      _
    $region10: #{_lambda_.6} parent=5 // pred_check_branch
      %130 = sbr.rel (%p127) target = $region12
    $region11: #{_lambda_.6} parent=5 // pred_region
      %s131 = ssub.s32 %s9, 1
      // Predicated region
      $region13: #{_lambda_.6} parent=11 // pred_check
        %p132 = pneg %p68
      $region14: #{_lambda_.6} parent=11 // pred_check_branch
        %134 = sbr.rel (%p132) target = $region16
      $region15: #{_lambda_.6} parent=11 // pred_region
        _
      $region16: #{_lambda_.6} parent=11 // pred_fallthru
        _
      // Predicated region
      $region17: #{_lambda_.6} parent=11 // pred_check
        %p135 = pneg %p89
      $region18: #{_lambda_.6} parent=11 // pred_check_branch
        %137 = sbr.rel (%p135) target = $region20
      $region19: #{_lambda_.6} parent=11 // pred_region
        _
      $region20: #{_lambda_.6} parent=11 // pred_fallthru
        _
    $region12: #{_lambda_.6} parent=5 // pred_fallthru
      _
    %p138 = scmp.lt.s32.totalorder %s9, 2
    // Predicated region
    $region21: #{_lambda_.6} parent=5 // pred_check
      %p139 = pneg %p138
    $region22: #{_lambda_.6} parent=5 // pred_check_branch
      %141 = sbr.rel (%p139) target = $region24
    $region23: #{_lambda_.6} parent=5 // pred_region
      // Predicated region
      $region25: #{_lambda_.6} parent=23 // pred_check
        %p142 = pneg %p41
      $region26: #{_lambda_.6} parent=23 // pred_check_branch
        %144 = sbr.rel (%p142) target = $region28
      $region27: #{_lambda_.6} parent=23 // pred_region
        %p145 = scmp.lt.s32.totalorder %s16, 1
        %s146 = scalar_select %p145, %s16, 1
        %s147 = smul.addr %s146, 8
        %s148 = smul.addr %s147, 4
        %s149 = scalar_lea.vmem %s0, %s148
      $region28: #{_lambda_.6} parent=23 // pred_fallthru
        _
    $region24: #{_lambda_.6} parent=5 // pred_fallthru
      _
    %p150 = scmp.le.s32.totalorder 1, %s9
    %p151 = scmp.lt.s32.totalorder %s9, 3
    %p152 = pnand %p150, %p151
    %p153 = pneg %p152
    // Predicated region
    $region29: #{_lambda_.6} parent=5 // pred_check
      _
    $region30: #{_lambda_.6} parent=5 // pred_check_branch
      %155 = sbr.rel (%p152) target = $region32
    $region31: #{_lambda_.6} parent=5 // pred_region
      %s156 = ssub.s32 %s9, 1
      %p157 = scmp.lt.s32.totalorder %s18, 1
      %s158 = scalar_select %p157, %s18, 1
      %s159 = smul.addr %s158, 8
      %s160 = smul.addr %s159, 4
      %s161 = scalar_lea.vmem %s0, %s160
      %p162 = pneg %p47
      %p163 = pneg %p44
      %p164 = pneg %p68
      %p165 = pneg %p65
      %p166 = pneg %p89
      %p167 = pneg %p86
      %p168 = pneg %p117
      %p169 = pneg %p114
      %s170 = smul.u32 4, %s19
      %p171 = scmp.lt.s32.totalorder %s18, 1
      %s172 = scalar_select %p171, %s18, 1
      %p173 = scmp.lt.s32.totalorder %s170, 3
      %s174 = scalar_select %p173, %s170, 3
      %s175 = smul.addr %s172, 4
      %s176 = sadd.s32 %s174, %s175
      %s177 = smul.addr %s176, 2
      %s178 = scalar_lea.vmem %s3, %s177
      %p179 = scmp.lt.s32.totalorder %s18, 1
      %s180 = scalar_select %p179, %s18, 1
      %s181 = smul.addr %s180, 8
      %s182 = smul.addr %s181, 4
      %s183 = scalar_lea.vmem %s0, %s182
      %s184 = smul.u32 4, %s19
      %p185 = scmp.lt.s32.totalorder %s18, 1
      %s186 = scalar_select %p185, %s18, 1
      %p187 = scmp.lt.s32.totalorder %s184, 3
      %s188 = scalar_select %p187, %s184, 3
      %s189 = smul.addr %s186, 4
      %s190 = sadd.s32 %s188, %s189
      %s191 = smul.addr %s190, 2
      %s192 = scalar_lea.vmem %s3, %s191
      %s193 = smul.u32 4, %s19
      %s195 = smul.u32 %s19, 8
      %s196 = smul.addr %s195, 4
      %s197 = scalar_lea.vmem %s183, %s196
      %v198 = vld [vmem:[%s197] sm:$0xf]
      %v199 = vld [vmem:[%s197 + $0x4] sm:$0xf]
      %v200 = vld [vmem:[%s197 + $0x8] sm:$0xf]
      %v201 = vld [vmem:[%s197 + $0xc] sm:$0xf]
      %v202 = vld [vmem:[%s197 + $0x10] sm:$0xf]
      %v203 = vld [vmem:[%s197 + $0x14] sm:$0xf]
      %v204 = vld [vmem:[%s197 + $0x18] sm:$0xf]
      %v205 = vld [vmem:[%s197 + $0x1c] sm:$0xf]
      %s206 = ssub.s32 %s195, 1
      %p207 = scmp.gt.s32.totalorder %s206, 0
      %s208 = scalar_select %p207, %s206, 0
      %s209 = smul.addr %s208, 4
      %s210 = scalar_lea.vmem %s183, %s209
      %v211 = vld [vmem:[%s210] sm:$0xf]
      %p212 = scmp.gt.s32.totalorder %s195, 0
      %s213 = scalar_select %p212, 1, 0
      %s214 = scvt.s32.f32 %s213
      %p216 = scmp.ne.f32.partialorder %s214, %s214
      %s217 = sshrl.u32 %s214, 16
      %s218 = sand.u32 %s217, 1
      %s219 = sadd.s32 32767, %s218
      %s220 = sadd.s32 %s214, %s219
      %s221 = sand.u32 %s220, 4294901760
      %s222 = scalar_select %p216, 2143289344, %s221
      %s224 = sshrl.u32 %s222, 16
      %s225 = sshll.u32 %s224, 16
      %s226 = sor.u32 %s224, %s225
      %v227 = vstv %s226
      %v229 = vmul.bf16 %v211, %v227
      %s230 = sadd.s32 %s195, 8
      %p231 = scmp.lt.s32.totalorder %s230, 7
      %s232 = scalar_select %p231, %s230, 7
      %s233 = smul.addr %s232, 4
      %s234 = scalar_lea.vmem %s183, %s233
      %v235 = vld [vmem:[%s234] sm:$0xf]
      %p236 = scmp.lt.s32.totalorder %s230, 8
      %s237 = scalar_select %p236, 1, 0
      %s238 = scvt.s32.f32 %s237
      %p240 = scmp.ne.f32.partialorder %s238, %s238
      %s241 = sshrl.u32 %s238, 16
      %s242 = sand.u32 %s241, 1
      %s243 = sadd.s32 32767, %s242
      %s244 = sadd.s32 %s238, %s243
      %s245 = sand.u32 %s244, 4294901760
      %s246 = scalar_select %p240, 2143289344, %s245
      %s248 = sshrl.u32 %s246, 16
      %s249 = sshll.u32 %s248, 16
      %s250 = sor.u32 %s248, %s249
      %v251 = vstv %s250
      %v253 = vmul.bf16 %v235, %v251
      %v264 = vunpack.c.l.b16 %v229
      %v265 = vunpack.c.l.b16 %v198
      %v266 = vunpack.c.l.b16 %v199
      %v267 = vunpack.c.l.b16 %v200
      %v268 = vunpack.c.l.b16 %v201
      %v269 = vunpack.c.l.b16 %v202
      %v270 = vunpack.c.l.b16 %v203
      %v271 = vunpack.c.l.b16 %v204
      %v272 = vunpack.c.l.b16 %v205
      %v273 = vunpack.c.l.b16 %v253
      %v274 = vpack.c.b16 %v264, %v264
      %v275 = vpack.c.b16 %v265, %v265
      %v276 = vpack.c.b16 %v266, %v266
      %v277 = vpack.c.b16 %v267, %v267
      %v278 = vpack.c.b16 %v268, %v268
      %v279 = vpack.c.b16 %v269, %v269
      %v280 = vpack.c.b16 %v270, %v270
      %v281 = vpack.c.b16 %v271, %v271
      %v282 = vpack.c.b16 %v272, %v272
      %v283 = vpack.c.b16 %v273, %v273
      %v285 = vshrl.u32 %v274, 16
      %v287 = vrot.slane %v285, 7
      %v288 = vshll.u32 %v274, 16
      %v290 = vor.u32 %v287, %v288
      %v292 = vshrl.u32 %v275, 16
      %v294 = vrot.slane %v292, 7
      %v295 = vshll.u32 %v275, 16
      %v297 = vor.u32 %v294, %v295
      %v299 = vshrl.u32 %v276, 16
      %v301 = vrot.slane %v299, 7
      %v302 = vshll.u32 %v276, 16
      %v304 = vor.u32 %v301, %v302
      %v306 = vshrl.u32 %v277, 16
      %v308 = vrot.slane %v306, 7
      %v309 = vshll.u32 %v277, 16
      %v311 = vor.u32 %v308, %v309
      %v313 = vshrl.u32 %v278, 16
      %v315 = vrot.slane %v313, 7
      %v316 = vshll.u32 %v278, 16
      %v318 = vor.u32 %v315, %v316
      %v320 = vshrl.u32 %v279, 16
      %v322 = vrot.slane %v320, 7
      %v323 = vshll.u32 %v279, 16
      %v325 = vor.u32 %v322, %v323
      %v327 = vshrl.u32 %v280, 16
      %v329 = vrot.slane %v327, 7
      %v330 = vshll.u32 %v280, 16
      %v332 = vor.u32 %v329, %v330
      %v334 = vshrl.u32 %v281, 16
      %v336 = vrot.slane %v334, 7
      %v337 = vshll.u32 %v281, 16
      %v339 = vor.u32 %v336, %v337
      %v341 = vshrl.u32 %v282, 16
      %v343 = vrot.slane %v341, 7
      %v344 = vshll.u32 %v282, 16
      %v346 = vor.u32 %v343, %v344
      %v348 = vshrl.u32 %v283, 16
      %v350 = vrot.slane %v348, 7
      %v351 = vshll.u32 %v283, 16
      %v353 = vor.u32 %v350, %v351
      %vm364 = vcmask 1040384
      %vm365 = vsmask.f32 256
      %vm366 = vmand %vm364, %vm365
      %v367 = vsel %vm366, 0, %v290
      %v368 = vsel %vm366, 0, %v297
      %v369 = vsel %vm366, 0, %v304
      %v370 = vsel %vm366, 0, %v311
      %v371 = vsel %vm366, 0, %v318
      %v372 = vsel %vm366, 0, %v325
      %v373 = vsel %vm366, 0, %v332
      %v374 = vsel %vm366, 0, %v339
      %v375 = vsel %vm366, 0, %v346
      %v376 = vsel %vm366, 0, %v353
      %vm377 = vcmask 1044480
      %vm378 = vsmask.f32 4352
      %vm379 = vmand %vm377, %vm378
      %v380 = vsel %vm379, %v367, 0
      %v381 = vsel %vm379, %v368, 0
      %v382 = vsel %vm379, %v369, 0
      %v383 = vsel %vm379, %v370, 0
      %v384 = vsel %vm379, %v371, 0
      %v385 = vsel %vm379, %v372, 0
      %v386 = vsel %vm379, %v373, 0
      %v387 = vsel %vm379, %v374, 0
      %v388 = vsel %vm379, %v375, 0
      %v389 = vsel %vm379, %v376, 0
      %v391 = vshrl.u32 %v380, 16
      %v393 = vshll.u32 %v380, 16
      %v395 = vrot.slane %v393, 1
      %v396 = vor.u32 %v391, %v395
      %v398 = vshrl.u32 %v381, 16
      %v400 = vshll.u32 %v381, 16
      %v402 = vrot.slane %v400, 1
      %v403 = vor.u32 %v398, %v402
      %v405 = vshrl.u32 %v382, 16
      %v407 = vshll.u32 %v382, 16
      %v409 = vrot.slane %v407, 1
      %v410 = vor.u32 %v405, %v409
      %v412 = vshrl.u32 %v383, 16
      %v414 = vshll.u32 %v383, 16
      %v416 = vrot.slane %v414, 1
      %v417 = vor.u32 %v412, %v416
      %v419 = vshrl.u32 %v384, 16
      %v421 = vshll.u32 %v384, 16
      %v423 = vrot.slane %v421, 1
      %v424 = vor.u32 %v419, %v423
      %v426 = vshrl.u32 %v385, 16
      %v428 = vshll.u32 %v385, 16
      %v430 = vrot.slane %v428, 1
      %v431 = vor.u32 %v426, %v430
      %v433 = vshrl.u32 %v386, 16
      %v435 = vshll.u32 %v386, 16
      %v437 = vrot.slane %v435, 1
      %v438 = vor.u32 %v433, %v437
      %v440 = vshrl.u32 %v387, 16
      %v442 = vshll.u32 %v387, 16
      %v444 = vrot.slane %v442, 1
      %v445 = vor.u32 %v440, %v444
      %v454 = vrot.slane %v380, 1
      %v455 = vrot.slane %v381, 1
      %v456 = vrot.slane %v382, 1
      %v457 = vrot.slane %v383, 1
      %v458 = vrot.slane %v384, 1
      %v459 = vrot.slane %v385, 1
      %v460 = vrot.slane %v386, 1
      %v461 = vrot.slane %v387, 1
      %v462 = vunpack.c.l.b16 %v380
      %v463 = vunpack.c.l.b16 %v396
      %v464 = vunpack.c.l.b16 %v454
      %v465 = vunpack.c.l.b16 %v381
      %v466 = vunpack.c.l.b16 %v403
      %v467 = vunpack.c.l.b16 %v455
      %v468 = vunpack.c.l.b16 %v382
      %v469 = vunpack.c.l.b16 %v410
      %v470 = vunpack.c.l.b16 %v456
      %v471 = vunpack.c.l.b16 %v383
      %v472 = vunpack.c.l.b16 %v417
      %v473 = vunpack.c.l.b16 %v457
      %v474 = vunpack.c.l.b16 %v384
      %v475 = vunpack.c.l.b16 %v424
      %v476 = vunpack.c.l.b16 %v458
      %v477 = vunpack.c.l.b16 %v385
      %v478 = vunpack.c.l.b16 %v431
      %v479 = vunpack.c.l.b16 %v459
      %v480 = vunpack.c.l.b16 %v386
      %v481 = vunpack.c.l.b16 %v438
      %v482 = vunpack.c.l.b16 %v460
      %v483 = vunpack.c.l.b16 %v387
      %v484 = vunpack.c.l.b16 %v445
      %v485 = vunpack.c.l.b16 %v461
      %v486 = vld [vmem:[%s1] sm:$0xf]
      %v487 = vld [vmem:[%s1 + $0x4] sm:$0xf]
      %v488 = vld [vmem:[%s1 + $0x8] sm:$0xf]
      %v489 = vld [vmem:[%s1 + $0xc] sm:$0xf]
      %v490 = vld [vmem:[%s1 + $0x10] sm:$0xf]
      %v491 = vld [vmem:[%s1 + $0x14] sm:$0xf]
      %v492 = vld [vmem:[%s1 + $0x18] sm:$0xf]
      %v493 = vld [vmem:[%s1 + $0x1c] sm:$0xf]
      %v494 = vld [vmem:[%s1 + $0x20] sm:$0xf]
      %v495 = vld [vmem:[%s1 + $0x24] sm:$0xf]
      %v496 = vld [vmem:[%s1 + $0x28] sm:$0xf]
      %v497 = vld [vmem:[%s1 + $0x2c] sm:$0xf]
      %v498 = vld [vmem:[%s1 + $0x30] sm:$0xf]
      %v499 = vld [vmem:[%s1 + $0x34] sm:$0xf]
      %v500 = vld [vmem:[%s1 + $0x38] sm:$0xf]
      %v501 = vld [vmem:[%s1 + $0x3c] sm:$0xf]
      %v502 = vld [vmem:[%s1 + $0x40] sm:$0xf]
      %v503 = vld [vmem:[%s1 + $0x44] sm:$0xf]
      %v504 = vld [vmem:[%s1 + $0x48] sm:$0xf]
      %v505 = vld [vmem:[%s1 + $0x4c] sm:$0xf]
      %v506 = vld [vmem:[%s1 + $0x50] sm:$0xf]
      %v507 = vld [vmem:[%s1 + $0x54] sm:$0xf]
      %v508 = vld [vmem:[%s1 + $0x58] sm:$0xf]
      %v509 = vld [vmem:[%s1 + $0x5c] sm:$0xf]
      %v510 = vld [vmem:[%s1 + $0x60] sm:$0xf]
      %v511 = vld [vmem:[%s1 + $0x64] sm:$0xf]
      %v512 = vld [vmem:[%s1 + $0x68] sm:$0xf]
      %v513 = vld [vmem:[%s1 + $0x6c] sm:$0xf]
      %v514 = vld [vmem:[%s1 + $0x70] sm:$0xf]
      %v515 = vld [vmem:[%s1 + $0x74] sm:$0xf]
      %v516 = vld [vmem:[%s1 + $0x78] sm:$0xf]
      %v517 = vld [vmem:[%s1 + $0x7c] sm:$0xf]
      %v518 = vld [vmem:[%s1 + $0x80] sm:$0xf]
      %v519 = vld [vmem:[%s1 + $0x84] sm:$0xf]
      %v520 = vld [vmem:[%s1 + $0x88] sm:$0xf]
      %v521 = vld [vmem:[%s1 + $0x8c] sm:$0xf]
      %v522 = vld [vmem:[%s1 + $0x90] sm:$0xf]
      %v523 = vld [vmem:[%s1 + $0x94] sm:$0xf]
      %v524 = vld [vmem:[%s1 + $0x98] sm:$0xf]
      %v525 = vld [vmem:[%s1 + $0x9c] sm:$0xf]
      %v526 = vld [vmem:[%s1 + $0xa0] sm:$0xf]
      %v527 = vld [vmem:[%s1 + $0xa4] sm:$0xf]
      %v528 = vld [vmem:[%s1 + $0xa8] sm:$0xf]
      %v529 = vld [vmem:[%s1 + $0xac] sm:$0xf]
      %v530 = vld [vmem:[%s1 + $0xb0] sm:$0xf]
      %v531 = vld [vmem:[%s1 + $0xb4] sm:$0xf]
      %v532 = vld [vmem:[%s1 + $0xb8] sm:$0xf]
      %v533 = vld [vmem:[%s1 + $0xbc] sm:$0xf]
      %v535 = vshrl.u32 %v388, 16
      %v537 = vshll.u32 %v388, 16
      %v539 = vrot.slane %v537, 1
      %v540 = vor.u32 %v535, %v539
      %v542 = vrot.slane %v388, 1
      %v543 = vunpack.c.l.b16 %v388
      %v544 = vunpack.c.l.b16 %v540
      %v545 = vunpack.c.l.b16 %v542
      %v546 = vld [vmem:[%s1 + $0xc0] sm:$0xf]
      %v547 = vld [vmem:[%s1 + $0xc4] sm:$0xf]
      %v548 = vld [vmem:[%s1 + $0xc8] sm:$0xf]
      %v549 = vld [vmem:[%s1 + $0xcc] sm:$0xf]
      %v550 = vld [vmem:[%s1 + $0xd0] sm:$0xf]
      %v551 = vld [vmem:[%s1 + $0xd4] sm:$0xf]
      %v552 = vld [vmem:[%s1 + $0xd8] sm:$0xf]
      %v553 = vld [vmem:[%s1 + $0xdc] sm:$0xf]
      %v554 = vld [vmem:[%s1 + $0xe0] sm:$0xf]
      %v555 = vld [vmem:[%s1 + $0xe4] sm:$0xf]
      %v556 = vld [vmem:[%s1 + $0xe8] sm:$0xf]
      %v557 = vld [vmem:[%s1 + $0xec] sm:$0xf]
      %v558 = vld [vmem:[%s1 + $0xf0] sm:$0xf]
      %v559 = vld [vmem:[%s1 + $0xf4] sm:$0xf]
      %v560 = vld [vmem:[%s1 + $0xf8] sm:$0xf]
      %v561 = vld [vmem:[%s1 + $0xfc] sm:$0xf]
      %v562 = vld [vmem:[%s1 + $0x100] sm:$0xf]
      %v563 = vld [vmem:[%s1 + $0x104] sm:$0xf]
      %v564 = vld [vmem:[%s1 + $0x108] sm:$0xf]
      %v565 = vld [vmem:[%s1 + $0x10c] sm:$0xf]
      %v566 = vld [vmem:[%s1 + $0x110] sm:$0xf]
      %v567 = vld [vmem:[%s1 + $0x114] sm:$0xf]
      %v568 = vld [vmem:[%s1 + $0x118] sm:$0xf]
      %v569 = vld [vmem:[%s1 + $0x11c] sm:$0xf]
      %v570 = vld [vmem:[%s1 + $0x120] sm:$0xf]
      %v571 = vld [vmem:[%s1 + $0x124] sm:$0xf]
      %v572 = vld [vmem:[%s1 + $0x128] sm:$0xf]
      %v573 = vld [vmem:[%s1 + $0x12c] sm:$0xf]
      %v574 = vld [vmem:[%s1 + $0x130] sm:$0xf]
      %v575 = vld [vmem:[%s1 + $0x134] sm:$0xf]
      %v576 = vld [vmem:[%s1 + $0x138] sm:$0xf]
      %v577 = vld [vmem:[%s1 + $0x13c] sm:$0xf]
      %v578 = vld [vmem:[%s1 + $0x140] sm:$0xf]
      %v579 = vld [vmem:[%s1 + $0x144] sm:$0xf]
      %v580 = vld [vmem:[%s1 + $0x148] sm:$0xf]
      %v581 = vld [vmem:[%s1 + $0x14c] sm:$0xf]
      %v582 = vld [vmem:[%s1 + $0x150] sm:$0xf]
      %v583 = vld [vmem:[%s1 + $0x154] sm:$0xf]
      %v584 = vld [vmem:[%s1 + $0x158] sm:$0xf]
      %v585 = vld [vmem:[%s1 + $0x15c] sm:$0xf]
      %v586 = vld [vmem:[%s1 + $0x160] sm:$0xf]
      %v587 = vld [vmem:[%s1 + $0x164] sm:$0xf]
      %v588 = vld [vmem:[%s1 + $0x168] sm:$0xf]
      %v589 = vld [vmem:[%s1 + $0x16c] sm:$0xf]
      %v590 = vld [vmem:[%s1 + $0x170] sm:$0xf]
      %v591 = vld [vmem:[%s1 + $0x174] sm:$0xf]
      %v592 = vld [vmem:[%s1 + $0x178] sm:$0xf]
      %v593 = vld [vmem:[%s1 + $0x17c] sm:$0xf]
      %v594 = vpack.c.b16 %v468, %v465
      %v595 = vpack.c.b16 %v469, %v466
      %v596 = vpack.c.b16 %v470, %v467
      %v597 = vpack.c.b16 %v474, %v471
      %v598 = vpack.c.b16 %v475, %v472
      %v599 = vpack.c.b16 %v476, %v473
      %v600 = vpack.c.b16 %v480, %v477
      %v601 = vpack.c.b16 %v481, %v478
      %v602 = vpack.c.b16 %v482, %v479
      %v603 = vpack.c.b16 %v543, %v483
      %v604 = vpack.c.b16 %v544, %v484
      %v605 = vpack.c.b16 %v545, %v485
      %v666 = vunpack.c.l.b16 %v546
      %v667 = vunpack.c.l.b16 %v547
      %v668 = vunpack.c.l.b16 %v548
      %v669 = vunpack.c.l.b16 %v549
      %v670 = vunpack.c.l.b16 %v550
      %v671 = vunpack.c.l.b16 %v551
      %v672 = vunpack.c.l.b16 %v552
      %v673 = vunpack.c.l.b16 %v553
      %v674 = vunpack.c.l.b16 %v554
      %v675 = vunpack.c.l.b16 %v555
      %v676 = vunpack.c.l.b16 %v556
      %v677 = vunpack.c.l.b16 %v557
      %v678 = vunpack.c.l.b16 %v558
      %v679 = vunpack.c.l.b16 %v559
      %v680 = vunpack.c.l.b16 %v560
      %v681 = vunpack.c.l.b16 %v561
      %v682 = vunpack.c.l.b16 %v562
      %v683 = vunpack.c.l.b16 %v563
      %v684 = vunpack.c.l.b16 %v564
      %v685 = vunpack.c.l.b16 %v565
      %v686 = vunpack.c.l.b16 %v566
      %v687 = vunpack.c.l.b16 %v567
      %v688 = vunpack.c.l.b16 %v568
      %v689 = vunpack.c.l.b16 %v569
      %v690 = vunpack.c.l.b16 %v570
      %v691 = vunpack.c.l.b16 %v571
      %v692 = vunpack.c.l.b16 %v572
      %v693 = vunpack.c.l.b16 %v573
      %v694 = vunpack.c.l.b16 %v574
      %v695 = vunpack.c.l.b16 %v575
      %v696 = vunpack.c.l.b16 %v576
      %v697 = vunpack.c.l.b16 %v577
      %v698 = vunpack.c.l.b16 %v578
      %v699 = vunpack.c.l.b16 %v579
      %v700 = vunpack.c.l.b16 %v580
      %v701 = vunpack.c.l.b16 %v581
      %v702 = vunpack.c.l.b16 %v582
      %v703 = vunpack.c.l.b16 %v583
      %v704 = vunpack.c.l.b16 %v584
      %v705 = vunpack.c.l.b16 %v585
      %v706 = vunpack.c.l.b16 %v586
      %v707 = vunpack.c.l.b16 %v587
      %v708 = vunpack.c.l.b16 %v588
      %v709 = vunpack.c.l.b16 %v589
      %v710 = vunpack.c.l.b16 %v590
      %v711 = vunpack.c.l.b16 %v591
      %v712 = vunpack.c.l.b16 %v592
      %v713 = vunpack.c.l.b16 %v593
      %v714 = vpack.c.b16 %v667, %v666
      %v715 = vpack.c.b16 %v669, %v668
      %v716 = vpack.c.b16 %v671, %v670
      %v717 = vpack.c.b16 %v673, %v672
      %v718 = vpack.c.b16 %v675, %v674
      %v719 = vpack.c.b16 %v677, %v676
      %v720 = vpack.c.b16 %v679, %v678
      %v721 = vpack.c.b16 %v681, %v680
      %v722 = vpack.c.b16 %v683, %v682
      %v723 = vpack.c.b16 %v685, %v684
      %v724 = vpack.c.b16 %v687, %v686
      %v725 = vpack.c.b16 %v689, %v688
      %v726 = vpack.c.b16 %v691, %v690
      %v727 = vpack.c.b16 %v693, %v692
      %v728 = vpack.c.b16 %v695, %v694
      %v729 = vpack.c.b16 %v697, %v696
      %v730 = vpack.c.b16 %v699, %v698
      %v731 = vpack.c.b16 %v701, %v700
      %v732 = vpack.c.b16 %v703, %v702
      %v733 = vpack.c.b16 %v705, %v704
      %v734 = vpack.c.b16 %v707, %v706
      %v735 = vpack.c.b16 %v709, %v708
      %v736 = vpack.c.b16 %v711, %v710
      %v737 = vpack.c.b16 %v713, %v712
      %762 = vmatprep.subr.bf16.mxu0 0
      %763 = vmatpush1.bf16.msra.mxu0 %v714
      %764 = vmatprep.subr.bf16.mxu0 0
      %765 = vmatpush1.bf16.msra.mxu0 %v715
      %766 = vmatprep.subr.bf16.mxu0 0
      %767 = vmatpush1.bf16.msra.mxu0 %v716
      %768 = vmatprep.subr.bf16.mxu0 0
      %769 = vmatpush1.bf16.msra.mxu0 %v717
      %770 = vmatprep.subr.bf16.mxu0 0
      %771 = vmatpush1.bf16.msra.mxu0 %v718
      %772 = vmatprep.subr.bf16.mxu0 0
      %773 = vmatpush1.bf16.msra.mxu0 %v719
      %774 = vmatprep.subr.bf16.mxu0 0
      %775 = vmatpush1.bf16.msra.mxu0 %v720
      %776 = vmatprep.subr.bf16.mxu0 0
      %777 = vmatpush1.bf16.msra.mxu0 %v721
      %778 = vmatprep.subr.bf16.mxu0 0
      %779 = vmatpush1.bf16.msra.mxu0 %v722
      %780 = vmatprep.subr.bf16.mxu0 0
      %781 = vmatpush1.bf16.msra.mxu0 %v723
      %782 = vmatprep.subr.bf16.mxu0 0
      %783 = vmatpush1.bf16.msra.mxu0 %v724
      %784 = vmatprep.subr.bf16.mxu0 0
      %785 = vmatpush1.bf16.msra.mxu0 %v725
      %786 = vmatprep.subr.bf16.mxu0 0
      %787 = vmatpush1.bf16.msra.mxu0 %v726
      %788 = vmatprep.subr.bf16.mxu0 0
      %789 = vmatpush1.bf16.msra.mxu0 %v727
      %790 = vmatprep.subr.bf16.mxu0 0
      %791 = vmatpush1.bf16.msra.mxu0 %v728
      %792 = vmatprep.subr.bf16.mxu0 0
      %793 = vmatpush1.bf16.msra.mxu0 %v729
      %794 = vmatprep.mubr.bf16.mxu0 %v595
      %795 = vmatmul.mubr.bf16.gmra.mrb[0].mxu0 %v594
      %v796 = vpop.f32.mrb[0].mxu0
      %v797 = vadd.f32 0.0, %v796
      %v798 = vpop.f32.mrb[0].mxu0
      %v799 = vpop.f32.mrb[0].mxu0
      %v800 = vadd.f32 0.0, %v799
      %v801 = vpop.f32.mrb[0].mxu0
      %802 = vmatprep.mubr.bf16.mxu0 %v598
      %803 = vmatmul.mubr.bf16.gmra.mrb[0].mxu0 %v597
      %v804 = vpop.f32.mrb[0].mxu0
      %v805 = vadd.f32 0.0, %v804
      %v806 = vpop.f32.mrb[0].mxu0
      %v807 = vpop.f32.mrb[0].mxu0
      %v808 = vadd.f32 0.0, %v807
      %v809 = vpop.f32.mrb[0].mxu0
      %810 = vmatprep.mubr.bf16.mxu0 %v601
      %811 = vmatmul.mubr.bf16.gmra.mrb[0].mxu0 %v600
      %v812 = vpop.f32.mrb[0].mxu0
      %v813 = vadd.f32 0.0, %v812
      %v814 = vpop.f32.mrb[0].mxu0
      %v815 = vpop.f32.mrb[0].mxu0
      %v816 = vadd.f32 0.0, %v815
      %v817 = vpop.f32.mrb[0].mxu0
      %818 = vmatprep.mubr.bf16.mxu0 %v604
      %819 = vmatmul.mubr.bf16.gmra.mrb[0].mxu0 %v603
      %v820 = vpop.f32.mrb[0].mxu0
      %v821 = vadd.f32 0.0, %v820
      %v822 = vpop.f32.mrb[0].mxu0
      %v823 = vpop.f32.mrb[0].mxu0
      %v824 = vadd.f32 0.0, %v823
      %v825 = vpop.f32.mrb[0].mxu0
      %826 = vdwg.mxu0
      %827 = vmatprep.subr.bf16.mxu0 0
      %828 = vmatpush1.bf16.msra.mxu0 %v730
      %829 = vmatprep.subr.bf16.mxu0 0
      %830 = vmatpush1.bf16.msra.mxu0 %v731
      %831 = vmatprep.subr.bf16.mxu0 0
      %832 = vmatpush1.bf16.msra.mxu0 %v732
      %833 = vmatprep.subr.bf16.mxu0 0
      %834 = vmatpush1.bf16.msra.mxu0 %v733
      %835 = vmatprep.subr.bf16.mxu0 0
      %836 = vmatpush1.bf16.msra.mxu0 %v734
      %837 = vmatprep.subr.bf16.mxu0 0
      %838 = vmatpush1.bf16.msra.mxu0 %v735
      %839 = vmatprep.subr.bf16.mxu0 0
      %840 = vmatpush1.bf16.msra.mxu0 %v736
      %841 = vmatprep.subr.bf16.mxu0 0
      %842 = vmatpush1.bf16.msra.mxu0 %v737
      %843 = vmatprep.subr.bf16.mxu0 0
      %844 = vmatpush1.bf16.msra.mxu0 0
      %845 = vmatprep.subr.bf16.mxu0 0
      %846 = vmatpush1.bf16.msra.mxu0 0
      %847 = vmatprep.subr.bf16.mxu0 0
      %848 = vmatpush1.bf16.msra.mxu0 0
      %849 = vmatprep.subr.bf16.mxu0 0
      %850 = vmatpush1.bf16.msra.mxu0 0
      %851 = vmatprep.subr.bf16.mxu0 0
      %852 = vmatpush1.bf16.msra.mxu0 0
      %853 = vmatprep.subr.bf16.mxu0 0
      %854 = vmatpush1.bf16.msra.mxu0 0
      %855 = vmatprep.subr.bf16.mxu0 0
      %856 = vmatpush1.bf16.msra.mxu0 0
      %857 = vmatprep.subr.bf16.mxu0 0
      %858 = vmatpush1.bf16.msra.mxu0 0
      %859 = vmatprep.mubr.bf16.mxu0 0
      %860 = vmatmul.mubr.bf16.gmra.mrb[0].mxu0 %v596
      %v861 = vpop.f32.mrb[0].mxu0
      %v862 = vadd.f32 %v797, %v861
      %v863 = vpop.f32.mrb[0].mxu0
      %v864 = vpop.f32.mrb[0].mxu0
      %v865 = vadd.f32 %v800, %v864
      %v866 = vpop.f32.mrb[0].mxu0
      %867 = vmatprep.mubr.bf16.mxu0 0
      %868 = vmatmul.mubr.bf16.gmra.mrb[0].mxu0 %v599
      %v869 = vpop.f32.mrb[0].mxu0
      %v870 = vadd.f32 %v805, %v869
      %v871 = vpop.f32.mrb[0].mxu0
      %v872 = vpop.f32.mrb[0].mxu0
      %v873 = vadd.f32 %v808, %v872
      %v874 = vpop.f32.mrb[0].mxu0
      %875 = vmatprep.mubr.bf16.mxu0 0
      %876 = vmatmul.mubr.bf16.gmra.mrb[0].mxu0 %v602
      %v877 = vpop.f32.mrb[0].mxu0
      %v878 = vadd.f32 %v813, %v877
      %v879 = vpop.f32.mrb[0].mxu0
      %v880 = vpop.f32.mrb[0].mxu0
      %v881 = vadd.f32 %v816, %v880
      %v882 = vpop.f32.mrb[0].mxu0
      %883 = vmatprep.mubr.bf16.mxu0 0
      %884 = vmatmul.mubr.bf16.gmra.mrb[0].mxu0 %v605
      %v885 = vpop.f32.mrb[0].mxu0
      %v886 = vadd.f32 %v821, %v885
      %v887 = vpop.f32.mrb[0].mxu0
      %v888 = vpop.f32.mrb[0].mxu0
      %v889 = vadd.f32 %v824, %v888
      %v890 = vpop.f32.mrb[0].mxu0
      %891 = vdwg.mxu0
      %v892 = vpack.c.b16 %v465, %v462
      %v893 = vpack.c.b16 %v466, %v463
      %v894 = vpack.c.b16 %v467, %v464
      %v895 = vpack.c.b16 %v471, %v468
      %v896 = vpack.c.b16 %v472, %v469
      %v897 = vpack.c.b16 %v473, %v470
      %v898 = vpack.c.b16 %v477, %v474
      %v899 = vpack.c.b16 %v478, %v475
      %v900 = vpack.c.b16 %v479, %v476
      %v901 = vpack.c.b16 %v483, %v480
      %v902 = vpack.c.b16 %v484, %v481
      %v903 = vpack.c.b16 %v485, %v482
      %v964 = vunpack.c.l.b16 %v486
      %v965 = vunpack.c.l.b16 %v487
      %v966 = vunpack.c.l.b16 %v488
      %v967 = vunpack.c.l.b16 %v489
      %v968 = vunpack.c.l.b16 %v490
      %v969 = vunpack.c.l.b16 %v491
      %v970 = vunpack.c.l.b16 %v492
      %v971 = vunpack.c.l.b16 %v493
      %v972 = vunpack.c.l.b16 %v494
      %v973 = vunpack.c.l.b16 %v495
      %v974 = vunpack.c.l.b16 %v496
      %v975 = vunpack.c.l.b16 %v497
      %v976 = vunpack.c.l.b16 %v498
      %v977 = vunpack.c.l.b16 %v499
      %v978 = vunpack.c.l.b16 %v500
      %v979 = vunpack.c.l.b16 %v501
      %v980 = vunpack.c.l.b16 %v502
      %v981 = vunpack.c.l.b16 %v503
      %v982 = vunpack.c.l.b16 %v504
      %v983 = vunpack.c.l.b16 %v505
      %v984 = vunpack.c.l.b16 %v506
      %v985 = vunpack.c.l.b16 %v507
      %v986 = vunpack.c.l.b16 %v508
      %v987 = vunpack.c.l.b16 %v509
      %v988 = vunpack.c.l.b16 %v510
      %v989 = vunpack.c.l.b16 %v511
      %v990 = vunpack.c.l.b16 %v512
      %v991 = vunpack.c.l.b16 %v513
      %v992 = vunpack.c.l.b16 %v514
      %v993 = vunpack.c.l.b16 %v515
      %v994 = vunpack.c.l.b16 %v516
      %v995 = vunpack.c.l.b16 %v517
      %v996 = vunpack.c.l.b16 %v518
      %v997 = vunpack.c.l.b16 %v519
      %v998 = vunpack.c.l.b16 %v520
      %v999 = vunpack.c.l.b16 %v521
      %v1000 = vunpack.c.l.b16 %v522
      %v1001 = vunpack.c.l.b16 %v523
      %v1002 = vunpack.c.l.b16 %v524
      %v1003 = vunpack.c.l.b16 %v525
      %v1004 = vunpack.c.l.b16 %v526
      %v1005 = vunpack.c.l.b16 %v527
      %v1006 = vunpack.c.l.b16 %v528
      %v1007 = vunpack.c.l.b16 %v529
      %v1008 = vunpack.c.l.b16 %v530
      %v1009 = vunpack.c.l.b16 %v531
      %v1010 = vunpack.c.l.b16 %v532
      %v1011 = vunpack.c.l.b16 %v533
      %v1012 = vpack.c.b16 %v965, %v964
      %v1013 = vpack.c.b16 %v967, %v966
      %v1014 = vpack.c.b16 %v969, %v968
      %v1015 = vpack.c.b16 %v971, %v970
      %v1016 = vpack.c.b16 %v973, %v972
      %v1017 = vpack.c.b16 %v975, %v974
      %v1018 = vpack.c.b16 %v977, %v976
      %v1019 = vpack.c.b16 %v979, %v978
      %v1020 = vpack.c.b16 %v981, %v980
      %v1021 = vpack.c.b16 %v983, %v982
      %v1022 = vpack.c.b16 %v985, %v984
      %v1023 = vpack.c.b16 %v987, %v986
      %v1024 = vpack.c.b16 %v989, %v988
      %v1025 = vpack.c.b16 %v991, %v990
      %v1026 = vpack.c.b16 %v993, %v992
      %v1027 = vpack.c.b16 %v995, %v994
      %v1028 = vpack.c.b16 %v997, %v996
      %v1029 = vpack.c.b16 %v999, %v998
      %v1030 = vpack.c.b16 %v1001, %v1000
      %v1031 = vpack.c.b16 %v1003, %v1002
      %v1032 = vpack.c.b16 %v1005, %v1004
      %v1033 = vpack.c.b16 %v1007, %v1006
      %v1034 = vpack.c.b16 %v1009, %v1008
      %v1035 = vpack.c.b16 %v1011, %v1010
      %1060 = vmatprep.subr.bf16.mxu0 0
      %1061 = vmatpush1.bf16.msra.mxu0 %v1012
      %1062 = vmatprep.subr.bf16.mxu0 0
      %1063 = vmatpush1.bf16.msra.mxu0 %v1013
      %1064 = vmatprep.subr.bf16.mxu0 0
      %1065 = vmatpush1.bf16.msra.mxu0 %v1014
      %1066 = vmatprep.subr.bf16.mxu0 0
      %1067 = vmatpush1.bf16.msra.mxu0 %v1015
      %1068 = vmatprep.subr.bf16.mxu0 0
      %1069 = vmatpush1.bf16.msra.mxu0 %v1016
      %1070 = vmatprep.subr.bf16.mxu0 0
      %1071 = vmatpush1.bf16.msra.mxu0 %v1017
      %1072 = vmatprep.subr.bf16.mxu0 0
      %1073 = vmatpush1.bf16.msra.mxu0 %v1018
      %1074 = vmatprep.subr.bf16.mxu0 0
      %1075 = vmatpush1.bf16.msra.mxu0 %v1019
      %1076 = vmatprep.subr.bf16.mxu0 0
      %1077 = vmatpush1.bf16.msra.mxu0 %v1020
      %1078 = vmatprep.subr.bf16.mxu0 0
      %1079 = vmatpush1.bf16.msra.mxu0 %v1021
      %1080 = vmatprep.subr.bf16.mxu0 0
      %1081 = vmatpush1.bf16.msra.mxu0 %v1022
      %1082 = vmatprep.subr.bf16.mxu0 0
      %1083 = vmatpush1.bf16.msra.mxu0 %v1023
      %1084 = vmatprep.subr.bf16.mxu0 0
      %1085 = vmatpush1.bf16.msra.mxu0 %v1024
      %1086 = vmatprep.subr.bf16.mxu0 0
      %1087 = vmatpush1.bf16.msra.mxu0 %v1025
      %1088 = vmatprep.subr.bf16.mxu0 0
      %1089 = vmatpush1.bf16.msra.mxu0 %v1026
      %1090 = vmatprep.subr.bf16.mxu0 0
      %1091 = vmatpush1.bf16.msra.mxu0 %v1027
      %1092 = vmatprep.mubr.bf16.mxu0 %v893
      %1093 = vmatmul.mubr.bf16.gmra.mrb[0].mxu0 %v892
      %v1094 = vpop.f32.mrb[0].mxu0
      %v1095 = vadd.f32 %v862, %v1094
      %v1096 = vpop.f32.mrb[0].mxu0
      %v1097 = vpop.f32.mrb[0].mxu0
      %v1098 = vadd.f32 %v865, %v1097
      %v1099 = vpop.f32.mrb[0].mxu0
      %1100 = vmatprep.mubr.bf16.mxu0 %v896
      %1101 = vmatmul.mubr.bf16.gmra.mrb[0].mxu0 %v895
      %v1102 = vpop.f32.mrb[0].mxu0
      %v1103 = vadd.f32 %v870, %v1102
      %v1104 = vpop.f32.mrb[0].mxu0
      %v1105 = vpop.f32.mrb[0].mxu0
      %v1106 = vadd.f32 %v873, %v1105
      %v1107 = vpop.f32.mrb[0].mxu0
      %1108 = vmatprep.mubr.bf16.mxu0 %v899
      %1109 = vmatmul.mubr.bf16.gmra.mrb[0].mxu0 %v898
      %v1110 = vpop.f32.mrb[0].mxu0
      %v1111 = vadd.f32 %v878, %v1110
      %v1112 = vpop.f32.mrb[0].mxu0
      %v1113 = vpop.f32.mrb[0].mxu0
      %v1114 = vadd.f32 %v881, %v1113
      %v1115 = vpop.f32.mrb[0].mxu0
      %1116 = vmatprep.mubr.bf16.mxu0 %v902
      %1117 = vmatmul.mubr.bf16.gmra.mrb[0].mxu0 %v901
      %v1118 = vpop.f32.mrb[0].mxu0
      %v1119 = vadd.f32 %v886, %v1118
      %v1120 = vpop.f32.mrb[0].mxu0
      %v1121 = vpop.f32.mrb[0].mxu0
      %v1122 = vadd.f32 %v889, %v1121
      %v1123 = vpop.f32.mrb[0].mxu0
      %1124 = vdwg.mxu0
      %1125 = vmatprep.subr.bf16.mxu0 0
      %1126 = vmatpush1.bf16.msra.mxu0 %v1028
      %1127 = vmatprep.subr.bf16.mxu0 0
      %1128 = vmatpush1.bf16.msra.mxu0 %v1029
      %1129 = vmatprep.subr.bf16.mxu0 0
      %1130 = vmatpush1.bf16.msra.mxu0 %v1030
      %1131 = vmatprep.subr.bf16.mxu0 0
      %1132 = vmatpush1.bf16.msra.mxu0 %v1031
      %1133 = vmatprep.subr.bf16.mxu0 0
      %1134 = vmatpush1.bf16.msra.mxu0 %v1032
      %1135 = vmatprep.subr.bf16.mxu0 0
      %1136 = vmatpush1.bf16.msra.mxu0 %v1033
      %1137 = vmatprep.subr.bf16.mxu0 0
      %1138 = vmatpush1.bf16.msra.mxu0 %v1034
      %1139 = vmatprep.subr.bf16.mxu0 0
      %1140 = vmatpush1.bf16.msra.mxu0 %v1035
      %1141 = vmatprep.subr.bf16.mxu0 0
      %1142 = vmatpush1.bf16.msra.mxu0 0
      %1143 = vmatprep.subr.bf16.mxu0 0
      %1144 = vmatpush1.bf16.msra.mxu0 0
      %1145 = vmatprep.subr.bf16.mxu0 0
      %1146 = vmatpush1.bf16.msra.mxu0 0
      %1147 = vmatprep.subr.bf16.mxu0 0
      %1148 = vmatpush1.bf16.msra.mxu0 0
      %1149 = vmatprep.subr.bf16.mxu0 0
      %1150 = vmatpush1.bf16.msra.mxu0 0
      %1151 = vmatprep.subr.bf16.mxu0 0
      %1152 = vmatpush1.bf16.msra.mxu0 0
      %1153 = vmatprep.subr.bf16.mxu0 0
      %1154 = vmatpush1.bf16.msra.mxu0 0
      %1155 = vmatprep.subr.bf16.mxu0 0
      %1156 = vmatpush1.bf16.msra.mxu0 0
      %1157 = vmatprep.mubr.bf16.mxu0 0
      %1158 = vmatmul.mubr.bf16.gmra.mrb[0].mxu0 %v894
      %v1159 = vpop.f32.mrb[0].mxu0
      %v1160 = vadd.f32 %v1095, %v1159
      %v1161 = vpop.f32.mrb[0].mxu0
      %v1162 = vpop.f32.mrb[0].mxu0
      %v1163 = vadd.f32 %v1098, %v1162
      %v1164 = vpop.f32.mrb[0].mxu0
      %1165 = vmatprep.mubr.bf16.mxu0 0
      %1166 = vmatmul.mubr.bf16.gmra.mrb[0].mxu0 %v897
      %v1167 = vpop.f32.mrb[0].mxu0
      %v1168 = vadd.f32 %v1103, %v1167
      %v1169 = vpop.f32.mrb[0].mxu0
      %v1170 = vpop.f32.mrb[0].mxu0
      %v1171 = vadd.f32 %v1106, %v1170
      %v1172 = vpop.f32.mrb[0].mxu0
      %1173 = vmatprep.mubr.bf16.mxu0 0
      %1174 = vmatmul.mubr.bf16.gmra.mrb[0].mxu0 %v900
      %v1175 = vpop.f32.mrb[0].mxu0
      %v1176 = vadd.f32 %v1111, %v1175
      %v1177 = vpop.f32.mrb[0].mxu0
      %v1178 = vpop.f32.mrb[0].mxu0
      %v1179 = vadd.f32 %v1114, %v1178
      %v1180 = vpop.f32.mrb[0].mxu0
      %1181 = vmatprep.mubr.bf16.mxu0 0
      %1182 = vmatmul.mubr.bf16.gmra.mrb[0].mxu0 %v903
      %v1183 = vpop.f32.mrb[0].mxu0
      %v1184 = vadd.f32 %v1119, %v1183
      %v1185 = vpop.f32.mrb[0].mxu0
      %v1186 = vpop.f32.mrb[0].mxu0
      %v1187 = vadd.f32 %v1122, %v1186
      %v1188 = vpop.f32.mrb[0].mxu0
      %1189 = vdwg.mxu0
      %v1191 = vshrl.u32 %v389, 16
      %v1193 = vshll.u32 %v389, 16
      %v1195 = vrot.slane %v1193, 1
      %v1196 = vor.u32 %v1191, %v1195
      %v1198 = vrot.slane %v389, 1
      %v1199 = vunpack.c.l.b16 %v389
      %v1200 = vunpack.c.l.b16 %v1196
      %v1201 = vunpack.c.l.b16 %v1198
      %v1202 = vld [vmem:[%s1 + $0x180] sm:$0xf]
      %v1203 = vld [vmem:[%s1 + $0x184] sm:$0xf]
      %v1204 = vld [vmem:[%s1 + $0x188] sm:$0xf]
      %v1205 = vld [vmem:[%s1 + $0x18c] sm:$0xf]
      %v1206 = vld [vmem:[%s1 + $0x190] sm:$0xf]
      %v1207 = vld [vmem:[%s1 + $0x194] sm:$0xf]
      %v1208 = vld [vmem:[%s1 + $0x198] sm:$0xf]
      %v1209 = vld [vmem:[%s1 + $0x19c] sm:$0xf]
      %v1210 = vld [vmem:[%s1 + $0x1a0] sm:$0xf]
      %v1211 = vld [vmem:[%s1 + $0x1a4] sm:$0xf]
      %v1212 = vld [vmem:[%s1 + $0x1a8] sm:$0xf]
      %v1213 = vld [vmem:[%s1 + $0x1ac] sm:$0xf]
      %v1214 = vld [vmem:[%s1 + $0x1b0] sm:$0xf]
      %v1215 = vld [vmem:[%s1 + $0x1b4] sm:$0xf]
      %v1216 = vld [vmem:[%s1 + $0x1b8] sm:$0xf]
      %v1217 = vld [vmem:[%s1 + $0x1bc] sm:$0xf]
      %v1218 = vld [vmem:[%s1 + $0x1c0] sm:$0xf]
      %v1219 = vld [vmem:[%s1 + $0x1c4] sm:$0xf]
      %v1220 = vld [vmem:[%s1 + $0x1c8] sm:$0xf]
      %v1221 = vld [vmem:[%s1 + $0x1cc] sm:$0xf]
      %v1222 = vld [vmem:[%s1 + $0x1d0] sm:$0xf]
      %v1223 = vld [vmem:[%s1 + $0x1d4] sm:$0xf]
      %v1224 = vld [vmem:[%s1 + $0x1d8] sm:$0xf]
      %v1225 = vld [vmem:[%s1 + $0x1dc] sm:$0xf]
      %v1226 = vld [vmem:[%s1 + $0x1e0] sm:$0xf]
      %v1227 = vld [vmem:[%s1 + $0x1e4] sm:$0xf]
      %v1228 = vld [vmem:[%s1 + $0x1e8] sm:$0xf]
      %v1229 = vld [vmem:[%s1 + $0x1ec] sm:$0xf]
      %v1230 = vld [vmem:[%s1 + $0x1f0] sm:$0xf]
      %v1231 = vld [vmem:[%s1 + $0x1f4] sm:$0xf]
      %v1232 = vld [vmem:[%s1 + $0x1f8] sm:$0xf]
      %v1233 = vld [vmem:[%s1 + $0x1fc] sm:$0xf]
      %v1234 = vld [vmem:[%s1 + $0x200] sm:$0xf]
      %v1235 = vld [vmem:[%s1 + $0x204] sm:$0xf]
      %v1236 = vld [vmem:[%s1 + $0x208] sm:$0xf]
      %v1237 = vld [vmem:[%s1 + $0x20c] sm:$0xf]
      %v1238 = vld [vmem:[%s1 + $0x210] sm:$0xf]
      %v1239 = vld [vmem:[%s1 + $0x214] sm:$0xf]
      %v1240 = vld [vmem:[%s1 + $0x218] sm:$0xf]
      %v1241 = vld [vmem:[%s1 + $0x21c] sm:$0xf]
      %v1242 = vld [vmem:[%s1 + $0x220] sm:$0xf]
      %v1243 = vld [vmem:[%s1 + $0x224] sm:$0xf]
      %v1244 = vld [vmem:[%s1 + $0x228] sm:$0xf]
      %v1245 = vld [vmem:[%s1 + $0x22c] sm:$0xf]
      %v1246 = vld [vmem:[%s1 + $0x230] sm:$0xf]
      %v1247 = vld [vmem:[%s1 + $0x234] sm:$0xf]
      %v1248 = vld [vmem:[%s1 + $0x238] sm:$0xf]
      %v1249 = vld [vmem:[%s1 + $0x23c] sm:$0xf]
      %v1250 = vpack.c.b16 %v1199, %v543
      %v1251 = vpack.c.b16 %v1200, %v544
      %v1252 = vpack.c.b16 %v1201, %v545
      %v1304 = vunpack.c.l.b16 %v1202
      %v1305 = vunpack.c.l.b16 %v1203
      %v1306 = vunpack.c.l.b16 %v1204
      %v1307 = vunpack.c.l.b16 %v1205
      %v1308 = vunpack.c.l.b16 %v1206
      %v1309 = vunpack.c.l.b16 %v1207
      %v1310 = vunpack.c.l.b16 %v1208
      %v1311 = vunpack.c.l.b16 %v1209
      %v1312 = vunpack.c.l.b16 %v1210
      %v1313 = vunpack.c.l.b16 %v1211
      %v1314 = vunpack.c.l.b16 %v1212
      %v1315 = vunpack.c.l.b16 %v1213
      %v1316 = vunpack.c.l.b16 %v1214
      %v1317 = vunpack.c.l.b16 %v1215
      %v1318 = vunpack.c.l.b16 %v1216
      %v1319 = vunpack.c.l.b16 %v1217
      %v1320 = vunpack.c.l.b16 %v1218
      %v1321 = vunpack.c.l.b16 %v1219
      %v1322 = vunpack.c.l.b16 %v1220
      %v1323 = vunpack.c.l.b16 %v1221
      %v1324 = vunpack.c.l.b16 %v1222
      %v1325 = vunpack.c.l.b16 %v1223
      %v1326 = vunpack.c.l.b16 %v1224
      %v1327 = vunpack.c.l.b16 %v1225
      %v1328 = vunpack.c.l.b16 %v1226
      %v1329 = vunpack.c.l.b16 %v1227
      %v1330 = vunpack.c.l.b16 %v1228
      %v1331 = vunpack.c.l.b16 %v1229
      %v1332 = vunpack.c.l.b16 %v1230
      %v1333 = vunpack.c.l.b16 %v1231
      %v1334 = vunpack.c.l.b16 %v1232
      %v1335 = vunpack.c.l.b16 %v1233
      %v1336 = vunpack.c.l.b16 %v1234
      %v1337 = vunpack.c.l.b16 %v1235
      %v1338 = vunpack.c.l.b16 %v1236
      %v1339 = vunpack.c.l.b16 %v1237
      %v1340 = vunpack.c.l.b16 %v1238
      %v1341 = vunpack.c.l.b16 %v1239
      %v1342 = vunpack.c.l.b16 %v1240
      %v1343 = vunpack.c.l.b16 %v1241
      %v1344 = vunpack.c.l.b16 %v1242
      %v1345 = vunpack.c.l.b16 %v1243
      %v1346 = vunpack.c.l.b16 %v1244
      %v1347 = vunpack.c.l.b16 %v1245
      %v1348 = vunpack.c.l.b16 %v1246
      %v1349 = vunpack.c.l.b16 %v1247
      %v1350 = vunpack.c.l.b16 %v1248
      %v1351 = vunpack.c.l.b16 %v1249
      %v1352 = vpack.c.b16 %v1305, %v1304
      %v1353 = vpack.c.b16 %v1307, %v1306
      %v1354 = vpack.c.b16 %v1309, %v1308
      %v1355 = vpack.c.b16 %v1311, %v1310
      %v1356 = vpack.c.b16 %v1313, %v1312
      %v1357 = vpack.c.b16 %v1315, %v1314
      %v1358 = vpack.c.b16 %v1317, %v1316
      %v1359 = vpack.c.b16 %v1319, %v1318
      %v1360 = vpack.c.b16 %v1321, %v1320
      %v1361 = vpack.c.b16 %v1323, %v1322
      %v1362 = vpack.c.b16 %v1325, %v1324
      %v1363 = vpack.c.b16 %v1327, %v1326
      %v1364 = vpack.c.b16 %v1329, %v1328
      %v1365 = vpack.c.b16 %v1331, %v1330
      %v1366 = vpack.c.b16 %v1333, %v1332
      %v1367 = vpack.c.b16 %v1335, %v1334
      %v1368 = vpack.c.b16 %v1337, %v1336
      %v1369 = vpack.c.b16 %v1339, %v1338
      %v1370 = vpack.c.b16 %v1341, %v1340
      %v1371 = vpack.c.b16 %v1343, %v1342
      %v1372 = vpack.c.b16 %v1345, %v1344
      %v1373 = vpack.c.b16 %v1347, %v1346
      %v1374 = vpack.c.b16 %v1349, %v1348
      %v1375 = vpack.c.b16 %v1351, %v1350
      %1400 = vmatprep.subr.bf16.mxu0 0
      %1401 = vmatpush1.bf16.msra.mxu0 %v1352
      %1402 = vmatprep.subr.bf16.mxu0 0
      %1403 = vmatpush1.bf16.msra.mxu0 %v1353
      %1404 = vmatprep.subr.bf16.mxu0 0
      %1405 = vmatpush1.bf16.msra.mxu0 %v1354
      %1406 = vmatprep.subr.bf16.mxu0 0
      %1407 = vmatpush1.bf16.msra.mxu0 %v1355
      %1408 = vmatprep.subr.bf16.mxu0 0
      %1409 = vmatpush1.bf16.msra.mxu0 %v1356
      %1410 = vmatprep.subr.bf16.mxu0 0
      %1411 = vmatpush1.bf16.msra.mxu0 %v1357
      %1412 = vmatprep.subr.bf16.mxu0 0
      %1413 = vmatpush1.bf16.msra.mxu0 %v1358
      %1414 = vmatprep.subr.bf16.mxu0 0
      %1415 = vmatpush1.bf16.msra.mxu0 %v1359
      %1416 = vmatprep.subr.bf16.mxu0 0
      %1417 = vmatpush1.bf16.msra.mxu0 %v1360
      %1418 = vmatprep.subr.bf16.mxu0 0
      %1419 = vmatpush1.bf16.msra.mxu0 %v1361
      %1420 = vmatprep.subr.bf16.mxu0 0
      %1421 = vmatpush1.bf16.msra.mxu0 %v1362
      %1422 = vmatprep.subr.bf16.mxu0 0
      %1423 = vmatpush1.bf16.msra.mxu0 %v1363
      %1424 = vmatprep.subr.bf16.mxu0 0
      %1425 = vmatpush1.bf16.msra.mxu0 %v1364
      %1426 = vmatprep.subr.bf16.mxu0 0
      %1427 = vmatpush1.bf16.msra.mxu0 %v1365
      %1428 = vmatprep.subr.bf16.mxu0 0
      %1429 = vmatpush1.bf16.msra.mxu0 %v1366
      %1430 = vmatprep.subr.bf16.mxu0 0
      %1431 = vmatpush1.bf16.msra.mxu0 %v1367
      %1432 = vmatprep.mubr.bf16.mxu0 %v896
      %1433 = vmatmul.mubr.bf16.gmra.mrb[0].mxu0 %v895
      %v1434 = vpop.f32.mrb[0].mxu0
      %v1435 = vadd.f32 0.0, %v1434
      %v1436 = vpop.f32.mrb[0].mxu0
      %v1437 = vpop.f32.mrb[0].mxu0
      %v1438 = vadd.f32 0.0, %v1437
      %v1439 = vpop.f32.mrb[0].mxu0
      %1440 = vmatprep.mubr.bf16.mxu0 %v899
      %1441 = vmatmul.mubr.bf16.gmra.mrb[0].mxu0 %v898
      %v1442 = vpop.f32.mrb[0].mxu0
      %v1443 = vadd.f32 0.0, %v1442
      %v1444 = vpop.f32.mrb[0].mxu0
      %v1445 = vpop.f32.mrb[0].mxu0
      %v1446 = vadd.f32 0.0, %v1445
      %v1447 = vpop.f32.mrb[0].mxu0
      %1448 = vmatprep.mubr.bf16.mxu0 %v902
      %1449 = vmatmul.mubr.bf16.gmra.mrb[0].mxu0 %v901
      %v1450 = vpop.f32.mrb[0].mxu0
      %v1451 = vadd.f32 0.0, %v1450
      %v1452 = vpop.f32.mrb[0].mxu0
      %v1453 = vpop.f32.mrb[0].mxu0
      %v1454 = vadd.f32 0.0, %v1453
      %v1455 = vpop.f32.mrb[0].mxu0
      %1456 = vmatprep.mubr.bf16.mxu0 %v1251
      %1457 = vmatmul.mubr.bf16.gmra.mrb[0].mxu0 %v1250
      %v1458 = vpop.f32.mrb[0].mxu0
      %v1459 = vadd.f32 0.0, %v1458
      %v1460 = vpop.f32.mrb[0].mxu0
      %v1461 = vpop.f32.mrb[0].mxu0
      %v1462 = vadd.f32 0.0, %v1461
      %v1463 = vpop.f32.mrb[0].mxu0
      %1464 = vdwg.mxu0
      %1465 = vmatprep.subr.bf16.mxu0 0
      %1466 = vmatpush1.bf16.msra.mxu0 %v1368
      %1467 = vmatprep.subr.bf16.mxu0 0
      %1468 = vmatpush1.bf16.msra.mxu0 %v1369
      %1469 = vmatprep.subr.bf16.mxu0 0
      %1470 = vmatpush1.bf16.msra.mxu0 %v1370
      %1471 = vmatprep.subr.bf16.mxu0 0
      %1472 = vmatpush1.bf16.msra.mxu0 %v1371
      %1473 = vmatprep.subr.bf16.mxu0 0
      %1474 = vmatpush1.bf16.msra.mxu0 %v1372
      %1475 = vmatprep.subr.bf16.mxu0 0
      %1476 = vmatpush1.bf16.msra.mxu0 %v1373
      %1477 = vmatprep.subr.bf16.mxu0 0
      %1478 = vmatpush1.bf16.msra.mxu0 %v1374
      %1479 = vmatprep.subr.bf16.mxu0 0
      %1480 = vmatpush1.bf16.msra.mxu0 %v1375
      %1481 = vmatprep.subr.bf16.mxu0 0
      %1482 = vmatpush1.bf16.msra.mxu0 0
      %1483 = vmatprep.subr.bf16.mxu0 0
      %1484 = vmatpush1.bf16.msra.mxu0 0
      %1485 = vmatprep.subr.bf16.mxu0 0
      %1486 = vmatpush1.bf16.msra.mxu0 0
      %1487 = vmatprep.subr.bf16.mxu0 0
      %1488 = vmatpush1.bf16.msra.mxu0 0
      %1489 = vmatprep.subr.bf16.mxu0 0
      %1490 = vmatpush1.bf16.msra.mxu0 0
      %1491 = vmatprep.subr.bf16.mxu0 0
      %1492 = vmatpush1.bf16.msra.mxu0 0
      %1493 = vmatprep.subr.bf16.mxu0 0
      %1494 = vmatpush1.bf16.msra.mxu0 0
      %1495 = vmatprep.subr.bf16.mxu0 0
      %1496 = vmatpush1.bf16.msra.mxu0 0
      %1497 = vmatprep.mubr.bf16.mxu0 0
      %1498 = vmatmul.mubr.bf16.gmra.mrb[0].mxu0 %v897
      %v1499 = vpop.f32.mrb[0].mxu0
      %v1500 = vadd.f32 %v1435, %v1499
      %v1501 = vpop.f32.mrb[0].mxu0
      %v1502 = vpop.f32.mrb[0].mxu0
      %v1503 = vadd.f32 %v1438, %v1502
      %v1504 = vpop.f32.mrb[0].mxu0
      %1505 = vmatprep.mubr.bf16.mxu0 0
      %1506 = vmatmul.mubr.bf16.gmra.mrb[0].mxu0 %v900
      %v1507 = vpop.f32.mrb[0].mxu0
      %v1508 = vadd.f32 %v1443, %v1507
      %v1509 = vpop.f32.mrb[0].mxu0
      %v1510 = vpop.f32.mrb[0].mxu0
      %v1511 = vadd.f32 %v1446, %v1510
      %v1512 = vpop.f32.mrb[0].mxu0
      %1513 = vmatprep.mubr.bf16.mxu0 0
      %1514 = vmatmul.mubr.bf16.gmra.mrb[0].mxu0 %v903
      %v1515 = vpop.f32.mrb[0].mxu0
      %v1516 = vadd.f32 %v1451, %v1515
      %v1517 = vpop.f32.mrb[0].mxu0
      %v1518 = vpop.f32.mrb[0].mxu0
      %v1519 = vadd.f32 %v1454, %v1518
      %v1520 = vpop.f32.mrb[0].mxu0
      %1521 = vmatprep.mubr.bf16.mxu0 0
      %1522 = vmatmul.mubr.bf16.gmra.mrb[0].mxu0 %v1252
      %v1523 = vpop.f32.mrb[0].mxu0
      %v1524 = vadd.f32 %v1459, %v1523
      %v1525 = vpop.f32.mrb[0].mxu0
      %v1526 = vpop.f32.mrb[0].mxu0
      %v1527 = vadd.f32 %v1462, %v1526
      %v1528 = vpop.f32.mrb[0].mxu0
      %1529 = vdwg.mxu0
      %v1530 = vadd.f32 %v1160, %v1500
      %v1531 = vadd.f32 %v1163, %v1503
      %v1532 = vadd.f32 %v1168, %v1508
      %v1533 = vadd.f32 %v1171, %v1511
      %v1534 = vadd.f32 %v1176, %v1516
      %v1535 = vadd.f32 %v1179, %v1519
      %v1536 = vadd.f32 %v1184, %v1524
      %v1537 = vadd.f32 %v1187, %v1527
      %v1538 = vld [vmem:[%s2] sm:$0x1]
      %v1540 = vlaneseq
      %v1541 = vshrl.u32 %v1540, 7
      %v1542 = vsub.s32 0, %v1541
      %v1543 = vrot.slane %v1538, %v1542
      %v1545 = vadd.f32 %v1530, %v1543
      %v1546 = vadd.f32 %v1531, %v1543
      %v1547 = vadd.f32 %v1532, %v1543
      %v1548 = vadd.f32 %v1533, %v1543
      %v1549 = vadd.f32 %v1534, %v1543
      %v1550 = vadd.f32 %v1535, %v1543
      %v1551 = vadd.f32 %v1536, %v1543
      %v1552 = vadd.f32 %v1537, %v1543
      %v1553 = vmax.f32 %v1545, 0.0
      %v1554 = vmax.f32 %v1546, 0.0
      %v1555 = vmax.f32 %v1547, 0.0
      %v1556 = vmax.f32 %v1548, 0.0
      %v1557 = vmax.f32 %v1549, 0.0
      %v1558 = vmax.f32 %v1550, 0.0
      %v1559 = vmax.f32 %v1551, 0.0
      %v1560 = vmax.f32 %v1552, 0.0
      %v1561 = vmax.f32 %v1553, %v1554
      %v1562 = vmax.f32 %v1555, %v1556
      %v1563 = vmax.f32 %v1557, %v1558
      %v1564 = vmax.f32 %v1559, %v1560
      %v1569 = vcombine.high %v1561, %v1561
      %v1571 = vunpack.c.l.s4 1983009808
      %v1572 = vunpack.c.0.s8 %v1571
      %v1573 = vlaneseq
      %v1574 = vshrl.u32 %v1573, 7
      %v1575 = vsub.s32 %v1572, %v1574
      %v1576 = vrot.slane %v1561, %v1575
      %v1578 = vunpack.c.l.s4 1983009808
      %v1579 = vunpack.c.0.s8 %v1578
      %v1580 = vlaneseq
      %v1581 = vshrl.u32 %v1580, 7
      %v1582 = vsub.s32 %v1579, %v1581
      %v1583 = vrot.slane %v1569, %v1582
      %v1584 = vcombine.high %v1576, %v1576
      %v1585 = vcombine.high %v1583, %v1583
      %v1586 = vcombine.high %v1562, %v1562
      %v1588 = vunpack.c.l.s4 1983009808
      %v1589 = vunpack.c.0.s8 %v1588
      %v1590 = vlaneseq
      %v1591 = vshrl.u32 %v1590, 7
      %v1592 = vsub.s32 %v1589, %v1591
      %v1593 = vrot.slane %v1562, %v1592
      %v1595 = vunpack.c.l.s4 1983009808
      %v1596 = vunpack.c.0.s8 %v1595
      %v1597 = vlaneseq
      %v1598 = vshrl.u32 %v1597, 7
      %v1599 = vsub.s32 %v1596, %v1598
      %v1600 = vrot.slane %v1586, %v1599
      %v1601 = vcombine.high %v1593, %v1593
      %v1602 = vcombine.high %v1600, %v1600
      %v1603 = vcombine.high %v1563, %v1563
      %v1605 = vunpack.c.l.s4 1983009808
      %v1606 = vunpack.c.0.s8 %v1605
      %v1607 = vlaneseq
      %v1608 = vshrl.u32 %v1607, 7
      %v1609 = vsub.s32 %v1606, %v1608
      %v1610 = vrot.slane %v1563, %v1609
      %v1612 = vunpack.c.l.s4 1983009808
      %v1613 = vunpack.c.0.s8 %v1612
      %v1614 = vlaneseq
      %v1615 = vshrl.u32 %v1614, 7
      %v1616 = vsub.s32 %v1613, %v1615
      %v1617 = vrot.slane %v1603, %v1616
      %v1618 = vcombine.high %v1610, %v1610
      %v1619 = vcombine.high %v1617, %v1617
      %v1620 = vcombine.high %v1564, %v1564
      %v1622 = vunpack.c.l.s4 1983009808
      %v1623 = vunpack.c.0.s8 %v1622
      %v1624 = vlaneseq
      %v1625 = vshrl.u32 %v1624, 7
      %v1626 = vsub.s32 %v1623, %v1625
      %v1627 = vrot.slane %v1564, %v1626
      %v1629 = vunpack.c.l.s4 1983009808
      %v1630 = vunpack.c.0.s8 %v1629
      %v1631 = vlaneseq
      %v1632 = vshrl.u32 %v1631, 7
      %v1633 = vsub.s32 %v1630, %v1632
      %v1634 = vrot.slane %v1620, %v1633
      %v1635 = vcombine.high %v1627, %v1627
      %v1636 = vcombine.high %v1634, %v1634
      %vm1653 = vcmask 1041408
      %v1654 = vsel %vm1653, %v1576, -inf
      %v1655 = vrot.slane %v1654, 4
      %v1656 = vmax.f32 %v1654, %v1655
      %v1657 = vrot.slane %v1656, 2
      %v1658 = vmax.f32 %v1656, %v1657
      %v1659 = vrot.slane %v1658, 1
      %v1660 = vmax.f32 %v1658, %v1659
      %v1661 = vsel %vm1653, %v1584, -inf
      %v1662 = vrot.slane %v1661, 4
      %v1663 = vmax.f32 %v1661, %v1662
      %v1664 = vrot.slane %v1663, 2
      %v1665 = vmax.f32 %v1663, %v1664
      %v1666 = vrot.slane %v1665, 1
      %v1667 = vmax.f32 %v1665, %v1666
      %v1668 = vsel %vm1653, %v1583, -inf
      %v1669 = vrot.slane %v1668, 4
      %v1670 = vmax.f32 %v1668, %v1669
      %v1671 = vrot.slane %v1670, 2
      %v1672 = vmax.f32 %v1670, %v1671
      %v1673 = vrot.slane %v1672, 1
      %v1674 = vmax.f32 %v1672, %v1673
      %v1675 = vsel %vm1653, %v1585, -inf
      %v1676 = vrot.slane %v1675, 4
      %v1677 = vmax.f32 %v1675, %v1676
      %v1678 = vrot.slane %v1677, 2
      %v1679 = vmax.f32 %v1677, %v1678
      %v1680 = vrot.slane %v1679, 1
      %v1681 = vmax.f32 %v1679, %v1680
      %v1682 = vsel %vm1653, %v1593, -inf
      %v1683 = vrot.slane %v1682, 4
      %v1684 = vmax.f32 %v1682, %v1683
      %v1685 = vrot.slane %v1684, 2
      %v1686 = vmax.f32 %v1684, %v1685
      %v1687 = vrot.slane %v1686, 1
      %v1688 = vmax.f32 %v1686, %v1687
      %v1689 = vsel %vm1653, %v1601, -inf
      %v1690 = vrot.slane %v1689, 4
      %v1691 = vmax.f32 %v1689, %v1690
      %v1692 = vrot.slane %v1691, 2
      %v1693 = vmax.f32 %v1691, %v1692
      %v1694 = vrot.slane %v1693, 1
      %v1695 = vmax.f32 %v1693, %v1694
      %v1696 = vsel %vm1653, %v1600, -inf
      %v1697 = vrot.slane %v1696, 4
      %v1698 = vmax.f32 %v1696, %v1697
      %v1699 = vrot.slane %v1698, 2
      %v1700 = vmax.f32 %v1698, %v1699
      %v1701 = vrot.slane %v1700, 1
      %v1702 = vmax.f32 %v1700, %v1701
      %v1703 = vsel %vm1653, %v1602, -inf
      %v1704 = vrot.slane %v1703, 4
      %v1705 = vmax.f32 %v1703, %v1704
      %v1706 = vrot.slane %v1705, 2
      %v1707 = vmax.f32 %v1705, %v1706
      %v1708 = vrot.slane %v1707, 1
      %v1709 = vmax.f32 %v1707, %v1708
      %v1710 = vsel %vm1653, %v1610, -inf
      %v1711 = vrot.slane %v1710, 4
      %v1712 = vmax.f32 %v1710, %v1711
      %v1713 = vrot.slane %v1712, 2
      %v1714 = vmax.f32 %v1712, %v1713
      %v1715 = vrot.slane %v1714, 1
      %v1716 = vmax.f32 %v1714, %v1715
      %v1717 = vsel %vm1653, %v1618, -inf
      %v1718 = vrot.slane %v1717, 4
      %v1719 = vmax.f32 %v1717, %v1718
      %v1720 = vrot.slane %v1719, 2
      %v1721 = vmax.f32 %v1719, %v1720
      %v1722 = vrot.slane %v1721, 1
      %v1723 = vmax.f32 %v1721, %v1722
      %v1724 = vsel %vm1653, %v1617, -inf
      %v1725 = vrot.slane %v1724, 4
      %v1726 = vmax.f32 %v1724, %v1725
      %v1727 = vrot.slane %v1726, 2
      %v1728 = vmax.f32 %v1726, %v1727
      %v1729 = vrot.slane %v1728, 1
      %v1730 = vmax.f32 %v1728, %v1729
      %v1731 = vsel %vm1653, %v1619, -inf
      %v1732 = vrot.slane %v1731, 4
      %v1733 = vmax.f32 %v1731, %v1732
      %v1734 = vrot.slane %v1733, 2
      %v1735 = vmax.f32 %v1733, %v1734
      %v1736 = vrot.slane %v1735, 1
      %v1737 = vmax.f32 %v1735, %v1736
      %v1738 = vsel %vm1653, %v1627, -inf
      %v1739 = vrot.slane %v1738, 4
      %v1740 = vmax.f32 %v1738, %v1739
      %v1741 = vrot.slane %v1740, 2
      %v1742 = vmax.f32 %v1740, %v1741
      %v1743 = vrot.slane %v1742, 1
      %v1744 = vmax.f32 %v1742, %v1743
      %v1745 = vsel %vm1653, %v1635, -inf
      %v1746 = vrot.slane %v1745, 4
      %v1747 = vmax.f32 %v1745, %v1746
      %v1748 = vrot.slane %v1747, 2
      %v1749 = vmax.f32 %v1747, %v1748
      %v1750 = vrot.slane %v1749, 1
      %v1751 = vmax.f32 %v1749, %v1750
      %v1752 = vsel %vm1653, %v1634, -inf
      %v1753 = vrot.slane %v1752, 4
      %v1754 = vmax.f32 %v1752, %v1753
      %v1755 = vrot.slane %v1754, 2
      %v1756 = vmax.f32 %v1754, %v1755
      %v1757 = vrot.slane %v1756, 1
      %v1758 = vmax.f32 %v1756, %v1757
      %v1759 = vsel %vm1653, %v1636, -inf
      %v1760 = vrot.slane %v1759, 4
      %v1761 = vmax.f32 %v1759, %v1760
      %v1762 = vrot.slane %v1761, 2
      %v1763 = vmax.f32 %v1761, %v1762
      %v1764 = vrot.slane %v1763, 1
      %v1765 = vmax.f32 %v1763, %v1764
      %v1766 = vpack.c.bf16 %v1660, %v1660
      %v1767 = vpack.c.bf16 %v1667, %v1667
      %v1768 = vpack.c.bf16 %v1674, %v1674
      %v1769 = vpack.c.bf16 %v1681, %v1681
      %v1770 = vpack.c.bf16 %v1688, %v1688
      %v1771 = vpack.c.bf16 %v1695, %v1695
      %v1772 = vpack.c.bf16 %v1702, %v1702
      %v1773 = vpack.c.bf16 %v1709, %v1709
      %v1774 = vpack.c.bf16 %v1716, %v1716
      %v1775 = vpack.c.bf16 %v1723, %v1723
      %v1776 = vpack.c.bf16 %v1730, %v1730
      %v1777 = vpack.c.bf16 %v1737, %v1737
      %v1778 = vpack.c.bf16 %v1744, %v1744
      %v1779 = vpack.c.bf16 %v1751, %v1751
      %v1780 = vpack.c.bf16 %v1758, %v1758
      %v1781 = vpack.c.bf16 %v1765, %v1765
      %v1799 = vunpack.c.l.s4 1983009808
      %v1800 = vunpack.c.0.s8 %v1799
      %v1801 = vlaneseq
      %v1802 = vshrl.u32 %v1801, 7
      %v1803 = vsub.s32 %v1800, %v1802
      %v1804 = vrot.slane %v1766, %v1803
      %v1806 = vunpack.c.l.s4 1983009808
      %v1807 = vunpack.c.0.s8 %v1806
      %v1808 = vlaneseq
      %v1809 = vshrl.u32 %v1808, 7
      %v1810 = vsub.s32 %v1807, %v1809
      %v1811 = vrot.slane %v1767, %v1810
      %v1813 = vunpack.c.l.s4 1983009808
      %v1814 = vunpack.c.0.s8 %v1813
      %v1815 = vlaneseq
      %v1816 = vshrl.u32 %v1815, 7
      %v1817 = vsub.s32 %v1814, %v1816
      %v1818 = vrot.slane %v1768, %v1817
      %v1820 = vunpack.c.l.s4 1983009808
      %v1821 = vunpack.c.0.s8 %v1820
      %v1822 = vlaneseq
      %v1823 = vshrl.u32 %v1822, 7
      %v1824 = vsub.s32 %v1821, %v1823
      %v1825 = vrot.slane %v1769, %v1824
      %v1827 = vunpack.c.l.s4 1983009808
      %v1828 = vunpack.c.0.s8 %v1827
      %v1829 = vlaneseq
      %v1830 = vshrl.u32 %v1829, 7
      %v1831 = vsub.s32 %v1828, %v1830
      %v1832 = vrot.slane %v1770, %v1831
      %v1834 = vunpack.c.l.s4 1983009808
      %v1835 = vunpack.c.0.s8 %v1834
      %v1836 = vlaneseq
      %v1837 = vshrl.u32 %v1836, 7
      %v1838 = vsub.s32 %v1835, %v1837
      %v1839 = vrot.slane %v1771, %v1838
      %v1841 = vunpack.c.l.s4 1983009808
      %v1842 = vunpack.c.0.s8 %v1841
      %v1843 = vlaneseq
      %v1844 = vshrl.u32 %v1843, 7
      %v1845 = vsub.s32 %v1842, %v1844
      %v1846 = vrot.slane %v1772, %v1845
      %v1848 = vunpack.c.l.s4 1983009808
      %v1849 = vunpack.c.0.s8 %v1848
      %v1850 = vlaneseq
      %v1851 = vshrl.u32 %v1850, 7
      %v1852 = vsub.s32 %v1849, %v1851
      %v1853 = vrot.slane %v1773, %v1852
      %v1855 = vunpack.c.l.s4 1983009808
      %v1856 = vunpack.c.0.s8 %v1855
      %v1857 = vlaneseq
      %v1858 = vshrl.u32 %v1857, 7
      %v1859 = vsub.s32 %v1856, %v1858
      %v1860 = vrot.slane %v1774, %v1859
      %v1862 = vunpack.c.l.s4 1983009808
      %v1863 = vunpack.c.0.s8 %v1862
      %v1864 = vlaneseq
      %v1865 = vshrl.u32 %v1864, 7
      %v1866 = vsub.s32 %v1863, %v1865
      %v1867 = vrot.slane %v1775, %v1866
      %v1869 = vunpack.c.l.s4 1983009808
      %v1870 = vunpack.c.0.s8 %v1869
      %v1871 = vlaneseq
      %v1872 = vshrl.u32 %v1871, 7
      %v1873 = vsub.s32 %v1870, %v1872
      %v1874 = vrot.slane %v1776, %v1873
      %v1876 = vunpack.c.l.s4 1983009808
      %v1877 = vunpack.c.0.s8 %v1876
      %v1878 = vlaneseq
      %v1879 = vshrl.u32 %v1878, 7
      %v1880 = vsub.s32 %v1877, %v1879
      %v1881 = vrot.slane %v1777, %v1880
      %v1883 = vunpack.c.l.s4 1983009808
      %v1884 = vunpack.c.0.s8 %v1883
      %v1885 = vlaneseq
      %v1886 = vshrl.u32 %v1885, 7
      %v1887 = vsub.s32 %v1884, %v1886
      %v1888 = vrot.slane %v1778, %v1887
      %v1890 = vunpack.c.l.s4 1983009808
      %v1891 = vunpack.c.0.s8 %v1890
      %v1892 = vlaneseq
      %v1893 = vshrl.u32 %v1892, 7
      %v1894 = vsub.s32 %v1891, %v1893
      %v1895 = vrot.slane %v1779, %v1894
      %v1897 = vunpack.c.l.s4 1983009808
      %v1898 = vunpack.c.0.s8 %v1897
      %v1899 = vlaneseq
      %v1900 = vshrl.u32 %v1899, 7
      %v1901 = vsub.s32 %v1898, %v1900
      %v1902 = vrot.slane %v1780, %v1901
      %v1904 = vunpack.c.l.s4 1983009808
      %v1905 = vunpack.c.0.s8 %v1904
      %v1906 = vlaneseq
      %v1907 = vshrl.u32 %v1906, 7
      %v1908 = vsub.s32 %v1905, %v1907
      %v1909 = vrot.slane %v1781, %v1908
      %v1911 = vunpack.c.l.s4 1983009808
      %v1912 = vunpack.c.0.s8 %v1911
      %v1913 = vlaneseq
      %v1914 = vshrl.u32 %v1913, 7
      %v1915 = vsub.s32 %v1912, %v1914
      %v1916 = vrot.slane %v1804, %v1915
      %v1918 = vunpack.c.l.s4 1983009808
      %v1919 = vunpack.c.0.s8 %v1918
      %v1920 = vlaneseq
      %v1921 = vshrl.u32 %v1920, 7
      %v1922 = vsub.s32 %v1919, %v1921
      %v1923 = vrot.slane %v1811, %v1922
      %v1925 = vunpack.c.l.s4 1983009808
      %v1926 = vunpack.c.0.s8 %v1925
      %v1927 = vlaneseq
      %v1928 = vshrl.u32 %v1927, 7
      %v1929 = vsub.s32 %v1926, %v1928
      %v1930 = vrot.slane %v1818, %v1929
      %v1932 = vunpack.c.l.s4 1983009808
      %v1933 = vunpack.c.0.s8 %v1932
      %v1934 = vlaneseq
      %v1935 = vshrl.u32 %v1934, 7
      %v1936 = vsub.s32 %v1933, %v1935
      %v1937 = vrot.slane %v1825, %v1936
      %v1939 = vunpack.c.l.s4 1983009808
      %v1940 = vunpack.c.0.s8 %v1939
      %v1941 = vlaneseq
      %v1942 = vshrl.u32 %v1941, 7
      %v1943 = vsub.s32 %v1940, %v1942
      %v1944 = vrot.slane %v1832, %v1943
      %v1946 = vunpack.c.l.s4 1983009808
      %v1947 = vunpack.c.0.s8 %v1946
      %v1948 = vlaneseq
      %v1949 = vshrl.u32 %v1948, 7
      %v1950 = vsub.s32 %v1947, %v1949
      %v1951 = vrot.slane %v1839, %v1950
      %v1953 = vunpack.c.l.s4 1983009808
      %v1954 = vunpack.c.0.s8 %v1953
      %v1955 = vlaneseq
      %v1956 = vshrl.u32 %v1955, 7
      %v1957 = vsub.s32 %v1954, %v1956
      %v1958 = vrot.slane %v1846, %v1957
      %v1960 = vunpack.c.l.s4 1983009808
      %v1961 = vunpack.c.0.s8 %v1960
      %v1962 = vlaneseq
      %v1963 = vshrl.u32 %v1962, 7
      %v1964 = vsub.s32 %v1961, %v1963
      %v1965 = vrot.slane %v1853, %v1964
      %v1967 = vunpack.c.l.s4 1983009808
      %v1968 = vunpack.c.0.s8 %v1967
      %v1969 = vlaneseq
      %v1970 = vshrl.u32 %v1969, 7
      %v1971 = vsub.s32 %v1968, %v1970
      %v1972 = vrot.slane %v1860, %v1971
      %v1974 = vunpack.c.l.s4 1983009808
      %v1975 = vunpack.c.0.s8 %v1974
      %v1976 = vlaneseq
      %v1977 = vshrl.u32 %v1976, 7
      %v1978 = vsub.s32 %v1975, %v1977
      %v1979 = vrot.slane %v1867, %v1978
      %v1981 = vunpack.c.l.s4 1983009808
      %v1982 = vunpack.c.0.s8 %v1981
      %v1983 = vlaneseq
      %v1984 = vshrl.u32 %v1983, 7
      %v1985 = vsub.s32 %v1982, %v1984
      %v1986 = vrot.slane %v1874, %v1985
      %v1988 = vunpack.c.l.s4 1983009808
      %v1989 = vunpack.c.0.s8 %v1988
      %v1990 = vlaneseq
      %v1991 = vshrl.u32 %v1990, 7
      %v1992 = vsub.s32 %v1989, %v1991
      %v1993 = vrot.slane %v1881, %v1992
      %v1995 = vunpack.c.l.s4 1983009808
      %v1996 = vunpack.c.0.s8 %v1995
      %v1997 = vlaneseq
      %v1998 = vshrl.u32 %v1997, 7
      %v1999 = vsub.s32 %v1996, %v1998
      %v2000 = vrot.slane %v1888, %v1999
      %v2002 = vunpack.c.l.s4 1983009808
      %v2003 = vunpack.c.0.s8 %v2002
      %v2004 = vlaneseq
      %v2005 = vshrl.u32 %v2004, 7
      %v2006 = vsub.s32 %v2003, %v2005
      %v2007 = vrot.slane %v1895, %v2006
      %v2009 = vunpack.c.l.s4 1983009808
      %v2010 = vunpack.c.0.s8 %v2009
      %v2011 = vlaneseq
      %v2012 = vshrl.u32 %v2011, 7
      %v2013 = vsub.s32 %v2010, %v2012
      %v2014 = vrot.slane %v1902, %v2013
      %v2016 = vunpack.c.l.s4 1983009808
      %v2017 = vunpack.c.0.s8 %v2016
      %v2018 = vlaneseq
      %v2019 = vshrl.u32 %v2018, 7
      %v2020 = vsub.s32 %v2017, %v2019
      %v2021 = vrot.slane %v1909, %v2020
      %v2022 = vunpack.c.l.b16 %v1916
      %v2023 = vunpack.c.l.b16 %v1923
      %v2024 = vunpack.c.l.b16 %v1930
      %v2025 = vunpack.c.l.b16 %v1937
      %v2026 = vunpack.c.l.b16 %v1944
      %v2027 = vunpack.c.l.b16 %v1951
      %v2028 = vunpack.c.l.b16 %v1958
      %v2029 = vunpack.c.l.b16 %v1965
      %v2030 = vunpack.c.l.b16 %v1972
      %v2031 = vunpack.c.l.b16 %v1979
      %v2032 = vunpack.c.l.b16 %v1986
      %v2033 = vunpack.c.l.b16 %v1993
      %v2034 = vunpack.c.l.b16 %v2000
      %v2035 = vunpack.c.l.b16 %v2007
      %v2036 = vunpack.c.l.b16 %v2014
      %v2037 = vunpack.c.l.b16 %v2021
      %v2038 = vrot.slane %v2023, 7
      %vm2039 = vcmask 1041409
      %v2040 = vsel %vm2039, %v2038, %v2022
      %v2041 = vrot.slane %v2024, 6
      %vm2042 = vcmask 1042434
      %v2043 = vsel %vm2042, %v2041, %v2040
      %v2044 = vrot.slane %v2025, 5
      %vm2045 = vcmask 1043459
      %v2046 = vsel %vm2045, %v2044, %v2043
      %v2047 = vrot.slane %v2027, 7
      %v2048 = vsel %vm2039, %v2047, %v2026
      %v2049 = vrot.slane %v2028, 6
      %v2050 = vsel %vm2042, %v2049, %v2048
      %v2051 = vrot.slane %v2029, 5
      %v2052 = vsel %vm2045, %v2051, %v2050
      %v2053 = vrot.slane %v2031, 7
      %v2054 = vsel %vm2039, %v2053, %v2030
      %v2055 = vrot.slane %v2032, 6
      %v2056 = vsel %vm2042, %v2055, %v2054
      %v2057 = vrot.slane %v2033, 5
      %v2058 = vsel %vm2045, %v2057, %v2056
      %v2059 = vrot.slane %v2035, 7
      %v2060 = vsel %vm2039, %v2059, %v2034
      %v2061 = vrot.slane %v2036, 6
      %v2062 = vsel %vm2042, %v2061, %v2060
      %v2063 = vrot.slane %v2037, 5
      %v2064 = vsel %vm2045, %v2063, %v2062
      %v2065 = vpack.c.b16 %v2046, %v2046
      %v2066 = vpack.c.b16 %v2052, %v2052
      %v2067 = vpack.c.b16 %v2058, %v2058
      %v2068 = vpack.c.b16 %v2064, %v2064
      %v2070 = vunpack.c.l.s4 1983009808
      %v2071 = vunpack.c.0.s8 %v2070
      %v2072 = vlaneseq
      %v2073 = vshrl.u32 %v2072, 7
      %v2074 = vsub.s32 %v2071, %v2073
      %v2075 = vrot.slane %v2065, %v2074
      %v2077 = vunpack.c.l.s4 1983009808
      %v2078 = vunpack.c.0.s8 %v2077
      %v2079 = vlaneseq
      %v2080 = vshrl.u32 %v2079, 7
      %v2081 = vsub.s32 %v2078, %v2080
      %v2082 = vrot.slane %v2066, %v2081
      %v2084 = vunpack.c.l.s4 1983009808
      %v2085 = vunpack.c.0.s8 %v2084
      %v2086 = vlaneseq
      %v2087 = vshrl.u32 %v2086, 7
      %v2088 = vsub.s32 %v2085, %v2087
      %v2089 = vrot.slane %v2067, %v2088
      %v2091 = vunpack.c.l.s4 1983009808
      %v2092 = vunpack.c.0.s8 %v2091
      %v2093 = vlaneseq
      %v2094 = vshrl.u32 %v2093, 7
      %v2095 = vsub.s32 %v2092, %v2094
      %v2096 = vrot.slane %v2068, %v2095
      %2101 = vst [vmem:[%s192] sm:$0x3] %v2075
      %2102 = vst [vmem:[%s192 + $0x2] sm:$0x3] %v2082
      %2103 = vst [vmem:[%s192 + $0x4] sm:$0x3] %v2089
      %2104 = vst [vmem:[%s192 + $0x6] sm:$0x3] %v2096
      %s2105 = smul.u32 4, %s19
      %p2106 = scmp.lt.s32.totalorder %s18, 1
      %s2107 = scalar_select %p2106, %s18, 1
      %p2108 = scmp.lt.s32.totalorder %s2105, 3
      %s2109 = scalar_select %p2108, %s2105, 3
      %s2110 = smul.addr %s2107, 4
      %s2111 = sadd.s32 %s2109, %s2110
      %s2112 = smul.addr %s2111, 2
      %s2113 = scalar_lea.vmem %s3, %s2112
      // Predicated region
      $region33: #{_lambda_.6} parent=31 // pred_check
        %p2114 = pneg %p114
      $region34: #{_lambda_.6} parent=31 // pred_check_branch
        %2116 = sbr.rel (%p2114) target = $region36
      $region35: #{_lambda_.6} parent=31 // pred_region
        %s2117 = smul.u32 4, %s19
      $region36: #{_lambda_.6} parent=31 // pred_fallthru
        _
    $region32: #{_lambda_.6} parent=5 // pred_fallthru
      _
    %p2118 = scmp.le.s32.totalorder 2, %s9
    // Predicated region
    $region37: #{_lambda_.6} parent=5 // pred_check
      %p2119 = pneg %p2118
    $region38: #{_lambda_.6} parent=5 // pred_check_branch
      %2121 = sbr.rel (%p2119) target = $region40
    $region39: #{_lambda_.6} parent=5 // pred_region
      %s2122 = ssub.s32 %s9, 2
      // Predicated region
      $region41: #{_lambda_.6} parent=39 // pred_check
        %p2123 = pneg %p120
      $region42: #{_lambda_.6} parent=39 // pred_check_branch
        %2125 = sbr.rel (%p2123) target = $region44
      $region43: #{_lambda_.6} parent=39 // pred_region
        %s2126 = smul.u32 4, %s21
        %p2127 = scmp.lt.s32.totalorder %s20, 1
        %s2128 = scalar_select %p2127, %s20, 1
        %p2129 = scmp.lt.s32.totalorder %s2126, 3
        %s2130 = scalar_select %p2129, %s2126, 3
        %s2131 = smul.addr %s2128, 4
        %s2132 = sadd.s32 %s2130, %s2131
        %s2133 = smul.addr %s2132, 2
        %s2134 = scalar_lea.vmem %s3, %s2133
      $region44: #{_lambda_.6} parent=39 // pred_fallthru
        _
    $region40: #{_lambda_.6} parent=5 // pred_fallthru
      _
  $region6: #{_lambda_.6} parent=0 // loop_footer
    %s13 = sadd.s32 1, %s9
  $region7: #{_lambda_.6} parent=0 // loop_footer_branch
    %8 = sbr.rel target = $region3
  $region8: #{_lambda_.6} parent=0 // loop_exit
    _

// kernel: _lambda_.7
$region0: #{_lambda_.7}
  #allocation0 [shape = 'u32[]', space=smem, size = 0x4, offset = 0x4, fixed_abs, tag = 'smem constant byte address 0x4 - core index']
  #allocation1 [shape = 'u32[144,128]{1,0:T(1,128)}', space=vmem, size = 0x12000, scoped, tag = 'internal scratch']
  %s0 = inlined_call_operand.vmem [shape: bf16[2,4,4,128], index: 0, kind: input, shape index: {}]
  %s1 = inlined_call_operand.vmem [shape: bf16[1152,256], index: 1, kind: input, shape index: {}]
  %s2 = inlined_call_operand.vmem [shape: f32[1,256], index: 2, kind: input, shape index: {}]
  %s3 = inlined_call_operand.vmem [shape: bf16[2,4,4,256], index: 3, kind: output, shape index: {}]
  %s4 = sld [smem:[#allocation0]]
  $region45: #{_lambda_.7} parent=0
    _
  %s6 = ssub.s32 1, %s4
  %s7 = scalar_select 0, %s6, %s4
  loop: start=0, step=1, limit=4
  $region2: #{_lambda_.7} parent=0 // loop_pre_header
    _
  $region3: #{_lambda_.7} parent=0 // loop_header
    %s9 = sphi 0, %s13
    %p10 = scmp.ge.s32.totalorder %s9, 4
    %s16 = sphi 0, %s28
    %s17 = sphi 0, %s24
    %s18 = sphi 0, %s16
    %s19 = sphi 0, %s17
    %s20 = sphi 0, %s18
    %s21 = sphi 0, %s19
    %s31 = sphi 0, %s33
    %s34 = sphi 0, %s31
    %s35 = sphi 0, %s34
    %s51 = sphi 0, %s35
    %s55 = sphi 0, %s55
    %s57 = sphi 0, %s55
    %s58 = sphi 0, %s57
    %s72 = sphi 0, %s58
    %s76 = sphi 0, %s76
    %s78 = sphi 0, %s76
    %s79 = sphi 0, %s78
    %s93 = sphi 0, %s79
    %s101 = sphi 0, %s103
    %s104 = sphi 0, %s101
    %s105 = sphi 0, %s104
    %s121 = sphi 0, %s105
  $region4: #{_lambda_.7} parent=0 // loop_header_branch
    %12 = sbr.rel (%p10) target = $region8
  $region5: #{_lambda_.7} parent=0 // loop_body
    %s14 = ssub.s32 %s9, 1
    %s15 = ssub.s32 %s9, 2
    %s22 = sadd.s32 1, %s17
    %p23 = scmp.ge.s32.totalorder %s22, 1
    %s24 = scalar_select %p23, 0, %s22
    %s25 = sadd.s32 1, %s16
    %s26 = scalar_select %p23, %s25, %s16
    %p27 = scmp.ge.s32.totalorder %s26, 2
    %s28 = scalar_select %p27, 0, %s26
    %s29 = ssub.s32 %s16, %s28
    %p30 = scmp.eq.s32.totalorder %s29, 0
    %s32 = sadd.s32 %s31, 1
    %s33 = scalar_select %p30, %s31, %s32
    %p36 = pneg %p30
    %p37 = scmp.eq.s32.totalorder %s9, 1
    %p38 = por %p36, %p37
    %p39 = scmp.ne.s32.totalorder %s31, %s34
    %p40 = scmp.eq.s32.totalorder %s9, 0
    %p41 = por %p39, %p40
    %p42 = scmp.ne.s32.totalorder %s31, %s34
    %p43 = scmp.eq.s32.totalorder %s14, 1
    %p44 = por %p42, %p43
    %p45 = scmp.ne.s32.totalorder %s34, %s35
    %p46 = scmp.eq.s32.totalorder %s14, 0
    %p47 = por %p45, %p46
    %p48 = scmp.ne.s32.totalorder %s34, %s35
    %p49 = scmp.eq.s32.totalorder %s15, 1
    %p50 = por %p48, %p49
    %p52 = scmp.ne.s32.totalorder %s35, %s51
    %p53 = scmp.eq.s32.totalorder %s15, 0
    %p54 = por %p52, %p53
    %s56 = sadd.s32 %s55, 1
    %p59 = scmp.eq.s32.totalorder %s9, 1
    %p60 = scmp.ne.s32.totalorder %s55, %s57
    %p61 = scmp.eq.s32.totalorder %s9, 0
    %p62 = por %p60, %p61
    %p63 = scmp.ne.s32.totalorder %s55, %s57
    %p64 = scmp.eq.s32.totalorder %s14, 1
    %p65 = por %p63, %p64
    %p66 = scmp.ne.s32.totalorder %s57, %s58
    %p67 = scmp.eq.s32.totalorder %s14, 0
    %p68 = por %p66, %p67
    %p69 = scmp.ne.s32.totalorder %s57, %s58
    %p70 = scmp.eq.s32.totalorder %s15, 1
    %p71 = por %p69, %p70
    %p73 = scmp.ne.s32.totalorder %s58, %s72
    %p74 = scmp.eq.s32.totalorder %s15, 0
    %p75 = por %p73, %p74
    %s77 = sadd.s32 %s76, 1
    %p80 = scmp.eq.s32.totalorder %s9, 1
    %p81 = scmp.ne.s32.totalorder %s76, %s78
    %p82 = scmp.eq.s32.totalorder %s9, 0
    %p83 = por %p81, %p82
    %p84 = scmp.ne.s32.totalorder %s76, %s78
    %p85 = scmp.eq.s32.totalorder %s14, 1
    %p86 = por %p84, %p85
    %p87 = scmp.ne.s32.totalorder %s78, %s79
    %p88 = scmp.eq.s32.totalorder %s14, 0
    %p89 = por %p87, %p88
    %p90 = scmp.ne.s32.totalorder %s78, %s79
    %p91 = scmp.eq.s32.totalorder %s15, 1
    %p92 = por %p90, %p91
    %p94 = scmp.ne.s32.totalorder %s79, %s93
    %p95 = scmp.eq.s32.totalorder %s15, 0
    %p96 = por %p94, %p95
    %s97 = ssub.s32 %s16, %s28
    %s98 = ssub.s32 %s17, %s24
    %s99 = sor.u32 %s97, %s98
    %p100 = scmp.eq.s32.totalorder %s99, 0
    %s102 = sadd.s32 %s101, 1
    %s103 = scalar_select %p100, %s101, %s102
    %p106 = pneg %p100
    %p107 = scmp.eq.s32.totalorder %s9, 1
    %p108 = por %p106, %p107
    %p109 = scmp.ne.s32.totalorder %s101, %s104
    %p110 = scmp.eq.s32.totalorder %s9, 0
    %p111 = por %p109, %p110
    %p112 = scmp.ne.s32.totalorder %s101, %s104
    %p113 = scmp.eq.s32.totalorder %s14, 1
    %p114 = por %p112, %p113
    %p115 = scmp.ne.s32.totalorder %s104, %s105
    %p116 = scmp.eq.s32.totalorder %s14, 0
    %p117 = por %p115, %p116
    %p118 = scmp.ne.s32.totalorder %s104, %s105
    %p119 = scmp.eq.s32.totalorder %s15, 1
    %p120 = por %p118, %p119
    %p122 = scmp.ne.s32.totalorder %s105, %s121
    %p123 = scmp.eq.s32.totalorder %s15, 0
    %p124 = por %p122, %p123
    %p125 = scmp.le.s32.totalorder 1, %s9
    %p126 = scmp.lt.s32.totalorder %s9, 3
    %p127 = pnand %p125, %p126
    %p128 = pneg %p127
    // Predicated region
    $region9: #{_lambda_.7} parent=5 // pred_check
      _
    $region10: #{_lambda_.7} parent=5 // pred_check_branch
      %130 = sbr.rel (%p127) target = $region12
    $region11: #{_lambda_.7} parent=5 // pred_region
      %s131 = ssub.s32 %s9, 1
      // Predicated region
      $region13: #{_lambda_.7} parent=11 // pred_check
        %p132 = pneg %p68
      $region14: #{_lambda_.7} parent=11 // pred_check_branch
        %134 = sbr.rel (%p132) target = $region16
      $region15: #{_lambda_.7} parent=11 // pred_region
        _
      $region16: #{_lambda_.7} parent=11 // pred_fallthru
        _
      // Predicated region
      $region17: #{_lambda_.7} parent=11 // pred_check
        %p135 = pneg %p89
      $region18: #{_lambda_.7} parent=11 // pred_check_branch
        %137 = sbr.rel (%p135) target = $region20
      $region19: #{_lambda_.7} parent=11 // pred_region
        _
      $region20: #{_lambda_.7} parent=11 // pred_fallthru
        _
    $region12: #{_lambda_.7} parent=5 // pred_fallthru
      _
    %p138 = scmp.lt.s32.totalorder %s9, 2
    // Predicated region
    $region21: #{_lambda_.7} parent=5 // pred_check
      %p139 = pneg %p138
    $region22: #{_lambda_.7} parent=5 // pred_check_branch
      %141 = sbr.rel (%p139) target = $region24
    $region23: #{_lambda_.7} parent=5 // pred_region
      // Predicated region
      $region25: #{_lambda_.7} parent=23 // pred_check
        %p142 = pneg %p41
      $region26: #{_lambda_.7} parent=23 // pred_check_branch
        %144 = sbr.rel (%p142) target = $region28
      $region27: #{_lambda_.7} parent=23 // pred_region
        %p145 = scmp.lt.s32.totalorder %s16, 1
        %s146 = scalar_select %p145, %s16, 1
        %s147 = smul.addr %s146, 4
        %s148 = smul.addr %s147, 2
        %s149 = scalar_lea.vmem %s0, %s148
      $region28: #{_lambda_.7} parent=23 // pred_fallthru
        _
    $region24: #{_lambda_.7} parent=5 // pred_fallthru
      _
    %p150 = scmp.le.s32.totalorder 1, %s9
    %p151 = scmp.lt.s32.totalorder %s9, 3
    %p152 = pnand %p150, %p151
    %p153 = pneg %p152
    // Predicated region
    $region29: #{_lambda_.7} parent=5 // pred_check
      _
    $region30: #{_lambda_.7} parent=5 // pred_check_branch
      %155 = sbr.rel (%p152) target = $region32
    $region31: #{_lambda_.7} parent=5 // pred_region
      %s156 = ssub.s32 %s9, 1
      %p157 = scmp.lt.s32.totalorder %s18, 1
      %s158 = scalar_select %p157, %s18, 1
      %s159 = smul.addr %s158, 4
      %s160 = smul.addr %s159, 2
      %s161 = scalar_lea.vmem %s0, %s160
      %p162 = pneg %p47
      %p163 = pneg %p44
      %p164 = pneg %p68
      %p165 = pneg %p65
      %p166 = pneg %p89
      %p167 = pneg %p86
      %p168 = pneg %p117
      %p169 = pneg %p114
      %s170 = smul.u32 4, %s19
      %p171 = scmp.lt.s32.totalorder %s18, 1
      %s172 = scalar_select %p171, %s18, 1
      %p173 = scmp.lt.s32.totalorder %s170, 3
      %s174 = scalar_select %p173, %s170, 3
      %s175 = smul.addr %s174, 2
      %s176 = smul.addr %s172, 8
      %s177 = sadd.s32 %s175, %s176
      %s178 = smul.addr %s177, 2
      %s179 = scalar_lea.vmem %s3, %s178
      %p180 = scmp.lt.s32.totalorder %s18, 1
      %s181 = scalar_select %p180, %s18, 1
      %s182 = smul.addr %s181, 4
      %s183 = smul.addr %s182, 2
      %s184 = scalar_lea.vmem %s0, %s183
      %s185 = smul.u32 4, %s19
      %p186 = scmp.lt.s32.totalorder %s18, 1
      %s187 = scalar_select %p186, %s18, 1
      %p188 = scmp.lt.s32.totalorder %s185, 3
      %s189 = scalar_select %p188, %s185, 3
      %s190 = smul.addr %s189, 2
      %s191 = smul.addr %s187, 8
      %s192 = sadd.s32 %s190, %s191
      %s193 = smul.addr %s192, 2
      %s194 = scalar_lea.vmem %s3, %s193
      %s195 = smul.u32 4, %s19
      %s197 = smul.u32 %s19, 4
      %s198 = smul.addr %s197, 2
      %s199 = scalar_lea.vmem %s184, %s198
      %v200 = vld [vmem:[%s199] sm:$0x3]
      %v201 = vld [vmem:[%s199 + $0x2] sm:$0x3]
      %v202 = vld [vmem:[%s199 + $0x4] sm:$0x3]
      %v203 = vld [vmem:[%s199 + $0x6] sm:$0x3]
      %s204 = ssub.s32 %s197, 1
      %p205 = scmp.gt.s32.totalorder %s204, 0
      %s206 = scalar_select %p205, %s204, 0
      %s207 = smul.addr %s206, 2
      %s208 = scalar_lea.vmem %s184, %s207
      %v209 = vld [vmem:[%s208] sm:$0x3]
      %p210 = scmp.gt.s32.totalorder %s197, 0
      %s211 = scalar_select %p210, 1, 0
      %s212 = scvt.s32.f32 %s211
      %p214 = scmp.ne.f32.partialorder %s212, %s212
      %s215 = sshrl.u32 %s212, 16
      %s216 = sand.u32 %s215, 1
      %s217 = sadd.s32 32767, %s216
      %s218 = sadd.s32 %s212, %s217
      %s219 = sand.u32 %s218, 4294901760
      %s220 = scalar_select %p214, 2143289344, %s219
      %s222 = sshrl.u32 %s220, 16
      %s223 = sshll.u32 %s222, 16
      %s224 = sor.u32 %s222, %s223
      %v225 = vstv %s224
      %v227 = vmul.bf16 %v209, %v225
      %s228 = sadd.s32 %s197, 4
      %p229 = scmp.lt.s32.totalorder %s228, 3
      %s230 = scalar_select %p229, %s228, 3
      %s231 = smul.addr %s230, 2
      %s232 = scalar_lea.vmem %s184, %s231
      %v233 = vld [vmem:[%s232] sm:$0x3]
      %p234 = scmp.lt.s32.totalorder %s228, 4
      %s235 = scalar_select %p234, 1, 0
      %s236 = scvt.s32.f32 %s235
      %p238 = scmp.ne.f32.partialorder %s236, %s236
      %s239 = sshrl.u32 %s236, 16
      %s240 = sand.u32 %s239, 1
      %s241 = sadd.s32 32767, %s240
      %s242 = sadd.s32 %s236, %s241
      %s243 = sand.u32 %s242, 4294901760
      %s244 = scalar_select %p238, 2143289344, %s243
      %s246 = sshrl.u32 %s244, 16
      %s247 = sshll.u32 %s246, 16
      %s248 = sor.u32 %s246, %s247
      %v249 = vstv %s248
      %v251 = vmul.bf16 %v233, %v249
      %v259 = vunpack.c.l.s4 1983009808
      %v260 = vunpack.c.0.s8 %v259
      %v261 = vlaneseq
      %v262 = vshrl.u32 %v261, 7
      %v263 = vsub.s32 %v260, %v262
      %v264 = vrot.slane %v227, %v263
      %v266 = vunpack.c.l.s4 1983009808
      %v267 = vunpack.c.0.s8 %v266
      %v268 = vlaneseq
      %v269 = vshrl.u32 %v268, 7
      %v270 = vsub.s32 %v267, %v269
      %v271 = vrot.slane %v200, %v270
      %v273 = vunpack.c.l.s4 1983009808
      %v274 = vunpack.c.0.s8 %v273
      %v275 = vlaneseq
      %v276 = vshrl.u32 %v275, 7
      %v277 = vsub.s32 %v274, %v276
      %v278 = vrot.slane %v201, %v277
      %v280 = vunpack.c.l.s4 1983009808
      %v281 = vunpack.c.0.s8 %v280
      %v282 = vlaneseq
      %v283 = vshrl.u32 %v282, 7
      %v284 = vsub.s32 %v281, %v283
      %v285 = vrot.slane %v202, %v284
      %v287 = vunpack.c.l.s4 1983009808
      %v288 = vunpack.c.0.s8 %v287
      %v289 = vlaneseq
      %v290 = vshrl.u32 %v289, 7
      %v291 = vsub.s32 %v288, %v290
      %v292 = vrot.slane %v203, %v291
      %v294 = vunpack.c.l.s4 1983009808
      %v295 = vunpack.c.0.s8 %v294
      %v296 = vlaneseq
      %v297 = vshrl.u32 %v296, 7
      %v298 = vsub.s32 %v295, %v297
      %v299 = vrot.slane %v251, %v298
      %v301 = vshrl.u32 %v264, 16
      %v303 = vrot.slane %v301, 7
      %v304 = vshll.u32 %v264, 16
      %v306 = vor.u32 %v303, %v304
      %v308 = vshrl.u32 %v271, 16
      %v310 = vrot.slane %v308, 7
      %v311 = vshll.u32 %v271, 16
      %v313 = vor.u32 %v310, %v311
      %v315 = vshrl.u32 %v278, 16
      %v317 = vrot.slane %v315, 7
      %v318 = vshll.u32 %v278, 16
      %v320 = vor.u32 %v317, %v318
      %v322 = vshrl.u32 %v285, 16
      %v324 = vrot.slane %v322, 7
      %v325 = vshll.u32 %v285, 16
      %v327 = vor.u32 %v324, %v325
      %v329 = vshrl.u32 %v292, 16
      %v331 = vrot.slane %v329, 7
      %v332 = vshll.u32 %v292, 16
      %v334 = vor.u32 %v331, %v332
      %v336 = vshrl.u32 %v299, 16
      %v338 = vrot.slane %v336, 7
      %v339 = vshll.u32 %v299, 16
      %v341 = vor.u32 %v338, %v339
      %vm348 = vcmask 1040384
      %vm349 = vsmask.f32 256
      %vm350 = vmand %vm348, %vm349
      %v351 = vsel %vm350, 0, %v306
      %v352 = vsel %vm350, 0, %v313
      %v353 = vsel %vm350, 0, %v320
      %v354 = vsel %vm350, 0, %v327
      %v355 = vsel %vm350, 0, %v334
      %v356 = vsel %vm350, 0, %v341
      %vm357 = vcmask 1042432
      %vm358 = vsmask.f32 2304
      %vm359 = vmand %vm357, %vm358
      %v360 = vsel %vm359, %v351, 0
      %v361 = vsel %vm359, %v352, 0
      %v362 = vsel %vm359, %v353, 0
      %v363 = vsel %vm359, %v354, 0
      %v364 = vsel %vm359, %v355, 0
      %v365 = vsel %vm359, %v356, 0
      %v367 = vshrl.u32 %v360, 16
      %v369 = vshll.u32 %v360, 16
      %v371 = vrot.slane %v369, 1
      %v372 = vor.u32 %v367, %v371
      %v374 = vshrl.u32 %v361, 16
      %v376 = vshll.u32 %v361, 16
      %v378 = vrot.slane %v376, 1
      %v379 = vor.u32 %v374, %v378
      %v381 = vshrl.u32 %v362, 16
      %v383 = vshll.u32 %v362, 16
      %v385 = vrot.slane %v383, 1
      %v386 = vor.u32 %v381, %v385
      %v388 = vshrl.u32 %v363, 16
      %v390 = vshll.u32 %v363, 16
      %v392 = vrot.slane %v390, 1
      %v393 = vor.u32 %v388, %v392
      %v398 = vrot.slane %v360, 1
      %v399 = vrot.slane %v361, 1
      %v400 = vrot.slane %v362, 1
      %v401 = vrot.slane %v363, 1
      %v402 = vcombine.low %v360, %v372
      %v404 = vunpack.c.l.s4 1983009808
      %v405 = vunpack.c.0.s8 %v404
      %v406 = vlaneseq
      %v407 = vshrl.u32 %v406, 7
      %v408 = vsub.s32 %v405, %v407
      %v409 = vrot.slane %v402, %v408
      %v411 = vunpack.c.l.s4 1983009808
      %v412 = vunpack.c.0.s8 %v411
      %v413 = vlaneseq
      %v414 = vshrl.u32 %v413, 7
      %v415 = vsub.s32 %v412, %v414
      %v416 = vrot.slane %v398, %v415
      %v417 = vcombine.low %v409, %v416
      %v418 = vcombine.low %v361, %v379
      %v420 = vunpack.c.l.s4 1983009808
      %v421 = vunpack.c.0.s8 %v420
      %v422 = vlaneseq
      %v423 = vshrl.u32 %v422, 7
      %v424 = vsub.s32 %v421, %v423
      %v425 = vrot.slane %v418, %v424
      %v427 = vunpack.c.l.s4 1983009808
      %v428 = vunpack.c.0.s8 %v427
      %v429 = vlaneseq
      %v430 = vshrl.u32 %v429, 7
      %v431 = vsub.s32 %v428, %v430
      %v432 = vrot.slane %v399, %v431
      %v433 = vcombine.low %v425, %v432
      %v434 = vcombine.low %v362, %v386
      %v436 = vunpack.c.l.s4 1983009808
      %v437 = vunpack.c.0.s8 %v436
      %v438 = vlaneseq
      %v439 = vshrl.u32 %v438, 7
      %v440 = vsub.s32 %v437, %v439
      %v441 = vrot.slane %v434, %v440
      %v443 = vunpack.c.l.s4 1983009808
      %v444 = vunpack.c.0.s8 %v443
      %v445 = vlaneseq
      %v446 = vshrl.u32 %v445, 7
      %v447 = vsub.s32 %v444, %v446
      %v448 = vrot.slane %v400, %v447
      %v449 = vcombine.low %v441, %v448
      %v450 = vcombine.low %v363, %v393
      %v452 = vunpack.c.l.s4 1983009808
      %v453 = vunpack.c.0.s8 %v452
      %v454 = vlaneseq
      %v455 = vshrl.u32 %v454, 7
      %v456 = vsub.s32 %v453, %v455
      %v457 = vrot.slane %v450, %v456
      %v459 = vunpack.c.l.s4 1983009808
      %v460 = vunpack.c.0.s8 %v459
      %v461 = vlaneseq
      %v462 = vshrl.u32 %v461, 7
      %v463 = vsub.s32 %v460, %v462
      %v464 = vrot.slane %v401, %v463
      %v465 = vcombine.low %v457, %v464
      %v466 = vld [vmem:[%s1] sm:$0xff]
      %v467 = vld [vmem:[%s1 + $0x8] sm:$0xff]
      %v468 = vld [vmem:[%s1 + $0x10] sm:$0xff]
      %v469 = vld [vmem:[%s1 + $0x18] sm:$0xff]
      %v470 = vld [vmem:[%s1 + $0x20] sm:$0xff]
      %v471 = vld [vmem:[%s1 + $0x28] sm:$0xff]
      %v472 = vld [vmem:[%s1 + $0x30] sm:$0xff]
      %v473 = vld [vmem:[%s1 + $0x38] sm:$0xff]
      %v474 = vld [vmem:[%s1 + $0x40] sm:$0xff]
      %v475 = vld [vmem:[%s1 + $0x48] sm:$0xff]
      %v476 = vld [vmem:[%s1 + $0x50] sm:$0xff]
      %v477 = vld [vmem:[%s1 + $0x58] sm:$0xff]
      %v478 = vld [vmem:[%s1 + $0x60] sm:$0xff]
      %v479 = vld [vmem:[%s1 + $0x68] sm:$0xff]
      %v480 = vld [vmem:[%s1 + $0x70] sm:$0xff]
      %v481 = vld [vmem:[%s1 + $0x78] sm:$0xff]
      %v482 = vld [vmem:[%s1 + $0x80] sm:$0xff]
      %v483 = vld [vmem:[%s1 + $0x88] sm:$0xff]
      %v484 = vld [vmem:[%s1 + $0x90] sm:$0xff]
      %v485 = vld [vmem:[%s1 + $0x98] sm:$0xff]
      %v486 = vld [vmem:[%s1 + $0xa0] sm:$0xff]
      %v487 = vld [vmem:[%s1 + $0xa8] sm:$0xff]
      %v488 = vld [vmem:[%s1 + $0xb0] sm:$0xff]
      %v489 = vld [vmem:[%s1 + $0xb8] sm:$0xff]
      %v490 = vld [vmem:[%s1 + $0xc0] sm:$0xff]
      %v491 = vld [vmem:[%s1 + $0xc8] sm:$0xff]
      %v492 = vld [vmem:[%s1 + $0xd0] sm:$0xff]
      %v493 = vld [vmem:[%s1 + $0xd8] sm:$0xff]
      %v494 = vld [vmem:[%s1 + $0xe0] sm:$0xff]
      %v495 = vld [vmem:[%s1 + $0xe8] sm:$0xff]
      %v496 = vld [vmem:[%s1 + $0xf0] sm:$0xff]
      %v497 = vld [vmem:[%s1 + $0xf8] sm:$0xff]
      %v498 = vld [vmem:[%s1 + $0x100] sm:$0xff]
      %v499 = vld [vmem:[%s1 + $0x108] sm:$0xff]
      %v500 = vld [vmem:[%s1 + $0x110] sm:$0xff]
      %v501 = vld [vmem:[%s1 + $0x118] sm:$0xff]
      %v502 = vld [vmem:[%s1 + $0x120] sm:$0xff]
      %v503 = vld [vmem:[%s1 + $0x128] sm:$0xff]
      %v504 = vld [vmem:[%s1 + $0x130] sm:$0xff]
      %v505 = vld [vmem:[%s1 + $0x138] sm:$0xff]
      %v506 = vld [vmem:[%s1 + $0x140] sm:$0xff]
      %v507 = vld [vmem:[%s1 + $0x148] sm:$0xff]
      %v508 = vld [vmem:[%s1 + $0x150] sm:$0xff]
      %v509 = vld [vmem:[%s1 + $0x158] sm:$0xff]
      %v510 = vld [vmem:[%s1 + $0x160] sm:$0xff]
      %v511 = vld [vmem:[%s1 + $0x168] sm:$0xff]
      %v512 = vld [vmem:[%s1 + $0x170] sm:$0xff]
      %v513 = vld [vmem:[%s1 + $0x178] sm:$0xff]
      %v515 = vshrl.u32 %v364, 16
      %v517 = vshll.u32 %v364, 16
      %v519 = vrot.slane %v517, 1
      %v520 = vor.u32 %v515, %v519
      %v522 = vrot.slane %v364, 1
      %v523 = vcombine.low %v364, %v520
      %v525 = vunpack.c.l.s4 1983009808
      %v526 = vunpack.c.0.s8 %v525
      %v527 = vlaneseq
      %v528 = vshrl.u32 %v527, 7
      %v529 = vsub.s32 %v526, %v528
      %v530 = vrot.slane %v523, %v529
      %v532 = vunpack.c.l.s4 1983009808
      %v533 = vunpack.c.0.s8 %v532
      %v534 = vlaneseq
      %v535 = vshrl.u32 %v534, 7
      %v536 = vsub.s32 %v533, %v535
      %v537 = vrot.slane %v522, %v536
      %v538 = vcombine.low %v530, %v537
      %v539 = vld [vmem:[%s1 + $0x180] sm:$0xff]
      %v540 = vld [vmem:[%s1 + $0x188] sm:$0xff]
      %v541 = vld [vmem:[%s1 + $0x190] sm:$0xff]
      %v542 = vld [vmem:[%s1 + $0x198] sm:$0xff]
      %v543 = vld [vmem:[%s1 + $0x1a0] sm:$0xff]
      %v544 = vld [vmem:[%s1 + $0x1a8] sm:$0xff]
      %v545 = vld [vmem:[%s1 + $0x1b0] sm:$0xff]
      %v546 = vld [vmem:[%s1 + $0x1b8] sm:$0xff]
      %v547 = vld [vmem:[%s1 + $0x1c0] sm:$0xff]
      %v548 = vld [vmem:[%s1 + $0x1c8] sm:$0xff]
      %v549 = vld [vmem:[%s1 + $0x1d0] sm:$0xff]
      %v550 = vld [vmem:[%s1 + $0x1d8] sm:$0xff]
      %v551 = vld [vmem:[%s1 + $0x1e0] sm:$0xff]
      %v552 = vld [vmem:[%s1 + $0x1e8] sm:$0xff]
      %v553 = vld [vmem:[%s1 + $0x1f0] sm:$0xff]
      %v554 = vld [vmem:[%s1 + $0x1f8] sm:$0xff]
      %v555 = vld [vmem:[%s1 + $0x200] sm:$0xff]
      %v556 = vld [vmem:[%s1 + $0x208] sm:$0xff]
      %v557 = vld [vmem:[%s1 + $0x210] sm:$0xff]
      %v558 = vld [vmem:[%s1 + $0x218] sm:$0xff]
      %v559 = vld [vmem:[%s1 + $0x220] sm:$0xff]
      %v560 = vld [vmem:[%s1 + $0x228] sm:$0xff]
      %v561 = vld [vmem:[%s1 + $0x230] sm:$0xff]
      %v562 = vld [vmem:[%s1 + $0x238] sm:$0xff]
      %v563 = vld [vmem:[%s1 + $0x240] sm:$0xff]
      %v564 = vld [vmem:[%s1 + $0x248] sm:$0xff]
      %v565 = vld [vmem:[%s1 + $0x250] sm:$0xff]
      %v566 = vld [vmem:[%s1 + $0x258] sm:$0xff]
      %v567 = vld [vmem:[%s1 + $0x260] sm:$0xff]
      %v568 = vld [vmem:[%s1 + $0x268] sm:$0xff]
      %v569 = vld [vmem:[%s1 + $0x270] sm:$0xff]
      %v570 = vld [vmem:[%s1 + $0x278] sm:$0xff]
      %v571 = vld [vmem:[%s1 + $0x280] sm:$0xff]
      %v572 = vld [vmem:[%s1 + $0x288] sm:$0xff]
      %v573 = vld [vmem:[%s1 + $0x290] sm:$0xff]
      %v574 = vld [vmem:[%s1 + $0x298] sm:$0xff]
      %v575 = vld [vmem:[%s1 + $0x2a0] sm:$0xff]
      %v576 = vld [vmem:[%s1 + $0x2a8] sm:$0xff]
      %v577 = vld [vmem:[%s1 + $0x2b0] sm:$0xff]
      %v578 = vld [vmem:[%s1 + $0x2b8] sm:$0xff]
      %v579 = vld [vmem:[%s1 + $0x2c0] sm:$0xff]
      %v580 = vld [vmem:[%s1 + $0x2c8] sm:$0xff]
      %v581 = vld [vmem:[%s1 + $0x2d0] sm:$0xff]
      %v582 = vld [vmem:[%s1 + $0x2d8] sm:$0xff]
      %v583 = vld [vmem:[%s1 + $0x2e0] sm:$0xff]
      %v584 = vld [vmem:[%s1 + $0x2e8] sm:$0xff]
      %v585 = vld [vmem:[%s1 + $0x2f0] sm:$0xff]
      %v586 = vld [vmem:[%s1 + $0x2f8] sm:$0xff]
      %v587 = vcombine.low %v433, %v449
      %v588 = vcombine.high %v433, %v449
      %v589 = vcombine.low %v465, %v538
      %v590 = vcombine.high %v465, %v538
      %v592 = vunpack.c.l.s4 1983009808
      %v593 = vunpack.c.0.s8 %v592
      %v594 = vlaneseq
      %v595 = vshrl.u32 %v594, 7
      %v596 = vsub.s32 %v593, %v595
      %v597 = vrot.slane %v587, %v596
      %v599 = vunpack.c.l.s4 1983009808
      %v600 = vunpack.c.0.s8 %v599
      %v601 = vlaneseq
      %v602 = vshrl.u32 %v601, 7
      %v603 = vsub.s32 %v600, %v602
      %v604 = vrot.slane %v588, %v603
      %v606 = vunpack.c.l.s4 1983009808
      %v607 = vunpack.c.0.s8 %v606
      %v608 = vlaneseq
      %v609 = vshrl.u32 %v608, 7
      %v610 = vsub.s32 %v607, %v609
      %v611 = vrot.slane %v589, %v610
      %v613 = vunpack.c.l.s4 1983009808
      %v614 = vunpack.c.0.s8 %v613
      %v615 = vlaneseq
      %v616 = vshrl.u32 %v615, 7
      %v617 = vsub.s32 %v614, %v616
      %v618 = vrot.slane %v590, %v617
      %v619 = vcombine.low %v597, %v611
      %v620 = vcombine.high %v597, %v611
      %v621 = vcombine.low %v604, %v618
      %v673 = vunpack.c.l.b16 %v539
      %v674 = vunpack.c.h.b16 %v539
      %v675 = vunpack.c.l.b16 %v540
      %v676 = vunpack.c.h.b16 %v540
      %v677 = vunpack.c.l.b16 %v541
      %v678 = vunpack.c.h.b16 %v541
      %v679 = vunpack.c.l.b16 %v542
      %v680 = vunpack.c.h.b16 %v542
      %v681 = vunpack.c.l.b16 %v543
      %v682 = vunpack.c.h.b16 %v543
      %v683 = vunpack.c.l.b16 %v544
      %v684 = vunpack.c.h.b16 %v544
      %v685 = vunpack.c.l.b16 %v545
      %v686 = vunpack.c.h.b16 %v545
      %v687 = vunpack.c.l.b16 %v546
      %v688 = vunpack.c.h.b16 %v546
      %v689 = vunpack.c.l.b16 %v547
      %v690 = vunpack.c.h.b16 %v547
      %v691 = vunpack.c.l.b16 %v548
      %v692 = vunpack.c.h.b16 %v548
      %v693 = vunpack.c.l.b16 %v549
      %v694 = vunpack.c.h.b16 %v549
      %v695 = vunpack.c.l.b16 %v550
      %v696 = vunpack.c.h.b16 %v550
      %v697 = vunpack.c.l.b16 %v551
      %v698 = vunpack.c.h.b16 %v551
      %v699 = vunpack.c.l.b16 %v552
      %v700 = vunpack.c.h.b16 %v552
      %v701 = vunpack.c.l.b16 %v553
      %v702 = vunpack.c.h.b16 %v553
      %v703 = vunpack.c.l.b16 %v554
      %v704 = vunpack.c.h.b16 %v554
      %v705 = vunpack.c.l.b16 %v555
      %v706 = vunpack.c.h.b16 %v555
      %v707 = vunpack.c.l.b16 %v556
      %v708 = vunpack.c.h.b16 %v556
      %v709 = vunpack.c.l.b16 %v557
      %v710 = vunpack.c.h.b16 %v557
      %v711 = vunpack.c.l.b16 %v558
      %v712 = vunpack.c.h.b16 %v558
      %v713 = vunpack.c.l.b16 %v559
      %v714 = vunpack.c.h.b16 %v559
      %v715 = vunpack.c.l.b16 %v560
      %v716 = vunpack.c.h.b16 %v560
      %v717 = vunpack.c.l.b16 %v561
      %v718 = vunpack.c.h.b16 %v561
      %v719 = vunpack.c.l.b16 %v562
      %v720 = vunpack.c.h.b16 %v562
      %v721 = vunpack.c.l.b16 %v563
      %v722 = vunpack.c.h.b16 %v563
      %v723 = vunpack.c.l.b16 %v564
      %v724 = vunpack.c.h.b16 %v564
      %v725 = vunpack.c.l.b16 %v565
      %v726 = vunpack.c.h.b16 %v565
      %v727 = vunpack.c.l.b16 %v566
      %v728 = vunpack.c.h.b16 %v566
      %v729 = vunpack.c.l.b16 %v567
      %v730 = vunpack.c.h.b16 %v567
      %v731 = vunpack.c.l.b16 %v568
      %v732 = vunpack.c.h.b16 %v568
      %v733 = vunpack.c.l.b16 %v569
      %v734 = vunpack.c.h.b16 %v569
      %v735 = vunpack.c.l.b16 %v570
      %v736 = vunpack.c.h.b16 %v570
      %v737 = vunpack.c.l.b16 %v571
      %v738 = vunpack.c.h.b16 %v571
      %v739 = vunpack.c.l.b16 %v572
      %v740 = vunpack.c.h.b16 %v572
      %v741 = vunpack.c.l.b16 %v573
      %v742 = vunpack.c.h.b16 %v573
      %v743 = vunpack.c.l.b16 %v574
      %v744 = vunpack.c.h.b16 %v574
      %v745 = vunpack.c.l.b16 %v575
      %v746 = vunpack.c.h.b16 %v575
      %v747 = vunpack.c.l.b16 %v576
      %v748 = vunpack.c.h.b16 %v576
      %v749 = vunpack.c.l.b16 %v577
      %v750 = vunpack.c.h.b16 %v577
      %v751 = vunpack.c.l.b16 %v578
      %v752 = vunpack.c.h.b16 %v578
      %v753 = vunpack.c.l.b16 %v579
      %v754 = vunpack.c.h.b16 %v579
      %v755 = vunpack.c.l.b16 %v580
      %v756 = vunpack.c.h.b16 %v580
      %v757 = vunpack.c.l.b16 %v581
      %v758 = vunpack.c.h.b16 %v581
      %v759 = vunpack.c.l.b16 %v582
      %v760 = vunpack.c.h.b16 %v582
      %v761 = vunpack.c.l.b16 %v583
      %v762 = vunpack.c.h.b16 %v583
      %v763 = vunpack.c.l.b16 %v584
      %v764 = vunpack.c.h.b16 %v584
      %v765 = vunpack.c.l.b16 %v585
      %v766 = vunpack.c.h.b16 %v585
      %v767 = vunpack.c.l.b16 %v586
      %v768 = vunpack.c.h.b16 %v586
      %v769 = vpack.c.b16 %v675, %v673
      %v770 = vpack.c.b16 %v676, %v674
      %v771 = vpack.c.b16 %v679, %v677
      %v772 = vpack.c.b16 %v680, %v678
      %v773 = vpack.c.b16 %v683, %v681
      %v774 = vpack.c.b16 %v684, %v682
      %v775 = vpack.c.b16 %v687, %v685
      %v776 = vpack.c.b16 %v688, %v686
      %v777 = vpack.c.b16 %v691, %v689
      %v778 = vpack.c.b16 %v692, %v690
      %v779 = vpack.c.b16 %v695, %v693
      %v780 = vpack.c.b16 %v696, %v694
      %v781 = vpack.c.b16 %v699, %v697
      %v782 = vpack.c.b16 %v700, %v698
      %v783 = vpack.c.b16 %v703, %v701
      %v784 = vpack.c.b16 %v704, %v702
      %v785 = vpack.c.b16 %v707, %v705
      %v786 = vpack.c.b16 %v708, %v706
      %v787 = vpack.c.b16 %v711, %v709
      %v788 = vpack.c.b16 %v712, %v710
      %v789 = vpack.c.b16 %v715, %v713
      %v790 = vpack.c.b16 %v716, %v714
      %v791 = vpack.c.b16 %v719, %v717
      %v792 = vpack.c.b16 %v720, %v718
      %v793 = vpack.c.b16 %v723, %v721
      %v794 = vpack.c.b16 %v724, %v722
      %v795 = vpack.c.b16 %v727, %v725
      %v796 = vpack.c.b16 %v728, %v726
      %v797 = vpack.c.b16 %v731, %v729
      %v798 = vpack.c.b16 %v732, %v730
      %v799 = vpack.c.b16 %v735, %v733
      %v800 = vpack.c.b16 %v736, %v734
      %v801 = vpack.c.b16 %v739, %v737
      %v802 = vpack.c.b16 %v740, %v738
      %v803 = vpack.c.b16 %v743, %v741
      %v804 = vpack.c.b16 %v744, %v742
      %v805 = vpack.c.b16 %v747, %v745
      %v806 = vpack.c.b16 %v748, %v746
      %v807 = vpack.c.b16 %v751, %v749
      %v808 = vpack.c.b16 %v752, %v750
      %v809 = vpack.c.b16 %v755, %v753
      %v810 = vpack.c.b16 %v756, %v754
      %v811 = vpack.c.b16 %v759, %v757
      %v812 = vpack.c.b16 %v760, %v758
      %v813 = vpack.c.b16 %v763, %v761
      %v814 = vpack.c.b16 %v764, %v762
      %v815 = vpack.c.b16 %v767, %v765
      %v816 = vpack.c.b16 %v768, %v766
      %865 = vmatprep.subr.bf16.mxu0 %v770
      %866 = vmatpush1.bf16.msra.mxu0 %v769
      %867 = vmatprep.subr.bf16.mxu0 %v772
      %868 = vmatpush1.bf16.msra.mxu0 %v771
      %869 = vmatprep.subr.bf16.mxu0 %v774
      %870 = vmatpush1.bf16.msra.mxu0 %v773
      %871 = vmatprep.subr.bf16.mxu0 %v776
      %872 = vmatpush1.bf16.msra.mxu0 %v775
      %873 = vmatprep.subr.bf16.mxu0 %v778
      %874 = vmatpush1.bf16.msra.mxu0 %v777
      %875 = vmatprep.subr.bf16.mxu0 %v780
      %876 = vmatpush1.bf16.msra.mxu0 %v779
      %877 = vmatprep.subr.bf16.mxu0 %v782
      %878 = vmatpush1.bf16.msra.mxu0 %v781
      %879 = vmatprep.subr.bf16.mxu0 %v784
      %880 = vmatpush1.bf16.msra.mxu0 %v783
      %881 = vmatprep.subr.bf16.mxu0 %v786
      %882 = vmatpush1.bf16.msra.mxu0 %v785
      %883 = vmatprep.subr.bf16.mxu0 %v788
      %884 = vmatpush1.bf16.msra.mxu0 %v787
      %885 = vmatprep.subr.bf16.mxu0 %v790
      %886 = vmatpush1.bf16.msra.mxu0 %v789
      %887 = vmatprep.subr.bf16.mxu0 %v792
      %888 = vmatpush1.bf16.msra.mxu0 %v791
      %889 = vmatprep.subr.bf16.mxu0 %v794
      %890 = vmatpush1.bf16.msra.mxu0 %v793
      %891 = vmatprep.subr.bf16.mxu0 %v796
      %892 = vmatpush1.bf16.msra.mxu0 %v795
      %893 = vmatprep.subr.bf16.mxu0 %v798
      %894 = vmatpush1.bf16.msra.mxu0 %v797
      %895 = vmatprep.subr.bf16.mxu0 %v800
      %896 = vmatpush1.bf16.msra.mxu0 %v799
      %897 = vmatprep.mubr.bf16.mxu0 %v620
      %898 = vmatmul.mubr.bf16.gmra.mrb[0].mxu0 %v619
      %v899 = vpop.f32.mrb[0].mxu0
      %v900 = vadd.f32 0.0, %v899
      %v901 = vpop.f32.mrb[0].mxu0
      %v902 = vadd.f32 0.0, %v901
      %v903 = vpop.f32.mrb[0].mxu0
      %v904 = vadd.f32 0.0, %v903
      %v905 = vpop.f32.mrb[0].mxu0
      %v906 = vadd.f32 0.0, %v905
      %907 = vdwg.mxu0
      %908 = vmatprep.subr.bf16.mxu0 %v802
      %909 = vmatpush1.bf16.msra.mxu0 %v801
      %910 = vmatprep.subr.bf16.mxu0 %v804
      %911 = vmatpush1.bf16.msra.mxu0 %v803
      %912 = vmatprep.subr.bf16.mxu0 %v806
      %913 = vmatpush1.bf16.msra.mxu0 %v805
      %914 = vmatprep.subr.bf16.mxu0 %v808
      %915 = vmatpush1.bf16.msra.mxu0 %v807
      %916 = vmatprep.subr.bf16.mxu0 %v810
      %917 = vmatpush1.bf16.msra.mxu0 %v809
      %918 = vmatprep.subr.bf16.mxu0 %v812
      %919 = vmatpush1.bf16.msra.mxu0 %v811
      %920 = vmatprep.subr.bf16.mxu0 %v814
      %921 = vmatpush1.bf16.msra.mxu0 %v813
      %922 = vmatprep.subr.bf16.mxu0 %v816
      %923 = vmatpush1.bf16.msra.mxu0 %v815
      %924 = vmatprep.subr.bf16.mxu0 0
      %925 = vmatpush1.bf16.msra.mxu0 0
      %926 = vmatprep.subr.bf16.mxu0 0
      %927 = vmatpush1.bf16.msra.mxu0 0
      %928 = vmatprep.subr.bf16.mxu0 0
      %929 = vmatpush1.bf16.msra.mxu0 0
      %930 = vmatprep.subr.bf16.mxu0 0
      %931 = vmatpush1.bf16.msra.mxu0 0
      %932 = vmatprep.subr.bf16.mxu0 0
      %933 = vmatpush1.bf16.msra.mxu0 0
      %934 = vmatprep.subr.bf16.mxu0 0
      %935 = vmatpush1.bf16.msra.mxu0 0
      %936 = vmatprep.subr.bf16.mxu0 0
      %937 = vmatpush1.bf16.msra.mxu0 0
      %938 = vmatprep.subr.bf16.mxu0 0
      %939 = vmatpush1.bf16.msra.mxu0 0
      %940 = vmatprep.mubr.bf16.mxu0 0
      %941 = vmatmul.mubr.bf16.gmra.mrb[0].mxu0 %v621
      %v942 = vpop.f32.mrb[0].mxu0
      %v943 = vadd.f32 %v900, %v942
      %v944 = vpop.f32.mrb[0].mxu0
      %v945 = vadd.f32 %v902, %v944
      %v946 = vpop.f32.mrb[0].mxu0
      %v947 = vadd.f32 %v904, %v946
      %v948 = vpop.f32.mrb[0].mxu0
      %v949 = vadd.f32 %v906, %v948
      %950 = vdwg.mxu0
      %v951 = vcombine.low %v417, %v433
      %v952 = vcombine.high %v417, %v433
      %v953 = vcombine.low %v449, %v465
      %v954 = vcombine.high %v449, %v465
      %v956 = vunpack.c.l.s4 1983009808
      %v957 = vunpack.c.0.s8 %v956
      %v958 = vlaneseq
      %v959 = vshrl.u32 %v958, 7
      %v960 = vsub.s32 %v957, %v959
      %v961 = vrot.slane %v951, %v960
      %v963 = vunpack.c.l.s4 1983009808
      %v964 = vunpack.c.0.s8 %v963
      %v965 = vlaneseq
      %v966 = vshrl.u32 %v965, 7
      %v967 = vsub.s32 %v964, %v966
      %v968 = vrot.slane %v952, %v967
      %v970 = vunpack.c.l.s4 1983009808
      %v971 = vunpack.c.0.s8 %v970
      %v972 = vlaneseq
      %v973 = vshrl.u32 %v972, 7
      %v974 = vsub.s32 %v971, %v973
      %v975 = vrot.slane %v953, %v974
      %v977 = vunpack.c.l.s4 1983009808
      %v978 = vunpack.c.0.s8 %v977
      %v979 = vlaneseq
      %v980 = vshrl.u32 %v979, 7
      %v981 = vsub.s32 %v978, %v980
      %v982 = vrot.slane %v954, %v981
      %v983 = vcombine.low %v961, %v975
      %v984 = vcombine.high %v961, %v975
      %v985 = vcombine.low %v968, %v982
      %v1037 = vunpack.c.l.b16 %v466
      %v1038 = vunpack.c.h.b16 %v466
      %v1039 = vunpack.c.l.b16 %v467
      %v1040 = vunpack.c.h.b16 %v467
      %v1041 = vunpack.c.l.b16 %v468
      %v1042 = vunpack.c.h.b16 %v468
      %v1043 = vunpack.c.l.b16 %v469
      %v1044 = vunpack.c.h.b16 %v469
      %v1045 = vunpack.c.l.b16 %v470
      %v1046 = vunpack.c.h.b16 %v470
      %v1047 = vunpack.c.l.b16 %v471
      %v1048 = vunpack.c.h.b16 %v471
      %v1049 = vunpack.c.l.b16 %v472
      %v1050 = vunpack.c.h.b16 %v472
      %v1051 = vunpack.c.l.b16 %v473
      %v1052 = vunpack.c.h.b16 %v473
      %v1053 = vunpack.c.l.b16 %v474
      %v1054 = vunpack.c.h.b16 %v474
      %v1055 = vunpack.c.l.b16 %v475
      %v1056 = vunpack.c.h.b16 %v475
      %v1057 = vunpack.c.l.b16 %v476
      %v1058 = vunpack.c.h.b16 %v476
      %v1059 = vunpack.c.l.b16 %v477
      %v1060 = vunpack.c.h.b16 %v477
      %v1061 = vunpack.c.l.b16 %v478
      %v1062 = vunpack.c.h.b16 %v478
      %v1063 = vunpack.c.l.b16 %v479
      %v1064 = vunpack.c.h.b16 %v479
      %v1065 = vunpack.c.l.b16 %v480
      %v1066 = vunpack.c.h.b16 %v480
      %v1067 = vunpack.c.l.b16 %v481
      %v1068 = vunpack.c.h.b16 %v481
      %v1069 = vunpack.c.l.b16 %v482
      %v1070 = vunpack.c.h.b16 %v482
      %v1071 = vunpack.c.l.b16 %v483
      %v1072 = vunpack.c.h.b16 %v483
      %v1073 = vunpack.c.l.b16 %v484
      %v1074 = vunpack.c.h.b16 %v484
      %v1075 = vunpack.c.l.b16 %v485
      %v1076 = vunpack.c.h.b16 %v485
      %v1077 = vunpack.c.l.b16 %v486
      %v1078 = vunpack.c.h.b16 %v486
      %v1079 = vunpack.c.l.b16 %v487
      %v1080 = vunpack.c.h.b16 %v487
      %v1081 = vunpack.c.l.b16 %v488
      %v1082 = vunpack.c.h.b16 %v488
      %v1083 = vunpack.c.l.b16 %v489
      %v1084 = vunpack.c.h.b16 %v489
      %v1085 = vunpack.c.l.b16 %v490
      %v1086 = vunpack.c.h.b16 %v490
      %v1087 = vunpack.c.l.b16 %v491
      %v1088 = vunpack.c.h.b16 %v491
      %v1089 = vunpack.c.l.b16 %v492
      %v1090 = vunpack.c.h.b16 %v492
      %v1091 = vunpack.c.l.b16 %v493
      %v1092 = vunpack.c.h.b16 %v493
      %v1093 = vunpack.c.l.b16 %v494
      %v1094 = vunpack.c.h.b16 %v494
      %v1095 = vunpack.c.l.b16 %v495
      %v1096 = vunpack.c.h.b16 %v495
      %v1097 = vunpack.c.l.b16 %v496
      %v1098 = vunpack.c.h.b16 %v496
      %v1099 = vunpack.c.l.b16 %v497
      %v1100 = vunpack.c.h.b16 %v497
      %v1101 = vunpack.c.l.b16 %v498
      %v1102 = vunpack.c.h.b16 %v498
      %v1103 = vunpack.c.l.b16 %v499
      %v1104 = vunpack.c.h.b16 %v499
      %v1105 = vunpack.c.l.b16 %v500
      %v1106 = vunpack.c.h.b16 %v500
      %v1107 = vunpack.c.l.b16 %v501
      %v1108 = vunpack.c.h.b16 %v501
      %v1109 = vunpack.c.l.b16 %v502
      %v1110 = vunpack.c.h.b16 %v502
      %v1111 = vunpack.c.l.b16 %v503
      %v1112 = vunpack.c.h.b16 %v503
      %v1113 = vunpack.c.l.b16 %v504
      %v1114 = vunpack.c.h.b16 %v504
      %v1115 = vunpack.c.l.b16 %v505
      %v1116 = vunpack.c.h.b16 %v505
      %v1117 = vunpack.c.l.b16 %v506
      %v1118 = vunpack.c.h.b16 %v506
      %v1119 = vunpack.c.l.b16 %v507
      %v1120 = vunpack.c.h.b16 %v507
      %v1121 = vunpack.c.l.b16 %v508
      %v1122 = vunpack.c.h.b16 %v508
      %v1123 = vunpack.c.l.b16 %v509
      %v1124 = vunpack.c.h.b16 %v509
      %v1125 = vunpack.c.l.b16 %v510
      %v1126 = vunpack.c.h.b16 %v510
      %v1127 = vunpack.c.l.b16 %v511
      %v1128 = vunpack.c.h.b16 %v511
      %v1129 = vunpack.c.l.b16 %v512
      %v1130 = vunpack.c.h.b16 %v512
      %v1131 = vunpack.c.l.b16 %v513
      %v1132 = vunpack.c.h.b16 %v513
      %v1133 = vpack.c.b16 %v1039, %v1037
      %v1134 = vpack.c.b16 %v1040, %v1038
      %v1135 = vpack.c.b16 %v1043, %v1041
      %v1136 = vpack.c.b16 %v1044, %v1042
      %v1137 = vpack.c.b16 %v1047, %v1045
      %v1138 = vpack.c.b16 %v1048, %v1046
      %v1139 = vpack.c.b16 %v1051, %v1049
      %v1140 = vpack.c.b16 %v1052, %v1050
      %v1141 = vpack.c.b16 %v1055, %v1053
      %v1142 = vpack.c.b16 %v1056, %v1054
      %v1143 = vpack.c.b16 %v1059, %v1057
      %v1144 = vpack.c.b16 %v1060, %v1058
      %v1145 = vpack.c.b16 %v1063, %v1061
      %v1146 = vpack.c.b16 %v1064, %v1062
      %v1147 = vpack.c.b16 %v1067, %v1065
      %v1148 = vpack.c.b16 %v1068, %v1066
      %v1149 = vpack.c.b16 %v1071, %v1069
      %v1150 = vpack.c.b16 %v1072, %v1070
      %v1151 = vpack.c.b16 %v1075, %v1073
      %v1152 = vpack.c.b16 %v1076, %v1074
      %v1153 = vpack.c.b16 %v1079, %v1077
      %v1154 = vpack.c.b16 %v1080, %v1078
      %v1155 = vpack.c.b16 %v1083, %v1081
      %v1156 = vpack.c.b16 %v1084, %v1082
      %v1157 = vpack.c.b16 %v1087, %v1085
      %v1158 = vpack.c.b16 %v1088, %v1086
      %v1159 = vpack.c.b16 %v1091, %v1089
      %v1160 = vpack.c.b16 %v1092, %v1090
      %v1161 = vpack.c.b16 %v1095, %v1093
      %v1162 = vpack.c.b16 %v1096, %v1094
      %v1163 = vpack.c.b16 %v1099, %v1097
      %v1164 = vpack.c.b16 %v1100, %v1098
      %v1165 = vpack.c.b16 %v1103, %v1101
      %v1166 = vpack.c.b16 %v1104, %v1102
      %v1167 = vpack.c.b16 %v1107, %v1105
      %v1168 = vpack.c.b16 %v1108, %v1106
      %v1169 = vpack.c.b16 %v1111, %v1109
      %v1170 = vpack.c.b16 %v1112, %v1110
      %v1171 = vpack.c.b16 %v1115, %v1113
      %v1172 = vpack.c.b16 %v1116, %v1114
      %v1173 = vpack.c.b16 %v1119, %v1117
      %v1174 = vpack.c.b16 %v1120, %v1118
      %v1175 = vpack.c.b16 %v1123, %v1121
      %v1176 = vpack.c.b16 %v1124, %v1122
      %v1177 = vpack.c.b16 %v1127, %v1125
      %v1178 = vpack.c.b16 %v1128, %v1126
      %v1179 = vpack.c.b16 %v1131, %v1129
      %v1180 = vpack.c.b16 %v1132, %v1130
      %1229 = vmatprep.subr.bf16.mxu0 %v1134
      %1230 = vmatpush1.bf16.msra.mxu0 %v1133
      %1231 = vmatprep.subr.bf16.mxu0 %v1136
      %1232 = vmatpush1.bf16.msra.mxu0 %v1135
      %1233 = vmatprep.subr.bf16.mxu0 %v1138
      %1234 = vmatpush1.bf16.msra.mxu0 %v1137
      %1235 = vmatprep.subr.bf16.mxu0 %v1140
      %1236 = vmatpush1.bf16.msra.mxu0 %v1139
      %1237 = vmatprep.subr.bf16.mxu0 %v1142
      %1238 = vmatpush1.bf16.msra.mxu0 %v1141
      %1239 = vmatprep.subr.bf16.mxu0 %v1144
      %1240 = vmatpush1.bf16.msra.mxu0 %v1143
      %1241 = vmatprep.subr.bf16.mxu0 %v1146
      %1242 = vmatpush1.bf16.msra.mxu0 %v1145
      %1243 = vmatprep.subr.bf16.mxu0 %v1148
      %1244 = vmatpush1.bf16.msra.mxu0 %v1147
      %1245 = vmatprep.subr.bf16.mxu0 %v1150
      %1246 = vmatpush1.bf16.msra.mxu0 %v1149
      %1247 = vmatprep.subr.bf16.mxu0 %v1152
      %1248 = vmatpush1.bf16.msra.mxu0 %v1151
      %1249 = vmatprep.subr.bf16.mxu0 %v1154
      %1250 = vmatpush1.bf16.msra.mxu0 %v1153
      %1251 = vmatprep.subr.bf16.mxu0 %v1156
      %1252 = vmatpush1.bf16.msra.mxu0 %v1155
      %1253 = vmatprep.subr.bf16.mxu0 %v1158
      %1254 = vmatpush1.bf16.msra.mxu0 %v1157
      %1255 = vmatprep.subr.bf16.mxu0 %v1160
      %1256 = vmatpush1.bf16.msra.mxu0 %v1159
      %1257 = vmatprep.subr.bf16.mxu0 %v1162
      %1258 = vmatpush1.bf16.msra.mxu0 %v1161
      %1259 = vmatprep.subr.bf16.mxu0 %v1164
      %1260 = vmatpush1.bf16.msra.mxu0 %v1163
      %1261 = vmatprep.mubr.bf16.mxu0 %v984
      %1262 = vmatmul.mubr.bf16.gmra.mrb[0].mxu0 %v983
      %v1263 = vpop.f32.mrb[0].mxu0
      %v1264 = vadd.f32 %v943, %v1263
      %v1265 = vpop.f32.mrb[0].mxu0
      %v1266 = vadd.f32 %v945, %v1265
      %v1267 = vpop.f32.mrb[0].mxu0
      %v1268 = vadd.f32 %v947, %v1267
      %v1269 = vpop.f32.mrb[0].mxu0
      %v1270 = vadd.f32 %v949, %v1269
      %1271 = vdwg.mxu0
      %1272 = vmatprep.subr.bf16.mxu0 %v1166
      %1273 = vmatpush1.bf16.msra.mxu0 %v1165
      %1274 = vmatprep.subr.bf16.mxu0 %v1168
      %1275 = vmatpush1.bf16.msra.mxu0 %v1167
      %1276 = vmatprep.subr.bf16.mxu0 %v1170
      %1277 = vmatpush1.bf16.msra.mxu0 %v1169
      %1278 = vmatprep.subr.bf16.mxu0 %v1172
      %1279 = vmatpush1.bf16.msra.mxu0 %v1171
      %1280 = vmatprep.subr.bf16.mxu0 %v1174
      %1281 = vmatpush1.bf16.msra.mxu0 %v1173
      %1282 = vmatprep.subr.bf16.mxu0 %v1176
      %1283 = vmatpush1.bf16.msra.mxu0 %v1175
      %1284 = vmatprep.subr.bf16.mxu0 %v1178
      %1285 = vmatpush1.bf16.msra.mxu0 %v1177
      %1286 = vmatprep.subr.bf16.mxu0 %v1180
      %1287 = vmatpush1.bf16.msra.mxu0 %v1179
      %1288 = vmatprep.subr.bf16.mxu0 0
      %1289 = vmatpush1.bf16.msra.mxu0 0
      %1290 = vmatprep.subr.bf16.mxu0 0
      %1291 = vmatpush1.bf16.msra.mxu0 0
      %1292 = vmatprep.subr.bf16.mxu0 0
      %1293 = vmatpush1.bf16.msra.mxu0 0
      %1294 = vmatprep.subr.bf16.mxu0 0
      %1295 = vmatpush1.bf16.msra.mxu0 0
      %1296 = vmatprep.subr.bf16.mxu0 0
      %1297 = vmatpush1.bf16.msra.mxu0 0
      %1298 = vmatprep.subr.bf16.mxu0 0
      %1299 = vmatpush1.bf16.msra.mxu0 0
      %1300 = vmatprep.subr.bf16.mxu0 0
      %1301 = vmatpush1.bf16.msra.mxu0 0
      %1302 = vmatprep.subr.bf16.mxu0 0
      %1303 = vmatpush1.bf16.msra.mxu0 0
      %1304 = vmatprep.mubr.bf16.mxu0 0
      %1305 = vmatmul.mubr.bf16.gmra.mrb[0].mxu0 %v985
      %v1306 = vpop.f32.mrb[0].mxu0
      %v1307 = vadd.f32 %v1264, %v1306
      %v1308 = vpop.f32.mrb[0].mxu0
      %v1309 = vadd.f32 %v1266, %v1308
      %v1310 = vpop.f32.mrb[0].mxu0
      %v1311 = vadd.f32 %v1268, %v1310
      %v1312 = vpop.f32.mrb[0].mxu0
      %v1313 = vadd.f32 %v1270, %v1312
      %1314 = vdwg.mxu0
      %v1316 = vshrl.u32 %v365, 16
      %v1318 = vshll.u32 %v365, 16
      %v1320 = vrot.slane %v1318, 1
      %v1321 = vor.u32 %v1316, %v1320
      %v1323 = vrot.slane %v365, 1
      %v1324 = vcombine.low %v365, %v1321
      %v1326 = vunpack.c.l.s4 1983009808
      %v1327 = vunpack.c.0.s8 %v1326
      %v1328 = vlaneseq
      %v1329 = vshrl.u32 %v1328, 7
      %v1330 = vsub.s32 %v1327, %v1329
      %v1331 = vrot.slane %v1324, %v1330
      %v1333 = vunpack.c.l.s4 1983009808
      %v1334 = vunpack.c.0.s8 %v1333
      %v1335 = vlaneseq
      %v1336 = vshrl.u32 %v1335, 7
      %v1337 = vsub.s32 %v1334, %v1336
      %v1338 = vrot.slane %v1323, %v1337
      %v1339 = vcombine.low %v1331, %v1338
      %v1340 = vld [vmem:[%s1 + $0x300] sm:$0xff]
      %v1341 = vld [vmem:[%s1 + $0x308] sm:$0xff]
      %v1342 = vld [vmem:[%s1 + $0x310] sm:$0xff]
      %v1343 = vld [vmem:[%s1 + $0x318] sm:$0xff]
      %v1344 = vld [vmem:[%s1 + $0x320] sm:$0xff]
      %v1345 = vld [vmem:[%s1 + $0x328] sm:$0xff]
      %v1346 = vld [vmem:[%s1 + $0x330] sm:$0xff]
      %v1347 = vld [vmem:[%s1 + $0x338] sm:$0xff]
      %v1348 = vld [vmem:[%s1 + $0x340] sm:$0xff]
      %v1349 = vld [vmem:[%s1 + $0x348] sm:$0xff]
      %v1350 = vld [vmem:[%s1 + $0x350] sm:$0xff]
      %v1351 = vld [vmem:[%s1 + $0x358] sm:$0xff]
      %v1352 = vld [vmem:[%s1 + $0x360] sm:$0xff]
      %v1353 = vld [vmem:[%s1 + $0x368] sm:$0xff]
      %v1354 = vld [vmem:[%s1 + $0x370] sm:$0xff]
      %v1355 = vld [vmem:[%s1 + $0x378] sm:$0xff]
      %v1356 = vld [vmem:[%s1 + $0x380] sm:$0xff]
      %v1357 = vld [vmem:[%s1 + $0x388] sm:$0xff]
      %v1358 = vld [vmem:[%s1 + $0x390] sm:$0xff]
      %v1359 = vld [vmem:[%s1 + $0x398] sm:$0xff]
      %v1360 = vld [vmem:[%s1 + $0x3a0] sm:$0xff]
      %v1361 = vld [vmem:[%s1 + $0x3a8] sm:$0xff]
      %v1362 = vld [vmem:[%s1 + $0x3b0] sm:$0xff]
      %v1363 = vld [vmem:[%s1 + $0x3b8] sm:$0xff]
      %v1364 = vld [vmem:[%s1 + $0x3c0] sm:$0xff]
      %v1365 = vld [vmem:[%s1 + $0x3c8] sm:$0xff]
      %v1366 = vld [vmem:[%s1 + $0x3d0] sm:$0xff]
      %v1367 = vld [vmem:[%s1 + $0x3d8] sm:$0xff]
      %v1368 = vld [vmem:[%s1 + $0x3e0] sm:$0xff]
      %v1369 = vld [vmem:[%s1 + $0x3e8] sm:$0xff]
      %v1370 = vld [vmem:[%s1 + $0x3f0] sm:$0xff]
      %v1371 = vld [vmem:[%s1 + $0x3f8] sm:$0xff]
      %v1372 = vld [vmem:[%s1 + $0x400] sm:$0xff]
      %v1373 = vld [vmem:[%s1 + $0x408] sm:$0xff]
      %v1374 = vld [vmem:[%s1 + $0x410] sm:$0xff]
      %v1375 = vld [vmem:[%s1 + $0x418] sm:$0xff]
      %v1376 = vld [vmem:[%s1 + $0x420] sm:$0xff]
      %v1377 = vld [vmem:[%s1 + $0x428] sm:$0xff]
      %v1378 = vld [vmem:[%s1 + $0x430] sm:$0xff]
      %v1379 = vld [vmem:[%s1 + $0x438] sm:$0xff]
      %v1380 = vld [vmem:[%s1 + $0x440] sm:$0xff]
      %v1381 = vld [vmem:[%s1 + $0x448] sm:$0xff]
      %v1382 = vld [vmem:[%s1 + $0x450] sm:$0xff]
      %v1383 = vld [vmem:[%s1 + $0x458] sm:$0xff]
      %v1384 = vld [vmem:[%s1 + $0x460] sm:$0xff]
      %v1385 = vld [vmem:[%s1 + $0x468] sm:$0xff]
      %v1386 = vld [vmem:[%s1 + $0x470] sm:$0xff]
      %v1387 = vld [vmem:[%s1 + $0x478] sm:$0xff]
      %v1388 = vcombine.low %v538, %v1339
      %v1389 = vcombine.high %v538, %v1339
      %v1391 = vunpack.c.l.s4 1983009808
      %v1392 = vunpack.c.0.s8 %v1391
      %v1393 = vlaneseq
      %v1394 = vshrl.u32 %v1393, 7
      %v1395 = vsub.s32 %v1392, %v1394
      %v1396 = vrot.slane %v1388, %v1395
      %v1398 = vunpack.c.l.s4 1983009808
      %v1399 = vunpack.c.0.s8 %v1398
      %v1400 = vlaneseq
      %v1401 = vshrl.u32 %v1400, 7
      %v1402 = vsub.s32 %v1399, %v1401
      %v1403 = vrot.slane %v1389, %v1402
      %v1404 = vcombine.low %v975, %v1396
      %v1405 = vcombine.high %v975, %v1396
      %v1406 = vcombine.low %v982, %v1403
      %v1458 = vunpack.c.l.b16 %v1340
      %v1459 = vunpack.c.h.b16 %v1340
      %v1460 = vunpack.c.l.b16 %v1341
      %v1461 = vunpack.c.h.b16 %v1341
      %v1462 = vunpack.c.l.b16 %v1342
      %v1463 = vunpack.c.h.b16 %v1342
      %v1464 = vunpack.c.l.b16 %v1343
      %v1465 = vunpack.c.h.b16 %v1343
      %v1466 = vunpack.c.l.b16 %v1344
      %v1467 = vunpack.c.h.b16 %v1344
      %v1468 = vunpack.c.l.b16 %v1345
      %v1469 = vunpack.c.h.b16 %v1345
      %v1470 = vunpack.c.l.b16 %v1346
      %v1471 = vunpack.c.h.b16 %v1346
      %v1472 = vunpack.c.l.b16 %v1347
      %v1473 = vunpack.c.h.b16 %v1347
      %v1474 = vunpack.c.l.b16 %v1348
      %v1475 = vunpack.c.h.b16 %v1348
      %v1476 = vunpack.c.l.b16 %v1349
      %v1477 = vunpack.c.h.b16 %v1349
      %v1478 = vunpack.c.l.b16 %v1350
      %v1479 = vunpack.c.h.b16 %v1350
      %v1480 = vunpack.c.l.b16 %v1351
      %v1481 = vunpack.c.h.b16 %v1351
      %v1482 = vunpack.c.l.b16 %v1352
      %v1483 = vunpack.c.h.b16 %v1352
      %v1484 = vunpack.c.l.b16 %v1353
      %v1485 = vunpack.c.h.b16 %v1353
      %v1486 = vunpack.c.l.b16 %v1354
      %v1487 = vunpack.c.h.b16 %v1354
      %v1488 = vunpack.c.l.b16 %v1355
      %v1489 = vunpack.c.h.b16 %v1355
      %v1490 = vunpack.c.l.b16 %v1356
      %v1491 = vunpack.c.h.b16 %v1356
      %v1492 = vunpack.c.l.b16 %v1357
      %v1493 = vunpack.c.h.b16 %v1357
      %v1494 = vunpack.c.l.b16 %v1358
      %v1495 = vunpack.c.h.b16 %v1358
      %v1496 = vunpack.c.l.b16 %v1359
      %v1497 = vunpack.c.h.b16 %v1359
      %v1498 = vunpack.c.l.b16 %v1360
      %v1499 = vunpack.c.h.b16 %v1360
      %v1500 = vunpack.c.l.b16 %v1361
      %v1501 = vunpack.c.h.b16 %v1361
      %v1502 = vunpack.c.l.b16 %v1362
      %v1503 = vunpack.c.h.b16 %v1362
      %v1504 = vunpack.c.l.b16 %v1363
      %v1505 = vunpack.c.h.b16 %v1363
      %v1506 = vunpack.c.l.b16 %v1364
      %v1507 = vunpack.c.h.b16 %v1364
      %v1508 = vunpack.c.l.b16 %v1365
      %v1509 = vunpack.c.h.b16 %v1365
      %v1510 = vunpack.c.l.b16 %v1366
      %v1511 = vunpack.c.h.b16 %v1366
      %v1512 = vunpack.c.l.b16 %v1367
      %v1513 = vunpack.c.h.b16 %v1367
      %v1514 = vunpack.c.l.b16 %v1368
      %v1515 = vunpack.c.h.b16 %v1368
      %v1516 = vunpack.c.l.b16 %v1369
      %v1517 = vunpack.c.h.b16 %v1369
      %v1518 = vunpack.c.l.b16 %v1370
      %v1519 = vunpack.c.h.b16 %v1370
      %v1520 = vunpack.c.l.b16 %v1371
      %v1521 = vunpack.c.h.b16 %v1371
      %v1522 = vunpack.c.l.b16 %v1372
      %v1523 = vunpack.c.h.b16 %v1372
      %v1524 = vunpack.c.l.b16 %v1373
      %v1525 = vunpack.c.h.b16 %v1373
      %v1526 = vunpack.c.l.b16 %v1374
      %v1527 = vunpack.c.h.b16 %v1374
      %v1528 = vunpack.c.l.b16 %v1375
      %v1529 = vunpack.c.h.b16 %v1375
      %v1530 = vunpack.c.l.b16 %v1376
      %v1531 = vunpack.c.h.b16 %v1376
      %v1532 = vunpack.c.l.b16 %v1377
      %v1533 = vunpack.c.h.b16 %v1377
      %v1534 = vunpack.c.l.b16 %v1378
      %v1535 = vunpack.c.h.b16 %v1378
      %v1536 = vunpack.c.l.b16 %v1379
      %v1537 = vunpack.c.h.b16 %v1379
      %v1538 = vunpack.c.l.b16 %v1380
      %v1539 = vunpack.c.h.b16 %v1380
      %v1540 = vunpack.c.l.b16 %v1381
      %v1541 = vunpack.c.h.b16 %v1381
      %v1542 = vunpack.c.l.b16 %v1382
      %v1543 = vunpack.c.h.b16 %v1382
      %v1544 = vunpack.c.l.b16 %v1383
      %v1545 = vunpack.c.h.b16 %v1383
      %v1546 = vunpack.c.l.b16 %v1384
      %v1547 = vunpack.c.h.b16 %v1384
      %v1548 = vunpack.c.l.b16 %v1385
      %v1549 = vunpack.c.h.b16 %v1385
      %v1550 = vunpack.c.l.b16 %v1386
      %v1551 = vunpack.c.h.b16 %v1386
      %v1552 = vunpack.c.l.b16 %v1387
      %v1553 = vunpack.c.h.b16 %v1387
      %v1554 = vpack.c.b16 %v1460, %v1458
      %v1555 = vpack.c.b16 %v1461, %v1459
      %v1556 = vpack.c.b16 %v1464, %v1462
      %v1557 = vpack.c.b16 %v1465, %v1463
      %v1558 = vpack.c.b16 %v1468, %v1466
      %v1559 = vpack.c.b16 %v1469, %v1467
      %v1560 = vpack.c.b16 %v1472, %v1470
      %v1561 = vpack.c.b16 %v1473, %v1471
      %v1562 = vpack.c.b16 %v1476, %v1474
      %v1563 = vpack.c.b16 %v1477, %v1475
      %v1564 = vpack.c.b16 %v1480, %v1478
      %v1565 = vpack.c.b16 %v1481, %v1479
      %v1566 = vpack.c.b16 %v1484, %v1482
      %v1567 = vpack.c.b16 %v1485, %v1483
      %v1568 = vpack.c.b16 %v1488, %v1486
      %v1569 = vpack.c.b16 %v1489, %v1487
      %v1570 = vpack.c.b16 %v1492, %v1490
      %v1571 = vpack.c.b16 %v1493, %v1491
      %v1572 = vpack.c.b16 %v1496, %v1494
      %v1573 = vpack.c.b16 %v1497, %v1495
      %v1574 = vpack.c.b16 %v1500, %v1498
      %v1575 = vpack.c.b16 %v1501, %v1499
      %v1576 = vpack.c.b16 %v1504, %v1502
      %v1577 = vpack.c.b16 %v1505, %v1503
      %v1578 = vpack.c.b16 %v1508, %v1506
      %v1579 = vpack.c.b16 %v1509, %v1507
      %v1580 = vpack.c.b16 %v1512, %v1510
      %v1581 = vpack.c.b16 %v1513, %v1511
      %v1582 = vpack.c.b16 %v1516, %v1514
      %v1583 = vpack.c.b16 %v1517, %v1515
      %v1584 = vpack.c.b16 %v1520, %v1518
      %v1585 = vpack.c.b16 %v1521, %v1519
      %v1586 = vpack.c.b16 %v1524, %v1522
      %v1587 = vpack.c.b16 %v1525, %v1523
      %v1588 = vpack.c.b16 %v1528, %v1526
      %v1589 = vpack.c.b16 %v1529, %v1527
      %v1590 = vpack.c.b16 %v1532, %v1530
      %v1591 = vpack.c.b16 %v1533, %v1531
      %v1592 = vpack.c.b16 %v1536, %v1534
      %v1593 = vpack.c.b16 %v1537, %v1535
      %v1594 = vpack.c.b16 %v1540, %v1538
      %v1595 = vpack.c.b16 %v1541, %v1539
      %v1596 = vpack.c.b16 %v1544, %v1542
      %v1597 = vpack.c.b16 %v1545, %v1543
      %v1598 = vpack.c.b16 %v1548, %v1546
      %v1599 = vpack.c.b16 %v1549, %v1547
      %v1600 = vpack.c.b16 %v1552, %v1550
      %v1601 = vpack.c.b16 %v1553, %v1551
      %1650 = vmatprep.subr.bf16.mxu0 %v1555
      %1651 = vmatpush1.bf16.msra.mxu0 %v1554
      %1652 = vmatprep.subr.bf16.mxu0 %v1557
      %1653 = vmatpush1.bf16.msra.mxu0 %v1556
      %1654 = vmatprep.subr.bf16.mxu0 %v1559
      %1655 = vmatpush1.bf16.msra.mxu0 %v1558
      %1656 = vmatprep.subr.bf16.mxu0 %v1561
      %1657 = vmatpush1.bf16.msra.mxu0 %v1560
      %1658 = vmatprep.subr.bf16.mxu0 %v1563
      %1659 = vmatpush1.bf16.msra.mxu0 %v1562
      %1660 = vmatprep.subr.bf16.mxu0 %v1565
      %1661 = vmatpush1.bf16.msra.mxu0 %v1564
      %1662 = vmatprep.subr.bf16.mxu0 %v1567
      %1663 = vmatpush1.bf16.msra.mxu0 %v1566
      %1664 = vmatprep.subr.bf16.mxu0 %v1569
      %1665 = vmatpush1.bf16.msra.mxu0 %v1568
      %1666 = vmatprep.subr.bf16.mxu0 %v1571
      %1667 = vmatpush1.bf16.msra.mxu0 %v1570
      %1668 = vmatprep.subr.bf16.mxu0 %v1573
      %1669 = vmatpush1.bf16.msra.mxu0 %v1572
      %1670 = vmatprep.subr.bf16.mxu0 %v1575
      %1671 = vmatpush1.bf16.msra.mxu0 %v1574
      %1672 = vmatprep.subr.bf16.mxu0 %v1577
      %1673 = vmatpush1.bf16.msra.mxu0 %v1576
      %1674 = vmatprep.subr.bf16.mxu0 %v1579
      %1675 = vmatpush1.bf16.msra.mxu0 %v1578
      %1676 = vmatprep.subr.bf16.mxu0 %v1581
      %1677 = vmatpush1.bf16.msra.mxu0 %v1580
      %1678 = vmatprep.subr.bf16.mxu0 %v1583
      %1679 = vmatpush1.bf16.msra.mxu0 %v1582
      %1680 = vmatprep.subr.bf16.mxu0 %v1585
      %1681 = vmatpush1.bf16.msra.mxu0 %v1584
      %1682 = vmatprep.mubr.bf16.mxu0 %v1405
      %1683 = vmatmul.mubr.bf16.gmra.mrb[0].mxu0 %v1404
      %v1684 = vpop.f32.mrb[0].mxu0
      %v1685 = vadd.f32 0.0, %v1684
      %v1686 = vpop.f32.mrb[0].mxu0
      %v1687 = vadd.f32 0.0, %v1686
      %v1688 = vpop.f32.mrb[0].mxu0
      %v1689 = vadd.f32 0.0, %v1688
      %v1690 = vpop.f32.mrb[0].mxu0
      %v1691 = vadd.f32 0.0, %v1690
      %1692 = vdwg.mxu0
      %1693 = vmatprep.subr.bf16.mxu0 %v1587
      %1694 = vmatpush1.bf16.msra.mxu0 %v1586
      %1695 = vmatprep.subr.bf16.mxu0 %v1589
      %1696 = vmatpush1.bf16.msra.mxu0 %v1588
      %1697 = vmatprep.subr.bf16.mxu0 %v1591
      %1698 = vmatpush1.bf16.msra.mxu0 %v1590
      %1699 = vmatprep.subr.bf16.mxu0 %v1593
      %1700 = vmatpush1.bf16.msra.mxu0 %v1592
      %1701 = vmatprep.subr.bf16.mxu0 %v1595
      %1702 = vmatpush1.bf16.msra.mxu0 %v1594
      %1703 = vmatprep.subr.bf16.mxu0 %v1597
      %1704 = vmatpush1.bf16.msra.mxu0 %v1596
      %1705 = vmatprep.subr.bf16.mxu0 %v1599
      %1706 = vmatpush1.bf16.msra.mxu0 %v1598
      %1707 = vmatprep.subr.bf16.mxu0 %v1601
      %1708 = vmatpush1.bf16.msra.mxu0 %v1600
      %1709 = vmatprep.subr.bf16.mxu0 0
      %1710 = vmatpush1.bf16.msra.mxu0 0
      %1711 = vmatprep.subr.bf16.mxu0 0
      %1712 = vmatpush1.bf16.msra.mxu0 0
      %1713 = vmatprep.subr.bf16.mxu0 0
      %1714 = vmatpush1.bf16.msra.mxu0 0
      %1715 = vmatprep.subr.bf16.mxu0 0
      %1716 = vmatpush1.bf16.msra.mxu0 0
      %1717 = vmatprep.subr.bf16.mxu0 0
      %1718 = vmatpush1.bf16.msra.mxu0 0
      %1719 = vmatprep.subr.bf16.mxu0 0
      %1720 = vmatpush1.bf16.msra.mxu0 0
      %1721 = vmatprep.subr.bf16.mxu0 0
      %1722 = vmatpush1.bf16.msra.mxu0 0
      %1723 = vmatprep.subr.bf16.mxu0 0
      %1724 = vmatpush1.bf16.msra.mxu0 0
      %1725 = vmatprep.mubr.bf16.mxu0 0
      %1726 = vmatmul.mubr.bf16.gmra.mrb[0].mxu0 %v1406
      %v1727 = vpop.f32.mrb[0].mxu0
      %v1728 = vadd.f32 %v1685, %v1727
      %v1729 = vpop.f32.mrb[0].mxu0
      %v1730 = vadd.f32 %v1687, %v1729
      %v1731 = vpop.f32.mrb[0].mxu0
      %v1732 = vadd.f32 %v1689, %v1731
      %v1733 = vpop.f32.mrb[0].mxu0
      %v1734 = vadd.f32 %v1691, %v1733
      %1735 = vdwg.mxu0
      %v1736 = vadd.f32 %v1307, %v1728
      %v1737 = vadd.f32 %v1309, %v1730
      %v1738 = vadd.f32 %v1311, %v1732
      %v1739 = vadd.f32 %v1313, %v1734
      %v1740 = vld [vmem:[%s2] sm:$0x3]
      %v1742 = vlaneseq
      %v1743 = vshrl.u32 %v1742, 7
      %v1744 = vsub.s32 0, %v1743
      %v1745 = vrot.slane %v1740, %v1744
      %v1746 = vlaneseq
      %v1747 = vshrl.u32 %v1746, 7
      %v1748 = vsub.s32 1, %v1747
      %v1749 = vrot.slane %v1740, %v1748
      %v1752 = vadd.f32 %v1736, %v1745
      %v1753 = vadd.f32 %v1737, %v1749
      %v1754 = vadd.f32 %v1738, %v1745
      %v1755 = vadd.f32 %v1739, %v1749
      %v1756 = vmax.f32 %v1752, 0.0
      %v1757 = vmax.f32 %v1753, 0.0
      %v1758 = vmax.f32 %v1754, 0.0
      %v1759 = vmax.f32 %v1755, 0.0
      %v1764 = vcombine.low %v1756, %v1757
      %v1765 = vcombine.high %v1756, %v1757
      %v1766 = vcombine.low %v1758, %v1759
      %v1767 = vcombine.high %v1758, %v1759
      %v1772 = vcombine.high %v1764, %v1764
      %v1773 = vcombine.high %v1765, %v1765
      %v1774 = vcombine.high %v1766, %v1766
      %v1775 = vcombine.high %v1767, %v1767
      %v1780 = vpack.c.bf16 %v1764, %v1764
      %v1781 = vpack.c.bf16 %v1772, %v1772
      %v1782 = vpack.c.bf16 %v1765, %v1765
      %v1783 = vpack.c.bf16 %v1773, %v1773
      %v1784 = vpack.c.bf16 %v1766, %v1766
      %v1785 = vpack.c.bf16 %v1774, %v1774
      %v1786 = vpack.c.bf16 %v1767, %v1767
      %v1787 = vpack.c.bf16 %v1775, %v1775
      %v1796 = vcombine.low %v1780, %v1781
      %v1798 = vunpack.c.l.s4 1983009808
      %v1799 = vunpack.c.0.s8 %v1798
      %v1800 = vlaneseq
      %v1801 = vshrl.u32 %v1800, 7
      %v1802 = vsub.s32 %v1799, %v1801
      %v1803 = vrot.slane %v1796, %v1802
      %v1804 = vcombine.low %v1782, %v1783
      %v1806 = vunpack.c.l.s4 1983009808
      %v1807 = vunpack.c.0.s8 %v1806
      %v1808 = vlaneseq
      %v1809 = vshrl.u32 %v1808, 7
      %v1810 = vsub.s32 %v1807, %v1809
      %v1811 = vrot.slane %v1804, %v1810
      %v1812 = vcombine.low %v1784, %v1785
      %v1814 = vunpack.c.l.s4 1983009808
      %v1815 = vunpack.c.0.s8 %v1814
      %v1816 = vlaneseq
      %v1817 = vshrl.u32 %v1816, 7
      %v1818 = vsub.s32 %v1815, %v1817
      %v1819 = vrot.slane %v1812, %v1818
      %v1820 = vcombine.low %v1786, %v1787
      %v1822 = vunpack.c.l.s4 1983009808
      %v1823 = vunpack.c.0.s8 %v1822
      %v1824 = vlaneseq
      %v1825 = vshrl.u32 %v1824, 7
      %v1826 = vsub.s32 %v1823, %v1825
      %v1827 = vrot.slane %v1820, %v1826
      %1832 = vst [vmem:[%s194] sm:$0xf] %v1803
      %1833 = vst [vmem:[%s194 + $0x4] sm:$0xf] %v1811
      %1834 = vst [vmem:[%s194 + $0x8] sm:$0xf] %v1819
      %1835 = vst [vmem:[%s194 + $0xc] sm:$0xf] %v1827
      %s1836 = smul.u32 4, %s19
      %p1837 = scmp.lt.s32.totalorder %s18, 1
      %s1838 = scalar_select %p1837, %s18, 1
      %p1839 = scmp.lt.s32.totalorder %s1836, 3
      %s1840 = scalar_select %p1839, %s1836, 3
      %s1841 = smul.addr %s1840, 2
      %s1842 = smul.addr %s1838, 8
      %s1843 = sadd.s32 %s1841, %s1842
      %s1844 = smul.addr %s1843, 2
      %s1845 = scalar_lea.vmem %s3, %s1844
      // Predicated region
      $region33: #{_lambda_.7} parent=31 // pred_check
        %p1846 = pneg %p114
      $region34: #{_lambda_.7} parent=31 // pred_check_branch
        %1848 = sbr.rel (%p1846) target = $region36
      $region35: #{_lambda_.7} parent=31 // pred_region
        %s1849 = smul.u32 4, %s19
      $region36: #{_lambda_.7} parent=31 // pred_fallthru
        _
    $region32: #{_lambda_.7} parent=5 // pred_fallthru
      _
    %p1850 = scmp.le.s32.totalorder 2, %s9
    // Predicated region
    $region37: #{_lambda_.7} parent=5 // pred_check
      %p1851 = pneg %p1850
    $region38: #{_lambda_.7} parent=5 // pred_check_branch
      %1853 = sbr.rel (%p1851) target = $region40
    $region39: #{_lambda_.7} parent=5 // pred_region
      %s1854 = ssub.s32 %s9, 2
      // Predicated region
      $region41: #{_lambda_.7} parent=39 // pred_check
        %p1855 = pneg %p120
      $region42: #{_lambda_.7} parent=39 // pred_check_branch
        %1857 = sbr.rel (%p1855) target = $region44
      $region43: #{_lambda_.7} parent=39 // pred_region
        %s1858 = smul.u32 4, %s21
        %p1859 = scmp.lt.s32.totalorder %s20, 1
        %s1860 = scalar_select %p1859, %s20, 1
        %p1861 = scmp.lt.s32.totalorder %s1858, 3
        %s1862 = scalar_select %p1861, %s1858, 3
        %s1863 = smul.addr %s1862, 2
        %s1864 = smul.addr %s1860, 8
        %s1865 = sadd.s32 %s1863, %s1864
        %s1866 = smul.addr %s1865, 2
        %s1867 = scalar_lea.vmem %s3, %s1866
      $region44: #{_lambda_.7} parent=39 // pred_fallthru
        _
    $region40: #{_lambda_.7} parent=5 // pred_fallthru
      _
  $region6: #{_lambda_.7} parent=0 // loop_footer
    %s13 = sadd.s32 1, %s9
  $region7: #{_lambda_.7} parent=0 // loop_footer_branch
    %8 = sbr.rel target = $region3
  $region8: #{_lambda_.7} parent=0 // loop_exit
    _

// kernel: _lambda_.4
$region0: #{_lambda_.4}
  #allocation0 [shape = 'u32[]', space=smem, size = 0x4, offset = 0x4, fixed_abs, tag = 'smem constant byte address 0x4 - core index']
  #allocation1 [shape = 'u32[144,128]{1,0:T(1,128)}', space=vmem, size = 0x12000, scoped, tag = 'internal scratch']
  %s0 = inlined_call_operand.vmem [shape: bf16[2,16,16,64], index: 0, kind: input, shape index: {}]
  %s1 = inlined_call_operand.vmem [shape: bf16[576,64], index: 1, kind: input, shape index: {}]
  %s2 = inlined_call_operand.vmem [shape: f32[1,64], index: 2, kind: input, shape index: {}]
  %s3 = inlined_call_operand.vmem [shape: bf16[2,8,512], index: 3, kind: output, shape index: {}]
  %s4 = sld [smem:[#allocation0]]
  $region45: #{_lambda_.4} parent=0
    _
  %s6 = ssub.s32 1, %s4
  %s7 = scalar_select 0, %s6, %s4
  loop: start=0, step=1, limit=4
  $region2: #{_lambda_.4} parent=0 // loop_pre_header
    _
  $region3: #{_lambda_.4} parent=0 // loop_header
    %s9 = sphi 0, %s13
    %p10 = scmp.ge.s32.totalorder %s9, 4
    %s16 = sphi 0, %s28
    %s17 = sphi 0, %s24
    %s18 = sphi 0, %s16
    %s19 = sphi 0, %s17
    %s20 = sphi 0, %s18
    %s21 = sphi 0, %s19
    %s31 = sphi 0, %s33
    %s34 = sphi 0, %s31
    %s35 = sphi 0, %s34
    %s51 = sphi 0, %s35
    %s55 = sphi 0, %s55
    %s57 = sphi 0, %s55
    %s58 = sphi 0, %s57
    %s72 = sphi 0, %s58
    %s76 = sphi 0, %s76
    %s78 = sphi 0, %s76
    %s79 = sphi 0, %s78
    %s93 = sphi 0, %s79
    %s101 = sphi 0, %s103
    %s104 = sphi 0, %s101
    %s105 = sphi 0, %s104
    %s121 = sphi 0, %s105
  $region4: #{_lambda_.4} parent=0 // loop_header_branch
    %12 = sbr.rel (%p10) target = $region8
  $region5: #{_lambda_.4} parent=0 // loop_body
    %s14 = ssub.s32 %s9, 1
    %s15 = ssub.s32 %s9, 2
    %s22 = sadd.s32 1, %s17
    %p23 = scmp.ge.s32.totalorder %s22, 1
    %s24 = scalar_select %p23, 0, %s22
    %s25 = sadd.s32 1, %s16
    %s26 = scalar_select %p23, %s25, %s16
    %p27 = scmp.ge.s32.totalorder %s26, 2
    %s28 = scalar_select %p27, 0, %s26
    %s29 = ssub.s32 %s16, %s28
    %p30 = scmp.eq.s32.totalorder %s29, 0
    %s32 = sadd.s32 %s31, 1
    %s33 = scalar_select %p30, %s31, %s32
    %p36 = pneg %p30
    %p37 = scmp.eq.s32.totalorder %s9, 1
    %p38 = por %p36, %p37
    %p39 = scmp.ne.s32.totalorder %s31, %s34
    %p40 = scmp.eq.s32.totalorder %s9, 0
    %p41 = por %p39, %p40
    %p42 = scmp.ne.s32.totalorder %s31, %s34
    %p43 = scmp.eq.s32.totalorder %s14, 1
    %p44 = por %p42, %p43
    %p45 = scmp.ne.s32.totalorder %s34, %s35
    %p46 = scmp.eq.s32.totalorder %s14, 0
    %p47 = por %p45, %p46
    %p48 = scmp.ne.s32.totalorder %s34, %s35
    %p49 = scmp.eq.s32.totalorder %s15, 1
    %p50 = por %p48, %p49
    %p52 = scmp.ne.s32.totalorder %s35, %s51
    %p53 = scmp.eq.s32.totalorder %s15, 0
    %p54 = por %p52, %p53
    %s56 = sadd.s32 %s55, 1
    %p59 = scmp.eq.s32.totalorder %s9, 1
    %p60 = scmp.ne.s32.totalorder %s55, %s57
    %p61 = scmp.eq.s32.totalorder %s9, 0
    %p62 = por %p60, %p61
    %p63 = scmp.ne.s32.totalorder %s55, %s57
    %p64 = scmp.eq.s32.totalorder %s14, 1
    %p65 = por %p63, %p64
    %p66 = scmp.ne.s32.totalorder %s57, %s58
    %p67 = scmp.eq.s32.totalorder %s14, 0
    %p68 = por %p66, %p67
    %p69 = scmp.ne.s32.totalorder %s57, %s58
    %p70 = scmp.eq.s32.totalorder %s15, 1
    %p71 = por %p69, %p70
    %p73 = scmp.ne.s32.totalorder %s58, %s72
    %p74 = scmp.eq.s32.totalorder %s15, 0
    %p75 = por %p73, %p74
    %s77 = sadd.s32 %s76, 1
    %p80 = scmp.eq.s32.totalorder %s9, 1
    %p81 = scmp.ne.s32.totalorder %s76, %s78
    %p82 = scmp.eq.s32.totalorder %s9, 0
    %p83 = por %p81, %p82
    %p84 = scmp.ne.s32.totalorder %s76, %s78
    %p85 = scmp.eq.s32.totalorder %s14, 1
    %p86 = por %p84, %p85
    %p87 = scmp.ne.s32.totalorder %s78, %s79
    %p88 = scmp.eq.s32.totalorder %s14, 0
    %p89 = por %p87, %p88
    %p90 = scmp.ne.s32.totalorder %s78, %s79
    %p91 = scmp.eq.s32.totalorder %s15, 1
    %p92 = por %p90, %p91
    %p94 = scmp.ne.s32.totalorder %s79, %s93
    %p95 = scmp.eq.s32.totalorder %s15, 0
    %p96 = por %p94, %p95
    %s97 = ssub.s32 %s16, %s28
    %s98 = ssub.s32 %s17, %s24
    %s99 = sor.u32 %s97, %s98
    %p100 = scmp.eq.s32.totalorder %s99, 0
    %s102 = sadd.s32 %s101, 1
    %s103 = scalar_select %p100, %s101, %s102
    %p106 = pneg %p100
    %p107 = scmp.eq.s32.totalorder %s9, 1
    %p108 = por %p106, %p107
    %p109 = scmp.ne.s32.totalorder %s101, %s104
    %p110 = scmp.eq.s32.totalorder %s9, 0
    %p111 = por %p109, %p110
    %p112 = scmp.ne.s32.totalorder %s101, %s104
    %p113 = scmp.eq.s32.totalorder %s14, 1
    %p114 = por %p112, %p113
    %p115 = scmp.ne.s32.totalorder %s104, %s105
    %p116 = scmp.eq.s32.totalorder %s14, 0
    %p117 = por %p115, %p116
    %p118 = scmp.ne.s32.totalorder %s104, %s105
    %p119 = scmp.eq.s32.totalorder %s15, 1
    %p120 = por %p118, %p119
    %p122 = scmp.ne.s32.totalorder %s105, %s121
    %p123 = scmp.eq.s32.totalorder %s15, 0
    %p124 = por %p122, %p123
    %p125 = scmp.le.s32.totalorder 1, %s9
    %p126 = scmp.lt.s32.totalorder %s9, 3
    %p127 = pnand %p125, %p126
    %p128 = pneg %p127
    // Predicated region
    $region9: #{_lambda_.4} parent=5 // pred_check
      _
    $region10: #{_lambda_.4} parent=5 // pred_check_branch
      %130 = sbr.rel (%p127) target = $region12
    $region11: #{_lambda_.4} parent=5 // pred_region
      %s131 = ssub.s32 %s9, 1
      // Predicated region
      $region13: #{_lambda_.4} parent=11 // pred_check
        %p132 = pneg %p68
      $region14: #{_lambda_.4} parent=11 // pred_check_branch
        %134 = sbr.rel (%p132) target = $region16
      $region15: #{_lambda_.4} parent=11 // pred_region
        _
      $region16: #{_lambda_.4} parent=11 // pred_fallthru
        _
      // Predicated region
      $region17: #{_lambda_.4} parent=11 // pred_check
        %p135 = pneg %p89
      $region18: #{_lambda_.4} parent=11 // pred_check_branch
        %137 = sbr.rel (%p135) target = $region20
      $region19: #{_lambda_.4} parent=11 // pred_region
        _
      $region20: #{_lambda_.4} parent=11 // pred_fallthru
        _
    $region12: #{_lambda_.4} parent=5 // pred_fallthru
      _
    %p138 = scmp.lt.s32.totalorder %s9, 2
    // Predicated region
    $region21: #{_lambda_.4} parent=5 // pred_check
      %p139 = pneg %p138
    $region22: #{_lambda_.4} parent=5 // pred_check_branch
      %141 = sbr.rel (%p139) target = $region24
    $region23: #{_lambda_.4} parent=5 // pred_region
      // Predicated region
      $region25: #{_lambda_.4} parent=23 // pred_check
        %p142 = pneg %p41
      $region26: #{_lambda_.4} parent=23 // pred_check_branch
        %144 = sbr.rel (%p142) target = $region28
      $region27: #{_lambda_.4} parent=23 // pred_region
        %p145 = scmp.lt.s32.totalorder %s16, 1
        %s146 = scalar_select %p145, %s16, 1
        %s147 = smul.addr %s146, 32
        %s148 = smul.addr %s147, 4
        %s149 = scalar_lea.vmem %s0, %s148
      $region28: #{_lambda_.4} parent=23 // pred_fallthru
        _
    $region24: #{_lambda_.4} parent=5 // pred_fallthru
      _
    %p150 = scmp.le.s32.totalorder 1, %s9
    %p151 = scmp.lt.s32.totalorder %s9, 3
    %p152 = pnand %p150, %p151
    %p153 = pneg %p152
    // Predicated region
    $region29: #{_lambda_.4} parent=5 // pred_check
      _
    $region30: #{_lambda_.4} parent=5 // pred_check_branch
      %155 = sbr.rel (%p152) target = $region32
    $region31: #{_lambda_.4} parent=5 // pred_region
      %s156 = ssub.s32 %s9, 1
      %p157 = scmp.lt.s32.totalorder %s18, 1
      %s158 = scalar_select %p157, %s18, 1
      %s159 = smul.addr %s158, 32
      %s160 = smul.addr %s159, 4
      %s161 = scalar_lea.vmem %s0, %s160
      %p162 = pneg %p47
      %p163 = pneg %p44
      %p164 = pneg %p68
      %p165 = pneg %p65
      %p166 = pneg %p89
      %p167 = pneg %p86
      %p168 = pneg %p117
      %p169 = pneg %p114
      %p170 = scmp.lt.s32.totalorder %s18, 1
      %s171 = scalar_select %p170, %s18, 1
      %p172 = scmp.lt.s32.totalorder %s19, 0
      %s173 = scalar_select %p172, %s19, 0
      %s174 = smul.addr %s173, 4
      %s175 = smul.addr %s171, 4
      %s176 = sadd.s32 %s174, %s175
      %s177 = smul.addr %s176, 4
      %s178 = scalar_lea.vmem %s3, %s177
      %p179 = scmp.lt.s32.totalorder %s18, 1
      %s180 = scalar_select %p179, %s18, 1
      %s181 = smul.addr %s180, 32
      %s182 = smul.addr %s181, 4
      %s183 = scalar_lea.vmem %s0, %s182
      %p184 = scmp.lt.s32.totalorder %s18, 1
      %s185 = scalar_select %p184, %s18, 1
      %p186 = scmp.lt.s32.totalorder %s19, 0
      %s187 = scalar_select %p186, %s19, 0
      %s188 = smul.addr %s187, 4
      %s189 = smul.addr %s185, 4
      %s190 = sadd.s32 %s188, %s189
      %s191 = smul.addr %s190, 4
      %s192 = scalar_lea.vmem %s3, %s191
      %s194 = smul.u32 %s19, 16
      %s195 = smul.u32 %s194, 2
      %s196 = smul.addr %s195, 4
      %s197 = scalar_lea.vmem %s183, %s196
      %v198 = vld [vmem:[%s197] sm:$0xf]
      %v199 = vld [vmem:[%s197 + $0x4] sm:$0xf]
      %v200 = vld [vmem:[%s197 + $0x8] sm:$0xf]
      %v201 = vld [vmem:[%s197 + $0xc] sm:$0xf]
      %v202 = vld [vmem:[%s197 + $0x10] sm:$0xf]
      %v203 = vld [vmem:[%s197 + $0x14] sm:$0xf]
      %v204 = vld [vmem:[%s197 + $0x18] sm:$0xf]
      %v205 = vld [vmem:[%s197 + $0x1c] sm:$0xf]
      %v206 = vld [vmem:[%s197 + $0x20] sm:$0xf]
      %v207 = vld [vmem:[%s197 + $0x24] sm:$0xf]
      %v208 = vld [vmem:[%s197 + $0x28] sm:$0xf]
      %v209 = vld [vmem:[%s197 + $0x2c] sm:$0xf]
      %v210 = vld [vmem:[%s197 + $0x30] sm:$0xf]
      %v211 = vld [vmem:[%s197 + $0x34] sm:$0xf]
      %v212 = vld [vmem:[%s197 + $0x38] sm:$0xf]
      %v213 = vld [vmem:[%s197 + $0x3c] sm:$0xf]
      %v214 = vld [vmem:[%s197 + $0x40] sm:$0xf]
      %v215 = vld [vmem:[%s197 + $0x44] sm:$0xf]
      %v216 = vld [vmem:[%s197 + $0x48] sm:$0xf]
      %v217 = vld [vmem:[%s197 + $0x4c] sm:$0xf]
      %v218 = vld [vmem:[%s197 + $0x50] sm:$0xf]
      %v219 = vld [vmem:[%s197 + $0x54] sm:$0xf]
      %v220 = vld [vmem:[%s197 + $0x58] sm:$0xf]
      %v221 = vld [vmem:[%s197 + $0x5c] sm:$0xf]
      %v222 = vld [vmem:[%s197 + $0x60] sm:$0xf]
      %v223 = vld [vmem:[%s197 + $0x64] sm:$0xf]
      %v224 = vld [vmem:[%s197 + $0x68] sm:$0xf]
      %v225 = vld [vmem:[%s197 + $0x6c] sm:$0xf]
      %v226 = vld [vmem:[%s197 + $0x70] sm:$0xf]
      %v227 = vld [vmem:[%s197 + $0x74] sm:$0xf]
      %v228 = vld [vmem:[%s197 + $0x78] sm:$0xf]
      %v229 = vld [vmem:[%s197 + $0x7c] sm:$0xf]
      %s230 = ssub.s32 %s194, 1
      %p231 = scmp.gt.s32.totalorder %s230, 0
      %s232 = scalar_select %p231, %s230, 0
      %s233 = smul.u32 %s232, 2
      %s234 = smul.addr %s233, 4
      %s235 = scalar_lea.vmem %s183, %s234
      %v236 = vld [vmem:[%s235] sm:$0xf]
      %v237 = vld [vmem:[%s235 + $0x4] sm:$0xf]
      %p238 = scmp.gt.s32.totalorder %s194, 0
      %s239 = scalar_select %p238, 1, 0
      %s240 = scvt.s32.f32 %s239
      %p242 = scmp.ne.f32.partialorder %s240, %s240
      %s243 = sshrl.u32 %s240, 16
      %s244 = sand.u32 %s243, 1
      %s245 = sadd.s32 32767, %s244
      %s246 = sadd.s32 %s240, %s245
      %s247 = sand.u32 %s246, 4294901760
      %s248 = scalar_select %p242, 2143289344, %s247
      %s250 = sshrl.u32 %s248, 16
      %s251 = sshll.u32 %s250, 16
      %s252 = sor.u32 %s250, %s251
      %v253 = vstv %s252
      %v255 = vmul.bf16 %v236, %v253
      %v256 = vmul.bf16 %v237, %v253
      %s257 = sadd.s32 %s194, 16
      %p258 = scmp.lt.s32.totalorder %s257, 15
      %s259 = scalar_select %p258, %s257, 15
      %s260 = smul.u32 %s259, 2
      %s261 = smul.addr %s260, 4
      %s262 = scalar_lea.vmem %s183, %s261
      %v263 = vld [vmem:[%s262] sm:$0xf]
      %v264 = vld [vmem:[%s262 + $0x4] sm:$0xf]
      %p265 = scmp.lt.s32.totalorder %s257, 16
      %s266 = scalar_select %p265, 1, 0
      %s267 = scvt.s32.f32 %s266
      %p269 = scmp.ne.f32.partialorder %s267, %s267
      %s270 = sshrl.u32 %s267, 16
      %s271 = sand.u32 %s270, 1
      %s272 = sadd.s32 32767, %s271
      %s273 = sadd.s32 %s267, %s272
      %s274 = sand.u32 %s273, 4294901760
      %s275 = scalar_select %p269, 2143289344, %s274
      %s277 = sshrl.u32 %s275, 16
      %s278 = sshll.u32 %s277, 16
      %s279 = sor.u32 %s277, %s278
      %v280 = vstv %s279
      %v282 = vmul.bf16 %v263, %v280
      %v283 = vmul.bf16 %v264, %v280
      %v320 = vunpack.c.l.b16 %v255
      %v321 = vunpack.c.l.b16 %v256
      %v322 = vunpack.c.l.b16 %v198
      %v323 = vunpack.c.l.b16 %v199
      %v324 = vunpack.c.l.b16 %v200
      %v325 = vunpack.c.l.b16 %v201
      %v326 = vunpack.c.l.b16 %v202
      %v327 = vunpack.c.l.b16 %v203
      %v328 = vunpack.c.l.b16 %v204
      %v329 = vunpack.c.l.b16 %v205
      %v330 = vunpack.c.l.b16 %v206
      %v331 = vunpack.c.l.b16 %v207
      %v332 = vunpack.c.l.b16 %v208
      %v333 = vunpack.c.l.b16 %v209
      %v334 = vunpack.c.l.b16 %v210
      %v335 = vunpack.c.l.b16 %v211
      %v336 = vunpack.c.l.b16 %v212
      %v337 = vunpack.c.l.b16 %v213
      %v338 = vunpack.c.l.b16 %v214
      %v339 = vunpack.c.l.b16 %v215
      %v340 = vunpack.c.l.b16 %v216
      %v341 = vunpack.c.l.b16 %v217
      %v342 = vunpack.c.l.b16 %v218
      %v343 = vunpack.c.l.b16 %v219
      %v344 = vunpack.c.l.b16 %v220
      %v345 = vunpack.c.l.b16 %v221
      %v346 = vunpack.c.l.b16 %v222
      %v347 = vunpack.c.l.b16 %v223
      %v348 = vunpack.c.l.b16 %v224
      %v349 = vunpack.c.l.b16 %v225
      %v350 = vunpack.c.l.b16 %v226
      %v351 = vunpack.c.l.b16 %v227
      %v352 = vunpack.c.l.b16 %v228
      %v353 = vunpack.c.l.b16 %v229
      %v354 = vunpack.c.l.b16 %v282
      %v355 = vunpack.c.l.b16 %v283
      %v356 = vpack.c.b16 %v321, %v320
      %v357 = vpack.c.b16 %v323, %v322
      %v358 = vpack.c.b16 %v325, %v324
      %v359 = vpack.c.b16 %v327, %v326
      %v360 = vpack.c.b16 %v329, %v328
      %v361 = vpack.c.b16 %v331, %v330
      %v362 = vpack.c.b16 %v333, %v332
      %v363 = vpack.c.b16 %v335, %v334
      %v364 = vpack.c.b16 %v337, %v336
      %v365 = vpack.c.b16 %v339, %v338
      %v366 = vpack.c.b16 %v341, %v340
      %v367 = vpack.c.b16 %v343, %v342
      %v368 = vpack.c.b16 %v345, %v344
      %v369 = vpack.c.b16 %v347, %v346
      %v370 = vpack.c.b16 %v349, %v348
      %v371 = vpack.c.b16 %v351, %v350
      %v372 = vpack.c.b16 %v353, %v352
      %v373 = vpack.c.b16 %v355, %v354
      %v375 = vshrl.u32 %v356, 16
      %v377 = vrot.slane %v375, 7
      %v378 = vshll.u32 %v356, 16
      %v380 = vor.u32 %v377, %v378
      %v382 = vshrl.u32 %v357, 16
      %v384 = vrot.slane %v382, 7
      %v385 = vshll.u32 %v357, 16
      %v387 = vor.u32 %v384, %v385
      %v389 = vshrl.u32 %v358, 16
      %v391 = vrot.slane %v389, 7
      %v392 = vshll.u32 %v358, 16
      %v394 = vor.u32 %v391, %v392
      %v396 = vshrl.u32 %v359, 16
      %v398 = vrot.slane %v396, 7
      %v399 = vshll.u32 %v359, 16
      %v401 = vor.u32 %v398, %v399
      %v403 = vshrl.u32 %v360, 16
      %v405 = vrot.slane %v403, 7
      %v406 = vshll.u32 %v360, 16
      %v408 = vor.u32 %v405, %v406
      %v410 = vshrl.u32 %v361, 16
      %v412 = vrot.slane %v410, 7
      %v413 = vshll.u32 %v361, 16
      %v415 = vor.u32 %v412, %v413
      %v417 = vshrl.u32 %v362, 16
      %v419 = vrot.slane %v417, 7
      %v420 = vshll.u32 %v362, 16
      %v422 = vor.u32 %v419, %v420
      %v424 = vshrl.u32 %v363, 16
      %v426 = vrot.slane %v424, 7
      %v427 = vshll.u32 %v363, 16
      %v429 = vor.u32 %v426, %v427
      %v431 = vshrl.u32 %v364, 16
      %v433 = vrot.slane %v431, 7
      %v434 = vshll.u32 %v364, 16
      %v436 = vor.u32 %v433, %v434
      %v438 = vshrl.u32 %v365, 16
      %v440 = vrot.slane %v438, 7
      %v441 = vshll.u32 %v365, 16
      %v443 = vor.u32 %v440, %v441
      %v445 = vshrl.u32 %v366, 16
      %v447 = vrot.slane %v445, 7
      %v448 = vshll.u32 %v366, 16
      %v450 = vor.u32 %v447, %v448
      %v452 = vshrl.u32 %v367, 16
      %v454 = vrot.slane %v452, 7
      %v455 = vshll.u32 %v367, 16
      %v457 = vor.u32 %v454, %v455
      %v459 = vshrl.u32 %v368, 16
      %v461 = vrot.slane %v459, 7
      %v462 = vshll.u32 %v368, 16
      %v464 = vor.u32 %v461, %v462
      %v466 = vshrl.u32 %v369, 16
      %v468 = vrot.slane %v466, 7
      %v469 = vshll.u32 %v369, 16
      %v471 = vor.u32 %v468, %v469
      %v473 = vshrl.u32 %v370, 16
      %v475 = vrot.slane %v473, 7
      %v476 = vshll.u32 %v370, 16
      %v478 = vor.u32 %v475, %v476
      %v480 = vshrl.u32 %v371, 16
      %v482 = vrot.slane %v480, 7
      %v483 = vshll.u32 %v371, 16
      %v485 = vor.u32 %v482, %v483
      %v487 = vshrl.u32 %v372, 16
      %v489 = vrot.slane %v487, 7
      %v490 = vshll.u32 %v372, 16
      %v492 = vor.u32 %v489, %v490
      %v494 = vshrl.u32 %v373, 16
      %v496 = vrot.slane %v494, 7
      %v497 = vshll.u32 %v373, 16
      %v499 = vor.u32 %v496, %v497
      %vm536 = vcmask 1040384
      %vm537 = vsmask.f32 256
      %vm538 = vmand %vm536, %vm537
      %v539 = vsel %vm538, 0, %v380
      %v540 = vsel %vm538, 0, %v387
      %v541 = vsel %vm538, 0, %v394
      %v542 = vsel %vm538, 0, %v401
      %v543 = vsel %vm538, 0, %v408
      %v544 = vsel %vm538, 0, %v415
      %v545 = vsel %vm538, 0, %v422
      %v546 = vsel %vm538, 0, %v429
      %v547 = vsel %vm538, 0, %v436
      %v548 = vsel %vm538, 0, %v443
      %v549 = vsel %vm538, 0, %v450
      %v550 = vsel %vm538, 0, %v457
      %v551 = vsel %vm538, 0, %v464
      %v552 = vsel %vm538, 0, %v471
      %v553 = vsel %vm538, 0, %v478
      %v554 = vsel %vm538, 0, %v485
      %v555 = vsel %vm538, 0, %v492
      %v556 = vsel %vm538, 0, %v499
      %v557 = vsel %vm538, %v377, 0
      %v558 = vsel %vm538, %v384, 0
      %v559 = vsel %vm538, %v391, 0
      %v560 = vsel %vm538, %v398, 0
      %v561 = vsel %vm538, %v405, 0
      %v562 = vsel %vm538, %v412, 0
      %v563 = vsel %vm538, %v419, 0
      %v564 = vsel %vm538, %v426, 0
      %v565 = vsel %vm538, %v433, 0
      %v566 = vsel %vm538, %v440, 0
      %v567 = vsel %vm538, %v447, 0
      %v568 = vsel %vm538, %v454, 0
      %v569 = vsel %vm538, %v461, 0
      %v570 = vsel %vm538, %v468, 0
      %v571 = vsel %vm538, %v475, 0
      %v572 = vsel %vm538, %v482, 0
      %v573 = vsel %vm538, %v489, 0
      %v574 = vsel %vm538, %v496, 0
      %vm575 = vsmask.f32 7424
      %v577 = vshrl.u32 %v539, 16
      %v579 = vshll.u32 %v539, 16
      %v581 = vrot.slane %v579, 1
      %v582 = vor.u32 %v577, %v581
      %v584 = vshll.u32 %v557, 16
      %v586 = vrot.slane %v584, 1
      %v587 = vsel %vm575, %v582, %v586
      %v589 = vshrl.u32 %v540, 16
      %v591 = vshll.u32 %v540, 16
      %v593 = vrot.slane %v591, 1
      %v594 = vor.u32 %v589, %v593
      %v596 = vshll.u32 %v558, 16
      %v598 = vrot.slane %v596, 1
      %v599 = vsel %vm575, %v594, %v598
      %v601 = vshrl.u32 %v541, 16
      %v603 = vshll.u32 %v541, 16
      %v605 = vrot.slane %v603, 1
      %v606 = vor.u32 %v601, %v605
      %v608 = vshll.u32 %v559, 16
      %v610 = vrot.slane %v608, 1
      %v611 = vsel %vm575, %v606, %v610
      %v613 = vshrl.u32 %v542, 16
      %v615 = vshll.u32 %v542, 16
      %v617 = vrot.slane %v615, 1
      %v618 = vor.u32 %v613, %v617
      %v620 = vshll.u32 %v560, 16
      %v622 = vrot.slane %v620, 1
      %v623 = vsel %vm575, %v618, %v622
      %v625 = vshrl.u32 %v543, 16
      %v627 = vshll.u32 %v543, 16
      %v629 = vrot.slane %v627, 1
      %v630 = vor.u32 %v625, %v629
      %v632 = vshll.u32 %v561, 16
      %v634 = vrot.slane %v632, 1
      %v635 = vsel %vm575, %v630, %v634
      %v637 = vshrl.u32 %v544, 16
      %v639 = vshll.u32 %v544, 16
      %v641 = vrot.slane %v639, 1
      %v642 = vor.u32 %v637, %v641
      %v644 = vshll.u32 %v562, 16
      %v646 = vrot.slane %v644, 1
      %v647 = vsel %vm575, %v642, %v646
      %v649 = vshrl.u32 %v545, 16
      %v651 = vshll.u32 %v545, 16
      %v653 = vrot.slane %v651, 1
      %v654 = vor.u32 %v649, %v653
      %v656 = vshll.u32 %v563, 16
      %v658 = vrot.slane %v656, 1
      %v659 = vsel %vm575, %v654, %v658
      %v661 = vshrl.u32 %v546, 16
      %v663 = vshll.u32 %v546, 16
      %v665 = vrot.slane %v663, 1
      %v666 = vor.u32 %v661, %v665
      %v668 = vshll.u32 %v564, 16
      %v670 = vrot.slane %v668, 1
      %v671 = vsel %vm575, %v666, %v670
      %v673 = vshrl.u32 %v547, 16
      %v675 = vshll.u32 %v547, 16
      %v677 = vrot.slane %v675, 1
      %v678 = vor.u32 %v673, %v677
      %v680 = vshll.u32 %v565, 16
      %v682 = vrot.slane %v680, 1
      %v683 = vsel %vm575, %v678, %v682
      %v685 = vshrl.u32 %v548, 16
      %v687 = vshll.u32 %v548, 16
      %v689 = vrot.slane %v687, 1
      %v690 = vor.u32 %v685, %v689
      %v692 = vshll.u32 %v566, 16
      %v694 = vrot.slane %v692, 1
      %v695 = vsel %vm575, %v690, %v694
      %v697 = vshrl.u32 %v549, 16
      %v699 = vshll.u32 %v549, 16
      %v701 = vrot.slane %v699, 1
      %v702 = vor.u32 %v697, %v701
      %v704 = vshll.u32 %v567, 16
      %v706 = vrot.slane %v704, 1
      %v707 = vsel %vm575, %v702, %v706
      %v709 = vshrl.u32 %v550, 16
      %v711 = vshll.u32 %v550, 16
      %v713 = vrot.slane %v711, 1
      %v714 = vor.u32 %v709, %v713
      %v716 = vshll.u32 %v568, 16
      %v718 = vrot.slane %v716, 1
      %v719 = vsel %vm575, %v714, %v718
      %v721 = vshrl.u32 %v551, 16
      %v723 = vshll.u32 %v551, 16
      %v725 = vrot.slane %v723, 1
      %v726 = vor.u32 %v721, %v725
      %v728 = vshll.u32 %v569, 16
      %v730 = vrot.slane %v728, 1
      %v731 = vsel %vm575, %v726, %v730
      %v733 = vshrl.u32 %v552, 16
      %v735 = vshll.u32 %v552, 16
      %v737 = vrot.slane %v735, 1
      %v738 = vor.u32 %v733, %v737
      %v740 = vshll.u32 %v570, 16
      %v742 = vrot.slane %v740, 1
      %v743 = vsel %vm575, %v738, %v742
      %v745 = vshrl.u32 %v553, 16
      %v747 = vshll.u32 %v553, 16
      %v749 = vrot.slane %v747, 1
      %v750 = vor.u32 %v745, %v749
      %v752 = vshll.u32 %v571, 16
      %v754 = vrot.slane %v752, 1
      %v755 = vsel %vm575, %v750, %v754
      %v757 = vshrl.u32 %v554, 16
      %v759 = vshll.u32 %v554, 16
      %v761 = vrot.slane %v759, 1
      %v762 = vor.u32 %v757, %v761
      %v764 = vshll.u32 %v572, 16
      %v766 = vrot.slane %v764, 1
      %v767 = vsel %vm575, %v762, %v766
      %768 = vrot.lane.b32.xlu0 %v587, 64
      %v769 = vpop.permute.xlu0 %768
      %770 = vrot.lane.b32.xlu0 %v599, 64
      %v771 = vpop.permute.xlu0 %770
      %772 = vrot.lane.b32.xlu0 %v611, 64
      %v773 = vpop.permute.xlu0 %772
      %774 = vrot.lane.b32.xlu0 %v623, 64
      %v775 = vpop.permute.xlu0 %774
      %776 = vrot.lane.b32.xlu0 %v635, 64
      %v777 = vpop.permute.xlu0 %776
      %778 = vrot.lane.b32.xlu0 %v647, 64
      %v779 = vpop.permute.xlu0 %778
      %780 = vrot.lane.b32.xlu0 %v659, 64
      %v781 = vpop.permute.xlu0 %780
      %782 = vrot.lane.b32.xlu0 %v671, 64
      %v783 = vpop.permute.xlu0 %782
      %784 = vrot.lane.b32.xlu0 %v683, 64
      %v785 = vpop.permute.xlu0 %784
      %786 = vrot.lane.b32.xlu0 %v695, 64
      %v787 = vpop.permute.xlu0 %786
      %788 = vrot.lane.b32.xlu0 %v707, 64
      %v789 = vpop.permute.xlu0 %788
      %790 = vrot.lane.b32.xlu0 %v719, 64
      %v791 = vpop.permute.xlu0 %790
      %792 = vrot.lane.b32.xlu0 %v731, 64
      %v793 = vpop.permute.xlu0 %792
      %794 = vrot.lane.b32.xlu0 %v743, 64
      %v795 = vpop.permute.xlu0 %794
      %796 = vrot.lane.b32.xlu0 %v755, 64
      %v797 = vpop.permute.xlu0 %796
      %798 = vrot.lane.b32.xlu0 %v767, 64
      %v799 = vpop.permute.xlu0 %798
      %vm832 = vcmask 1046528
      %v833 = vrot.slane %v539, 1
      %v834 = vrot.slane %v557, 1
      %v835 = vsel %vm832, %v833, %v834
      %v836 = vrot.slane %v540, 1
      %v837 = vrot.slane %v558, 1
      %v838 = vsel %vm832, %v836, %v837
      %v839 = vrot.slane %v541, 1
      %v840 = vrot.slane %v559, 1
      %v841 = vsel %vm832, %v839, %v840
      %v842 = vrot.slane %v542, 1
      %v843 = vrot.slane %v560, 1
      %v844 = vsel %vm832, %v842, %v843
      %v845 = vrot.slane %v543, 1
      %v846 = vrot.slane %v561, 1
      %v847 = vsel %vm832, %v845, %v846
      %v848 = vrot.slane %v544, 1
      %v849 = vrot.slane %v562, 1
      %v850 = vsel %vm832, %v848, %v849
      %v851 = vrot.slane %v545, 1
      %v852 = vrot.slane %v563, 1
      %v853 = vsel %vm832, %v851, %v852
      %v854 = vrot.slane %v546, 1
      %v855 = vrot.slane %v564, 1
      %v856 = vsel %vm832, %v854, %v855
      %v857 = vrot.slane %v547, 1
      %v858 = vrot.slane %v565, 1
      %v859 = vsel %vm832, %v857, %v858
      %v860 = vrot.slane %v548, 1
      %v861 = vrot.slane %v566, 1
      %v862 = vsel %vm832, %v860, %v861
      %v863 = vrot.slane %v549, 1
      %v864 = vrot.slane %v567, 1
      %v865 = vsel %vm832, %v863, %v864
      %v866 = vrot.slane %v550, 1
      %v867 = vrot.slane %v568, 1
      %v868 = vsel %vm832, %v866, %v867
      %v869 = vrot.slane %v551, 1
      %v870 = vrot.slane %v569, 1
      %v871 = vsel %vm832, %v869, %v870
      %v872 = vrot.slane %v552, 1
      %v873 = vrot.slane %v570, 1
      %v874 = vsel %vm832, %v872, %v873
      %v875 = vrot.slane %v553, 1
      %v876 = vrot.slane %v571, 1
      %v877 = vsel %vm832, %v875, %v876
      %v878 = vrot.slane %v554, 1
      %v879 = vrot.slane %v572, 1
      %v880 = vsel %vm832, %v878, %v879
      %vm881 = vcmask 523264
      %v883 = vsel %vm881, %v539, %v769
      %v886 = vsel %vm881, %v540, %v771
      %v889 = vsel %vm881, %v541, %v773
      %v892 = vsel %vm881, %v542, %v775
      %v895 = vsel %vm881, %v543, %v777
      %v898 = vsel %vm881, %v544, %v779
      %v901 = vsel %vm881, %v545, %v781
      %v904 = vsel %vm881, %v546, %v783
      %v907 = vsel %vm881, %v547, %v785
      %v910 = vsel %vm881, %v548, %v787
      %v913 = vsel %vm881, %v549, %v789
      %v916 = vsel %vm881, %v550, %v791
      %v919 = vsel %vm881, %v551, %v793
      %v922 = vsel %vm881, %v552, %v795
      %v925 = vsel %vm881, %v553, %v797
      %v928 = vsel %vm881, %v554, %v799
      %v930 = vld [vmem:[%s1] sm:$0xf]
      %v931 = vld [vmem:[%s1 + $0x4] sm:$0xf]
      %v932 = vld [vmem:[%s1 + $0x8] sm:$0xf]
      %v933 = vld [vmem:[%s1 + $0xc] sm:$0xf]
      %v934 = vld [vmem:[%s1 + $0x10] sm:$0xf]
      %v935 = vld [vmem:[%s1 + $0x14] sm:$0xf]
      %v936 = vld [vmem:[%s1 + $0x18] sm:$0xf]
      %v937 = vld [vmem:[%s1 + $0x1c] sm:$0xf]
      %v938 = vld [vmem:[%s1 + $0x20] sm:$0xf]
      %v939 = vld [vmem:[%s1 + $0x24] sm:$0xf]
      %v940 = vld [vmem:[%s1 + $0x28] sm:$0xf]
      %v941 = vld [vmem:[%s1 + $0x2c] sm:$0xf]
      %v942 = vld [vmem:[%s1 + $0x30] sm:$0xf]
      %v943 = vld [vmem:[%s1 + $0x34] sm:$0xf]
      %v944 = vld [vmem:[%s1 + $0x38] sm:$0xf]
      %v945 = vld [vmem:[%s1 + $0x3c] sm:$0xf]
      %v946 = vld [vmem:[%s1 + $0x40] sm:$0xf]
      %v947 = vld [vmem:[%s1 + $0x44] sm:$0xf]
      %v948 = vld [vmem:[%s1 + $0x48] sm:$0xf]
      %v949 = vld [vmem:[%s1 + $0x4c] sm:$0xf]
      %v950 = vld [vmem:[%s1 + $0x50] sm:$0xf]
      %v951 = vld [vmem:[%s1 + $0x54] sm:$0xf]
      %v952 = vld [vmem:[%s1 + $0x58] sm:$0xf]
      %v953 = vld [vmem:[%s1 + $0x5c] sm:$0xf]
      %v955 = vshrl.u32 %v555, 16
      %v957 = vshll.u32 %v555, 16
      %v959 = vrot.slane %v957, 1
      %v960 = vor.u32 %v955, %v959
      %v962 = vshll.u32 %v573, 16
      %v964 = vrot.slane %v962, 1
      %v965 = vsel %vm575, %v960, %v964
      %966 = vrot.lane.b32.xlu0 %v965, 64
      %v967 = vpop.permute.xlu0 %966
      %v970 = vrot.slane %v555, 1
      %v971 = vrot.slane %v573, 1
      %v972 = vsel %vm832, %v970, %v971
      %v974 = vsel %vm881, %v555, %v967
      %v976 = vld [vmem:[%s1 + $0x60] sm:$0xf]
      %v977 = vld [vmem:[%s1 + $0x64] sm:$0xf]
      %v978 = vld [vmem:[%s1 + $0x68] sm:$0xf]
      %v979 = vld [vmem:[%s1 + $0x6c] sm:$0xf]
      %v980 = vld [vmem:[%s1 + $0x70] sm:$0xf]
      %v981 = vld [vmem:[%s1 + $0x74] sm:$0xf]
      %v982 = vld [vmem:[%s1 + $0x78] sm:$0xf]
      %v983 = vld [vmem:[%s1 + $0x7c] sm:$0xf]
      %v984 = vld [vmem:[%s1 + $0x80] sm:$0xf]
      %v985 = vld [vmem:[%s1 + $0x84] sm:$0xf]
      %v986 = vld [vmem:[%s1 + $0x88] sm:$0xf]
      %v987 = vld [vmem:[%s1 + $0x8c] sm:$0xf]
      %v988 = vld [vmem:[%s1 + $0x90] sm:$0xf]
      %v989 = vld [vmem:[%s1 + $0x94] sm:$0xf]
      %v990 = vld [vmem:[%s1 + $0x98] sm:$0xf]
      %v991 = vld [vmem:[%s1 + $0x9c] sm:$0xf]
      %v992 = vld [vmem:[%s1 + $0xa0] sm:$0xf]
      %v993 = vld [vmem:[%s1 + $0xa4] sm:$0xf]
      %v994 = vld [vmem:[%s1 + $0xa8] sm:$0xf]
      %v995 = vld [vmem:[%s1 + $0xac] sm:$0xf]
      %v996 = vld [vmem:[%s1 + $0xb0] sm:$0xf]
      %v997 = vld [vmem:[%s1 + $0xb4] sm:$0xf]
      %v998 = vld [vmem:[%s1 + $0xb8] sm:$0xf]
      %v999 = vld [vmem:[%s1 + $0xbc] sm:$0xf]
      %v1024 = vunpack.c.l.b16 %v976
      %v1025 = vunpack.c.l.b16 %v977
      %v1026 = vunpack.c.l.b16 %v978
      %v1027 = vunpack.c.l.b16 %v979
      %v1028 = vunpack.c.l.b16 %v980
      %v1029 = vunpack.c.l.b16 %v981
      %v1030 = vunpack.c.l.b16 %v982
      %v1031 = vunpack.c.l.b16 %v983
      %v1032 = vunpack.c.l.b16 %v984
      %v1033 = vunpack.c.l.b16 %v985
      %v1034 = vunpack.c.l.b16 %v986
      %v1035 = vunpack.c.l.b16 %v987
      %v1036 = vunpack.c.l.b16 %v988
      %v1037 = vunpack.c.l.b16 %v989
      %v1038 = vunpack.c.l.b16 %v990
      %v1039 = vunpack.c.l.b16 %v991
      %v1040 = vunpack.c.l.b16 %v992
      %v1041 = vunpack.c.l.b16 %v993
      %v1042 = vunpack.c.l.b16 %v994
      %v1043 = vunpack.c.l.b16 %v995
      %v1044 = vunpack.c.l.b16 %v996
      %v1045 = vunpack.c.l.b16 %v997
      %v1046 = vunpack.c.l.b16 %v998
      %v1047 = vunpack.c.l.b16 %v999
      %v1048 = vpack.c.b16 %v1025, %v1024
      %v1049 = vpack.c.b16 %v1027, %v1026
      %v1050 = vpack.c.b16 %v1029, %v1028
      %v1051 = vpack.c.b16 %v1031, %v1030
      %v1052 = vpack.c.b16 %v1033, %v1032
      %v1053 = vpack.c.b16 %v1035, %v1034
      %v1054 = vpack.c.b16 %v1037, %v1036
      %v1055 = vpack.c.b16 %v1039, %v1038
      %v1056 = vpack.c.b16 %v1041, %v1040
      %v1057 = vpack.c.b16 %v1043, %v1042
      %v1058 = vpack.c.b16 %v1045, %v1044
      %v1059 = vpack.c.b16 %v1047, %v1046
      %v1073 = vsel %vm881, %v838, 0
      %v1076 = vsel %vm881, %v841, 0
      %v1079 = vsel %vm881, %v844, 0
      %v1082 = vsel %vm881, %v847, 0
      %v1085 = vsel %vm881, %v850, 0
      %v1088 = vsel %vm881, %v853, 0
      %v1091 = vsel %vm881, %v856, 0
      %v1094 = vsel %vm881, %v859, 0
      %v1097 = vsel %vm881, %v862, 0
      %v1100 = vsel %vm881, %v865, 0
      %v1103 = vsel %vm881, %v868, 0
      %v1106 = vsel %vm881, %v871, 0
      %v1109 = vsel %vm881, %v874, 0
      %v1112 = vsel %vm881, %v877, 0
      %v1115 = vsel %vm881, %v880, 0
      %v1118 = vsel %vm881, %v972, 0
      %1120 = vmatprep.subr.bf16.mxu0 0
      %1121 = vmatpush1.bf16.msra.mxu0 %v1048
      %1122 = vmatprep.subr.bf16.mxu0 0
      %1123 = vmatpush1.bf16.msra.mxu0 %v1049
      %1124 = vmatprep.subr.bf16.mxu0 0
      %1125 = vmatpush1.bf16.msra.mxu0 %v1050
      %1126 = vmatprep.subr.bf16.mxu0 0
      %1127 = vmatpush1.bf16.msra.mxu0 %v1051
      %1128 = vmatprep.subr.bf16.mxu0 0
      %1129 = vmatpush1.bf16.msra.mxu0 %v1052
      %1130 = vmatprep.subr.bf16.mxu0 0
      %1131 = vmatpush1.bf16.msra.mxu0 %v1053
      %1132 = vmatprep.subr.bf16.mxu0 0
      %1133 = vmatpush1.bf16.msra.mxu0 %v1054
      %1134 = vmatprep.subr.bf16.mxu0 0
      %1135 = vmatpush1.bf16.msra.mxu0 %v1055
      %1136 = vmatprep.subr.bf16.mxu0 0
      %1137 = vmatpush1.bf16.msra.mxu0 %v1056
      %1138 = vmatprep.subr.bf16.mxu0 0
      %1139 = vmatpush1.bf16.msra.mxu0 %v1057
      %1140 = vmatprep.subr.bf16.mxu0 0
      %1141 = vmatpush1.bf16.msra.mxu0 %v1058
      %1142 = vmatprep.subr.bf16.mxu0 0
      %1143 = vmatpush1.bf16.msra.mxu0 %v1059
      %1144 = vmatprep.subr.bf16.mxu0 0
      %1145 = vmatpush1.bf16.msra.mxu0 0
      %1146 = vmatprep.subr.bf16.mxu0 0
      %1147 = vmatpush1.bf16.msra.mxu0 0
      %1148 = vmatprep.subr.bf16.mxu0 0
      %1149 = vmatpush1.bf16.msra.mxu0 0
      %1150 = vmatprep.subr.bf16.mxu0 0
      %1151 = vmatpush1.bf16.msra.mxu0 0
      %1152 = vmatprep.mubr.bf16.mxu0 %v1073
      %1153 = vmatmul.mubr.bf16.gmra.mrb[0].mxu0 %v886
      %v1154 = vpop.f32.mrb[0].mxu0
      %v1155 = vadd.f32 0.0, %v1154
      %v1156 = vpop.f32.mrb[0].mxu0
      %v1157 = vpop.f32.mrb[0].mxu0
      %v1158 = vadd.f32 0.0, %v1157
      %v1159 = vpop.f32.mrb[0].mxu0
      %1160 = vmatprep.mubr.bf16.mxu0 %v1076
      %1161 = vmatmul.mubr.bf16.gmra.mrb[0].mxu0 %v889
      %v1162 = vpop.f32.mrb[0].mxu0
      %v1163 = vadd.f32 0.0, %v1162
      %v1164 = vpop.f32.mrb[0].mxu0
      %v1165 = vpop.f32.mrb[0].mxu0
      %v1166 = vadd.f32 0.0, %v1165
      %v1167 = vpop.f32.mrb[0].mxu0
      %1168 = vmatprep.mubr.bf16.mxu0 %v1079
      %1169 = vmatmul.mubr.bf16.gmra.mrb[0].mxu0 %v892
      %v1170 = vpop.f32.mrb[0].mxu0
      %v1171 = vadd.f32 0.0, %v1170
      %v1172 = vpop.f32.mrb[0].mxu0
      %v1173 = vpop.f32.mrb[0].mxu0
      %v1174 = vadd.f32 0.0, %v1173
      %v1175 = vpop.f32.mrb[0].mxu0
      %1176 = vmatprep.mubr.bf16.mxu0 %v1082
      %1177 = vmatmul.mubr.bf16.gmra.mrb[0].mxu0 %v895
      %v1178 = vpop.f32.mrb[0].mxu0
      %v1179 = vadd.f32 0.0, %v1178
      %v1180 = vpop.f32.mrb[0].mxu0
      %v1181 = vpop.f32.mrb[0].mxu0
      %v1182 = vadd.f32 0.0, %v1181
      %v1183 = vpop.f32.mrb[0].mxu0
      %1184 = vmatprep.mubr.bf16.mxu0 %v1085
      %1185 = vmatmul.mubr.bf16.gmra.mrb[0].mxu0 %v898
      %v1186 = vpop.f32.mrb[0].mxu0
      %v1187 = vadd.f32 0.0, %v1186
      %v1188 = vpop.f32.mrb[0].mxu0
      %v1189 = vpop.f32.mrb[0].mxu0
      %v1190 = vadd.f32 0.0, %v1189
      %v1191 = vpop.f32.mrb[0].mxu0
      %1192 = vmatprep.mubr.bf16.mxu0 %v1088
      %1193 = vmatmul.mubr.bf16.gmra.mrb[0].mxu0 %v901
      %v1194 = vpop.f32.mrb[0].mxu0
      %v1195 = vadd.f32 0.0, %v1194
      %v1196 = vpop.f32.mrb[0].mxu0
      %v1197 = vpop.f32.mrb[0].mxu0
      %v1198 = vadd.f32 0.0, %v1197
      %v1199 = vpop.f32.mrb[0].mxu0
      %1200 = vmatprep.mubr.bf16.mxu0 %v1091
      %1201 = vmatmul.mubr.bf16.gmra.mrb[0].mxu0 %v904
      %v1202 = vpop.f32.mrb[0].mxu0
      %v1203 = vadd.f32 0.0, %v1202
      %v1204 = vpop.f32.mrb[0].mxu0
      %v1205 = vpop.f32.mrb[0].mxu0
      %v1206 = vadd.f32 0.0, %v1205
      %v1207 = vpop.f32.mrb[0].mxu0
      %1208 = vmatprep.mubr.bf16.mxu0 %v1094
      %1209 = vmatmul.mubr.bf16.gmra.mrb[0].mxu0 %v907
      %v1210 = vpop.f32.mrb[0].mxu0
      %v1211 = vadd.f32 0.0, %v1210
      %v1212 = vpop.f32.mrb[0].mxu0
      %v1213 = vpop.f32.mrb[0].mxu0
      %v1214 = vadd.f32 0.0, %v1213
      %v1215 = vpop.f32.mrb[0].mxu0
      %1216 = vmatprep.mubr.bf16.mxu0 %v1097
      %1217 = vmatmul.mubr.bf16.gmra.mrb[0].mxu0 %v910
      %v1218 = vpop.f32.mrb[0].mxu0
      %v1219 = vadd.f32 0.0, %v1218
      %v1220 = vpop.f32.mrb[0].mxu0
      %v1221 = vpop.f32.mrb[0].mxu0
      %v1222 = vadd.f32 0.0, %v1221
      %v1223 = vpop.f32.mrb[0].mxu0
      %1224 = vmatprep.mubr.bf16.mxu0 %v1100
      %1225 = vmatmul.mubr.bf16.gmra.mrb[0].mxu0 %v913
      %v1226 = vpop.f32.mrb[0].mxu0
      %v1227 = vadd.f32 0.0, %v1226
      %v1228 = vpop.f32.mrb[0].mxu0
      %v1229 = vpop.f32.mrb[0].mxu0
      %v1230 = vadd.f32 0.0, %v1229
      %v1231 = vpop.f32.mrb[0].mxu0
      %1232 = vmatprep.mubr.bf16.mxu0 %v1103
      %1233 = vmatmul.mubr.bf16.gmra.mrb[0].mxu0 %v916
      %v1234 = vpop.f32.mrb[0].mxu0
      %v1235 = vadd.f32 0.0, %v1234
      %v1236 = vpop.f32.mrb[0].mxu0
      %v1237 = vpop.f32.mrb[0].mxu0
      %v1238 = vadd.f32 0.0, %v1237
      %v1239 = vpop.f32.mrb[0].mxu0
      %1240 = vmatprep.mubr.bf16.mxu0 %v1106
      %1241 = vmatmul.mubr.bf16.gmra.mrb[0].mxu0 %v919
      %v1242 = vpop.f32.mrb[0].mxu0
      %v1243 = vadd.f32 0.0, %v1242
      %v1244 = vpop.f32.mrb[0].mxu0
      %v1245 = vpop.f32.mrb[0].mxu0
      %v1246 = vadd.f32 0.0, %v1245
      %v1247 = vpop.f32.mrb[0].mxu0
      %1248 = vmatprep.mubr.bf16.mxu0 %v1109
      %1249 = vmatmul.mubr.bf16.gmra.mrb[0].mxu0 %v922
      %v1250 = vpop.f32.mrb[0].mxu0
      %v1251 = vadd.f32 0.0, %v1250
      %v1252 = vpop.f32.mrb[0].mxu0
      %v1253 = vpop.f32.mrb[0].mxu0
      %v1254 = vadd.f32 0.0, %v1253
      %v1255 = vpop.f32.mrb[0].mxu0
      %1256 = vmatprep.mubr.bf16.mxu0 %v1112
      %1257 = vmatmul.mubr.bf16.gmra.mrb[0].mxu0 %v925
      %v1258 = vpop.f32.mrb[0].mxu0
      %v1259 = vadd.f32 0.0, %v1258
      %v1260 = vpop.f32.mrb[0].mxu0
      %v1261 = vpop.f32.mrb[0].mxu0
      %v1262 = vadd.f32 0.0, %v1261
      %v1263 = vpop.f32.mrb[0].mxu0
      %1264 = vmatprep.mubr.bf16.mxu0 %v1115
      %1265 = vmatmul.mubr.bf16.gmra.mrb[0].mxu0 %v928
      %v1266 = vpop.f32.mrb[0].mxu0
      %v1267 = vadd.f32 0.0, %v1266
      %v1268 = vpop.f32.mrb[0].mxu0
      %v1269 = vpop.f32.mrb[0].mxu0
      %v1270 = vadd.f32 0.0, %v1269
      %v1271 = vpop.f32.mrb[0].mxu0
      %1272 = vmatprep.mubr.bf16.mxu0 %v1118
      %1273 = vmatmul.mubr.bf16.gmra.mrb[0].mxu0 %v974
      %v1274 = vpop.f32.mrb[0].mxu0
      %v1275 = vadd.f32 0.0, %v1274
      %v1276 = vpop.f32.mrb[0].mxu0
      %v1277 = vpop.f32.mrb[0].mxu0
      %v1278 = vadd.f32 0.0, %v1277
      %v1279 = vpop.f32.mrb[0].mxu0
      %1280 = vdwg.mxu0
      %v1305 = vunpack.c.l.b16 %v930
      %v1306 = vunpack.c.l.b16 %v931
      %v1307 = vunpack.c.l.b16 %v932
      %v1308 = vunpack.c.l.b16 %v933
      %v1309 = vunpack.c.l.b16 %v934
      %v1310 = vunpack.c.l.b16 %v935
      %v1311 = vunpack.c.l.b16 %v936
      %v1312 = vunpack.c.l.b16 %v937
      %v1313 = vunpack.c.l.b16 %v938
      %v1314 = vunpack.c.l.b16 %v939
      %v1315 = vunpack.c.l.b16 %v940
      %v1316 = vunpack.c.l.b16 %v941
      %v1317 = vunpack.c.l.b16 %v942
      %v1318 = vunpack.c.l.b16 %v943
      %v1319 = vunpack.c.l.b16 %v944
      %v1320 = vunpack.c.l.b16 %v945
      %v1321 = vunpack.c.l.b16 %v946
      %v1322 = vunpack.c.l.b16 %v947
      %v1323 = vunpack.c.l.b16 %v948
      %v1324 = vunpack.c.l.b16 %v949
      %v1325 = vunpack.c.l.b16 %v950
      %v1326 = vunpack.c.l.b16 %v951
      %v1327 = vunpack.c.l.b16 %v952
      %v1328 = vunpack.c.l.b16 %v953
      %v1329 = vpack.c.b16 %v1306, %v1305
      %v1330 = vpack.c.b16 %v1308, %v1307
      %v1331 = vpack.c.b16 %v1310, %v1309
      %v1332 = vpack.c.b16 %v1312, %v1311
      %v1333 = vpack.c.b16 %v1314, %v1313
      %v1334 = vpack.c.b16 %v1316, %v1315
      %v1335 = vpack.c.b16 %v1318, %v1317
      %v1336 = vpack.c.b16 %v1320, %v1319
      %v1337 = vpack.c.b16 %v1322, %v1321
      %v1338 = vpack.c.b16 %v1324, %v1323
      %v1339 = vpack.c.b16 %v1326, %v1325
      %v1340 = vpack.c.b16 %v1328, %v1327
      %v1354 = vsel %vm881, %v835, 0
      %1356 = vmatprep.subr.bf16.mxu0 0
      %1357 = vmatpush1.bf16.msra.mxu0 %v1329
      %1358 = vmatprep.subr.bf16.mxu0 0
      %1359 = vmatpush1.bf16.msra.mxu0 %v1330
      %1360 = vmatprep.subr.bf16.mxu0 0
      %1361 = vmatpush1.bf16.msra.mxu0 %v1331
      %1362 = vmatprep.subr.bf16.mxu0 0
      %1363 = vmatpush1.bf16.msra.mxu0 %v1332
      %1364 = vmatprep.subr.bf16.mxu0 0
      %1365 = vmatpush1.bf16.msra.mxu0 %v1333
      %1366 = vmatprep.subr.bf16.mxu0 0
      %1367 = vmatpush1.bf16.msra.mxu0 %v1334
      %1368 = vmatprep.subr.bf16.mxu0 0
      %1369 = vmatpush1.bf16.msra.mxu0 %v1335
      %1370 = vmatprep.subr.bf16.mxu0 0
      %1371 = vmatpush1.bf16.msra.mxu0 %v1336
      %1372 = vmatprep.subr.bf16.mxu0 0
      %1373 = vmatpush1.bf16.msra.mxu0 %v1337
      %1374 = vmatprep.subr.bf16.mxu0 0
      %1375 = vmatpush1.bf16.msra.mxu0 %v1338
      %1376 = vmatprep.subr.bf16.mxu0 0
      %1377 = vmatpush1.bf16.msra.mxu0 %v1339
      %1378 = vmatprep.subr.bf16.mxu0 0
      %1379 = vmatpush1.bf16.msra.mxu0 %v1340
      %1380 = vmatprep.subr.bf16.mxu0 0
      %1381 = vmatpush1.bf16.msra.mxu0 0
      %1382 = vmatprep.subr.bf16.mxu0 0
      %1383 = vmatpush1.bf16.msra.mxu0 0
      %1384 = vmatprep.subr.bf16.mxu0 0
      %1385 = vmatpush1.bf16.msra.mxu0 0
      %1386 = vmatprep.subr.bf16.mxu0 0
      %1387 = vmatpush1.bf16.msra.mxu0 0
      %1388 = vmatprep.mubr.bf16.mxu0 %v1354
      %1389 = vmatmul.mubr.bf16.gmra.mrb[0].mxu0 %v883
      %v1390 = vpop.f32.mrb[0].mxu0
      %v1391 = vadd.f32 %v1155, %v1390
      %v1392 = vpop.f32.mrb[0].mxu0
      %v1393 = vpop.f32.mrb[0].mxu0
      %v1394 = vadd.f32 %v1158, %v1393
      %v1395 = vpop.f32.mrb[0].mxu0
      %1396 = vmatprep.mubr.bf16.mxu0 %v1073
      %1397 = vmatmul.mubr.bf16.gmra.mrb[0].mxu0 %v886
      %v1398 = vpop.f32.mrb[0].mxu0
      %v1399 = vadd.f32 %v1163, %v1398
      %v1400 = vpop.f32.mrb[0].mxu0
      %v1401 = vpop.f32.mrb[0].mxu0
      %v1402 = vadd.f32 %v1166, %v1401
      %v1403 = vpop.f32.mrb[0].mxu0
      %1404 = vmatprep.mubr.bf16.mxu0 %v1076
      %1405 = vmatmul.mubr.bf16.gmra.mrb[0].mxu0 %v889
      %v1406 = vpop.f32.mrb[0].mxu0
      %v1407 = vadd.f32 %v1171, %v1406
      %v1408 = vpop.f32.mrb[0].mxu0
      %v1409 = vpop.f32.mrb[0].mxu0
      %v1410 = vadd.f32 %v1174, %v1409
      %v1411 = vpop.f32.mrb[0].mxu0
      %1412 = vmatprep.mubr.bf16.mxu0 %v1079
      %1413 = vmatmul.mubr.bf16.gmra.mrb[0].mxu0 %v892
      %v1414 = vpop.f32.mrb[0].mxu0
      %v1415 = vadd.f32 %v1179, %v1414
      %v1416 = vpop.f32.mrb[0].mxu0
      %v1417 = vpop.f32.mrb[0].mxu0
      %v1418 = vadd.f32 %v1182, %v1417
      %v1419 = vpop.f32.mrb[0].mxu0
      %1420 = vmatprep.mubr.bf16.mxu0 %v1082
      %1421 = vmatmul.mubr.bf16.gmra.mrb[0].mxu0 %v895
      %v1422 = vpop.f32.mrb[0].mxu0
      %v1423 = vadd.f32 %v1187, %v1422
      %v1424 = vpop.f32.mrb[0].mxu0
      %v1425 = vpop.f32.mrb[0].mxu0
      %v1426 = vadd.f32 %v1190, %v1425
      %v1427 = vpop.f32.mrb[0].mxu0
      %1428 = vmatprep.mubr.bf16.mxu0 %v1085
      %1429 = vmatmul.mubr.bf16.gmra.mrb[0].mxu0 %v898
      %v1430 = vpop.f32.mrb[0].mxu0
      %v1431 = vadd.f32 %v1195, %v1430
      %v1432 = vpop.f32.mrb[0].mxu0
      %v1433 = vpop.f32.mrb[0].mxu0
      %v1434 = vadd.f32 %v1198, %v1433
      %v1435 = vpop.f32.mrb[0].mxu0
      %1436 = vmatprep.mubr.bf16.mxu0 %v1088
      %1437 = vmatmul.mubr.bf16.gmra.mrb[0].mxu0 %v901
      %v1438 = vpop.f32.mrb[0].mxu0
      %v1439 = vadd.f32 %v1203, %v1438
      %v1440 = vpop.f32.mrb[0].mxu0
      %v1441 = vpop.f32.mrb[0].mxu0
      %v1442 = vadd.f32 %v1206, %v1441
      %v1443 = vpop.f32.mrb[0].mxu0
      %1444 = vmatprep.mubr.bf16.mxu0 %v1091
      %1445 = vmatmul.mubr.bf16.gmra.mrb[0].mxu0 %v904
      %v1446 = vpop.f32.mrb[0].mxu0
      %v1447 = vadd.f32 %v1211, %v1446
      %v1448 = vpop.f32.mrb[0].mxu0
      %v1449 = vpop.f32.mrb[0].mxu0
      %v1450 = vadd.f32 %v1214, %v1449
      %v1451 = vpop.f32.mrb[0].mxu0
      %1452 = vmatprep.mubr.bf16.mxu0 %v1094
      %1453 = vmatmul.mubr.bf16.gmra.mrb[0].mxu0 %v907
      %v1454 = vpop.f32.mrb[0].mxu0
      %v1455 = vadd.f32 %v1219, %v1454
      %v1456 = vpop.f32.mrb[0].mxu0
      %v1457 = vpop.f32.mrb[0].mxu0
      %v1458 = vadd.f32 %v1222, %v1457
      %v1459 = vpop.f32.mrb[0].mxu0
      %1460 = vmatprep.mubr.bf16.mxu0 %v1097
      %1461 = vmatmul.mubr.bf16.gmra.mrb[0].mxu0 %v910
      %v1462 = vpop.f32.mrb[0].mxu0
      %v1463 = vadd.f32 %v1227, %v1462
      %v1464 = vpop.f32.mrb[0].mxu0
      %v1465 = vpop.f32.mrb[0].mxu0
      %v1466 = vadd.f32 %v1230, %v1465
      %v1467 = vpop.f32.mrb[0].mxu0
      %1468 = vmatprep.mubr.bf16.mxu0 %v1100
      %1469 = vmatmul.mubr.bf16.gmra.mrb[0].mxu0 %v913
      %v1470 = vpop.f32.mrb[0].mxu0
      %v1471 = vadd.f32 %v1235, %v1470
      %v1472 = vpop.f32.mrb[0].mxu0
      %v1473 = vpop.f32.mrb[0].mxu0
      %v1474 = vadd.f32 %v1238, %v1473
      %v1475 = vpop.f32.mrb[0].mxu0
      %1476 = vmatprep.mubr.bf16.mxu0 %v1103
      %1477 = vmatmul.mubr.bf16.gmra.mrb[0].mxu0 %v916
      %v1478 = vpop.f32.mrb[0].mxu0
      %v1479 = vadd.f32 %v1243, %v1478
      %v1480 = vpop.f32.mrb[0].mxu0
      %v1481 = vpop.f32.mrb[0].mxu0
      %v1482 = vadd.f32 %v1246, %v1481
      %v1483 = vpop.f32.mrb[0].mxu0
      %1484 = vmatprep.mubr.bf16.mxu0 %v1106
      %1485 = vmatmul.mubr.bf16.gmra.mrb[0].mxu0 %v919
      %v1486 = vpop.f32.mrb[0].mxu0
      %v1487 = vadd.f32 %v1251, %v1486
      %v1488 = vpop.f32.mrb[0].mxu0
      %v1489 = vpop.f32.mrb[0].mxu0
      %v1490 = vadd.f32 %v1254, %v1489
      %v1491 = vpop.f32.mrb[0].mxu0
      %1492 = vmatprep.mubr.bf16.mxu0 %v1109
      %1493 = vmatmul.mubr.bf16.gmra.mrb[0].mxu0 %v922
      %v1494 = vpop.f32.mrb[0].mxu0
      %v1495 = vadd.f32 %v1259, %v1494
      %v1496 = vpop.f32.mrb[0].mxu0
      %v1497 = vpop.f32.mrb[0].mxu0
      %v1498 = vadd.f32 %v1262, %v1497
      %v1499 = vpop.f32.mrb[0].mxu0
      %1500 = vmatprep.mubr.bf16.mxu0 %v1112
      %1501 = vmatmul.mubr.bf16.gmra.mrb[0].mxu0 %v925
      %v1502 = vpop.f32.mrb[0].mxu0
      %v1503 = vadd.f32 %v1267, %v1502
      %v1504 = vpop.f32.mrb[0].mxu0
      %v1505 = vpop.f32.mrb[0].mxu0
      %v1506 = vadd.f32 %v1270, %v1505
      %v1507 = vpop.f32.mrb[0].mxu0
      %1508 = vmatprep.mubr.bf16.mxu0 %v1115
      %1509 = vmatmul.mubr.bf16.gmra.mrb[0].mxu0 %v928
      %v1510 = vpop.f32.mrb[0].mxu0
      %v1511 = vadd.f32 %v1275, %v1510
      %v1512 = vpop.f32.mrb[0].mxu0
      %v1513 = vpop.f32.mrb[0].mxu0
      %v1514 = vadd.f32 %v1278, %v1513
      %v1515 = vpop.f32.mrb[0].mxu0
      %1516 = vdwg.mxu0
      %v1518 = vshrl.u32 %v556, 16
      %v1520 = vshll.u32 %v556, 16
      %v1522 = vrot.slane %v1520, 1
      %v1523 = vor.u32 %v1518, %v1522
      %v1525 = vshll.u32 %v574, 16
      %v1527 = vrot.slane %v1525, 1
      %v1528 = vsel %vm575, %v1523, %v1527
      %1529 = vrot.lane.b32.xlu0 %v1528, 64
      %v1530 = vpop.permute.xlu0 %1529
      %v1533 = vrot.slane %v556, 1
      %v1534 = vrot.slane %v574, 1
      %v1535 = vsel %vm832, %v1533, %v1534
      %v1537 = vsel %vm881, %v556, %v1530
      %v1539 = vld [vmem:[%s1 + $0xc0] sm:$0xf]
      %v1540 = vld [vmem:[%s1 + $0xc4] sm:$0xf]
      %v1541 = vld [vmem:[%s1 + $0xc8] sm:$0xf]
      %v1542 = vld [vmem:[%s1 + $0xcc] sm:$0xf]
      %v1543 = vld [vmem:[%s1 + $0xd0] sm:$0xf]
      %v1544 = vld [vmem:[%s1 + $0xd4] sm:$0xf]
      %v1545 = vld [vmem:[%s1 + $0xd8] sm:$0xf]
      %v1546 = vld [vmem:[%s1 + $0xdc] sm:$0xf]
      %v1547 = vld [vmem:[%s1 + $0xe0] sm:$0xf]
      %v1548 = vld [vmem:[%s1 + $0xe4] sm:$0xf]
      %v1549 = vld [vmem:[%s1 + $0xe8] sm:$0xf]
      %v1550 = vld [vmem:[%s1 + $0xec] sm:$0xf]
      %v1551 = vld [vmem:[%s1 + $0xf0] sm:$0xf]
      %v1552 = vld [vmem:[%s1 + $0xf4] sm:$0xf]
      %v1553 = vld [vmem:[%s1 + $0xf8] sm:$0xf]
      %v1554 = vld [vmem:[%s1 + $0xfc] sm:$0xf]
      %v1555 = vld [vmem:[%s1 + $0x100] sm:$0xf]
      %v1556 = vld [vmem:[%s1 + $0x104] sm:$0xf]
      %v1557 = vld [vmem:[%s1 + $0x108] sm:$0xf]
      %v1558 = vld [vmem:[%s1 + $0x10c] sm:$0xf]
      %v1559 = vld [vmem:[%s1 + $0x110] sm:$0xf]
      %v1560 = vld [vmem:[%s1 + $0x114] sm:$0xf]
      %v1561 = vld [vmem:[%s1 + $0x118] sm:$0xf]
      %v1562 = vld [vmem:[%s1 + $0x11c] sm:$0xf]
      %v1587 = vunpack.c.l.b16 %v1539
      %v1588 = vunpack.c.l.b16 %v1540
      %v1589 = vunpack.c.l.b16 %v1541
      %v1590 = vunpack.c.l.b16 %v1542
      %v1591 = vunpack.c.l.b16 %v1543
      %v1592 = vunpack.c.l.b16 %v1544
      %v1593 = vunpack.c.l.b16 %v1545
      %v1594 = vunpack.c.l.b16 %v1546
      %v1595 = vunpack.c.l.b16 %v1547
      %v1596 = vunpack.c.l.b16 %v1548
      %v1597 = vunpack.c.l.b16 %v1549
      %v1598 = vunpack.c.l.b16 %v1550
      %v1599 = vunpack.c.l.b16 %v1551
      %v1600 = vunpack.c.l.b16 %v1552
      %v1601 = vunpack.c.l.b16 %v1553
      %v1602 = vunpack.c.l.b16 %v1554
      %v1603 = vunpack.c.l.b16 %v1555
      %v1604 = vunpack.c.l.b16 %v1556
      %v1605 = vunpack.c.l.b16 %v1557
      %v1606 = vunpack.c.l.b16 %v1558
      %v1607 = vunpack.c.l.b16 %v1559
      %v1608 = vunpack.c.l.b16 %v1560
      %v1609 = vunpack.c.l.b16 %v1561
      %v1610 = vunpack.c.l.b16 %v1562
      %v1611 = vpack.c.b16 %v1588, %v1587
      %v1612 = vpack.c.b16 %v1590, %v1589
      %v1613 = vpack.c.b16 %v1592, %v1591
      %v1614 = vpack.c.b16 %v1594, %v1593
      %v1615 = vpack.c.b16 %v1596, %v1595
      %v1616 = vpack.c.b16 %v1598, %v1597
      %v1617 = vpack.c.b16 %v1600, %v1599
      %v1618 = vpack.c.b16 %v1602, %v1601
      %v1619 = vpack.c.b16 %v1604, %v1603
      %v1620 = vpack.c.b16 %v1606, %v1605
      %v1621 = vpack.c.b16 %v1608, %v1607
      %v1622 = vpack.c.b16 %v1610, %v1609
      %v1636 = vsel %vm881, %v1535, 0
      %1638 = vmatprep.subr.bf16.mxu0 0
      %1639 = vmatpush1.bf16.msra.mxu0 %v1611
      %1640 = vmatprep.subr.bf16.mxu0 0
      %1641 = vmatpush1.bf16.msra.mxu0 %v1612
      %1642 = vmatprep.subr.bf16.mxu0 0
      %1643 = vmatpush1.bf16.msra.mxu0 %v1613
      %1644 = vmatprep.subr.bf16.mxu0 0
      %1645 = vmatpush1.bf16.msra.mxu0 %v1614
      %1646 = vmatprep.subr.bf16.mxu0 0
      %1647 = vmatpush1.bf16.msra.mxu0 %v1615
      %1648 = vmatprep.subr.bf16.mxu0 0
      %1649 = vmatpush1.bf16.msra.mxu0 %v1616
      %1650 = vmatprep.subr.bf16.mxu0 0
      %1651 = vmatpush1.bf16.msra.mxu0 %v1617
      %1652 = vmatprep.subr.bf16.mxu0 0
      %1653 = vmatpush1.bf16.msra.mxu0 %v1618
      %1654 = vmatprep.subr.bf16.mxu0 0
      %1655 = vmatpush1.bf16.msra.mxu0 %v1619
      %1656 = vmatprep.subr.bf16.mxu0 0
      %1657 = vmatpush1.bf16.msra.mxu0 %v1620
      %1658 = vmatprep.subr.bf16.mxu0 0
      %1659 = vmatpush1.bf16.msra.mxu0 %v1621
      %1660 = vmatprep.subr.bf16.mxu0 0
      %1661 = vmatpush1.bf16.msra.mxu0 %v1622
      %1662 = vmatprep.subr.bf16.mxu0 0
      %1663 = vmatpush1.bf16.msra.mxu0 0
      %1664 = vmatprep.subr.bf16.mxu0 0
      %1665 = vmatpush1.bf16.msra.mxu0 0
      %1666 = vmatprep.subr.bf16.mxu0 0
      %1667 = vmatpush1.bf16.msra.mxu0 0
      %1668 = vmatprep.subr.bf16.mxu0 0
      %1669 = vmatpush1.bf16.msra.mxu0 0
      %1670 = vmatprep.mubr.bf16.mxu0 %v1076
      %1671 = vmatmul.mubr.bf16.gmra.mrb[0].mxu0 %v889
      %v1672 = vpop.f32.mrb[0].mxu0
      %v1673 = vadd.f32 0.0, %v1672
      %v1674 = vpop.f32.mrb[0].mxu0
      %v1675 = vpop.f32.mrb[0].mxu0
      %v1676 = vadd.f32 0.0, %v1675
      %v1677 = vpop.f32.mrb[0].mxu0
      %1678 = vmatprep.mubr.bf16.mxu0 %v1079
      %1679 = vmatmul.mubr.bf16.gmra.mrb[0].mxu0 %v892
      %v1680 = vpop.f32.mrb[0].mxu0
      %v1681 = vadd.f32 0.0, %v1680
      %v1682 = vpop.f32.mrb[0].mxu0
      %v1683 = vpop.f32.mrb[0].mxu0
      %v1684 = vadd.f32 0.0, %v1683
      %v1685 = vpop.f32.mrb[0].mxu0
      %1686 = vmatprep.mubr.bf16.mxu0 %v1082
      %1687 = vmatmul.mubr.bf16.gmra.mrb[0].mxu0 %v895
      %v1688 = vpop.f32.mrb[0].mxu0
      %v1689 = vadd.f32 0.0, %v1688
      %v1690 = vpop.f32.mrb[0].mxu0
      %v1691 = vpop.f32.mrb[0].mxu0
      %v1692 = vadd.f32 0.0, %v1691
      %v1693 = vpop.f32.mrb[0].mxu0
      %1694 = vmatprep.mubr.bf16.mxu0 %v1085
      %1695 = vmatmul.mubr.bf16.gmra.mrb[0].mxu0 %v898
      %v1696 = vpop.f32.mrb[0].mxu0
      %v1697 = vadd.f32 0.0, %v1696
      %v1698 = vpop.f32.mrb[0].mxu0
      %v1699 = vpop.f32.mrb[0].mxu0
      %v1700 = vadd.f32 0.0, %v1699
      %v1701 = vpop.f32.mrb[0].mxu0
      %1702 = vmatprep.mubr.bf16.mxu0 %v1088
      %1703 = vmatmul.mubr.bf16.gmra.mrb[0].mxu0 %v901
      %v1704 = vpop.f32.mrb[0].mxu0
      %v1705 = vadd.f32 0.0, %v1704
      %v1706 = vpop.f32.mrb[0].mxu0
      %v1707 = vpop.f32.mrb[0].mxu0
      %v1708 = vadd.f32 0.0, %v1707
      %v1709 = vpop.f32.mrb[0].mxu0
      %1710 = vmatprep.mubr.bf16.mxu0 %v1091
      %1711 = vmatmul.mubr.bf16.gmra.mrb[0].mxu0 %v904
      %v1712 = vpop.f32.mrb[0].mxu0
      %v1713 = vadd.f32 0.0, %v1712
      %v1714 = vpop.f32.mrb[0].mxu0
      %v1715 = vpop.f32.mrb[0].mxu0
      %v1716 = vadd.f32 0.0, %v1715
      %v1717 = vpop.f32.mrb[0].mxu0
      %1718 = vmatprep.mubr.bf16.mxu0 %v1094
      %1719 = vmatmul.mubr.bf16.gmra.mrb[0].mxu0 %v907
      %v1720 = vpop.f32.mrb[0].mxu0
      %v1721 = vadd.f32 0.0, %v1720
      %v1722 = vpop.f32.mrb[0].mxu0
      %v1723 = vpop.f32.mrb[0].mxu0
      %v1724 = vadd.f32 0.0, %v1723
      %v1725 = vpop.f32.mrb[0].mxu0
      %1726 = vmatprep.mubr.bf16.mxu0 %v1097
      %1727 = vmatmul.mubr.bf16.gmra.mrb[0].mxu0 %v910
      %v1728 = vpop.f32.mrb[0].mxu0
      %v1729 = vadd.f32 0.0, %v1728
      %v1730 = vpop.f32.mrb[0].mxu0
      %v1731 = vpop.f32.mrb[0].mxu0
      %v1732 = vadd.f32 0.0, %v1731
      %v1733 = vpop.f32.mrb[0].mxu0
      %1734 = vmatprep.mubr.bf16.mxu0 %v1100
      %1735 = vmatmul.mubr.bf16.gmra.mrb[0].mxu0 %v913
      %v1736 = vpop.f32.mrb[0].mxu0
      %v1737 = vadd.f32 0.0, %v1736
      %v1738 = vpop.f32.mrb[0].mxu0
      %v1739 = vpop.f32.mrb[0].mxu0
      %v1740 = vadd.f32 0.0, %v1739
      %v1741 = vpop.f32.mrb[0].mxu0
      %1742 = vmatprep.mubr.bf16.mxu0 %v1103
      %1743 = vmatmul.mubr.bf16.gmra.mrb[0].mxu0 %v916
      %v1744 = vpop.f32.mrb[0].mxu0
      %v1745 = vadd.f32 0.0, %v1744
      %v1746 = vpop.f32.mrb[0].mxu0
      %v1747 = vpop.f32.mrb[0].mxu0
      %v1748 = vadd.f32 0.0, %v1747
      %v1749 = vpop.f32.mrb[0].mxu0
      %1750 = vmatprep.mubr.bf16.mxu0 %v1106
      %1751 = vmatmul.mubr.bf16.gmra.mrb[0].mxu0 %v919
      %v1752 = vpop.f32.mrb[0].mxu0
      %v1753 = vadd.f32 0.0, %v1752
      %v1754 = vpop.f32.mrb[0].mxu0
      %v1755 = vpop.f32.mrb[0].mxu0
      %v1756 = vadd.f32 0.0, %v1755
      %v1757 = vpop.f32.mrb[0].mxu0
      %1758 = vmatprep.mubr.bf16.mxu0 %v1109
      %1759 = vmatmul.mubr.bf16.gmra.mrb[0].mxu0 %v922
      %v1760 = vpop.f32.mrb[0].mxu0
      %v1761 = vadd.f32 0.0, %v1760
      %v1762 = vpop.f32.mrb[0].mxu0
      %v1763 = vpop.f32.mrb[0].mxu0
      %v1764 = vadd.f32 0.0, %v1763
      %v1765 = vpop.f32.mrb[0].mxu0
      %1766 = vmatprep.mubr.bf16.mxu0 %v1112
      %1767 = vmatmul.mubr.bf16.gmra.mrb[0].mxu0 %v925
      %v1768 = vpop.f32.mrb[0].mxu0
      %v1769 = vadd.f32 0.0, %v1768
      %v1770 = vpop.f32.mrb[0].mxu0
      %v1771 = vpop.f32.mrb[0].mxu0
      %v1772 = vadd.f32 0.0, %v1771
      %v1773 = vpop.f32.mrb[0].mxu0
      %1774 = vmatprep.mubr.bf16.mxu0 %v1115
      %1775 = vmatmul.mubr.bf16.gmra.mrb[0].mxu0 %v928
      %v1776 = vpop.f32.mrb[0].mxu0
      %v1777 = vadd.f32 0.0, %v1776
      %v1778 = vpop.f32.mrb[0].mxu0
      %v1779 = vpop.f32.mrb[0].mxu0
      %v1780 = vadd.f32 0.0, %v1779
      %v1781 = vpop.f32.mrb[0].mxu0
      %1782 = vmatprep.mubr.bf16.mxu0 %v1118
      %1783 = vmatmul.mubr.bf16.gmra.mrb[0].mxu0 %v974
      %v1784 = vpop.f32.mrb[0].mxu0
      %v1785 = vadd.f32 0.0, %v1784
      %v1786 = vpop.f32.mrb[0].mxu0
      %v1787 = vpop.f32.mrb[0].mxu0
      %v1788 = vadd.f32 0.0, %v1787
      %v1789 = vpop.f32.mrb[0].mxu0
      %1790 = vmatprep.mubr.bf16.mxu0 %v1636
      %1791 = vmatmul.mubr.bf16.gmra.mrb[0].mxu0 %v1537
      %v1792 = vpop.f32.mrb[0].mxu0
      %v1793 = vadd.f32 0.0, %v1792
      %v1794 = vpop.f32.mrb[0].mxu0
      %v1795 = vpop.f32.mrb[0].mxu0
      %v1796 = vadd.f32 0.0, %v1795
      %v1797 = vpop.f32.mrb[0].mxu0
      %1798 = vdwg.mxu0
      %v1799 = vadd.f32 %v1391, %v1673
      %v1800 = vadd.f32 %v1394, %v1676
      %v1801 = vadd.f32 %v1399, %v1681
      %v1802 = vadd.f32 %v1402, %v1684
      %v1803 = vadd.f32 %v1407, %v1689
      %v1804 = vadd.f32 %v1410, %v1692
      %v1805 = vadd.f32 %v1415, %v1697
      %v1806 = vadd.f32 %v1418, %v1700
      %v1807 = vadd.f32 %v1423, %v1705
      %v1808 = vadd.f32 %v1426, %v1708
      %v1809 = vadd.f32 %v1431, %v1713
      %v1810 = vadd.f32 %v1434, %v1716
      %v1811 = vadd.f32 %v1439, %v1721
      %v1812 = vadd.f32 %v1442, %v1724
      %v1813 = vadd.f32 %v1447, %v1729
      %v1814 = vadd.f32 %v1450, %v1732
      %v1815 = vadd.f32 %v1455, %v1737
      %v1816 = vadd.f32 %v1458, %v1740
      %v1817 = vadd.f32 %v1463, %v1745
      %v1818 = vadd.f32 %v1466, %v1748
      %v1819 = vadd.f32 %v1471, %v1753
      %v1820 = vadd.f32 %v1474, %v1756
      %v1821 = vadd.f32 %v1479, %v1761
      %v1822 = vadd.f32 %v1482, %v1764
      %v1823 = vadd.f32 %v1487, %v1769
      %v1824 = vadd.f32 %v1490, %v1772
      %v1825 = vadd.f32 %v1495, %v1777
      %v1826 = vadd.f32 %v1498, %v1780
      %v1827 = vadd.f32 %v1503, %v1785
      %v1828 = vadd.f32 %v1506, %v1788
      %v1829 = vadd.f32 %v1511, %v1793
      %v1830 = vadd.f32 %v1514, %v1796
      %v1831 = vld [vmem:[%s2] sm:$0x1]
      %v1833 = vlaneseq
      %v1834 = vshrl.u32 %v1833, 7
      %v1835 = vsub.s32 0, %v1834
      %v1836 = vrot.slane %v1831, %v1835
      %v1838 = vadd.f32 %v1799, %v1836
      %v1839 = vadd.f32 %v1800, %v1836
      %v1840 = vadd.f32 %v1801, %v1836
      %v1841 = vadd.f32 %v1802, %v1836
      %v1842 = vadd.f32 %v1803, %v1836
      %v1843 = vadd.f32 %v1804, %v1836
      %v1844 = vadd.f32 %v1805, %v1836
      %v1845 = vadd.f32 %v1806, %v1836
      %v1846 = vadd.f32 %v1807, %v1836
      %v1847 = vadd.f32 %v1808, %v1836
      %v1848 = vadd.f32 %v1809, %v1836
      %v1849 = vadd.f32 %v1810, %v1836
      %v1850 = vadd.f32 %v1811, %v1836
      %v1851 = vadd.f32 %v1812, %v1836
      %v1852 = vadd.f32 %v1813, %v1836
      %v1853 = vadd.f32 %v1814, %v1836
      %v1854 = vadd.f32 %v1815, %v1836
      %v1855 = vadd.f32 %v1816, %v1836
      %v1856 = vadd.f32 %v1817, %v1836
      %v1857 = vadd.f32 %v1818, %v1836
      %v1858 = vadd.f32 %v1819, %v1836
      %v1859 = vadd.f32 %v1820, %v1836
      %v1860 = vadd.f32 %v1821, %v1836
      %v1861 = vadd.f32 %v1822, %v1836
      %v1862 = vadd.f32 %v1823, %v1836
      %v1863 = vadd.f32 %v1824, %v1836
      %v1864 = vadd.f32 %v1825, %v1836
      %v1865 = vadd.f32 %v1826, %v1836
      %v1866 = vadd.f32 %v1827, %v1836
      %v1867 = vadd.f32 %v1828, %v1836
      %v1868 = vadd.f32 %v1829, %v1836
      %v1869 = vadd.f32 %v1830, %v1836
      %v1870 = vmax.f32 %v1838, 0.0
      %v1871 = vmax.f32 %v1839, 0.0
      %v1872 = vmax.f32 %v1840, 0.0
      %v1873 = vmax.f32 %v1841, 0.0
      %v1874 = vmax.f32 %v1842, 0.0
      %v1875 = vmax.f32 %v1843, 0.0
      %v1876 = vmax.f32 %v1844, 0.0
      %v1877 = vmax.f32 %v1845, 0.0
      %v1878 = vmax.f32 %v1846, 0.0
      %v1879 = vmax.f32 %v1847, 0.0
      %v1880 = vmax.f32 %v1848, 0.0
      %v1881 = vmax.f32 %v1849, 0.0
      %v1882 = vmax.f32 %v1850, 0.0
      %v1883 = vmax.f32 %v1851, 0.0
      %v1884 = vmax.f32 %v1852, 0.0
      %v1885 = vmax.f32 %v1853, 0.0
      %v1886 = vmax.f32 %v1854, 0.0
      %v1887 = vmax.f32 %v1855, 0.0
      %v1888 = vmax.f32 %v1856, 0.0
      %v1889 = vmax.f32 %v1857, 0.0
      %v1890 = vmax.f32 %v1858, 0.0
      %v1891 = vmax.f32 %v1859, 0.0
      %v1892 = vmax.f32 %v1860, 0.0
      %v1893 = vmax.f32 %v1861, 0.0
      %v1894 = vmax.f32 %v1862, 0.0
      %v1895 = vmax.f32 %v1863, 0.0
      %v1896 = vmax.f32 %v1864, 0.0
      %v1897 = vmax.f32 %v1865, 0.0
      %v1898 = vmax.f32 %v1866, 0.0
      %v1899 = vmax.f32 %v1867, 0.0
      %v1900 = vmax.f32 %v1868, 0.0
      %v1901 = vmax.f32 %v1869, 0.0
      %v1902 = vsel %vm881, %v1870, -inf
      %v1903 = vsel %vm881, %v1872, -inf
      %v1904 = vmax.f32 %v1902, %v1903
      %v1905 = vsel %vm881, %v1871, -inf
      %v1906 = vsel %vm881, %v1873, -inf
      %v1907 = vmax.f32 %v1905, %v1906
      %v1908 = vsel %vm881, %v1874, -inf
      %v1909 = vsel %vm881, %v1876, -inf
      %v1910 = vmax.f32 %v1908, %v1909
      %v1911 = vsel %vm881, %v1875, -inf
      %v1912 = vsel %vm881, %v1877, -inf
      %v1913 = vmax.f32 %v1911, %v1912
      %v1914 = vsel %vm881, %v1878, -inf
      %v1915 = vsel %vm881, %v1880, -inf
      %v1916 = vmax.f32 %v1914, %v1915
      %v1917 = vsel %vm881, %v1879, -inf
      %v1918 = vsel %vm881, %v1881, -inf
      %v1919 = vmax.f32 %v1917, %v1918
      %v1920 = vsel %vm881, %v1882, -inf
      %v1921 = vsel %vm881, %v1884, -inf
      %v1922 = vmax.f32 %v1920, %v1921
      %v1923 = vsel %vm881, %v1883, -inf
      %v1924 = vsel %vm881, %v1885, -inf
      %v1925 = vmax.f32 %v1923, %v1924
      %v1926 = vsel %vm881, %v1886, -inf
      %v1927 = vsel %vm881, %v1888, -inf
      %v1928 = vmax.f32 %v1926, %v1927
      %v1929 = vsel %vm881, %v1887, -inf
      %v1930 = vsel %vm881, %v1889, -inf
      %v1931 = vmax.f32 %v1929, %v1930
      %v1932 = vsel %vm881, %v1890, -inf
      %v1933 = vsel %vm881, %v1892, -inf
      %v1934 = vmax.f32 %v1932, %v1933
      %v1935 = vsel %vm881, %v1891, -inf
      %v1936 = vsel %vm881, %v1893, -inf
      %v1937 = vmax.f32 %v1935, %v1936
      %v1938 = vsel %vm881, %v1894, -inf
      %v1939 = vsel %vm881, %v1896, -inf
      %v1940 = vmax.f32 %v1938, %v1939
      %v1941 = vsel %vm881, %v1895, -inf
      %v1942 = vsel %vm881, %v1897, -inf
      %v1943 = vmax.f32 %v1941, %v1942
      %v1944 = vsel %vm881, %v1898, -inf
      %v1945 = vsel %vm881, %v1900, -inf
      %v1946 = vmax.f32 %v1944, %v1945
      %v1947 = vsel %vm881, %v1899, -inf
      %v1948 = vsel %vm881, %v1901, -inf
      %v1949 = vmax.f32 %v1947, %v1948
      %v1966 = vcombine.high %v1904, %v1904
      %v1968 = vunpack.c.l.s4 1983009808
      %v1969 = vunpack.c.0.s8 %v1968
      %v1970 = vlaneseq
      %v1971 = vshrl.u32 %v1970, 7
      %v1972 = vsub.s32 %v1969, %v1971
      %v1973 = vrot.slane %v1904, %v1972
      %v1975 = vunpack.c.l.s4 1983009808
      %v1976 = vunpack.c.0.s8 %v1975
      %v1977 = vlaneseq
      %v1978 = vshrl.u32 %v1977, 7
      %v1979 = vsub.s32 %v1976, %v1978
      %v1980 = vrot.slane %v1966, %v1979
      %v1981 = vcombine.high %v1973, %v1973
      %v1982 = vcombine.high %v1980, %v1980
      %v1983 = vcombine.high %v1907, %v1907
      %v1985 = vunpack.c.l.s4 1983009808
      %v1986 = vunpack.c.0.s8 %v1985
      %v1987 = vlaneseq
      %v1988 = vshrl.u32 %v1987, 7
      %v1989 = vsub.s32 %v1986, %v1988
      %v1990 = vrot.slane %v1907, %v1989
      %v1992 = vunpack.c.l.s4 1983009808
      %v1993 = vunpack.c.0.s8 %v1992
      %v1994 = vlaneseq
      %v1995 = vshrl.u32 %v1994, 7
      %v1996 = vsub.s32 %v1993, %v1995
      %v1997 = vrot.slane %v1983, %v1996
      %v1998 = vcombine.high %v1990, %v1990
      %v1999 = vcombine.high %v1997, %v1997
      %v2000 = vcombine.high %v1910, %v1910
      %v2002 = vunpack.c.l.s4 1983009808
      %v2003 = vunpack.c.0.s8 %v2002
      %v2004 = vlaneseq
      %v2005 = vshrl.u32 %v2004, 7
      %v2006 = vsub.s32 %v2003, %v2005
      %v2007 = vrot.slane %v1910, %v2006
      %v2009 = vunpack.c.l.s4 1983009808
      %v2010 = vunpack.c.0.s8 %v2009
      %v2011 = vlaneseq
      %v2012 = vshrl.u32 %v2011, 7
      %v2013 = vsub.s32 %v2010, %v2012
      %v2014 = vrot.slane %v2000, %v2013
      %v2015 = vcombine.high %v2007, %v2007
      %v2016 = vcombine.high %v2014, %v2014
      %v2017 = vcombine.high %v1913, %v1913
      %v2019 = vunpack.c.l.s4 1983009808
      %v2020 = vunpack.c.0.s8 %v2019
      %v2021 = vlaneseq
      %v2022 = vshrl.u32 %v2021, 7
      %v2023 = vsub.s32 %v2020, %v2022
      %v2024 = vrot.slane %v1913, %v2023
      %v2026 = vunpack.c.l.s4 1983009808
      %v2027 = vunpack.c.0.s8 %v2026
      %v2028 = vlaneseq
      %v2029 = vshrl.u32 %v2028, 7
      %v2030 = vsub.s32 %v2027, %v2029
      %v2031 = vrot.slane %v2017, %v2030
      %v2032 = vcombine.high %v2024, %v2024
      %v2033 = vcombine.high %v2031, %v2031
      %v2034 = vcombine.high %v1916, %v1916
      %v2036 = vunpack.c.l.s4 1983009808
      %v2037 = vunpack.c.0.s8 %v2036
      %v2038 = vlaneseq
      %v2039 = vshrl.u32 %v2038, 7
      %v2040 = vsub.s32 %v2037, %v2039
      %v2041 = vrot.slane %v1916, %v2040
      %v2043 = vunpack.c.l.s4 1983009808
      %v2044 = vunpack.c.0.s8 %v2043
      %v2045 = vlaneseq
      %v2046 = vshrl.u32 %v2045, 7
      %v2047 = vsub.s32 %v2044, %v2046
      %v2048 = vrot.slane %v2034, %v2047
      %v2049 = vcombine.high %v2041, %v2041
      %v2050 = vcombine.high %v2048, %v2048
      %v2051 = vcombine.high %v1919, %v1919
      %v2053 = vunpack.c.l.s4 1983009808
      %v2054 = vunpack.c.0.s8 %v2053
      %v2055 = vlaneseq
      %v2056 = vshrl.u32 %v2055, 7
      %v2057 = vsub.s32 %v2054, %v2056
      %v2058 = vrot.slane %v1919, %v2057
      %v2060 = vunpack.c.l.s4 1983009808
      %v2061 = vunpack.c.0.s8 %v2060
      %v2062 = vlaneseq
      %v2063 = vshrl.u32 %v2062, 7
      %v2064 = vsub.s32 %v2061, %v2063
      %v2065 = vrot.slane %v2051, %v2064
      %v2066 = vcombine.high %v2058, %v2058
      %v2067 = vcombine.high %v2065, %v2065
      %v2068 = vcombine.high %v1922, %v1922
      %v2070 = vunpack.c.l.s4 1983009808
      %v2071 = vunpack.c.0.s8 %v2070
      %v2072 = vlaneseq
      %v2073 = vshrl.u32 %v2072, 7
      %v2074 = vsub.s32 %v2071, %v2073
      %v2075 = vrot.slane %v1922, %v2074
      %v2077 = vunpack.c.l.s4 1983009808
      %v2078 = vunpack.c.0.s8 %v2077
      %v2079 = vlaneseq
      %v2080 = vshrl.u32 %v2079, 7
      %v2081 = vsub.s32 %v2078, %v2080
      %v2082 = vrot.slane %v2068, %v2081
      %v2083 = vcombine.high %v2075, %v2075
      %v2084 = vcombine.high %v2082, %v2082
      %v2085 = vcombine.high %v1925, %v1925
      %v2087 = vunpack.c.l.s4 1983009808
      %v2088 = vunpack.c.0.s8 %v2087
      %v2089 = vlaneseq
      %v2090 = vshrl.u32 %v2089, 7
      %v2091 = vsub.s32 %v2088, %v2090
      %v2092 = vrot.slane %v1925, %v2091
      %v2094 = vunpack.c.l.s4 1983009808
      %v2095 = vunpack.c.0.s8 %v2094
      %v2096 = vlaneseq
      %v2097 = vshrl.u32 %v2096, 7
      %v2098 = vsub.s32 %v2095, %v2097
      %v2099 = vrot.slane %v2085, %v2098
      %v2100 = vcombine.high %v2092, %v2092
      %v2101 = vcombine.high %v2099, %v2099
      %v2102 = vcombine.high %v1928, %v1928
      %v2104 = vunpack.c.l.s4 1983009808
      %v2105 = vunpack.c.0.s8 %v2104
      %v2106 = vlaneseq
      %v2107 = vshrl.u32 %v2106, 7
      %v2108 = vsub.s32 %v2105, %v2107
      %v2109 = vrot.slane %v1928, %v2108
      %v2111 = vunpack.c.l.s4 1983009808
      %v2112 = vunpack.c.0.s8 %v2111
      %v2113 = vlaneseq
      %v2114 = vshrl.u32 %v2113, 7
      %v2115 = vsub.s32 %v2112, %v2114
      %v2116 = vrot.slane %v2102, %v2115
      %v2117 = vcombine.high %v2109, %v2109
      %v2118 = vcombine.high %v2116, %v2116
      %v2119 = vcombine.high %v1931, %v1931
      %v2121 = vunpack.c.l.s4 1983009808
      %v2122 = vunpack.c.0.s8 %v2121
      %v2123 = vlaneseq
      %v2124 = vshrl.u32 %v2123, 7
      %v2125 = vsub.s32 %v2122, %v2124
      %v2126 = vrot.slane %v1931, %v2125
      %v2128 = vunpack.c.l.s4 1983009808
      %v2129 = vunpack.c.0.s8 %v2128
      %v2130 = vlaneseq
      %v2131 = vshrl.u32 %v2130, 7
      %v2132 = vsub.s32 %v2129, %v2131
      %v2133 = vrot.slane %v2119, %v2132
      %v2134 = vcombine.high %v2126, %v2126
      %v2135 = vcombine.high %v2133, %v2133
      %v2136 = vcombine.high %v1934, %v1934
      %v2138 = vunpack.c.l.s4 1983009808
      %v2139 = vunpack.c.0.s8 %v2138
      %v2140 = vlaneseq
      %v2141 = vshrl.u32 %v2140, 7
      %v2142 = vsub.s32 %v2139, %v2141
      %v2143 = vrot.slane %v1934, %v2142
      %v2145 = vunpack.c.l.s4 1983009808
      %v2146 = vunpack.c.0.s8 %v2145
      %v2147 = vlaneseq
      %v2148 = vshrl.u32 %v2147, 7
      %v2149 = vsub.s32 %v2146, %v2148
      %v2150 = vrot.slane %v2136, %v2149
      %v2151 = vcombine.high %v2143, %v2143
      %v2152 = vcombine.high %v2150, %v2150
      %v2153 = vcombine.high %v1937, %v1937
      %v2155 = vunpack.c.l.s4 1983009808
      %v2156 = vunpack.c.0.s8 %v2155
      %v2157 = vlaneseq
      %v2158 = vshrl.u32 %v2157, 7
      %v2159 = vsub.s32 %v2156, %v2158
      %v2160 = vrot.slane %v1937, %v2159
      %v2162 = vunpack.c.l.s4 1983009808
      %v2163 = vunpack.c.0.s8 %v2162
      %v2164 = vlaneseq
      %v2165 = vshrl.u32 %v2164, 7
      %v2166 = vsub.s32 %v2163, %v2165
      %v2167 = vrot.slane %v2153, %v2166
      %v2168 = vcombine.high %v2160, %v2160
      %v2169 = vcombine.high %v2167, %v2167
      %v2170 = vcombine.high %v1940, %v1940
      %v2172 = vunpack.c.l.s4 1983009808
      %v2173 = vunpack.c.0.s8 %v2172
      %v2174 = vlaneseq
      %v2175 = vshrl.u32 %v2174, 7
      %v2176 = vsub.s32 %v2173, %v2175
      %v2177 = vrot.slane %v1940, %v2176
      %v2179 = vunpack.c.l.s4 1983009808
      %v2180 = vunpack.c.0.s8 %v2179
      %v2181 = vlaneseq
      %v2182 = vshrl.u32 %v2181, 7
      %v2183 = vsub.s32 %v2180, %v2182
      %v2184 = vrot.slane %v2170, %v2183
      %v2185 = vcombine.high %v2177, %v2177
      %v2186 = vcombine.high %v2184, %v2184
      %v2187 = vcombine.high %v1943, %v1943
      %v2189 = vunpack.c.l.s4 1983009808
      %v2190 = vunpack.c.0.s8 %v2189
      %v2191 = vlaneseq
      %v2192 = vshrl.u32 %v2191, 7
      %v2193 = vsub.s32 %v2190, %v2192
      %v2194 = vrot.slane %v1943, %v2193
      %v2196 = vunpack.c.l.s4 1983009808
      %v2197 = vunpack.c.0.s8 %v2196
      %v2198 = vlaneseq
      %v2199 = vshrl.u32 %v2198, 7
      %v2200 = vsub.s32 %v2197, %v2199
      %v2201 = vrot.slane %v2187, %v2200
      %v2202 = vcombine.high %v2194, %v2194
      %v2203 = vcombine.high %v2201, %v2201
      %v2204 = vcombine.high %v1946, %v1946
      %v2206 = vunpack.c.l.s4 1983009808
      %v2207 = vunpack.c.0.s8 %v2206
      %v2208 = vlaneseq
      %v2209 = vshrl.u32 %v2208, 7
      %v2210 = vsub.s32 %v2207, %v2209
      %v2211 = vrot.slane %v1946, %v2210
      %v2213 = vunpack.c.l.s4 1983009808
      %v2214 = vunpack.c.0.s8 %v2213
      %v2215 = vlaneseq
      %v2216 = vshrl.u32 %v2215, 7
      %v2217 = vsub.s32 %v2214, %v2216
      %v2218 = vrot.slane %v2204, %v2217
      %v2219 = vcombine.high %v2211, %v2211
      %v2220 = vcombine.high %v2218, %v2218
      %v2221 = vcombine.high %v1949, %v1949
      %v2223 = vunpack.c.l.s4 1983009808
      %v2224 = vunpack.c.0.s8 %v2223
      %v2225 = vlaneseq
      %v2226 = vshrl.u32 %v2225, 7
      %v2227 = vsub.s32 %v2224, %v2226
      %v2228 = vrot.slane %v1949, %v2227
      %v2230 = vunpack.c.l.s4 1983009808
      %v2231 = vunpack.c.0.s8 %v2230
      %v2232 = vlaneseq
      %v2233 = vshrl.u32 %v2232, 7
      %v2234 = vsub.s32 %v2231, %v2233
      %v2235 = vrot.slane %v2221, %v2234
      %v2236 = vcombine.high %v2228, %v2228
      %v2237 = vcombine.high %v2235, %v2235
      %vm2302 = vcmask 517120
      %v2303 = vsel %vm2302, %v1973, -inf
      %v2304 = vrot.slane %v2303, 4
      %v2305 = vmax.f32 %v2303, %v2304
      %v2306 = vrot.slane %v2305, 2
      %v2307 = vmax.f32 %v2305, %v2306
      %v2308 = vrot.slane %v2307, 1
      %v2309 = vmax.f32 %v2307, %v2308
      %v2310 = vsel %vm2302, %v1981, -inf
      %v2311 = vrot.slane %v2310, 4
      %v2312 = vmax.f32 %v2310, %v2311
      %v2313 = vrot.slane %v2312, 2
      %v2314 = vmax.f32 %v2312, %v2313
      %v2315 = vrot.slane %v2314, 1
      %v2316 = vmax.f32 %v2314, %v2315
      %v2317 = vsel %vm2302, %v1980, -inf
      %v2318 = vrot.slane %v2317, 4
      %v2319 = vmax.f32 %v2317, %v2318
      %v2320 = vrot.slane %v2319, 2
      %v2321 = vmax.f32 %v2319, %v2320
      %v2322 = vrot.slane %v2321, 1
      %v2323 = vmax.f32 %v2321, %v2322
      %v2324 = vsel %vm2302, %v1982, -inf
      %v2325 = vrot.slane %v2324, 4
      %v2326 = vmax.f32 %v2324, %v2325
      %v2327 = vrot.slane %v2326, 2
      %v2328 = vmax.f32 %v2326, %v2327
      %v2329 = vrot.slane %v2328, 1
      %v2330 = vmax.f32 %v2328, %v2329
      %v2331 = vsel %vm2302, %v1990, -inf
      %v2332 = vrot.slane %v2331, 4
      %v2333 = vmax.f32 %v2331, %v2332
      %v2334 = vrot.slane %v2333, 2
      %v2335 = vmax.f32 %v2333, %v2334
      %v2336 = vrot.slane %v2335, 1
      %v2337 = vmax.f32 %v2335, %v2336
      %v2338 = vsel %vm2302, %v1998, -inf
      %v2339 = vrot.slane %v2338, 4
      %v2340 = vmax.f32 %v2338, %v2339
      %v2341 = vrot.slane %v2340, 2
      %v2342 = vmax.f32 %v2340, %v2341
      %v2343 = vrot.slane %v2342, 1
      %v2344 = vmax.f32 %v2342, %v2343
      %v2345 = vsel %vm2302, %v1997, -inf
      %v2346 = vrot.slane %v2345, 4
      %v2347 = vmax.f32 %v2345, %v2346
      %v2348 = vrot.slane %v2347, 2
      %v2349 = vmax.f32 %v2347, %v2348
      %v2350 = vrot.slane %v2349, 1
      %v2351 = vmax.f32 %v2349, %v2350
      %v2352 = vsel %vm2302, %v1999, -inf
      %v2353 = vrot.slane %v2352, 4
      %v2354 = vmax.f32 %v2352, %v2353
      %v2355 = vrot.slane %v2354, 2
      %v2356 = vmax.f32 %v2354, %v2355
      %v2357 = vrot.slane %v2356, 1
      %v2358 = vmax.f32 %v2356, %v2357
      %v2359 = vsel %vm2302, %v2007, -inf
      %v2360 = vrot.slane %v2359, 4
      %v2361 = vmax.f32 %v2359, %v2360
      %v2362 = vrot.slane %v2361, 2
      %v2363 = vmax.f32 %v2361, %v2362
      %v2364 = vrot.slane %v2363, 1
      %v2365 = vmax.f32 %v2363, %v2364
      %v2366 = vsel %vm2302, %v2015, -inf
      %v2367 = vrot.slane %v2366, 4
      %v2368 = vmax.f32 %v2366, %v2367
      %v2369 = vrot.slane %v2368, 2
      %v2370 = vmax.f32 %v2368, %v2369
      %v2371 = vrot.slane %v2370, 1
      %v2372 = vmax.f32 %v2370, %v2371
      %v2373 = vsel %vm2302, %v2014, -inf
      %v2374 = vrot.slane %v2373, 4
      %v2375 = vmax.f32 %v2373, %v2374
      %v2376 = vrot.slane %v2375, 2
      %v2377 = vmax.f32 %v2375, %v2376
      %v2378 = vrot.slane %v2377, 1
      %v2379 = vmax.f32 %v2377, %v2378
      %v2380 = vsel %vm2302, %v2016, -inf
      %v2381 = vrot.slane %v2380, 4
      %v2382 = vmax.f32 %v2380, %v2381
      %v2383 = vrot.slane %v2382, 2
      %v2384 = vmax.f32 %v2382, %v2383
      %v2385 = vrot.slane %v2384, 1
      %v2386 = vmax.f32 %v2384, %v2385
      %v2387 = vsel %vm2302, %v2024, -inf
      %v2388 = vrot.slane %v2387, 4
      %v2389 = vmax.f32 %v2387, %v2388
      %v2390 = vrot.slane %v2389, 2
      %v2391 = vmax.f32 %v2389, %v2390
      %v2392 = vrot.slane %v2391, 1
      %v2393 = vmax.f32 %v2391, %v2392
      %v2394 = vsel %vm2302, %v2032, -inf
      %v2395 = vrot.slane %v2394, 4
      %v2396 = vmax.f32 %v2394, %v2395
      %v2397 = vrot.slane %v2396, 2
      %v2398 = vmax.f32 %v2396, %v2397
      %v2399 = vrot.slane %v2398, 1
      %v2400 = vmax.f32 %v2398, %v2399
      %v2401 = vsel %vm2302, %v2031, -inf
      %v2402 = vrot.slane %v2401, 4
      %v2403 = vmax.f32 %v2401, %v2402
      %v2404 = vrot.slane %v2403, 2
      %v2405 = vmax.f32 %v2403, %v2404
      %v2406 = vrot.slane %v2405, 1
      %v2407 = vmax.f32 %v2405, %v2406
      %v2408 = vsel %vm2302, %v2033, -inf
      %v2409 = vrot.slane %v2408, 4
      %v2410 = vmax.f32 %v2408, %v2409
      %v2411 = vrot.slane %v2410, 2
      %v2412 = vmax.f32 %v2410, %v2411
      %v2413 = vrot.slane %v2412, 1
      %v2414 = vmax.f32 %v2412, %v2413
      %v2415 = vsel %vm2302, %v2041, -inf
      %v2416 = vrot.slane %v2415, 4
      %v2417 = vmax.f32 %v2415, %v2416
      %v2418 = vrot.slane %v2417, 2
      %v2419 = vmax.f32 %v2417, %v2418
      %v2420 = vrot.slane %v2419, 1
      %v2421 = vmax.f32 %v2419, %v2420
      %v2422 = vsel %vm2302, %v2049, -inf
      %v2423 = vrot.slane %v2422, 4
      %v2424 = vmax.f32 %v2422, %v2423
      %v2425 = vrot.slane %v2424, 2
      %v2426 = vmax.f32 %v2424, %v2425
      %v2427 = vrot.slane %v2426, 1
      %v2428 = vmax.f32 %v2426, %v2427
      %v2429 = vsel %vm2302, %v2048, -inf
      %v2430 = vrot.slane %v2429, 4
      %v2431 = vmax.f32 %v2429, %v2430
      %v2432 = vrot.slane %v2431, 2
      %v2433 = vmax.f32 %v2431, %v2432
      %v2434 = vrot.slane %v2433, 1
      %v2435 = vmax.f32 %v2433, %v2434
      %v2436 = vsel %vm2302, %v2050, -inf
      %v2437 = vrot.slane %v2436, 4
      %v2438 = vmax.f32 %v2436, %v2437
      %v2439 = vrot.slane %v2438, 2
      %v2440 = vmax.f32 %v2438, %v2439
      %v2441 = vrot.slane %v2440, 1
      %v2442 = vmax.f32 %v2440, %v2441
      %v2443 = vsel %vm2302, %v2058, -inf
      %v2444 = vrot.slane %v2443, 4
      %v2445 = vmax.f32 %v2443, %v2444
      %v2446 = vrot.slane %v2445, 2
      %v2447 = vmax.f32 %v2445, %v2446
      %v2448 = vrot.slane %v2447, 1
      %v2449 = vmax.f32 %v2447, %v2448
      %v2450 = vsel %vm2302, %v2066, -inf
      %v2451 = vrot.slane %v2450, 4
      %v2452 = vmax.f32 %v2450, %v2451
      %v2453 = vrot.slane %v2452, 2
      %v2454 = vmax.f32 %v2452, %v2453
      %v2455 = vrot.slane %v2454, 1
      %v2456 = vmax.f32 %v2454, %v2455
      %v2457 = vsel %vm2302, %v2065, -inf
      %v2458 = vrot.slane %v2457, 4
      %v2459 = vmax.f32 %v2457, %v2458
      %v2460 = vrot.slane %v2459, 2
      %v2461 = vmax.f32 %v2459, %v2460
      %v2462 = vrot.slane %v2461, 1
      %v2463 = vmax.f32 %v2461, %v2462
      %v2464 = vsel %vm2302, %v2067, -inf
      %v2465 = vrot.slane %v2464, 4
      %v2466 = vmax.f32 %v2464, %v2465
      %v2467 = vrot.slane %v2466, 2
      %v2468 = vmax.f32 %v2466, %v2467
      %v2469 = vrot.slane %v2468, 1
      %v2470 = vmax.f32 %v2468, %v2469
      %v2471 = vsel %vm2302, %v2075, -inf
      %v2472 = vrot.slane %v2471, 4
      %v2473 = vmax.f32 %v2471, %v2472
      %v2474 = vrot.slane %v2473, 2
      %v2475 = vmax.f32 %v2473, %v2474
      %v2476 = vrot.slane %v2475, 1
      %v2477 = vmax.f32 %v2475, %v2476
      %v2478 = vsel %vm2302, %v2083, -inf
      %v2479 = vrot.slane %v2478, 4
      %v2480 = vmax.f32 %v2478, %v2479
      %v2481 = vrot.slane %v2480, 2
      %v2482 = vmax.f32 %v2480, %v2481
      %v2483 = vrot.slane %v2482, 1
      %v2484 = vmax.f32 %v2482, %v2483
      %v2485 = vsel %vm2302, %v2082, -inf
      %v2486 = vrot.slane %v2485, 4
      %v2487 = vmax.f32 %v2485, %v2486
      %v2488 = vrot.slane %v2487, 2
      %v2489 = vmax.f32 %v2487, %v2488
      %v2490 = vrot.slane %v2489, 1
      %v2491 = vmax.f32 %v2489, %v2490
      %v2492 = vsel %vm2302, %v2084, -inf
      %v2493 = vrot.slane %v2492, 4
      %v2494 = vmax.f32 %v2492, %v2493
      %v2495 = vrot.slane %v2494, 2
      %v2496 = vmax.f32 %v2494, %v2495
      %v2497 = vrot.slane %v2496, 1
      %v2498 = vmax.f32 %v2496, %v2497
      %v2499 = vsel %vm2302, %v2092, -inf
      %v2500 = vrot.slane %v2499, 4
      %v2501 = vmax.f32 %v2499, %v2500
      %v2502 = vrot.slane %v2501, 2
      %v2503 = vmax.f32 %v2501, %v2502
      %v2504 = vrot.slane %v2503, 1
      %v2505 = vmax.f32 %v2503, %v2504
      %v2506 = vsel %vm2302, %v2100, -inf
      %v2507 = vrot.slane %v2506, 4
      %v2508 = vmax.f32 %v2506, %v2507
      %v2509 = vrot.slane %v2508, 2
      %v2510 = vmax.f32 %v2508, %v2509
      %v2511 = vrot.slane %v2510, 1
      %v2512 = vmax.f32 %v2510, %v2511
      %v2513 = vsel %vm2302, %v2099, -inf
      %v2514 = vrot.slane %v2513, 4
      %v2515 = vmax.f32 %v2513, %v2514
      %v2516 = vrot.slane %v2515, 2
      %v2517 = vmax.f32 %v2515, %v2516
      %v2518 = vrot.slane %v2517, 1
      %v2519 = vmax.f32 %v2517, %v2518
      %v2520 = vsel %vm2302, %v2101, -inf
      %v2521 = vrot.slane %v2520, 4
      %v2522 = vmax.f32 %v2520, %v2521
      %v2523 = vrot.slane %v2522, 2
      %v2524 = vmax.f32 %v2522, %v2523
      %v2525 = vrot.slane %v2524, 1
      %v2526 = vmax.f32 %v2524, %v2525
      %v2527 = vsel %vm2302, %v2109, -inf
      %v2528 = vrot.slane %v2527, 4
      %v2529 = vmax.f32 %v2527, %v2528
      %v2530 = vrot.slane %v2529, 2
      %v2531 = vmax.f32 %v2529, %v2530
      %v2532 = vrot.slane %v2531, 1
      %v2533 = vmax.f32 %v2531, %v2532
      %v2534 = vsel %vm2302, %v2117, -inf
      %v2535 = vrot.slane %v2534, 4
      %v2536 = vmax.f32 %v2534, %v2535
      %v2537 = vrot.slane %v2536, 2
      %v2538 = vmax.f32 %v2536, %v2537
      %v2539 = vrot.slane %v2538, 1
      %v2540 = vmax.f32 %v2538, %v2539
      %v2541 = vsel %vm2302, %v2116, -inf
      %v2542 = vrot.slane %v2541, 4
      %v2543 = vmax.f32 %v2541, %v2542
      %v2544 = vrot.slane %v2543, 2
      %v2545 = vmax.f32 %v2543, %v2544
      %v2546 = vrot.slane %v2545, 1
      %v2547 = vmax.f32 %v2545, %v2546
      %v2548 = vsel %vm2302, %v2118, -inf
      %v2549 = vrot.slane %v2548, 4
      %v2550 = vmax.f32 %v2548, %v2549
      %v2551 = vrot.slane %v2550, 2
      %v2552 = vmax.f32 %v2550, %v2551
      %v2553 = vrot.slane %v2552, 1
      %v2554 = vmax.f32 %v2552, %v2553
      %v2555 = vsel %vm2302, %v2126, -inf
      %v2556 = vrot.slane %v2555, 4
      %v2557 = vmax.f32 %v2555, %v2556
      %v2558 = vrot.slane %v2557, 2
      %v2559 = vmax.f32 %v2557, %v2558
      %v2560 = vrot.slane %v2559, 1
      %v2561 = vmax.f32 %v2559, %v2560
      %v2562 = vsel %vm2302, %v2134, -inf
      %v2563 = vrot.slane %v2562, 4
      %v2564 = vmax.f32 %v2562, %v2563
      %v2565 = vrot.slane %v2564, 2
      %v2566 = vmax.f32 %v2564, %v2565
      %v2567 = vrot.slane %v2566, 1
      %v2568 = vmax.f32 %v2566, %v2567
      %v2569 = vsel %vm2302, %v2133, -inf
      %v2570 = vrot.slane %v2569, 4
      %v2571 = vmax.f32 %v2569, %v2570
      %v2572 = vrot.slane %v2571, 2
      %v2573 = vmax.f32 %v2571, %v2572
      %v2574 = vrot.slane %v2573, 1
      %v2575 = vmax.f32 %v2573, %v2574
      %v2576 = vsel %vm2302, %v2135, -inf
      %v2577 = vrot.slane %v2576, 4
      %v2578 = vmax.f32 %v2576, %v2577
      %v2579 = vrot.slane %v2578, 2
      %v2580 = vmax.f32 %v2578, %v2579
      %v2581 = vrot.slane %v2580, 1
      %v2582 = vmax.f32 %v2580, %v2581
      %v2583 = vsel %vm2302, %v2143, -inf
      %v2584 = vrot.slane %v2583, 4
      %v2585 = vmax.f32 %v2583, %v2584
      %v2586 = vrot.slane %v2585, 2
      %v2587 = vmax.f32 %v2585, %v2586
      %v2588 = vrot.slane %v2587, 1
      %v2589 = vmax.f32 %v2587, %v2588
      %v2590 = vsel %vm2302, %v2151, -inf
      %v2591 = vrot.slane %v2590, 4
      %v2592 = vmax.f32 %v2590, %v2591
      %v2593 = vrot.slane %v2592, 2
      %v2594 = vmax.f32 %v2592, %v2593
      %v2595 = vrot.slane %v2594, 1
      %v2596 = vmax.f32 %v2594, %v2595
      %v2597 = vsel %vm2302, %v2150, -inf
      %v2598 = vrot.slane %v2597, 4
      %v2599 = vmax.f32 %v2597, %v2598
      %v2600 = vrot.slane %v2599, 2
      %v2601 = vmax.f32 %v2599, %v2600
      %v2602 = vrot.slane %v2601, 1
      %v2603 = vmax.f32 %v2601, %v2602
      %v2604 = vsel %vm2302, %v2152, -inf
      %v2605 = vrot.slane %v2604, 4
      %v2606 = vmax.f32 %v2604, %v2605
      %v2607 = vrot.slane %v2606, 2
      %v2608 = vmax.f32 %v2606, %v2607
      %v2609 = vrot.slane %v2608, 1
      %v2610 = vmax.f32 %v2608, %v2609
      %v2611 = vsel %vm2302, %v2160, -inf
      %v2612 = vrot.slane %v2611, 4
      %v2613 = vmax.f32 %v2611, %v2612
      %v2614 = vrot.slane %v2613, 2
      %v2615 = vmax.f32 %v2613, %v2614
      %v2616 = vrot.slane %v2615, 1
      %v2617 = vmax.f32 %v2615, %v2616
      %v2618 = vsel %vm2302, %v2168, -inf
      %v2619 = vrot.slane %v2618, 4
      %v2620 = vmax.f32 %v2618, %v2619
      %v2621 = vrot.slane %v2620, 2
      %v2622 = vmax.f32 %v2620, %v2621
      %v2623 = vrot.slane %v2622, 1
      %v2624 = vmax.f32 %v2622, %v2623
      %v2625 = vsel %vm2302, %v2167, -inf
      %v2626 = vrot.slane %v2625, 4
      %v2627 = vmax.f32 %v2625, %v2626
      %v2628 = vrot.slane %v2627, 2
      %v2629 = vmax.f32 %v2627, %v2628
      %v2630 = vrot.slane %v2629, 1
      %v2631 = vmax.f32 %v2629, %v2630
      %v2632 = vsel %vm2302, %v2169, -inf
      %v2633 = vrot.slane %v2632, 4
      %v2634 = vmax.f32 %v2632, %v2633
      %v2635 = vrot.slane %v2634, 2
      %v2636 = vmax.f32 %v2634, %v2635
      %v2637 = vrot.slane %v2636, 1
      %v2638 = vmax.f32 %v2636, %v2637
      %v2639 = vsel %vm2302, %v2177, -inf
      %v2640 = vrot.slane %v2639, 4
      %v2641 = vmax.f32 %v2639, %v2640
      %v2642 = vrot.slane %v2641, 2
      %v2643 = vmax.f32 %v2641, %v2642
      %v2644 = vrot.slane %v2643, 1
      %v2645 = vmax.f32 %v2643, %v2644
      %v2646 = vsel %vm2302, %v2185, -inf
      %v2647 = vrot.slane %v2646, 4
      %v2648 = vmax.f32 %v2646, %v2647
      %v2649 = vrot.slane %v2648, 2
      %v2650 = vmax.f32 %v2648, %v2649
      %v2651 = vrot.slane %v2650, 1
      %v2652 = vmax.f32 %v2650, %v2651
      %v2653 = vsel %vm2302, %v2184, -inf
      %v2654 = vrot.slane %v2653, 4
      %v2655 = vmax.f32 %v2653, %v2654
      %v2656 = vrot.slane %v2655, 2
      %v2657 = vmax.f32 %v2655, %v2656
      %v2658 = vrot.slane %v2657, 1
      %v2659 = vmax.f32 %v2657, %v2658
      %v2660 = vsel %vm2302, %v2186, -inf
      %v2661 = vrot.slane %v2660, 4
      %v2662 = vmax.f32 %v2660, %v2661
      %v2663 = vrot.slane %v2662, 2
      %v2664 = vmax.f32 %v2662, %v2663
      %v2665 = vrot.slane %v2664, 1
      %v2666 = vmax.f32 %v2664, %v2665
      %v2667 = vsel %vm2302, %v2194, -inf
      %v2668 = vrot.slane %v2667, 4
      %v2669 = vmax.f32 %v2667, %v2668
      %v2670 = vrot.slane %v2669, 2
      %v2671 = vmax.f32 %v2669, %v2670
      %v2672 = vrot.slane %v2671, 1
      %v2673 = vmax.f32 %v2671, %v2672
      %v2674 = vsel %vm2302, %v2202, -inf
      %v2675 = vrot.slane %v2674, 4
      %v2676 = vmax.f32 %v2674, %v2675
      %v2677 = vrot.slane %v2676, 2
      %v2678 = vmax.f32 %v2676, %v2677
      %v2679 = vrot.slane %v2678, 1
      %v2680 = vmax.f32 %v2678, %v2679
      %v2681 = vsel %vm2302, %v2201, -inf
      %v2682 = vrot.slane %v2681, 4
      %v2683 = vmax.f32 %v2681, %v2682
      %v2684 = vrot.slane %v2683, 2
      %v2685 = vmax.f32 %v2683, %v2684
      %v2686 = vrot.slane %v2685, 1
      %v2687 = vmax.f32 %v2685, %v2686
      %v2688 = vsel %vm2302, %v2203, -inf
      %v2689 = vrot.slane %v2688, 4
      %v2690 = vmax.f32 %v2688, %v2689
      %v2691 = vrot.slane %v2690, 2
      %v2692 = vmax.f32 %v2690, %v2691
      %v2693 = vrot.slane %v2692, 1
      %v2694 = vmax.f32 %v2692, %v2693
      %v2695 = vsel %vm2302, %v2211, -inf
      %v2696 = vrot.slane %v2695, 4
      %v2697 = vmax.f32 %v2695, %v2696
      %v2698 = vrot.slane %v2697, 2
      %v2699 = vmax.f32 %v2697, %v2698
      %v2700 = vrot.slane %v2699, 1
      %v2701 = vmax.f32 %v2699, %v2700
      %v2702 = vsel %vm2302, %v2219, -inf
      %v2703 = vrot.slane %v2702, 4
      %v2704 = vmax.f32 %v2702, %v2703
      %v2705 = vrot.slane %v2704, 2
      %v2706 = vmax.f32 %v2704, %v2705
      %v2707 = vrot.slane %v2706, 1
      %v2708 = vmax.f32 %v2706, %v2707
      %v2709 = vsel %vm2302, %v2218, -inf
      %v2710 = vrot.slane %v2709, 4
      %v2711 = vmax.f32 %v2709, %v2710
      %v2712 = vrot.slane %v2711, 2
      %v2713 = vmax.f32 %v2711, %v2712
      %v2714 = vrot.slane %v2713, 1
      %v2715 = vmax.f32 %v2713, %v2714
      %v2716 = vsel %vm2302, %v2220, -inf
      %v2717 = vrot.slane %v2716, 4
      %v2718 = vmax.f32 %v2716, %v2717
      %v2719 = vrot.slane %v2718, 2
      %v2720 = vmax.f32 %v2718, %v2719
      %v2721 = vrot.slane %v2720, 1
      %v2722 = vmax.f32 %v2720, %v2721
      %v2723 = vsel %vm2302, %v2228, -inf
      %v2724 = vrot.slane %v2723, 4
      %v2725 = vmax.f32 %v2723, %v2724
      %v2726 = vrot.slane %v2725, 2
      %v2727 = vmax.f32 %v2725, %v2726
      %v2728 = vrot.slane %v2727, 1
      %v2729 = vmax.f32 %v2727, %v2728
      %v2730 = vsel %vm2302, %v2236, -inf
      %v2731 = vrot.slane %v2730, 4
      %v2732 = vmax.f32 %v2730, %v2731
      %v2733 = vrot.slane %v2732, 2
      %v2734 = vmax.f32 %v2732, %v2733
      %v2735 = vrot.slane %v2734, 1
      %v2736 = vmax.f32 %v2734, %v2735
      %v2737 = vsel %vm2302, %v2235, -inf
      %v2738 = vrot.slane %v2737, 4
      %v2739 = vmax.f32 %v2737, %v2738
      %v2740 = vrot.slane %v2739, 2
      %v2741 = vmax.f32 %v2739, %v2740
      %v2742 = vrot.slane %v2741, 1
      %v2743 = vmax.f32 %v2741, %v2742
      %v2744 = vsel %vm2302, %v2237, -inf
      %v2745 = vrot.slane %v2744, 4
      %v2746 = vmax.f32 %v2744, %v2745
      %v2747 = vrot.slane %v2746, 2
      %v2748 = vmax.f32 %v2746, %v2747
      %v2749 = vrot.slane %v2748, 1
      %v2750 = vmax.f32 %v2748, %v2749
      %v2751 = vpack.c.bf16 %v2309, %v2309
      %v2752 = vpack.c.bf16 %v2316, %v2316
      %v2753 = vpack.c.bf16 %v2323, %v2323
      %v2754 = vpack.c.bf16 %v2330, %v2330
      %v2755 = vpack.c.bf16 %v2337, %v2337
      %v2756 = vpack.c.bf16 %v2344, %v2344
      %v2757 = vpack.c.bf16 %v2351, %v2351
      %v2758 = vpack.c.bf16 %v2358, %v2358
      %v2759 = vpack.c.bf16 %v2365, %v2365
      %v2760 = vpack.c.bf16 %v2372, %v2372
      %v2761 = vpack.c.bf16 %v2379, %v2379
      %v2762 = vpack.c.bf16 %v2386, %v2386
      %v2763 = vpack.c.bf16 %v2393, %v2393
      %v2764 = vpack.c.bf16 %v2400, %v2400
      %v2765 = vpack.c.bf16 %v2407, %v2407
      %v2766 = vpack.c.bf16 %v2414, %v2414
      %v2767 = vpack.c.bf16 %v2421, %v2421
      %v2768 = vpack.c.bf16 %v2428, %v2428
      %v2769 = vpack.c.bf16 %v2435, %v2435
      %v2770 = vpack.c.bf16 %v2442, %v2442
      %v2771 = vpack.c.bf16 %v2449, %v2449
      %v2772 = vpack.c.bf16 %v2456, %v2456
      %v2773 = vpack.c.bf16 %v2463, %v2463
      %v2774 = vpack.c.bf16 %v2470, %v2470
      %v2775 = vpack.c.bf16 %v2477, %v2477
      %v2776 = vpack.c.bf16 %v2484, %v2484
      %v2777 = vpack.c.bf16 %v2491, %v2491
      %v2778 = vpack.c.bf16 %v2498, %v2498
      %v2779 = vpack.c.bf16 %v2505, %v2505
      %v2780 = vpack.c.bf16 %v2512, %v2512
      %v2781 = vpack.c.bf16 %v2519, %v2519
      %v2782 = vpack.c.bf16 %v2526, %v2526
      %v2783 = vpack.c.bf16 %v2533, %v2533
      %v2784 = vpack.c.bf16 %v2540, %v2540
      %v2785 = vpack.c.bf16 %v2547, %v2547
      %v2786 = vpack.c.bf16 %v2554, %v2554
      %v2787 = vpack.c.bf16 %v2561, %v2561
      %v2788 = vpack.c.bf16 %v2568, %v2568
      %v2789 = vpack.c.bf16 %v2575, %v2575
      %v2790 = vpack.c.bf16 %v2582, %v2582
      %v2791 = vpack.c.bf16 %v2589, %v2589
      %v2792 = vpack.c.bf16 %v2596, %v2596
      %v2793 = vpack.c.bf16 %v2603, %v2603
      %v2794 = vpack.c.bf16 %v2610, %v2610
      %v2795 = vpack.c.bf16 %v2617, %v2617
      %v2796 = vpack.c.bf16 %v2624, %v2624
      %v2797 = vpack.c.bf16 %v2631, %v2631
      %v2798 = vpack.c.bf16 %v2638, %v2638
      %v2799 = vpack.c.bf16 %v2645, %v2645
      %v2800 = vpack.c.bf16 %v2652, %v2652
      %v2801 = vpack.c.bf16 %v2659, %v2659
      %v2802 = vpack.c.bf16 %v2666, %v2666
      %v2803 = vpack.c.bf16 %v2673, %v2673
      %v2804 = vpack.c.bf16 %v2680, %v2680
      %v2805 = vpack.c.bf16 %v2687, %v2687
      %v2806 = vpack.c.bf16 %v2694, %v2694
      %v2807 = vpack.c.bf16 %v2701, %v2701
      %v2808 = vpack.c.bf16 %v2708, %v2708
      %v2809 = vpack.c.bf16 %v2715, %v2715
      %v2810 = vpack.c.bf16 %v2722, %v2722
      %v2811 = vpack.c.bf16 %v2729, %v2729
      %v2812 = vpack.c.bf16 %v2736, %v2736
      %v2813 = vpack.c.bf16 %v2743, %v2743
      %v2814 = vpack.c.bf16 %v2750, %v2750
      %v2879 = vunpack.c.l.b16 %v2751
      %v2880 = vunpack.c.l.b16 %v2752
      %v2881 = vunpack.c.l.b16 %v2753
      %v2882 = vunpack.c.l.b16 %v2754
      %v2883 = vunpack.c.l.b16 %v2755
      %v2884 = vunpack.c.l.b16 %v2756
      %v2885 = vunpack.c.l.b16 %v2757
      %v2886 = vunpack.c.l.b16 %v2758
      %v2887 = vunpack.c.l.b16 %v2759
      %v2888 = vunpack.c.l.b16 %v2760
      %v2889 = vunpack.c.l.b16 %v2761
      %v2890 = vunpack.c.l.b16 %v2762
      %v2891 = vunpack.c.l.b16 %v2763
      %v2892 = vunpack.c.l.b16 %v2764
      %v2893 = vunpack.c.l.b16 %v2765
      %v2894 = vunpack.c.l.b16 %v2766
      %v2895 = vunpack.c.l.b16 %v2767
      %v2896 = vunpack.c.l.b16 %v2768
      %v2897 = vunpack.c.l.b16 %v2769
      %v2898 = vunpack.c.l.b16 %v2770
      %v2899 = vunpack.c.l.b16 %v2771
      %v2900 = vunpack.c.l.b16 %v2772
      %v2901 = vunpack.c.l.b16 %v2773
      %v2902 = vunpack.c.l.b16 %v2774
      %v2903 = vunpack.c.l.b16 %v2775
      %v2904 = vunpack.c.l.b16 %v2776
      %v2905 = vunpack.c.l.b16 %v2777
      %v2906 = vunpack.c.l.b16 %v2778
      %v2907 = vunpack.c.l.b16 %v2779
      %v2908 = vunpack.c.l.b16 %v2780
      %v2909 = vunpack.c.l.b16 %v2781
      %v2910 = vunpack.c.l.b16 %v2782
      %v2911 = vunpack.c.l.b16 %v2783
      %v2912 = vunpack.c.l.b16 %v2784
      %v2913 = vunpack.c.l.b16 %v2785
      %v2914 = vunpack.c.l.b16 %v2786
      %v2915 = vunpack.c.l.b16 %v2787
      %v2916 = vunpack.c.l.b16 %v2788
      %v2917 = vunpack.c.l.b16 %v2789
      %v2918 = vunpack.c.l.b16 %v2790
      %v2919 = vunpack.c.l.b16 %v2791
      %v2920 = vunpack.c.l.b16 %v2792
      %v2921 = vunpack.c.l.b16 %v2793
      %v2922 = vunpack.c.l.b16 %v2794
      %v2923 = vunpack.c.l.b16 %v2795
      %v2924 = vunpack.c.l.b16 %v2796
      %v2925 = vunpack.c.l.b16 %v2797
      %v2926 = vunpack.c.l.b16 %v2798
      %v2927 = vunpack.c.l.b16 %v2799
      %v2928 = vunpack.c.l.b16 %v2800
      %v2929 = vunpack.c.l.b16 %v2801
      %v2930 = vunpack.c.l.b16 %v2802
      %v2931 = vunpack.c.l.b16 %v2803
      %v2932 = vunpack.c.l.b16 %v2804
      %v2933 = vunpack.c.l.b16 %v2805
      %v2934 = vunpack.c.l.b16 %v2806
      %v2935 = vunpack.c.l.b16 %v2807
      %v2936 = vunpack.c.l.b16 %v2808
      %v2937 = vunpack.c.l.b16 %v2809
      %v2938 = vunpack.c.l.b16 %v2810
      %v2939 = vunpack.c.l.b16 %v2811
      %v2940 = vunpack.c.l.b16 %v2812
      %v2941 = vunpack.c.l.b16 %v2813
      %v2942 = vunpack.c.l.b16 %v2814
      %vm2943 = vcmask 1041409
      %v2944 = vsel %vm2943, %v2880, %v2879
      %vm2945 = vcmask 1042434
      %v2946 = vsel %vm2945, %v2881, %v2944
      %vm2947 = vcmask 1043459
      %v2948 = vsel %vm2947, %v2882, %v2946
      %vm2949 = vcmask 1044484
      %v2950 = vsel %vm2949, %v2883, %v2948
      %vm2951 = vcmask 1045509
      %v2952 = vsel %vm2951, %v2884, %v2950
      %vm2953 = vcmask 1046534
      %v2954 = vsel %vm2953, %v2885, %v2952
      %vm2955 = vcmask 1047559
      %v2956 = vsel %vm2955, %v2886, %v2954
      %v2957 = vsel %vm2943, %v2888, %v2887
      %v2958 = vsel %vm2945, %v2889, %v2957
      %v2959 = vsel %vm2947, %v2890, %v2958
      %v2960 = vsel %vm2949, %v2891, %v2959
      %v2961 = vsel %vm2951, %v2892, %v2960
      %v2962 = vsel %vm2953, %v2893, %v2961
      %v2963 = vsel %vm2955, %v2894, %v2962
      %v2964 = vsel %vm2943, %v2896, %v2895
      %v2965 = vsel %vm2945, %v2897, %v2964
      %v2966 = vsel %vm2947, %v2898, %v2965
      %v2967 = vsel %vm2949, %v2899, %v2966
      %v2968 = vsel %vm2951, %v2900, %v2967
      %v2969 = vsel %vm2953, %v2901, %v2968
      %v2970 = vsel %vm2955, %v2902, %v2969
      %v2971 = vsel %vm2943, %v2904, %v2903
      %v2972 = vsel %vm2945, %v2905, %v2971
      %v2973 = vsel %vm2947, %v2906, %v2972
      %v2974 = vsel %vm2949, %v2907, %v2973
      %v2975 = vsel %vm2951, %v2908, %v2974
      %v2976 = vsel %vm2953, %v2909, %v2975
      %v2977 = vsel %vm2955, %v2910, %v2976
      %v2978 = vsel %vm2943, %v2912, %v2911
      %v2979 = vsel %vm2945, %v2913, %v2978
      %v2980 = vsel %vm2947, %v2914, %v2979
      %v2981 = vsel %vm2949, %v2915, %v2980
      %v2982 = vsel %vm2951, %v2916, %v2981
      %v2983 = vsel %vm2953, %v2917, %v2982
      %v2984 = vsel %vm2955, %v2918, %v2983
      %v2985 = vsel %vm2943, %v2920, %v2919
      %v2986 = vsel %vm2945, %v2921, %v2985
      %v2987 = vsel %vm2947, %v2922, %v2986
      %v2988 = vsel %vm2949, %v2923, %v2987
      %v2989 = vsel %vm2951, %v2924, %v2988
      %v2990 = vsel %vm2953, %v2925, %v2989
      %v2991 = vsel %vm2955, %v2926, %v2990
      %v2992 = vsel %vm2943, %v2928, %v2927
      %v2993 = vsel %vm2945, %v2929, %v2992
      %v2994 = vsel %vm2947, %v2930, %v2993
      %v2995 = vsel %vm2949, %v2931, %v2994
      %v2996 = vsel %vm2951, %v2932, %v2995
      %v2997 = vsel %vm2953, %v2933, %v2996
      %v2998 = vsel %vm2955, %v2934, %v2997
      %v2999 = vsel %vm2943, %v2936, %v2935
      %v3000 = vsel %vm2945, %v2937, %v2999
      %v3001 = vsel %vm2947, %v2938, %v3000
      %v3002 = vsel %vm2949, %v2939, %v3001
      %v3003 = vsel %vm2951, %v2940, %v3002
      %v3004 = vsel %vm2953, %v2941, %v3003
      %v3005 = vsel %vm2955, %v2942, %v3004
      %v3006 = vpack.c.b16 %v2956, %v2956
      %v3007 = vpack.c.b16 %v2963, %v2963
      %v3008 = vpack.c.b16 %v2970, %v2970
      %v3009 = vpack.c.b16 %v2977, %v2977
      %v3010 = vpack.c.b16 %v2984, %v2984
      %v3011 = vpack.c.b16 %v2991, %v2991
      %v3012 = vpack.c.b16 %v2998, %v2998
      %v3013 = vpack.c.b16 %v3005, %v3005
      %v3022 = vcombine.low %v3006, %v3010
      %v3024 = vunpack.c.l.s4 1983009808
      %v3025 = vunpack.c.0.s8 %v3024
      %v3026 = vlaneseq
      %v3027 = vshrl.u32 %v3026, 7
      %v3028 = vsub.s32 %v3025, %v3027
      %v3029 = vrot.slane %v3022, %v3028
      %v3030 = vcombine.low %v3008, %v3012
      %v3032 = vunpack.c.l.s4 1983009808
      %v3033 = vunpack.c.0.s8 %v3032
      %v3034 = vlaneseq
      %v3035 = vshrl.u32 %v3034, 7
      %v3036 = vsub.s32 %v3033, %v3035
      %v3037 = vrot.slane %v3030, %v3036
      %v3038 = vcombine.low %v3029, %v3037
      %v3039 = vcombine.high %v3029, %v3037
      %v3041 = vunpack.c.l.s4 1934713408
      %v3042 = vunpack.c.0.s8 %v3041
      %v3043 = vlaneseq
      %v3044 = vshrl.u32 %v3043, 7
      %v3045 = vsub.s32 %v3042, %v3044
      %v3046 = vrot.slane %v3038, %v3045
      %v3048 = vunpack.c.l.s4 1934713408
      %v3049 = vunpack.c.0.s8 %v3048
      %v3050 = vlaneseq
      %v3051 = vshrl.u32 %v3050, 7
      %v3052 = vsub.s32 %v3049, %v3051
      %v3053 = vrot.slane %v3039, %v3052
      %v3054 = vcombine.high %v3046, 0
      %v3055 = vcombine.high %v3053, 0
      %v3056 = vcombine.low %v3007, %v3011
      %v3058 = vunpack.c.l.s4 1983009808
      %v3059 = vunpack.c.0.s8 %v3058
      %v3060 = vlaneseq
      %v3061 = vshrl.u32 %v3060, 7
      %v3062 = vsub.s32 %v3059, %v3061
      %v3063 = vrot.slane %v3056, %v3062
      %v3064 = vcombine.low %v3009, %v3013
      %v3066 = vunpack.c.l.s4 1983009808
      %v3067 = vunpack.c.0.s8 %v3066
      %v3068 = vlaneseq
      %v3069 = vshrl.u32 %v3068, 7
      %v3070 = vsub.s32 %v3067, %v3069
      %v3071 = vrot.slane %v3064, %v3070
      %v3072 = vcombine.low %v3063, %v3071
      %v3073 = vcombine.high %v3063, %v3071
      %v3075 = vunpack.c.l.s4 1934713408
      %v3076 = vunpack.c.0.s8 %v3075
      %v3077 = vlaneseq
      %v3078 = vshrl.u32 %v3077, 7
      %v3079 = vsub.s32 %v3076, %v3078
      %v3080 = vrot.slane %v3072, %v3079
      %v3082 = vunpack.c.l.s4 1934713408
      %v3083 = vunpack.c.0.s8 %v3082
      %v3084 = vlaneseq
      %v3085 = vshrl.u32 %v3084, 7
      %v3086 = vsub.s32 %v3083, %v3085
      %v3087 = vrot.slane %v3073, %v3086
      %v3088 = vcombine.high %v3080, 0
      %v3089 = vcombine.high %v3087, 0
      %v3092 = vpack.i.b16 %v3080, %v3046
      %v3093 = vshrl.u32 %v3046, 16
      %v3094 = vshrl.u32 %v3080, 16
      %v3095 = vpack.i.b16 %v3094, %v3093
      %v3098 = vpack.i.b16 %v3088, %v3054
      %v3099 = vshrl.u32 %v3054, 16
      %v3100 = vshrl.u32 %v3088, 16
      %v3101 = vpack.i.b16 %v3100, %v3099
      %v3104 = vpack.i.b16 %v3087, %v3053
      %v3105 = vshrl.u32 %v3053, 16
      %v3106 = vshrl.u32 %v3087, 16
      %v3107 = vpack.i.b16 %v3106, %v3105
      %v3110 = vpack.i.b16 %v3089, %v3055
      %v3111 = vshrl.u32 %v3055, 16
      %v3112 = vshrl.u32 %v3089, 16
      %v3113 = vpack.i.b16 %v3112, %v3111
      %3114 = vrot.lane.b32.xlu0 %v3095, 64
      %v3115 = vpop.permute.xlu0 %3114
      %3116 = vrot.lane.b32.xlu0 %v3101, 64
      %v3117 = vpop.permute.xlu0 %3116
      %3118 = vrot.lane.b32.xlu0 %v3107, 64
      %v3119 = vpop.permute.xlu0 %3118
      %3120 = vrot.lane.b32.xlu0 %v3113, 64
      %v3121 = vpop.permute.xlu0 %3120
      %v3124 = vsel %vm881, %v3092, %v3115
      %v3127 = vsel %vm881, %v3098, %v3117
      %v3130 = vsel %vm881, %v3104, %v3119
      %v3133 = vsel %vm881, %v3110, %v3121
      %v3138 = vunpack.c.l.b16 %v3124
      %v3139 = vunpack.c.l.b16 %v3127
      %v3140 = vunpack.c.l.b16 %v3130
      %v3141 = vunpack.c.l.b16 %v3133
      %v3142 = vpack.c.b16 %v3139, %v3138
      %v3143 = vpack.c.b16 %v3141, %v3140
      %3146 = vst [vmem:[%s192] sm:$0xff] %v3142
      %3147 = vst [vmem:[%s192 + $0x8] sm:$0xff] %v3143
      %p3148 = scmp.lt.s32.totalorder %s18, 1
      %s3149 = scalar_select %p3148, %s18, 1
      %p3150 = scmp.lt.s32.totalorder %s19, 0
      %s3151 = scalar_select %p3150, %s19, 0
      %s3152 = smul.addr %s3151, 4
      %s3153 = smul.addr %s3149, 4
      %s3154 = sadd.s32 %s3152, %s3153
      %s3155 = smul.addr %s3154, 4
      %s3156 = scalar_lea.vmem %s3, %s3155
      // Predicated region
      $region33: #{_lambda_.4} parent=31 // pred_check
        %p3157 = pneg %p114
      $region34: #{_lambda_.4} parent=31 // pred_check_branch
        %3159 = sbr.rel (%p3157) target = $region36
      $region35: #{_lambda_.4} parent=31 // pred_region
        _
      $region36: #{_lambda_.4} parent=31 // pred_fallthru
        _
    $region32: #{_lambda_.4} parent=5 // pred_fallthru
      _
    %p3160 = scmp.le.s32.totalorder 2, %s9
    // Predicated region
    $region37: #{_lambda_.4} parent=5 // pred_check
      %p3161 = pneg %p3160
    $region38: #{_lambda_.4} parent=5 // pred_check_branch
      %3163 = sbr.rel (%p3161) target = $region40
    $region39: #{_lambda_.4} parent=5 // pred_region
      %s3164 = ssub.s32 %s9, 2
      // Predicated region
      $region41: #{_lambda_.4} parent=39 // pred_check
        %p3165 = pneg %p120
      $region42: #{_lambda_.4} parent=39 // pred_check_branch
        %3167 = sbr.rel (%p3165) target = $region44
      $region43: #{_lambda_.4} parent=39 // pred_region
        %p3168 = scmp.lt.s32.totalorder %s20, 1
        %s3169 = scalar_select %p3168, %s20, 1
        %p3170 = scmp.lt.s32.totalorder %s21, 0
        %s3171 = scalar_select %p3170, %s21, 0
        %s3172 = smul.addr %s3171, 4
        %s3173 = smul.addr %s3169, 4
        %s3174 = sadd.s32 %s3172, %s3173
        %s3175 = smul.addr %s3174, 4
        %s3176 = scalar_lea.vmem %s3, %s3175
      $region44: #{_lambda_.4} parent=39 // pred_fallthru
        _
    $region40: #{_lambda_.4} parent=5 // pred_fallthru
      _
  $region6: #{_lambda_.4} parent=0 // loop_footer
    %s13 = sadd.s32 1, %s9
  $region7: #{_lambda_.4} parent=0 // loop_footer_branch
    %8 = sbr.rel target = $region3
  $region8: #{_lambda_.4} parent=0 // loop_exit
    _

</llo_original>
